<compile_context>
chip_gen: v6e
topology: v6e:2x2x1
jax: 0.10.0
libtpu: 0.0.40
codegen_flags: <defaults>
</compile_context>

<pallas_src>
import numpy as np
import jax
import jax.numpy as jnp
from jax import lax
from jax.experimental import pallas as pl
from jax.experimental.pallas import tpu as pltpu

# ---------------------------------------------------------------------------
# Static network geometry (spatial size fixed at 28x28 by fc1 = 16*7*7)
# ---------------------------------------------------------------------------
H = W = 28        # input image
HP = 32           # padded plane height (1 top pad + 3 bottom slack)
WE = 16           # width of each even/odd half of the 32-wide padded plane
C1 = 8            # conv1 out channels
M1 = H * WE       # 448 rows of the flattened conv1 plane
H2 = W2 = 14      # after pool1
WP2 = 16          # padded conv2 plane width
HP2 = 17          # padded conv2 plane height (1 + 14 + slack)
M2 = H2 * WP2     # 224 rows of the flattened conv2 plane
C2 = 16           # conv2 out channels
NH = 16           # fc1 hidden units
NO = 10           # classes


# ---------------------------------------------------------------------------
# Fused Pallas kernel: one image per grid step, everything resident in VMEM
# ---------------------------------------------------------------------------
def _mnist_fused_kernel(xe_ref, xo_ref, w1_ref, b1_ref, w2_ref, b2_ref,
                        fw1_ref, fb1_ref, fw2_ref, fb2_ref,
                        o_ref, xp2_ref, a2s_ref):
    # ---- conv1 (3x3, pad 1, Cin=1) + bias + ReLU + 2x2 maxpool --------------
    # xe/xo hold the even / odd columns of the zero-padded 32x32 input plane,
    # flattened to (HP*WE, 1): a conv tap is a single contiguous row-slice.
    acc_e = jnp.zeros((M1, C1), jnp.float32)   # conv output at even columns
    acc_o = jnp.zeros((M1, C1), jnp.float32)   # conv output at odd columns
    for kh in range(3):
        base = kh * WE
        e0 = xe_ref[0, pl.ds(base, M1), :]         # (448, 1)
        e1 = xe_ref[0, pl.ds(base + 1, M1), :]
        o0 = xo_ref[0, pl.ds(base, M1), :]
        o1 = xo_ref[0, pl.ds(base + 1, M1), :]
        wk0 = w1_ref[kh, 0]                        # (8,)
        wk1 = w1_ref[kh, 1]
        wk2 = w1_ref[kh, 2]
        acc_e = acc_e + e0 * wk0 + o0 * wk1 + e1 * wk2
        acc_o = acc_o + o0 * wk0 + e1 * wk1 + o1 * wk2
    bias1 = b1_ref[...]                            # (1, 8)
    relu_e = jnp.maximum(acc_e + bias1, 0.0)
    relu_o = jnp.maximum(acc_o + bias1, 0.0)
    wpool1 = jnp.maximum(relu_e, relu_o)           # maxpool along W, (448, 8)
    hpool1 = jnp.max(wpool1.reshape(H2, 2, WE, C1), axis=1)   # maxpool along H -> (14, 16, 8)
    # zero the garbage columns (j >= 14): they double as conv2 zero padding
    col = lax.broadcasted_iota(jnp.int32, (H2, WE, C1), 1)
    pool1 = jnp.where(col < W2, hpool1, 0.0)

    # ---- build the zero-padded conv2 input plane in VMEM --------------------
    # flat layout: row = padded_row * 16 + padded_col; image sits at rows/cols 1..14.
    xp2_ref[...] = jnp.zeros_like(xp2_ref)
    xp2_ref[pl.ds(WP2 + 1, M2), :] = pool1.reshape(M2, C1)

    # ---- conv2 (3x3, pad 1, Cin=8, Cout=16) + bias + ReLU -------------------
    acc2 = jnp.zeros((M2, C2), jnp.float32)
    for kh in range(3):
        for kw in range(3):
            tap = xp2_ref[pl.ds(kh * WP2 + kw, M2), :]          # (224, 8)
            acc2 = acc2 + jnp.dot(tap, w2_ref[kh * 3 + kw],
                                  preferred_element_type=jnp.float32)
    a2 = jnp.maximum(acc2 + b2_ref[...], 0.0)                   # (224, 16)

    # ---- 2x2 maxpool of conv2 output ----------------------------------------
    a2s_ref[pl.ds(M2, 8), :] = jnp.zeros((8, C2), jnp.float32)  # guard rows stay finite
    a2s_ref[pl.ds(0, M2), :] = a2
    wpool2 = jnp.maximum(a2s_ref[pl.ds(0, M2), :],
                         a2s_ref[pl.ds(1, M2), :])              # pairs along W (valid at even cols)
    pool2 = jnp.max(wpool2.reshape(7, 2, WP2, C2), axis=1)      # pairs along H -> (7, 16, 16)

    # ---- flatten + fc1 + ReLU + fc2  (dropout = identity, eval mode) --------
    # fw1_ref is pre-permuted / zero-padded to (16, 7, 16, 16): the PyTorch
    # (C,H,W) flatten order and the even-column selection cost nothing here.
    hidden = []
    for n in range(NH):
        partial = jnp.sum(jnp.sum(pool2 * fw1_ref[n], axis=0))  # scalar
        hidden.append(jnp.maximum(partial + fb1_ref[n], 0.0))
    out = fb2_ref[...]                                          # (1, 10)
    for n in range(NH):
        out = out + hidden[n] * fw2_ref[n, :]
    o_ref[0] = out


# ---------------------------------------------------------------------------
# One-time parameter re-layout (called once, outside the per-call hot path)
# ---------------------------------------------------------------------------
def prepare_params(p):
    w1 = jnp.transpose(p["cw1"][:, 0, :, :], (1, 2, 0))            # (3, 3, 8)  [kh, kw, cout]
    b1 = p["cb1"].reshape(1, C1)
    w2 = jnp.transpose(p["cw2"], (2, 3, 1, 0)).reshape(9, C1, C2)  # (tap, cin, cout)
    b2 = p["cb2"].reshape(1, C2)
    # fc1: PyTorch flatten order is (C, H, W); kernel layout is (i, wide_col, c)
    # with the value for output column m sitting at wide_col = 2*m.
    fw1_cij = p["fw1"].reshape(NH, C2, 7, 7)                       # (n, c, i, m)
    fw1 = jnp.zeros((NH, 7, WP2, C2), jnp.float32)
    fw1 = fw1.at[:, :, 0:14:2, :].set(jnp.transpose(fw1_cij, (0, 2, 3, 1)))
    fb1 = p["fb1"]                                                 # (16,) scalars -> SMEM
    fw2 = jnp.transpose(p["fw2"])                                  # (16, 10)
    fb2 = p["fb2"].reshape(1, NO)
    return {"w1": w1, "b1": b1, "w2": w2, "b2": b2,
            "fw1": fw1, "fb1": fb1, "fw2": fw2, "fb2": fb2}


# ---------------------------------------------------------------------------
# Forward wrapper: tiny glue (pad + even/odd split) + one pallas_call
# ---------------------------------------------------------------------------
def mnist_net_forward(x_nchw, prep):
    N = x_nchw.shape[0]
    x = x_nchw[:, 0, :, :]                                # (N, 28, 28), Cin = 1
    xp = jnp.pad(x, ((0, 0), (1, 3), (1, 3)))             # (N, 32, 32) zero-padded plane
    xe = xp[:, :, 0::2].reshape(N, HP * WE, 1)            # even padded columns, flattened
    xo = xp[:, :, 1::2].reshape(N, HP * WE, 1)            # odd padded columns, flattened

    out = pl.pallas_call(
        _mnist_fused_kernel,
        out_shape=jax.ShapeDtypeStruct((N, 1, NO), jnp.float32),
        grid=(N,),
        in_specs=[
            pl.BlockSpec((1, HP * WE, 1), lambda n: (n, 0, 0)),
            pl.BlockSpec((1, HP * WE, 1), lambda n: (n, 0, 0)),
            pl.BlockSpec((3, 3, C1), lambda n: (0, 0, 0)),
            pl.BlockSpec((1, C1), lambda n: (0, 0)),
            pl.BlockSpec((9, C1, C2), lambda n: (0, 0, 0)),
            pl.BlockSpec((1, C2), lambda n: (0, 0)),
            pl.BlockSpec((NH, 7, WP2, C2), lambda n: (0, 0, 0, 0)),
            pl.BlockSpec(memory_space=pltpu.MemorySpace.SMEM),     # fc1 bias scalars
            pl.BlockSpec((NH, NO), lambda n: (0, 0)),
            pl.BlockSpec((1, NO), lambda n: (0, 0)),
        ],
        out_specs=pl.BlockSpec((1, 1, NO), lambda n: (n, 0, 0)),
        scratch_shapes=[
            pltpu.VMEM((HP2 * WP2, C1), jnp.float32),   # padded conv2 input plane
            pltpu.VMEM((M2 + 8, C2), jnp.float32),      # conv2 activations (+ guard rows)
        ],
        compiler_params=pltpu.CompilerParams(dimension_semantics=("parallel",)),
    )(xe, xo, prep["w1"], prep["b1"], prep["w2"], prep["b2"],
      prep["fw1"], prep["fb1"], prep["fw2"], prep["fb2"])
    return out.reshape(N, NO)


# ---------------------------------------------------------------------------
# Deterministic parameter init (PyTorch-default-like uniform bounds)
# ---------------------------------------------------------------------------
def init_params(key):
    ks = jax.random.split(key, 8)

    def u(k, shape, fan_in):
        bound = 1.0 / np.sqrt(fan_in)
        return jax.random.uniform(k, shape, jnp.float32, -bound, bound)

    return {
        "cw1": u(ks[0], (8, 1, 3, 3), 1 * 9),
        "cb1": u(ks[1], (8,), 1 * 9),
        "cw2": u(ks[2], (16, 8, 3, 3), 8 * 9),
        "cb2": u(ks[3], (16,), 8 * 9),
        "fw1": u(ks[4], (16, 16 * 7 * 7), 16 * 7 * 7),
        "fb1": u(ks[5], (16,), 16 * 7 * 7),
        "fw2": u(ks[6], (10, 16), 16),
        "fb2": u(ks[7], (10,), 16),
    }


# ---------------------------------------------------------------------------
# Pure-JAX reference (same semantics as the PyTorch module in eval mode)
# ---------------------------------------------------------------------------
def reference_forward(x_nchw, p):
    def conv(x, w, b):
        y = lax.conv_general_dilated(x, w, window_strides=(1, 1),
                                     padding=((1, 1), (1, 1)),
                                     dimension_numbers=("NCHW", "OIHW", "NCHW"))
        return y + b[None, :, None, None]

    def pool(x):
        return lax.reduce_window(x, -jnp.inf, lax.max,
                                 (1, 1, 2, 2), (1, 1, 2, 2), "VALID")

    y = pool(jax.nn.relu(conv(x_nchw, p["cw1"], p["cb1"])))
    y = pool(jax.nn.relu(conv(y, p["cw2"], p["cb2"])))
    y = y.reshape(y.shape[0], -1)
    y = jax.nn.relu(y @ p["fw1"].T + p["fb1"])
    return y @ p["fw2"].T + p["fb2"]


if __name__ == "__main__":
    key = jax.random.PRNGKey(0)
    kx, kp = jax.random.split(key)
    # MNIST-shaped input (spatial size fixed at 28 by fc1 = 16*7*7), small batch.
    x = jax.random.normal(kx, (2, 1, 28, 28), jnp.float32)
    params = init_params(kp)
    prep = prepare_params(params)          # one-time weight re-layout

    fwd = jax.jit(mnist_net_forward)
    out = jax.block_until_ready(fwd(x, prep))
    assert out.shape == (2, 10)

    ref = reference_forward(x, params)
    np.testing.assert_allclose(np.asarray(out), np.asarray(ref), rtol=1e-4, atol=1e-4)

    print("KERNEL_OK")
</pallas_src>

<mosaic_0001>
module attributes {stable_mosaic.version = 11 : i64} {
  func.func @_mnist_fused_kernel(%arg0: i32, %arg1: memref<1x512x1xf32, #tpu.memory_space<vmem>>, %arg2: memref<1x512x1xf32, #tpu.memory_space<vmem>>, %arg3: memref<3x3x8xf32, #tpu.memory_space<vmem>>, %arg4: memref<1x8xf32, #tpu.memory_space<vmem>>, %arg5: memref<9x8x16xf32, #tpu.memory_space<vmem>>, %arg6: memref<1x16xf32, #tpu.memory_space<vmem>>, %arg7: memref<16x7x16x16xf32, #tpu.memory_space<vmem>>, %arg8: memref<16xf32, #tpu.memory_space<smem>>, %arg9: memref<16x10xf32, #tpu.memory_space<vmem>>, %arg10: memref<1x10xf32, #tpu.memory_space<vmem>>, %arg11: memref<1x1x10xf32, #tpu.memory_space<vmem>>, %arg12: memref<272x8xf32, #tpu.memory_space<vmem>>, %arg13: memref<232x16xf32, #tpu.memory_space<vmem>>) attributes {dimension_semantics = [#tpu.dimension_semantics<parallel>], iteration_bounds = array<i64: 2>, scalar_prefetch = 0 : i64, scratch_operands = 2 : i64, tpu.core_type = #tpu.core_type<tc>, window_params = [{transform_indices = @transform_0, window_bounds = array<i64: 1, 512, 1>}, {transform_indices = @transform_1, window_bounds = array<i64: 1, 512, 1>}, {pipeline_mode = #tpu.pipeline_mode<synchronous>, transform_indices = @transform_2, window_bounds = array<i64: 3, 3, 8>}, {pipeline_mode = #tpu.pipeline_mode<synchronous>, transform_indices = @transform_3, window_bounds = array<i64: 1, 8>}, {pipeline_mode = #tpu.pipeline_mode<synchronous>, transform_indices = @transform_4, window_bounds = array<i64: 9, 8, 16>}, {pipeline_mode = #tpu.pipeline_mode<synchronous>, transform_indices = @transform_5, window_bounds = array<i64: 1, 16>}, {pipeline_mode = #tpu.pipeline_mode<synchronous>, transform_indices = @transform_6, window_bounds = array<i64: 16, 7, 16, 16>}, {transform_indices = @transform_7, window_bounds = array<i64: 16>}, {pipeline_mode = #tpu.pipeline_mode<synchronous>, transform_indices = @transform_8, window_bounds = array<i64: 16, 10>}, {pipeline_mode = #tpu.pipeline_mode<synchronous>, transform_indices = @transform_9, window_bounds = array<i64: 1, 10>}, {transform_indices = @transform_10, window_bounds = array<i64: 1, 1, 10>}]} {
    %cst = arith.constant 0.000000e+00 : f32
    %0 = vector.broadcast %cst : f32 to vector<448x8xf32>
    %cst_0 = arith.constant 0.000000e+00 : f32
    %1 = vector.broadcast %cst_0 : f32 to vector<448x8xf32>
    %c0 = arith.constant 0 : index
    %c0_1 = arith.constant 0 : index
    %c0_2 = arith.constant 0 : index
    %2 = vector.load %arg1[%c0, %c0_1, %c0_2] : memref<1x512x1xf32, #tpu.memory_space<vmem>>, vector<1x448x1xf32>
    %3 = vector.shape_cast %2 : vector<1x448x1xf32> to vector<448x1xf32>
    %c0_3 = arith.constant 0 : index
    %c1 = arith.constant 1 : index
    %c0_4 = arith.constant 0 : index
    %4 = vector.load %arg1[%c0_3, %c1, %c0_4] : memref<1x512x1xf32, #tpu.memory_space<vmem>>, vector<1x448x1xf32>
    %5 = vector.shape_cast %4 : vector<1x448x1xf32> to vector<448x1xf32>
    %c0_5 = arith.constant 0 : index
    %c0_6 = arith.constant 0 : index
    %c0_7 = arith.constant 0 : index
    %6 = vector.load %arg2[%c0_5, %c0_6, %c0_7] : memref<1x512x1xf32, #tpu.memory_space<vmem>>, vector<1x448x1xf32>
    %7 = vector.shape_cast %6 : vector<1x448x1xf32> to vector<448x1xf32>
    %c0_8 = arith.constant 0 : index
    %c1_9 = arith.constant 1 : index
    %c0_10 = arith.constant 0 : index
    %8 = vector.load %arg2[%c0_8, %c1_9, %c0_10] : memref<1x512x1xf32, #tpu.memory_space<vmem>>, vector<1x448x1xf32>
    %9 = vector.shape_cast %8 : vector<1x448x1xf32> to vector<448x1xf32>
    %c0_11 = arith.constant 0 : index
    %c0_12 = arith.constant 0 : index
    %c0_13 = arith.constant 0 : index
    %10 = vector.load %arg3[%c0_11, %c0_12, %c0_13] : memref<3x3x8xf32, #tpu.memory_space<vmem>>, vector<1x1x8xf32>
    %11 = vector.shape_cast %10 : vector<1x1x8xf32> to vector<8xf32>
    %c0_14 = arith.constant 0 : index
    %c1_15 = arith.constant 1 : index
    %c0_16 = arith.constant 0 : index
    %12 = vector.load %arg3[%c0_14, %c1_15, %c0_16] : memref<3x3x8xf32, #tpu.memory_space<vmem>>, vector<1x1x8xf32>
    %13 = vector.shape_cast %12 : vector<1x1x8xf32> to vector<8xf32>
    %c0_17 = arith.constant 0 : index
    %c2 = arith.constant 2 : index
    %c0_18 = arith.constant 0 : index
    %14 = vector.load %arg3[%c0_17, %c2, %c0_18] : memref<3x3x8xf32, #tpu.memory_space<vmem>>, vector<1x1x8xf32>
    %15 = vector.shape_cast %14 : vector<1x1x8xf32> to vector<8xf32>
    %16 = vector.shape_cast %11 : vector<8xf32> to vector<1x8xf32>
    %17 = vector.broadcast %3 : vector<448x1xf32> to vector<448x8xf32>
    %18 = vector.broadcast %16 : vector<1x8xf32> to vector<448x8xf32>
    %19 = arith.mulf %17, %18 : vector<448x8xf32>
    %20 = arith.addf %0, %19 : vector<448x8xf32>
    %21 = vector.shape_cast %13 : vector<8xf32> to vector<1x8xf32>
    %22 = vector.broadcast %7 : vector<448x1xf32> to vector<448x8xf32>
    %23 = vector.broadcast %21 : vector<1x8xf32> to vector<448x8xf32>
    %24 = arith.mulf %22, %23 : vector<448x8xf32>
    %25 = arith.addf %20, %24 : vector<448x8xf32>
    %26 = vector.shape_cast %15 : vector<8xf32> to vector<1x8xf32>
    %27 = vector.broadcast %5 : vector<448x1xf32> to vector<448x8xf32>
    %28 = vector.broadcast %26 : vector<1x8xf32> to vector<448x8xf32>
    %29 = arith.mulf %27, %28 : vector<448x8xf32>
    %30 = arith.addf %25, %29 : vector<448x8xf32>
    %31 = vector.shape_cast %11 : vector<8xf32> to vector<1x8xf32>
    %32 = vector.broadcast %7 : vector<448x1xf32> to vector<448x8xf32>
    %33 = vector.broadcast %31 : vector<1x8xf32> to vector<448x8xf32>
    %34 = arith.mulf %32, %33 : vector<448x8xf32>
    %35 = arith.addf %1, %34 : vector<448x8xf32>
    %36 = vector.shape_cast %13 : vector<8xf32> to vector<1x8xf32>
    %37 = vector.broadcast %5 : vector<448x1xf32> to vector<448x8xf32>
    %38 = vector.broadcast %36 : vector<1x8xf32> to vector<448x8xf32>
    %39 = arith.mulf %37, %38 : vector<448x8xf32>
    %40 = arith.addf %35, %39 : vector<448x8xf32>
    %41 = vector.shape_cast %15 : vector<8xf32> to vector<1x8xf32>
    %42 = vector.broadcast %9 : vector<448x1xf32> to vector<448x8xf32>
    %43 = vector.broadcast %41 : vector<1x8xf32> to vector<448x8xf32>
    %44 = arith.mulf %42, %43 : vector<448x8xf32>
    %45 = arith.addf %40, %44 : vector<448x8xf32>
    %c0_19 = arith.constant 0 : index
    %c16 = arith.constant 16 : index
    %c0_20 = arith.constant 0 : index
    %46 = vector.load %arg1[%c0_19, %c16, %c0_20] : memref<1x512x1xf32, #tpu.memory_space<vmem>>, vector<1x448x1xf32>
    %47 = vector.shape_cast %46 : vector<1x448x1xf32> to vector<448x1xf32>
    %c0_21 = arith.constant 0 : index
    %c17 = arith.constant 17 : index
    %c0_22 = arith.constant 0 : index
    %48 = vector.load %arg1[%c0_21, %c17, %c0_22] : memref<1x512x1xf32, #tpu.memory_space<vmem>>, vector<1x448x1xf32>
    %49 = vector.shape_cast %48 : vector<1x448x1xf32> to vector<448x1xf32>
    %c0_23 = arith.constant 0 : index
    %c16_24 = arith.constant 16 : index
    %c0_25 = arith.constant 0 : index
    %50 = vector.load %arg2[%c0_23, %c16_24, %c0_25] : memref<1x512x1xf32, #tpu.memory_space<vmem>>, vector<1x448x1xf32>
    %51 = vector.shape_cast %50 : vector<1x448x1xf32> to vector<448x1xf32>
    %c0_26 = arith.constant 0 : index
    %c17_27 = arith.constant 17 : index
    %c0_28 = arith.constant 0 : index
    %52 = vector.load %arg2[%c0_26, %c17_27, %c0_28] : memref<1x512x1xf32, #tpu.memory_space<vmem>>, vector<1x448x1xf32>
    %53 = vector.shape_cast %52 : vector<1x448x1xf32> to vector<448x1xf32>
    %c1_29 = arith.constant 1 : index
    %c0_30 = arith.constant 0 : index
    %c0_31 = arith.constant 0 : index
    %54 = vector.load %arg3[%c1_29, %c0_30, %c0_31] : memref<3x3x8xf32, #tpu.memory_space<vmem>>, vector<1x1x8xf32>
    %55 = vector.shape_cast %54 : vector<1x1x8xf32> to vector<8xf32>
    %c1_32 = arith.constant 1 : index
    %c1_33 = arith.constant 1 : index
    %c0_34 = arith.constant 0 : index
    %56 = vector.load %arg3[%c1_32, %c1_33, %c0_34] : memref<3x3x8xf32, #tpu.memory_space<vmem>>, vector<1x1x8xf32>
    %57 = vector.shape_cast %56 : vector<1x1x8xf32> to vector<8xf32>
    %c1_35 = arith.constant 1 : index
    %c2_36 = arith.constant 2 : index
    %c0_37 = arith.constant 0 : index
    %58 = vector.load %arg3[%c1_35, %c2_36, %c0_37] : memref<3x3x8xf32, #tpu.memory_space<vmem>>, vector<1x1x8xf32>
    %59 = vector.shape_cast %58 : vector<1x1x8xf32> to vector<8xf32>
    %60 = vector.shape_cast %55 : vector<8xf32> to vector<1x8xf32>
    %61 = vector.broadcast %47 : vector<448x1xf32> to vector<448x8xf32>
    %62 = vector.broadcast %60 : vector<1x8xf32> to vector<448x8xf32>
    %63 = arith.mulf %61, %62 : vector<448x8xf32>
    %64 = arith.addf %30, %63 : vector<448x8xf32>
    %65 = vector.shape_cast %57 : vector<8xf32> to vector<1x8xf32>
    %66 = vector.broadcast %51 : vector<448x1xf32> to vector<448x8xf32>
    %67 = vector.broadcast %65 : vector<1x8xf32> to vector<448x8xf32>
    %68 = arith.mulf %66, %67 : vector<448x8xf32>
    %69 = arith.addf %64, %68 : vector<448x8xf32>
    %70 = vector.shape_cast %59 : vector<8xf32> to vector<1x8xf32>
    %71 = vector.broadcast %49 : vector<448x1xf32> to vector<448x8xf32>
    %72 = vector.broadcast %70 : vector<1x8xf32> to vector<448x8xf32>
    %73 = arith.mulf %71, %72 : vector<448x8xf32>
    %74 = arith.addf %69, %73 : vector<448x8xf32>
    %75 = vector.shape_cast %55 : vector<8xf32> to vector<1x8xf32>
    %76 = vector.broadcast %51 : vector<448x1xf32> to vector<448x8xf32>
    %77 = vector.broadcast %75 : vector<1x8xf32> to vector<448x8xf32>
    %78 = arith.mulf %76, %77 : vector<448x8xf32>
    %79 = arith.addf %45, %78 : vector<448x8xf32>
    %80 = vector.shape_cast %57 : vector<8xf32> to vector<1x8xf32>
    %81 = vector.broadcast %49 : vector<448x1xf32> to vector<448x8xf32>
    %82 = vector.broadcast %80 : vector<1x8xf32> to vector<448x8xf32>
    %83 = arith.mulf %81, %82 : vector<448x8xf32>
    %84 = arith.addf %79, %83 : vector<448x8xf32>
    %85 = vector.shape_cast %59 : vector<8xf32> to vector<1x8xf32>
    %86 = vector.broadcast %53 : vector<448x1xf32> to vector<448x8xf32>
    %87 = vector.broadcast %85 : vector<1x8xf32> to vector<448x8xf32>
    %88 = arith.mulf %86, %87 : vector<448x8xf32>
    %89 = arith.addf %84, %88 : vector<448x8xf32>
    %c0_38 = arith.constant 0 : index
    %c32 = arith.constant 32 : index
    %c0_39 = arith.constant 0 : index
    %90 = vector.load %arg1[%c0_38, %c32, %c0_39] : memref<1x512x1xf32, #tpu.memory_space<vmem>>, vector<1x448x1xf32>
    %91 = vector.shape_cast %90 : vector<1x448x1xf32> to vector<448x1xf32>
    %c0_40 = arith.constant 0 : index
    %c33 = arith.constant 33 : index
    %c0_41 = arith.constant 0 : index
    %92 = vector.load %arg1[%c0_40, %c33, %c0_41] : memref<1x512x1xf32, #tpu.memory_space<vmem>>, vector<1x448x1xf32>
    %93 = vector.shape_cast %92 : vector<1x448x1xf32> to vector<448x1xf32>
    %c0_42 = arith.constant 0 : index
    %c32_43 = arith.constant 32 : index
    %c0_44 = arith.constant 0 : index
    %94 = vector.load %arg2[%c0_42, %c32_43, %c0_44] : memref<1x512x1xf32, #tpu.memory_space<vmem>>, vector<1x448x1xf32>
    %95 = vector.shape_cast %94 : vector<1x448x1xf32> to vector<448x1xf32>
    %c0_45 = arith.constant 0 : index
    %c33_46 = arith.constant 33 : index
    %c0_47 = arith.constant 0 : index
    %96 = vector.load %arg2[%c0_45, %c33_46, %c0_47] : memref<1x512x1xf32, #tpu.memory_space<vmem>>, vector<1x448x1xf32>
    %97 = vector.shape_cast %96 : vector<1x448x1xf32> to vector<448x1xf32>
    %c2_48 = arith.constant 2 : index
    %c0_49 = arith.constant 0 : index
    %c0_50 = arith.constant 0 : index
    %98 = vector.load %arg3[%c2_48, %c0_49, %c0_50] : memref<3x3x8xf32, #tpu.memory_space<vmem>>, vector<1x1x8xf32>
    %99 = vector.shape_cast %98 : vector<1x1x8xf32> to vector<8xf32>
    %c2_51 = arith.constant 2 : index
    %c1_52 = arith.constant 1 : index
    %c0_53 = arith.constant 0 : index
    %100 = vector.load %arg3[%c2_51, %c1_52, %c0_53] : memref<3x3x8xf32, #tpu.memory_space<vmem>>, vector<1x1x8xf32>
    %101 = vector.shape_cast %100 : vector<1x1x8xf32> to vector<8xf32>
    %c2_54 = arith.constant 2 : index
    %c2_55 = arith.constant 2 : index
    %c0_56 = arith.constant 0 : index
    %102 = vector.load %arg3[%c2_54, %c2_55, %c0_56] : memref<3x3x8xf32, #tpu.memory_space<vmem>>, vector<1x1x8xf32>
    %103 = vector.shape_cast %102 : vector<1x1x8xf32> to vector<8xf32>
    %104 = vector.shape_cast %99 : vector<8xf32> to vector<1x8xf32>
    %105 = vector.broadcast %91 : vector<448x1xf32> to vector<448x8xf32>
    %106 = vector.broadcast %104 : vector<1x8xf32> to vector<448x8xf32>
    %107 = arith.mulf %105, %106 : vector<448x8xf32>
    %108 = arith.addf %74, %107 : vector<448x8xf32>
    %109 = vector.shape_cast %101 : vector<8xf32> to vector<1x8xf32>
    %110 = vector.broadcast %95 : vector<448x1xf32> to vector<448x8xf32>
    %111 = vector.broadcast %109 : vector<1x8xf32> to vector<448x8xf32>
    %112 = arith.mulf %110, %111 : vector<448x8xf32>
    %113 = arith.addf %108, %112 : vector<448x8xf32>
    %114 = vector.shape_cast %103 : vector<8xf32> to vector<1x8xf32>
    %115 = vector.broadcast %93 : vector<448x1xf32> to vector<448x8xf32>
    %116 = vector.broadcast %114 : vector<1x8xf32> to vector<448x8xf32>
    %117 = arith.mulf %115, %116 : vector<448x8xf32>
    %118 = arith.addf %113, %117 : vector<448x8xf32>
    %119 = vector.shape_cast %99 : vector<8xf32> to vector<1x8xf32>
    %120 = vector.broadcast %95 : vector<448x1xf32> to vector<448x8xf32>
    %121 = vector.broadcast %119 : vector<1x8xf32> to vector<448x8xf32>
    %122 = arith.mulf %120, %121 : vector<448x8xf32>
    %123 = arith.addf %89, %122 : vector<448x8xf32>
    %124 = vector.shape_cast %101 : vector<8xf32> to vector<1x8xf32>
    %125 = vector.broadcast %93 : vector<448x1xf32> to vector<448x8xf32>
    %126 = vector.broadcast %124 : vector<1x8xf32> to vector<448x8xf32>
    %127 = arith.mulf %125, %126 : vector<448x8xf32>
    %128 = arith.addf %123, %127 : vector<448x8xf32>
    %129 = vector.shape_cast %103 : vector<8xf32> to vector<1x8xf32>
    %130 = vector.broadcast %97 : vector<448x1xf32> to vector<448x8xf32>
    %131 = vector.broadcast %129 : vector<1x8xf32> to vector<448x8xf32>
    %132 = arith.mulf %130, %131 : vector<448x8xf32>
    %133 = arith.addf %128, %132 : vector<448x8xf32>
    %c0_57 = arith.constant 0 : index
    %c0_58 = arith.constant 0 : index
    %134 = vector.load %arg4[%c0_57, %c0_58] : memref<1x8xf32, #tpu.memory_space<vmem>>, vector<1x8xf32>
    %135 = vector.broadcast %134 : vector<1x8xf32> to vector<448x8xf32>
    %136 = arith.addf %118, %135 : vector<448x8xf32>
    %cst_59 = arith.constant 0.000000e+00 : f32
    %137 = vector.broadcast %cst_59 : f32 to vector<448x8xf32>
    %138 = arith.maximumf %136, %137 : vector<448x8xf32>
    %139 = vector.broadcast %134 : vector<1x8xf32> to vector<448x8xf32>
    %140 = arith.addf %133, %139 : vector<448x8xf32>
    %cst_60 = arith.constant 0.000000e+00 : f32
    %141 = vector.broadcast %cst_60 : f32 to vector<448x8xf32>
    %142 = arith.maximumf %140, %141 : vector<448x8xf32>
    %143 = arith.maximumf %138, %142 : vector<448x8xf32>
    %144 = vector.shape_cast %143 : vector<448x8xf32> to vector<14x2x16x8xf32>
    %cst_61 = arith.constant dense<0xFF800000> : vector<14x16x8xf32>
    %145 = vector.multi_reduction <maximumf>, %144, %cst_61 [1] : vector<14x2x16x8xf32> to vector<14x16x8xf32>
    %146 = tpu.iota {dimensions = array<i32: 1>} : vector<14x16x8xi32>
    %c14_i32 = arith.constant 14 : i32
    %147 = vector.broadcast %c14_i32 : i32 to vector<14x16x8xi32>
    %148 = arith.cmpi slt, %146, %147 : vector<14x16x8xi32>
    %cst_62 = arith.constant 0.000000e+00 : f32
    %149 = vector.broadcast %cst_62 : f32 to vector<14x16x8xf32>
    %150 = arith.select %148, %145, %149 : vector<14x16x8xi1>, vector<14x16x8xf32>
    %cst_63 = arith.constant 0.000000e+00 : f32
    %151 = vector.broadcast %cst_63 : f32 to vector<272x8xf32>
    %c0_64 = arith.constant 0 : index
    %c0_65 = arith.constant 0 : index
    %152 = vector.load %arg12[%c0_64, %c0_65] : memref<272x8xf32, #tpu.memory_space<vmem>>, vector<272x8xf32>
    tpu.vector_store %arg12[%c0_64, %c0_65], %151 {strides = array<i32>} : memref<272x8xf32, #tpu.memory_space<vmem>>, vector<272x8xf32>,
    %153 = vector.shape_cast %150 : vector<14x16x8xf32> to vector<224x8xf32>
    %c17_66 = arith.constant 17 : index
    %c0_67 = arith.constant 0 : index
    %154 = vector.load %arg12[%c17_66, %c0_67] : memref<272x8xf32, #tpu.memory_space<vmem>>, vector<224x8xf32>
    tpu.vector_store %arg12[%c17_66, %c0_67], %153 {strides = array<i32>} : memref<272x8xf32, #tpu.memory_space<vmem>>, vector<224x8xf32>,
    %cst_68 = arith.constant 0.000000e+00 : f32
    %155 = vector.broadcast %cst_68 : f32 to vector<224x16xf32>
    %c0_69 = arith.constant 0 : index
    %c0_70 = arith.constant 0 : index
    %156 = vector.load %arg12[%c0_69, %c0_70] : memref<272x8xf32, #tpu.memory_space<vmem>>, vector<224x8xf32>
    %c0_71 = arith.constant 0 : index
    %c0_72 = arith.constant 0 : index
    %c0_73 = arith.constant 0 : index
    %157 = vector.load %arg5[%c0_71, %c0_72, %c0_73] : memref<9x8x16xf32, #tpu.memory_space<vmem>>, vector<1x8x16xf32>
    %158 = vector.shape_cast %157 : vector<1x8x16xf32> to vector<8x16xf32>
    %cst_74 = arith.constant dense<0.000000e+00> : vector<224x16xf32>
    %159 = tpu.matmul %156, %158, %cst_74 {dimension_numbers = #tpu.dot_dimension_numbers<[1], [0], [0], [1], [0, 0, 1, 1], [], []>} : vector<224x8xf32>, vector<8x16xf32>, vector<224x16xf32> -> vector<224x16xf32>
    %160 = arith.addf %155, %159 : vector<224x16xf32>
    %c1_75 = arith.constant 1 : index
    %c0_76 = arith.constant 0 : index
    %161 = vector.load %arg12[%c1_75, %c0_76] : memref<272x8xf32, #tpu.memory_space<vmem>>, vector<224x8xf32>
    %c1_77 = arith.constant 1 : index
    %c0_78 = arith.constant 0 : index
    %c0_79 = arith.constant 0 : index
    %162 = vector.load %arg5[%c1_77, %c0_78, %c0_79] : memref<9x8x16xf32, #tpu.memory_space<vmem>>, vector<1x8x16xf32>
    %163 = vector.shape_cast %162 : vector<1x8x16xf32> to vector<8x16xf32>
    %cst_80 = arith.constant dense<0.000000e+00> : vector<224x16xf32>
    %164 = tpu.matmul %161, %163, %cst_80 {dimension_numbers = #tpu.dot_dimension_numbers<[1], [0], [0], [1], [0, 0, 1, 1], [], []>} : vector<224x8xf32>, vector<8x16xf32>, vector<224x16xf32> -> vector<224x16xf32>
    %165 = arith.addf %160, %164 : vector<224x16xf32>
    %c2_81 = arith.constant 2 : index
    %c0_82 = arith.constant 0 : index
    %166 = vector.load %arg12[%c2_81, %c0_82] : memref<272x8xf32, #tpu.memory_space<vmem>>, vector<224x8xf32>
    %c2_83 = arith.constant 2 : index
    %c0_84 = arith.constant 0 : index
    %c0_85 = arith.constant 0 : index
    %167 = vector.load %arg5[%c2_83, %c0_84, %c0_85] : memref<9x8x16xf32, #tpu.memory_space<vmem>>, vector<1x8x16xf32>
    %168 = vector.shape_cast %167 : vector<1x8x16xf32> to vector<8x16xf32>
    %cst_86 = arith.constant dense<0.000000e+00> : vector<224x16xf32>
    %169 = tpu.matmul %166, %168, %cst_86 {dimension_numbers = #tpu.dot_dimension_numbers<[1], [0], [0], [1], [0, 0, 1, 1], [], []>} : vector<224x8xf32>, vector<8x16xf32>, vector<224x16xf32> -> vector<224x16xf32>
    %170 = arith.addf %165, %169 : vector<224x16xf32>
    %c16_87 = arith.constant 16 : index
    %c0_88 = arith.constant 0 : index
    %171 = vector.load %arg12[%c16_87, %c0_88] : memref<272x8xf32, #tpu.memory_space<vmem>>, vector<224x8xf32>
    %c3 = arith.constant 3 : index
    %c0_89 = arith.constant 0 : index
    %c0_90 = arith.constant 0 : index
    %172 = vector.load %arg5[%c3, %c0_89, %c0_90] : memref<9x8x16xf32, #tpu.memory_space<vmem>>, vector<1x8x16xf32>
    %173 = vector.shape_cast %172 : vector<1x8x16xf32> to vector<8x16xf32>
    %cst_91 = arith.constant dense<0.000000e+00> : vector<224x16xf32>
    %174 = tpu.matmul %171, %173, %cst_91 {dimension_numbers = #tpu.dot_dimension_numbers<[1], [0], [0], [1], [0, 0, 1, 1], [], []>} : vector<224x8xf32>, vector<8x16xf32>, vector<224x16xf32> -> vector<224x16xf32>
    %175 = arith.addf %170, %174 : vector<224x16xf32>
    %c17_92 = arith.constant 17 : index
    %c0_93 = arith.constant 0 : index
    %176 = vector.load %arg12[%c17_92, %c0_93] : memref<272x8xf32, #tpu.memory_space<vmem>>, vector<224x8xf32>
    %c4 = arith.constant 4 : index
    %c0_94 = arith.constant 0 : index
    %c0_95 = arith.constant 0 : index
    %177 = vector.load %arg5[%c4, %c0_94, %c0_95] : memref<9x8x16xf32, #tpu.memory_space<vmem>>, vector<1x8x16xf32>
    %178 = vector.shape_cast %177 : vector<1x8x16xf32> to vector<8x16xf32>
    %cst_96 = arith.constant dense<0.000000e+00> : vector<224x16xf32>
    %179 = tpu.matmul %176, %178, %cst_96 {dimension_numbers = #tpu.dot_dimension_numbers<[1], [0], [0], [1], [0, 0, 1, 1], [], []>} : vector<224x8xf32>, vector<8x16xf32>, vector<224x16xf32> -> vector<224x16xf32>
    %180 = arith.addf %175, %179 : vector<224x16xf32>
    %c18 = arith.constant 18 : index
    %c0_97 = arith.constant 0 : index
    %181 = vector.load %arg12[%c18, %c0_97] : memref<272x8xf32, #tpu.memory_space<vmem>>, vector<224x8xf32>
    %c5 = arith.constant 5 : index
    %c0_98 = arith.constant 0 : index
    %c0_99 = arith.constant 0 : index
    %182 = vector.load %arg5[%c5, %c0_98, %c0_99] : memref<9x8x16xf32, #tpu.memory_space<vmem>>, vector<1x8x16xf32>
    %183 = vector.shape_cast %182 : vector<1x8x16xf32> to vector<8x16xf32>
    %cst_100 = arith.constant dense<0.000000e+00> : vector<224x16xf32>
    %184 = tpu.matmul %181, %183, %cst_100 {dimension_numbers = #tpu.dot_dimension_numbers<[1], [0], [0], [1], [0, 0, 1, 1], [], []>} : vector<224x8xf32>, vector<8x16xf32>, vector<224x16xf32> -> vector<224x16xf32>
    %185 = arith.addf %180, %184 : vector<224x16xf32>
    %c32_101 = arith.constant 32 : index
    %c0_102 = arith.constant 0 : index
    %186 = vector.load %arg12[%c32_101, %c0_102] : memref<272x8xf32, #tpu.memory_space<vmem>>, vector<224x8xf32>
    %c6 = arith.constant 6 : index
    %c0_103 = arith.constant 0 : index
    %c0_104 = arith.constant 0 : index
    %187 = vector.load %arg5[%c6, %c0_103, %c0_104] : memref<9x8x16xf32, #tpu.memory_space<vmem>>, vector<1x8x16xf32>
    %188 = vector.shape_cast %187 : vector<1x8x16xf32> to vector<8x16xf32>
    %cst_105 = arith.constant dense<0.000000e+00> : vector<224x16xf32>
    %189 = tpu.matmul %186, %188, %cst_105 {dimension_numbers = #tpu.dot_dimension_numbers<[1], [0], [0], [1], [0, 0, 1, 1], [], []>} : vector<224x8xf32>, vector<8x16xf32>, vector<224x16xf32> -> vector<224x16xf32>
    %190 = arith.addf %185, %189 : vector<224x16xf32>
    %c33_106 = arith.constant 33 : index
    %c0_107 = arith.constant 0 : index
    %191 = vector.load %arg12[%c33_106, %c0_107] : memref<272x8xf32, #tpu.memory_space<vmem>>, vector<224x8xf32>
    %c7 = arith.constant 7 : index
    %c0_108 = arith.constant 0 : index
    %c0_109 = arith.constant 0 : index
    %192 = vector.load %arg5[%c7, %c0_108, %c0_109] : memref<9x8x16xf32, #tpu.memory_space<vmem>>, vector<1x8x16xf32>
    %193 = vector.shape_cast %192 : vector<1x8x16xf32> to vector<8x16xf32>
    %cst_110 = arith.constant dense<0.000000e+00> : vector<224x16xf32>
    %194 = tpu.matmul %191, %193, %cst_110 {dimension_numbers = #tpu.dot_dimension_numbers<[1], [0], [0], [1], [0, 0, 1, 1], [], []>} : vector<224x8xf32>, vector<8x16xf32>, vector<224x16xf32> -> vector<224x16xf32>
    %195 = arith.addf %190, %194 : vector<224x16xf32>
    %c34 = arith.constant 34 : index
    %c0_111 = arith.constant 0 : index
    %196 = vector.load %arg12[%c34, %c0_111] : memref<272x8xf32, #tpu.memory_space<vmem>>, vector<224x8xf32>
    %c8 = arith.constant 8 : index
    %c0_112 = arith.constant 0 : index
    %c0_113 = arith.constant 0 : index
    %197 = vector.load %arg5[%c8, %c0_112, %c0_113] : memref<9x8x16xf32, #tpu.memory_space<vmem>>, vector<1x8x16xf32>
    %198 = vector.shape_cast %197 : vector<1x8x16xf32> to vector<8x16xf32>
    %cst_114 = arith.constant dense<0.000000e+00> : vector<224x16xf32>
    %199 = tpu.matmul %196, %198, %cst_114 {dimension_numbers = #tpu.dot_dimension_numbers<[1], [0], [0], [1], [0, 0, 1, 1], [], []>} : vector<224x8xf32>, vector<8x16xf32>, vector<224x16xf32> -> vector<224x16xf32>
    %200 = arith.addf %195, %199 : vector<224x16xf32>
    %c0_115 = arith.constant 0 : index
    %c0_116 = arith.constant 0 : index
    %201 = vector.load %arg6[%c0_115, %c0_116] : memref<1x16xf32, #tpu.memory_space<vmem>>, vector<1x16xf32>
    %202 = vector.broadcast %201 : vector<1x16xf32> to vector<224x16xf32>
    %203 = arith.addf %200, %202 : vector<224x16xf32>
    %cst_117 = arith.constant 0.000000e+00 : f32
    %204 = vector.broadcast %cst_117 : f32 to vector<224x16xf32>
    %205 = arith.maximumf %203, %204 : vector<224x16xf32>
    %cst_118 = arith.constant 0.000000e+00 : f32
    %206 = vector.broadcast %cst_118 : f32 to vector<8x16xf32>
    %c224 = arith.constant 224 : index
    %c0_119 = arith.constant 0 : index
    %207 = vector.load %arg13[%c224, %c0_119] : memref<232x16xf32, #tpu.memory_space<vmem>>, vector<8x16xf32>
    tpu.vector_store %arg13[%c224, %c0_119], %206 {strides = array<i32>} : memref<232x16xf32, #tpu.memory_space<vmem>>, vector<8x16xf32>,
    %c0_120 = arith.constant 0 : index
    %c0_121 = arith.constant 0 : index
    %208 = vector.load %arg13[%c0_120, %c0_121] : memref<232x16xf32, #tpu.memory_space<vmem>>, vector<224x16xf32>
    tpu.vector_store %arg13[%c0_120, %c0_121], %205 {strides = array<i32>} : memref<232x16xf32, #tpu.memory_space<vmem>>, vector<224x16xf32>,
    %c0_122 = arith.constant 0 : index
    %c0_123 = arith.constant 0 : index
    %209 = vector.load %arg13[%c0_122, %c0_123] : memref<232x16xf32, #tpu.memory_space<vmem>>, vector<224x16xf32>
    %c1_124 = arith.constant 1 : index
    %c0_125 = arith.constant 0 : index
    %210 = vector.load %arg13[%c1_124, %c0_125] : memref<232x16xf32, #tpu.memory_space<vmem>>, vector<224x16xf32>
    %211 = arith.maximumf %209, %210 : vector<224x16xf32>
    %212 = vector.shape_cast %211 : vector<224x16xf32> to vector<7x2x16x16xf32>
    %cst_126 = arith.constant dense<0xFF800000> : vector<7x16x16xf32>
    %213 = vector.multi_reduction <maximumf>, %212, %cst_126 [1] : vector<7x2x16x16xf32> to vector<7x16x16xf32>
    %c0_127 = arith.constant 0 : index
    %c0_128 = arith.constant 0 : index
    %c0_129 = arith.constant 0 : index
    %c0_130 = arith.constant 0 : index
    %214 = vector.load %arg7[%c0_127, %c0_128, %c0_129, %c0_130] : memref<16x7x16x16xf32, #tpu.memory_space<vmem>>, vector<1x7x16x16xf32>
    %215 = vector.shape_cast %214 : vector<1x7x16x16xf32> to vector<7x16x16xf32>
    %216 = arith.mulf %213, %215 : vector<7x16x16xf32>
    %cst_131 = arith.constant dense<0.000000e+00> : vector<16x16xf32>
    %217 = vector.multi_reduction <add>, %216, %cst_131 [0] : vector<7x16x16xf32> to vector<16x16xf32>
    %218 = vector.shape_cast %217 : vector<16x16xf32> to vector<1x16x16xf32>
    %cst_132 = arith.constant dense<0.000000e+00> : vector<1xf32>
    %219 = vector.multi_reduction <add>, %218, %cst_132 [1, 2] : vector<1x16x16xf32> to vector<1xf32>
    %220 = vector.shape_cast %219 : vector<1xf32> to vector<1x1x1xf32>
    %221 = vector.extract %220[0, 0, 0] : f32 from vector<1x1x1xf32>
    %c0_133 = arith.constant 0 : index
    %222 = memref.load %arg8[%c0_133] : memref<16xf32, #tpu.memory_space<smem>>
    %223 = arith.addf %221, %222 : f32
    %cst_134 = arith.constant 0.000000e+00 : f32
    %224 = arith.maximumf %223, %cst_134 : f32
    %c1_135 = arith.constant 1 : index
    %c0_136 = arith.constant 0 : index
    %c0_137 = arith.constant 0 : index
    %c0_138 = arith.constant 0 : index
    %225 = vector.load %arg7[%c1_135, %c0_136, %c0_137, %c0_138] : memref<16x7x16x16xf32, #tpu.memory_space<vmem>>, vector<1x7x16x16xf32>
    %226 = vector.shape_cast %225 : vector<1x7x16x16xf32> to vector<7x16x16xf32>
    %227 = arith.mulf %213, %226 : vector<7x16x16xf32>
    %cst_139 = arith.constant dense<0.000000e+00> : vector<16x16xf32>
    %228 = vector.multi_reduction <add>, %227, %cst_139 [0] : vector<7x16x16xf32> to vector<16x16xf32>
    %229 = vector.shape_cast %228 : vector<16x16xf32> to vector<1x16x16xf32>
    %cst_140 = arith.constant dense<0.000000e+00> : vector<1xf32>
    %230 = vector.multi_reduction <add>, %229, %cst_140 [1, 2] : vector<1x16x16xf32> to vector<1xf32>
    %231 = vector.shape_cast %230 : vector<1xf32> to vector<1x1x1xf32>
    %232 = vector.extract %231[0, 0, 0] : f32 from vector<1x1x1xf32>
    %c1_141 = arith.constant 1 : index
    %233 = memref.load %arg8[%c1_141] : memref<16xf32, #tpu.memory_space<smem>>
    %234 = arith.addf %232, %233 : f32
    %cst_142 = arith.constant 0.000000e+00 : f32
    %235 = arith.maximumf %234, %cst_142 : f32
    %c2_143 = arith.constant 2 : index
    %c0_144 = arith.constant 0 : index
    %c0_145 = arith.constant 0 : index
    %c0_146 = arith.constant 0 : index
    %236 = vector.load %arg7[%c2_143, %c0_144, %c0_145, %c0_146] : memref<16x7x16x16xf32, #tpu.memory_space<vmem>>, vector<1x7x16x16xf32>
    %237 = vector.shape_cast %236 : vector<1x7x16x16xf32> to vector<7x16x16xf32>
    %238 = arith.mulf %213, %237 : vector<7x16x16xf32>
    %cst_147 = arith.constant dense<0.000000e+00> : vector<16x16xf32>
    %239 = vector.multi_reduction <add>, %238, %cst_147 [0] : vector<7x16x16xf32> to vector<16x16xf32>
    %240 = vector.shape_cast %239 : vector<16x16xf32> to vector<1x16x16xf32>
    %cst_148 = arith.constant dense<0.000000e+00> : vector<1xf32>
    %241 = vector.multi_reduction <add>, %240, %cst_148 [1, 2] : vector<1x16x16xf32> to vector<1xf32>
    %242 = vector.shape_cast %241 : vector<1xf32> to vector<1x1x1xf32>
    %243 = vector.extract %242[0, 0, 0] : f32 from vector<1x1x1xf32>
    %c2_149 = arith.constant 2 : index
    %244 = memref.load %arg8[%c2_149] : memref<16xf32, #tpu.memory_space<smem>>
    %245 = arith.addf %243, %244 : f32
    %cst_150 = arith.constant 0.000000e+00 : f32
    %246 = arith.maximumf %245, %cst_150 : f32
    %c3_151 = arith.constant 3 : index
    %c0_152 = arith.constant 0 : index
    %c0_153 = arith.constant 0 : index
    %c0_154 = arith.constant 0 : index
    %247 = vector.load %arg7[%c3_151, %c0_152, %c0_153, %c0_154] : memref<16x7x16x16xf32, #tpu.memory_space<vmem>>, vector<1x7x16x16xf32>
    %248 = vector.shape_cast %247 : vector<1x7x16x16xf32> to vector<7x16x16xf32>
    %249 = arith.mulf %213, %248 : vector<7x16x16xf32>
    %cst_155 = arith.constant dense<0.000000e+00> : vector<16x16xf32>
    %250 = vector.multi_reduction <add>, %249, %cst_155 [0] : vector<7x16x16xf32> to vector<16x16xf32>
    %251 = vector.shape_cast %250 : vector<16x16xf32> to vector<1x16x16xf32>
    %cst_156 = arith.constant dense<0.000000e+00> : vector<1xf32>
    %252 = vector.multi_reduction <add>, %251, %cst_156 [1, 2] : vector<1x16x16xf32> to vector<1xf32>
    %253 = vector.shape_cast %252 : vector<1xf32> to vector<1x1x1xf32>
    %254 = vector.extract %253[0, 0, 0] : f32 from vector<1x1x1xf32>
    %c3_157 = arith.constant 3 : index
    %255 = memref.load %arg8[%c3_157] : memref<16xf32, #tpu.memory_space<smem>>
    %256 = arith.addf %254, %255 : f32
    %cst_158 = arith.constant 0.000000e+00 : f32
    %257 = arith.maximumf %256, %cst_158 : f32
    %c4_159 = arith.constant 4 : index
    %c0_160 = arith.constant 0 : index
    %c0_161 = arith.constant 0 : index
    %c0_162 = arith.constant 0 : index
    %258 = vector.load %arg7[%c4_159, %c0_160, %c0_161, %c0_162] : memref<16x7x16x16xf32, #tpu.memory_space<vmem>>, vector<1x7x16x16xf32>
    %259 = vector.shape_cast %258 : vector<1x7x16x16xf32> to vector<7x16x16xf32>
    %260 = arith.mulf %213, %259 : vector<7x16x16xf32>
    %cst_163 = arith.constant dense<0.000000e+00> : vector<16x16xf32>
    %261 = vector.multi_reduction <add>, %260, %cst_163 [0] : vector<7x16x16xf32> to vector<16x16xf32>
    %262 = vector.shape_cast %261 : vector<16x16xf32> to vector<1x16x16xf32>
    %cst_164 = arith.constant dense<0.000000e+00> : vector<1xf32>
    %263 = vector.multi_reduction <add>, %262, %cst_164 [1, 2] : vector<1x16x16xf32> to vector<1xf32>
    %264 = vector.shape_cast %263 : vector<1xf32> to vector<1x1x1xf32>
    %265 = vector.extract %264[0, 0, 0] : f32 from vector<1x1x1xf32>
    %c4_165 = arith.constant 4 : index
    %266 = memref.load %arg8[%c4_165] : memref<16xf32, #tpu.memory_space<smem>>
    %267 = arith.addf %265, %266 : f32
    %cst_166 = arith.constant 0.000000e+00 : f32
    %268 = arith.maximumf %267, %cst_166 : f32
    %c5_167 = arith.constant 5 : index
    %c0_168 = arith.constant 0 : index
    %c0_169 = arith.constant 0 : index
    %c0_170 = arith.constant 0 : index
    %269 = vector.load %arg7[%c5_167, %c0_168, %c0_169, %c0_170] : memref<16x7x16x16xf32, #tpu.memory_space<vmem>>, vector<1x7x16x16xf32>
    %270 = vector.shape_cast %269 : vector<1x7x16x16xf32> to vector<7x16x16xf32>
    %271 = arith.mulf %213, %270 : vector<7x16x16xf32>
    %cst_171 = arith.constant dense<0.000000e+00> : vector<16x16xf32>
    %272 = vector.multi_reduction <add>, %271, %cst_171 [0] : vector<7x16x16xf32> to vector<16x16xf32>
    %273 = vector.shape_cast %272 : vector<16x16xf32> to vector<1x16x16xf32>
    %cst_172 = arith.constant dense<0.000000e+00> : vector<1xf32>
    %274 = vector.multi_reduction <add>, %273, %cst_172 [1, 2] : vector<1x16x16xf32> to vector<1xf32>
    %275 = vector.shape_cast %274 : vector<1xf32> to vector<1x1x1xf32>
    %276 = vector.extract %275[0, 0, 0] : f32 from vector<1x1x1xf32>
    %c5_173 = arith.constant 5 : index
    %277 = memref.load %arg8[%c5_173] : memref<16xf32, #tpu.memory_space<smem>>
    %278 = arith.addf %276, %277 : f32
    %cst_174 = arith.constant 0.000000e+00 : f32
    %279 = arith.maximumf %278, %cst_174 : f32
    %c6_175 = arith.constant 6 : index
    %c0_176 = arith.constant 0 : index
    %c0_177 = arith.constant 0 : index
    %c0_178 = arith.constant 0 : index
    %280 = vector.load %arg7[%c6_175, %c0_176, %c0_177, %c0_178] : memref<16x7x16x16xf32, #tpu.memory_space<vmem>>, vector<1x7x16x16xf32>
    %281 = vector.shape_cast %280 : vector<1x7x16x16xf32> to vector<7x16x16xf32>
    %282 = arith.mulf %213, %281 : vector<7x16x16xf32>
    %cst_179 = arith.constant dense<0.000000e+00> : vector<16x16xf32>
    %283 = vector.multi_reduction <add>, %282, %cst_179 [0] : vector<7x16x16xf32> to vector<16x16xf32>
    %284 = vector.shape_cast %283 : vector<16x16xf32> to vector<1x16x16xf32>
    %cst_180 = arith.constant dense<0.000000e+00> : vector<1xf32>
    %285 = vector.multi_reduction <add>, %284, %cst_180 [1, 2] : vector<1x16x16xf32> to vector<1xf32>
    %286 = vector.shape_cast %285 : vector<1xf32> to vector<1x1x1xf32>
    %287 = vector.extract %286[0, 0, 0] : f32 from vector<1x1x1xf32>
    %c6_181 = arith.constant 6 : index
    %288 = memref.load %arg8[%c6_181] : memref<16xf32, #tpu.memory_space<smem>>
    %289 = arith.addf %287, %288 : f32
    %cst_182 = arith.constant 0.000000e+00 : f32
    %290 = arith.maximumf %289, %cst_182 : f32
    %c7_183 = arith.constant 7 : index
    %c0_184 = arith.constant 0 : index
    %c0_185 = arith.constant 0 : index
    %c0_186 = arith.constant 0 : index
    %291 = vector.load %arg7[%c7_183, %c0_184, %c0_185, %c0_186] : memref<16x7x16x16xf32, #tpu.memory_space<vmem>>, vector<1x7x16x16xf32>
    %292 = vector.shape_cast %291 : vector<1x7x16x16xf32> to vector<7x16x16xf32>
    %293 = arith.mulf %213, %292 : vector<7x16x16xf32>
    %cst_187 = arith.constant dense<0.000000e+00> : vector<16x16xf32>
    %294 = vector.multi_reduction <add>, %293, %cst_187 [0] : vector<7x16x16xf32> to vector<16x16xf32>
    %295 = vector.shape_cast %294 : vector<16x16xf32> to vector<1x16x16xf32>
    %cst_188 = arith.constant dense<0.000000e+00> : vector<1xf32>
    %296 = vector.multi_reduction <add>, %295, %cst_188 [1, 2] : vector<1x16x16xf32> to vector<1xf32>
    %297 = vector.shape_cast %296 : vector<1xf32> to vector<1x1x1xf32>
    %298 = vector.extract %297[0, 0, 0] : f32 from vector<1x1x1xf32>
    %c7_189 = arith.constant 7 : index
    %299 = memref.load %arg8[%c7_189] : memref<16xf32, #tpu.memory_space<smem>>
    %300 = arith.addf %298, %299 : f32
    %cst_190 = arith.constant 0.000000e+00 : f32
    %301 = arith.maximumf %300, %cst_190 : f32
    %c8_191 = arith.constant 8 : index
    %c0_192 = arith.constant 0 : index
    %c0_193 = arith.constant 0 : index
    %c0_194 = arith.constant 0 : index
    %302 = vector.load %arg7[%c8_191, %c0_192, %c0_193, %c0_194] : memref<16x7x16x16xf32, #tpu.memory_space<vmem>>, vector<1x7x16x16xf32>
    %303 = vector.shape_cast %302 : vector<1x7x16x16xf32> to vector<7x16x16xf32>
    %304 = arith.mulf %213, %303 : vector<7x16x16xf32>
    %cst_195 = arith.constant dense<0.000000e+00> : vector<16x16xf32>
    %305 = vector.multi_reduction <add>, %304, %cst_195 [0] : vector<7x16x16xf32> to vector<16x16xf32>
    %306 = vector.shape_cast %305 : vector<16x16xf32> to vector<1x16x16xf32>
    %cst_196 = arith.constant dense<0.000000e+00> : vector<1xf32>
    %307 = vector.multi_reduction <add>, %306, %cst_196 [1, 2] : vector<1x16x16xf32> to vector<1xf32>
    %308 = vector.shape_cast %307 : vector<1xf32> to vector<1x1x1xf32>
    %309 = vector.extract %308[0, 0, 0] : f32 from vector<1x1x1xf32>
    %c8_197 = arith.constant 8 : index
    %310 = memref.load %arg8[%c8_197] : memref<16xf32, #tpu.memory_space<smem>>
    %311 = arith.addf %309, %310 : f32
    %cst_198 = arith.constant 0.000000e+00 : f32
    %312 = arith.maximumf %311, %cst_198 : f32
    %c9 = arith.constant 9 : index
    %c0_199 = arith.constant 0 : index
    %c0_200 = arith.constant 0 : index
    %c0_201 = arith.constant 0 : index
    %313 = vector.load %arg7[%c9, %c0_199, %c0_200, %c0_201] : memref<16x7x16x16xf32, #tpu.memory_space<vmem>>, vector<1x7x16x16xf32>
    %314 = vector.shape_cast %313 : vector<1x7x16x16xf32> to vector<7x16x16xf32>
    %315 = arith.mulf %213, %314 : vector<7x16x16xf32>
    %cst_202 = arith.constant dense<0.000000e+00> : vector<16x16xf32>
    %316 = vector.multi_reduction <add>, %315, %cst_202 [0] : vector<7x16x16xf32> to vector<16x16xf32>
    %317 = vector.shape_cast %316 : vector<16x16xf32> to vector<1x16x16xf32>
    %cst_203 = arith.constant dense<0.000000e+00> : vector<1xf32>
    %318 = vector.multi_reduction <add>, %317, %cst_203 [1, 2] : vector<1x16x16xf32> to vector<1xf32>
    %319 = vector.shape_cast %318 : vector<1xf32> to vector<1x1x1xf32>
    %320 = vector.extract %319[0, 0, 0] : f32 from vector<1x1x1xf32>
    %c9_204 = arith.constant 9 : index
    %321 = memref.load %arg8[%c9_204] : memref<16xf32, #tpu.memory_space<smem>>
    %322 = arith.addf %320, %321 : f32
    %cst_205 = arith.constant 0.000000e+00 : f32
    %323 = arith.maximumf %322, %cst_205 : f32
    %c10 = arith.constant 10 : index
    %c0_206 = arith.constant 0 : index
    %c0_207 = arith.constant 0 : index
    %c0_208 = arith.constant 0 : index
    %324 = vector.load %arg7[%c10, %c0_206, %c0_207, %c0_208] : memref<16x7x16x16xf32, #tpu.memory_space<vmem>>, vector<1x7x16x16xf32>
    %325 = vector.shape_cast %324 : vector<1x7x16x16xf32> to vector<7x16x16xf32>
    %326 = arith.mulf %213, %325 : vector<7x16x16xf32>
    %cst_209 = arith.constant dense<0.000000e+00> : vector<16x16xf32>
    %327 = vector.multi_reduction <add>, %326, %cst_209 [0] : vector<7x16x16xf32> to vector<16x16xf32>
    %328 = vector.shape_cast %327 : vector<16x16xf32> to vector<1x16x16xf32>
    %cst_210 = arith.constant dense<0.000000e+00> : vector<1xf32>
    %329 = vector.multi_reduction <add>, %328, %cst_210 [1, 2] : vector<1x16x16xf32> to vector<1xf32>
    %330 = vector.shape_cast %329 : vector<1xf32> to vector<1x1x1xf32>
    %331 = vector.extract %330[0, 0, 0] : f32 from vector<1x1x1xf32>
    %c10_211 = arith.constant 10 : index
    %332 = memref.load %arg8[%c10_211] : memref<16xf32, #tpu.memory_space<smem>>
    %333 = arith.addf %331, %332 : f32
    %cst_212 = arith.constant 0.000000e+00 : f32
    %334 = arith.maximumf %333, %cst_212 : f32
    %c11 = arith.constant 11 : index
    %c0_213 = arith.constant 0 : index
    %c0_214 = arith.constant 0 : index
    %c0_215 = arith.constant 0 : index
    %335 = vector.load %arg7[%c11, %c0_213, %c0_214, %c0_215] : memref<16x7x16x16xf32, #tpu.memory_space<vmem>>, vector<1x7x16x16xf32>
    %336 = vector.shape_cast %335 : vector<1x7x16x16xf32> to vector<7x16x16xf32>
    %337 = arith.mulf %213, %336 : vector<7x16x16xf32>
    %cst_216 = arith.constant dense<0.000000e+00> : vector<16x16xf32>
    %338 = vector.multi_reduction <add>, %337, %cst_216 [0] : vector<7x16x16xf32> to vector<16x16xf32>
    %339 = vector.shape_cast %338 : vector<16x16xf32> to vector<1x16x16xf32>
    %cst_217 = arith.constant dense<0.000000e+00> : vector<1xf32>
    %340 = vector.multi_reduction <add>, %339, %cst_217 [1, 2] : vector<1x16x16xf32> to vector<1xf32>
    %341 = vector.shape_cast %340 : vector<1xf32> to vector<1x1x1xf32>
    %342 = vector.extract %341[0, 0, 0] : f32 from vector<1x1x1xf32>
    %c11_218 = arith.constant 11 : index
    %343 = memref.load %arg8[%c11_218] : memref<16xf32, #tpu.memory_space<smem>>
    %344 = arith.addf %342, %343 : f32
    %cst_219 = arith.constant 0.000000e+00 : f32
    %345 = arith.maximumf %344, %cst_219 : f32
    %c12 = arith.constant 12 : index
    %c0_220 = arith.constant 0 : index
    %c0_221 = arith.constant 0 : index
    %c0_222 = arith.constant 0 : index
    %346 = vector.load %arg7[%c12, %c0_220, %c0_221, %c0_222] : memref<16x7x16x16xf32, #tpu.memory_space<vmem>>, vector<1x7x16x16xf32>
    %347 = vector.shape_cast %346 : vector<1x7x16x16xf32> to vector<7x16x16xf32>
    %348 = arith.mulf %213, %347 : vector<7x16x16xf32>
    %cst_223 = arith.constant dense<0.000000e+00> : vector<16x16xf32>
    %349 = vector.multi_reduction <add>, %348, %cst_223 [0] : vector<7x16x16xf32> to vector<16x16xf32>
    %350 = vector.shape_cast %349 : vector<16x16xf32> to vector<1x16x16xf32>
    %cst_224 = arith.constant dense<0.000000e+00> : vector<1xf32>
    %351 = vector.multi_reduction <add>, %350, %cst_224 [1, 2] : vector<1x16x16xf32> to vector<1xf32>
    %352 = vector.shape_cast %351 : vector<1xf32> to vector<1x1x1xf32>
    %353 = vector.extract %352[0, 0, 0] : f32 from vector<1x1x1xf32>
    %c12_225 = arith.constant 12 : index
    %354 = memref.load %arg8[%c12_225] : memref<16xf32, #tpu.memory_space<smem>>
    %355 = arith.addf %353, %354 : f32
    %cst_226 = arith.constant 0.000000e+00 : f32
    %356 = arith.maximumf %355, %cst_226 : f32
    %c13 = arith.constant 13 : index
    %c0_227 = arith.constant 0 : index
    %c0_228 = arith.constant 0 : index
    %c0_229 = arith.constant 0 : index
    %357 = vector.load %arg7[%c13, %c0_227, %c0_228, %c0_229] : memref<16x7x16x16xf32, #tpu.memory_space<vmem>>, vector<1x7x16x16xf32>
    %358 = vector.shape_cast %357 : vector<1x7x16x16xf32> to vector<7x16x16xf32>
    %359 = arith.mulf %213, %358 : vector<7x16x16xf32>
    %cst_230 = arith.constant dense<0.000000e+00> : vector<16x16xf32>
    %360 = vector.multi_reduction <add>, %359, %cst_230 [0] : vector<7x16x16xf32> to vector<16x16xf32>
    %361 = vector.shape_cast %360 : vector<16x16xf32> to vector<1x16x16xf32>
    %cst_231 = arith.constant dense<0.000000e+00> : vector<1xf32>
    %362 = vector.multi_reduction <add>, %361, %cst_231 [1, 2] : vector<1x16x16xf32> to vector<1xf32>
    %363 = vector.shape_cast %362 : vector<1xf32> to vector<1x1x1xf32>
    %364 = vector.extract %363[0, 0, 0] : f32 from vector<1x1x1xf32>
    %c13_232 = arith.constant 13 : index
    %365 = memref.load %arg8[%c13_232] : memref<16xf32, #tpu.memory_space<smem>>
    %366 = arith.addf %364, %365 : f32
    %cst_233 = arith.constant 0.000000e+00 : f32
    %367 = arith.maximumf %366, %cst_233 : f32
    %c14 = arith.constant 14 : index
    %c0_234 = arith.constant 0 : index
    %c0_235 = arith.constant 0 : index
    %c0_236 = arith.constant 0 : index
    %368 = vector.load %arg7[%c14, %c0_234, %c0_235, %c0_236] : memref<16x7x16x16xf32, #tpu.memory_space<vmem>>, vector<1x7x16x16xf32>
    %369 = vector.shape_cast %368 : vector<1x7x16x16xf32> to vector<7x16x16xf32>
    %370 = arith.mulf %213, %369 : vector<7x16x16xf32>
    %cst_237 = arith.constant dense<0.000000e+00> : vector<16x16xf32>
    %371 = vector.multi_reduction <add>, %370, %cst_237 [0] : vector<7x16x16xf32> to vector<16x16xf32>
    %372 = vector.shape_cast %371 : vector<16x16xf32> to vector<1x16x16xf32>
    %cst_238 = arith.constant dense<0.000000e+00> : vector<1xf32>
    %373 = vector.multi_reduction <add>, %372, %cst_238 [1, 2] : vector<1x16x16xf32> to vector<1xf32>
    %374 = vector.shape_cast %373 : vector<1xf32> to vector<1x1x1xf32>
    %375 = vector.extract %374[0, 0, 0] : f32 from vector<1x1x1xf32>
    %c14_239 = arith.constant 14 : index
    %376 = memref.load %arg8[%c14_239] : memref<16xf32, #tpu.memory_space<smem>>
    %377 = arith.addf %375, %376 : f32
    %cst_240 = arith.constant 0.000000e+00 : f32
    %378 = arith.maximumf %377, %cst_240 : f32
    %c15 = arith.constant 15 : index
    %c0_241 = arith.constant 0 : index
    %c0_242 = arith.constant 0 : index
    %c0_243 = arith.constant 0 : index
    %379 = vector.load %arg7[%c15, %c0_241, %c0_242, %c0_243] : memref<16x7x16x16xf32, #tpu.memory_space<vmem>>, vector<1x7x16x16xf32>
    %380 = vector.shape_cast %379 : vector<1x7x16x16xf32> to vector<7x16x16xf32>
    %381 = arith.mulf %213, %380 : vector<7x16x16xf32>
    %cst_244 = arith.constant dense<0.000000e+00> : vector<16x16xf32>
    %382 = vector.multi_reduction <add>, %381, %cst_244 [0] : vector<7x16x16xf32> to vector<16x16xf32>
    %383 = vector.shape_cast %382 : vector<16x16xf32> to vector<1x16x16xf32>
    %cst_245 = arith.constant dense<0.000000e+00> : vector<1xf32>
    %384 = vector.multi_reduction <add>, %383, %cst_245 [1, 2] : vector<1x16x16xf32> to vector<1xf32>
    %385 = vector.shape_cast %384 : vector<1xf32> to vector<1x1x1xf32>
    %386 = vector.extract %385[0, 0, 0] : f32 from vector<1x1x1xf32>
    %c15_246 = arith.constant 15 : index
    %387 = memref.load %arg8[%c15_246] : memref<16xf32, #tpu.memory_space<smem>>
    %388 = arith.addf %386, %387 : f32
    %cst_247 = arith.constant 0.000000e+00 : f32
    %389 = arith.maximumf %388, %cst_247 : f32
    %c0_248 = arith.constant 0 : index
    %c0_249 = arith.constant 0 : index
    %390 = vector.load %arg10[%c0_248, %c0_249] : memref<1x10xf32, #tpu.memory_space<vmem>>, vector<1x10xf32>
    %c0_250 = arith.constant 0 : index
    %c0_251 = arith.constant 0 : index
    %391 = vector.load %arg9[%c0_250, %c0_251] : memref<16x10xf32, #tpu.memory_space<vmem>>, vector<1x10xf32>
    %392 = vector.shape_cast %391 : vector<1x10xf32> to vector<10xf32>
    %393 = vector.broadcast %224 : f32 to vector<10xf32>
    %394 = arith.mulf %393, %392 : vector<10xf32>
    %395 = vector.shape_cast %394 : vector<10xf32> to vector<1x10xf32>
    %396 = arith.addf %390, %395 : vector<1x10xf32>
    %c1_252 = arith.constant 1 : index
    %c0_253 = arith.constant 0 : index
    %397 = vector.load %arg9[%c1_252, %c0_253] : memref<16x10xf32, #tpu.memory_space<vmem>>, vector<1x10xf32>
    %398 = vector.shape_cast %397 : vector<1x10xf32> to vector<10xf32>
    %399 = vector.broadcast %235 : f32 to vector<10xf32>
    %400 = arith.mulf %399, %398 : vector<10xf32>
    %401 = vector.shape_cast %400 : vector<10xf32> to vector<1x10xf32>
    %402 = arith.addf %396, %401 : vector<1x10xf32>
    %c2_254 = arith.constant 2 : index
    %c0_255 = arith.constant 0 : index
    %403 = vector.load %arg9[%c2_254, %c0_255] : memref<16x10xf32, #tpu.memory_space<vmem>>, vector<1x10xf32>
    %404 = vector.shape_cast %403 : vector<1x10xf32> to vector<10xf32>
    %405 = vector.broadcast %246 : f32 to vector<10xf32>
    %406 = arith.mulf %405, %404 : vector<10xf32>
    %407 = vector.shape_cast %406 : vector<10xf32> to vector<1x10xf32>
    %408 = arith.addf %402, %407 : vector<1x10xf32>
    %c3_256 = arith.constant 3 : index
    %c0_257 = arith.constant 0 : index
    %409 = vector.load %arg9[%c3_256, %c0_257] : memref<16x10xf32, #tpu.memory_space<vmem>>, vector<1x10xf32>
    %410 = vector.shape_cast %409 : vector<1x10xf32> to vector<10xf32>
    %411 = vector.broadcast %257 : f32 to vector<10xf32>
    %412 = arith.mulf %411, %410 : vector<10xf32>
    %413 = vector.shape_cast %412 : vector<10xf32> to vector<1x10xf32>
    %414 = arith.addf %408, %413 : vector<1x10xf32>
    %c4_258 = arith.constant 4 : index
    %c0_259 = arith.constant 0 : index
    %415 = vector.load %arg9[%c4_258, %c0_259] : memref<16x10xf32, #tpu.memory_space<vmem>>, vector<1x10xf32>
    %416 = vector.shape_cast %415 : vector<1x10xf32> to vector<10xf32>
    %417 = vector.broadcast %268 : f32 to vector<10xf32>
    %418 = arith.mulf %417, %416 : vector<10xf32>
    %419 = vector.shape_cast %418 : vector<10xf32> to vector<1x10xf32>
    %420 = arith.addf %414, %419 : vector<1x10xf32>
    %c5_260 = arith.constant 5 : index
    %c0_261 = arith.constant 0 : index
    %421 = vector.load %arg9[%c5_260, %c0_261] : memref<16x10xf32, #tpu.memory_space<vmem>>, vector<1x10xf32>
    %422 = vector.shape_cast %421 : vector<1x10xf32> to vector<10xf32>
    %423 = vector.broadcast %279 : f32 to vector<10xf32>
    %424 = arith.mulf %423, %422 : vector<10xf32>
    %425 = vector.shape_cast %424 : vector<10xf32> to vector<1x10xf32>
    %426 = arith.addf %420, %425 : vector<1x10xf32>
    %c6_262 = arith.constant 6 : index
    %c0_263 = arith.constant 0 : index
    %427 = vector.load %arg9[%c6_262, %c0_263] : memref<16x10xf32, #tpu.memory_space<vmem>>, vector<1x10xf32>
    %428 = vector.shape_cast %427 : vector<1x10xf32> to vector<10xf32>
    %429 = vector.broadcast %290 : f32 to vector<10xf32>
    %430 = arith.mulf %429, %428 : vector<10xf32>
    %431 = vector.shape_cast %430 : vector<10xf32> to vector<1x10xf32>
    %432 = arith.addf %426, %431 : vector<1x10xf32>
    %c7_264 = arith.constant 7 : index
    %c0_265 = arith.constant 0 : index
    %433 = vector.load %arg9[%c7_264, %c0_265] : memref<16x10xf32, #tpu.memory_space<vmem>>, vector<1x10xf32>
    %434 = vector.shape_cast %433 : vector<1x10xf32> to vector<10xf32>
    %435 = vector.broadcast %301 : f32 to vector<10xf32>
    %436 = arith.mulf %435, %434 : vector<10xf32>
    %437 = vector.shape_cast %436 : vector<10xf32> to vector<1x10xf32>
    %438 = arith.addf %432, %437 : vector<1x10xf32>
    %c8_266 = arith.constant 8 : index
    %c0_267 = arith.constant 0 : index
    %439 = vector.load %arg9[%c8_266, %c0_267] : memref<16x10xf32, #tpu.memory_space<vmem>>, vector<1x10xf32>
    %440 = vector.shape_cast %439 : vector<1x10xf32> to vector<10xf32>
    %441 = vector.broadcast %312 : f32 to vector<10xf32>
    %442 = arith.mulf %441, %440 : vector<10xf32>
    %443 = vector.shape_cast %442 : vector<10xf32> to vector<1x10xf32>
    %444 = arith.addf %438, %443 : vector<1x10xf32>
    %c9_268 = arith.constant 9 : index
    %c0_269 = arith.constant 0 : index
    %445 = vector.load %arg9[%c9_268, %c0_269] : memref<16x10xf32, #tpu.memory_space<vmem>>, vector<1x10xf32>
    %446 = vector.shape_cast %445 : vector<1x10xf32> to vector<10xf32>
    %447 = vector.broadcast %323 : f32 to vector<10xf32>
    %448 = arith.mulf %447, %446 : vector<10xf32>
    %449 = vector.shape_cast %448 : vector<10xf32> to vector<1x10xf32>
    %450 = arith.addf %444, %449 : vector<1x10xf32>
    %c10_270 = arith.constant 10 : index
    %c0_271 = arith.constant 0 : index
    %451 = vector.load %arg9[%c10_270, %c0_271] : memref<16x10xf32, #tpu.memory_space<vmem>>, vector<1x10xf32>
    %452 = vector.shape_cast %451 : vector<1x10xf32> to vector<10xf32>
    %453 = vector.broadcast %334 : f32 to vector<10xf32>
    %454 = arith.mulf %453, %452 : vector<10xf32>
    %455 = vector.shape_cast %454 : vector<10xf32> to vector<1x10xf32>
    %456 = arith.addf %450, %455 : vector<1x10xf32>
    %c11_272 = arith.constant 11 : index
    %c0_273 = arith.constant 0 : index
    %457 = vector.load %arg9[%c11_272, %c0_273] : memref<16x10xf32, #tpu.memory_space<vmem>>, vector<1x10xf32>
    %458 = vector.shape_cast %457 : vector<1x10xf32> to vector<10xf32>
    %459 = vector.broadcast %345 : f32 to vector<10xf32>
    %460 = arith.mulf %459, %458 : vector<10xf32>
    %461 = vector.shape_cast %460 : vector<10xf32> to vector<1x10xf32>
    %462 = arith.addf %456, %461 : vector<1x10xf32>
    %c12_274 = arith.constant 12 : index
    %c0_275 = arith.constant 0 : index
    %463 = vector.load %arg9[%c12_274, %c0_275] : memref<16x10xf32, #tpu.memory_space<vmem>>, vector<1x10xf32>
    %464 = vector.shape_cast %463 : vector<1x10xf32> to vector<10xf32>
    %465 = vector.broadcast %356 : f32 to vector<10xf32>
    %466 = arith.mulf %465, %464 : vector<10xf32>
    %467 = vector.shape_cast %466 : vector<10xf32> to vector<1x10xf32>
    %468 = arith.addf %462, %467 : vector<1x10xf32>
    %c13_276 = arith.constant 13 : index
    %c0_277 = arith.constant 0 : index
    %469 = vector.load %arg9[%c13_276, %c0_277] : memref<16x10xf32, #tpu.memory_space<vmem>>, vector<1x10xf32>
    %470 = vector.shape_cast %469 : vector<1x10xf32> to vector<10xf32>
    %471 = vector.broadcast %367 : f32 to vector<10xf32>
    %472 = arith.mulf %471, %470 : vector<10xf32>
    %473 = vector.shape_cast %472 : vector<10xf32> to vector<1x10xf32>
    %474 = arith.addf %468, %473 : vector<1x10xf32>
    %c14_278 = arith.constant 14 : index
    %c0_279 = arith.constant 0 : index
    %475 = vector.load %arg9[%c14_278, %c0_279] : memref<16x10xf32, #tpu.memory_space<vmem>>, vector<1x10xf32>
    %476 = vector.shape_cast %475 : vector<1x10xf32> to vector<10xf32>
    %477 = vector.broadcast %378 : f32 to vector<10xf32>
    %478 = arith.mulf %477, %476 : vector<10xf32>
    %479 = vector.shape_cast %478 : vector<10xf32> to vector<1x10xf32>
    %480 = arith.addf %474, %479 : vector<1x10xf32>
    %c15_280 = arith.constant 15 : index
    %c0_281 = arith.constant 0 : index
    %481 = vector.load %arg9[%c15_280, %c0_281] : memref<16x10xf32, #tpu.memory_space<vmem>>, vector<1x10xf32>
    %482 = vector.shape_cast %481 : vector<1x10xf32> to vector<10xf32>
    %483 = vector.broadcast %389 : f32 to vector<10xf32>
    %484 = arith.mulf %483, %482 : vector<10xf32>
    %485 = vector.shape_cast %484 : vector<10xf32> to vector<1x10xf32>
    %486 = arith.addf %480, %485 : vector<1x10xf32>
    %c0_282 = arith.constant 0 : index
    %c0_283 = arith.constant 0 : index
    %c0_284 = arith.constant 0 : index
    %487 = vector.load %arg11[%c0_282, %c0_283, %c0_284] : memref<1x1x10xf32, #tpu.memory_space<vmem>>, vector<1x1x10xf32>
    %488 = vector.shape_cast %487 : vector<1x1x10xf32> to vector<1x10xf32>
    %489 = vector.shape_cast %486 : vector<1x10xf32> to vector<1x1x10xf32>
    tpu.vector_store %arg11[%c0_282, %c0_283, %c0_284], %489 {strides = array<i32>} : memref<1x1x10xf32, #tpu.memory_space<vmem>>, vector<1x1x10xf32>,
    return
  }
  func.func @transform_0(%arg0: i32) -> (i32, i32, i32) {
    %c0_i32 = arith.constant 0 : i32
    %c0_i32_0 = arith.constant 0 : i32
    %c0_i32_1 = arith.constant 0 : i32
    return %arg0, %c0_i32, %c0_i32_0 : i32, i32, i32
  }
  func.func @transform_1(%arg0: i32) -> (i32, i32, i32) {
    %c0_i32 = arith.constant 0 : i32
    %c0_i32_0 = arith.constant 0 : i32
    %c0_i32_1 = arith.constant 0 : i32
    return %arg0, %c0_i32, %c0_i32_0 : i32, i32, i32
  }
  func.func @transform_2(%arg0: i32) -> (i32, i32, i32) {
    %c0_i32 = arith.constant 0 : i32
    %c0_i32_0 = arith.constant 0 : i32
    %c0_i32_1 = arith.constant 0 : i32
    %c0_i32_2 = arith.constant 0 : i32
    return %c0_i32, %c0_i32_0, %c0_i32_1 : i32, i32, i32
  }
  func.func @transform_3(%arg0: i32) -> (i32, i32) {
    %c0_i32 = arith.constant 0 : i32
    %c0_i32_0 = arith.constant 0 : i32
    %c0_i32_1 = arith.constant 0 : i32
    return %c0_i32, %c0_i32_0 : i32, i32
  }
  func.func @transform_4(%arg0: i32) -> (i32, i32, i32) {
    %c0_i32 = arith.constant 0 : i32
    %c0_i32_0 = arith.constant 0 : i32
    %c0_i32_1 = arith.constant 0 : i32
    %c0_i32_2 = arith.constant 0 : i32
    return %c0_i32, %c0_i32_0, %c0_i32_1 : i32, i32, i32
  }
  func.func @transform_5(%arg0: i32) -> (i32, i32) {
    %c0_i32 = arith.constant 0 : i32
    %c0_i32_0 = arith.constant 0 : i32
    %c0_i32_1 = arith.constant 0 : i32
    return %c0_i32, %c0_i32_0 : i32, i32
  }
  func.func @transform_6(%arg0: i32) -> (i32, i32, i32, i32) {
    %c0_i32 = arith.constant 0 : i32
    %c0_i32_0 = arith.constant 0 : i32
    %c0_i32_1 = arith.constant 0 : i32
    %c0_i32_2 = arith.constant 0 : i32
    %c0_i32_3 = arith.constant 0 : i32
    return %c0_i32, %c0_i32_0, %c0_i32_1, %c0_i32_2 : i32, i32, i32, i32
  }
  func.func @transform_7(%arg0: i32) -> i32 {
    %c0_i32 = arith.constant 0 : i32
    %c0_i32_0 = arith.constant 0 : i32
    return %c0_i32 : i32
  }
  func.func @transform_8(%arg0: i32) -> (i32, i32) {
    %c0_i32 = arith.constant 0 : i32
    %c0_i32_0 = arith.constant 0 : i32
    %c0_i32_1 = arith.constant 0 : i32
    return %c0_i32, %c0_i32_0 : i32, i32
  }
  func.func @transform_9(%arg0: i32) -> (i32, i32) {
    %c0_i32 = arith.constant 0 : i32
    %c0_i32_0 = arith.constant 0 : i32
    %c0_i32_1 = arith.constant 0 : i32
    return %c0_i32, %c0_i32_0 : i32, i32
  }
  func.func @transform_10(%arg0: i32) -> (i32, i32, i32) {
    %c0_i32 = arith.constant 0 : i32
    %c0_i32_0 = arith.constant 0 : i32
    %c0_i32_1 = arith.constant 0 : i32
    return %arg0, %c0_i32, %c0_i32_0 : i32, i32, i32
  }
}

</mosaic_0001>

<llo_original>
// kernel: mnist_net_forward.1
$region0: #{mnist_net_forward.1}
  #allocation0 [shape = 'u32[]', space=smem, size = 0x4, offset = 0x4, fixed_abs, tag = 'smem constant byte address 0x4 - core index']
  #allocation1 [shape = 'u32[144,128]{1,0:T(1,128)}', space=vmem, size = 0x12000, scoped, tag = 'internal scratch']
  #allocation2 [shape = 'f32[272,8]{1,0:T(8,128)}', space=vmem, size = 0x22000, scoped, tag = 'scratch operand']
  #allocation3 [shape = 'f32[232,16]{1,0:T(8,128)}', space=vmem, size = 0x1d000, scoped, tag = 'scratch operand']
  %s0 = inlined_call_operand.vmem [shape: f32[2,512,1], index: 0, kind: input, shape index: {}]
  %s1 = inlined_call_operand.vmem [shape: f32[2,512,1], index: 1, kind: input, shape index: {}]
  %s2 = inlined_call_operand.vmem [shape: f32[3,3,8], index: 2, kind: input, shape index: {}]
  %s3 = inlined_call_operand.vmem [shape: f32[1,8], index: 3, kind: input, shape index: {}]
  %s4 = inlined_call_operand.vmem [shape: f32[9,8,16], index: 4, kind: input, shape index: {}]
  %s5 = inlined_call_operand.vmem [shape: f32[1,16], index: 5, kind: input, shape index: {}]
  %s6 = inlined_call_operand.vmem [shape: f32[16,7,16,16], index: 6, kind: input, shape index: {}]
  %s7 = inlined_call_operand.vmem [shape: f32[16], index: 7, kind: input, shape index: {}]
  %s8 = inlined_call_operand.vmem [shape: f32[16,10], index: 8, kind: input, shape index: {}]
  %s9 = inlined_call_operand.vmem [shape: f32[1,10], index: 9, kind: input, shape index: {}]
  %s10 = inlined_call_operand.hbm [shape: f32[2,1,10], index: 10, kind: output, shape index: {}]
  %s11 = sld [smem:[#allocation0]]
  $region77: #{mnist_net_forward.1} parent=0
    _
  %s13 = ssub.s32 1, %s11
  %s14 = scalar_select 0, %s13, %s11
  $region1: #{mnist_net_forward.1} parent=0
    #allocation4 [shape = 'u8[512]{0}', space=smem, size = 0x200, scoped, tag = 'input window, operand 7, single buffered']
    #allocation5 [shape = 's32[2]{0}', space=sflag, size = 0x8, scoped, tag = 'scoped memory for mnist_net_forward.1']
    #allocation6 [shape = 's32[2]{0}', space=sflag, size = 0x8, scoped, tag = 'scoped memory for mnist_net_forward.1']
    #allocation7 [shape = 'u8[1024]{0}', space=vmem, size = 0x400, scoped, tag = 'output window, operand 0']
    %15 = vsyncpa [#allocation6], 0
    %16 = vsyncpa [#allocation5], 0
    %s17 = scalar_lea.sflag [#allocation5], 1
    %18 = vsyncpa %s17, 0
    loop: start=0, step=1, limit=4
    $region2: #{mnist_net_forward.1} parent=1 // loop_pre_header
      _
    $region3: #{mnist_net_forward.1} parent=1 // loop_header
      %s20 = sphi 0, %s24
      %p21 = scmp.ge.s32.totalorder %s20, 4
      %s30 = sphi 0, %s32
      %s33 = sphi 0, %s30
      %s34 = sphi 0, %s33
      %s50 = sphi 0, %s34
      %s56 = sphi 0, %s58
      %s59 = sphi 0, %s56
      %s60 = sphi 0, %s59
      %s76 = sphi 0, %s60
      %s80 = sphi 0, %s80
      %s82 = sphi 0, %s80
      %s83 = sphi 0, %s82
      %s97 = sphi 0, %s83
      %s101 = sphi 0, %s101
      %s103 = sphi 0, %s101
      %s104 = sphi 0, %s103
      %s118 = sphi 0, %s104
      %s122 = sphi 0, %s122
      %s124 = sphi 0, %s122
      %s125 = sphi 0, %s124
      %s139 = sphi 0, %s125
      %s143 = sphi 0, %s143
      %s145 = sphi 0, %s143
      %s146 = sphi 0, %s145
      %s160 = sphi 0, %s146
      %s164 = sphi 0, %s164
      %s166 = sphi 0, %s164
      %s167 = sphi 0, %s166
      %s181 = sphi 0, %s167
      %s185 = sphi 0, %s185
      %s187 = sphi 0, %s185
      %s188 = sphi 0, %s187
      %s202 = sphi 0, %s188
      %s206 = sphi 0, %s206
      %s208 = sphi 0, %s206
      %s209 = sphi 0, %s208
      %s223 = sphi 0, %s209
      %s227 = sphi 0, %s227
      %s229 = sphi 0, %s227
      %s230 = sphi 0, %s229
      %s244 = sphi 0, %s230
      %s250 = sphi 0, %s252
      %s253 = sphi 0, %s250
      %s254 = sphi 0, %s253
      %s270 = sphi 0, %s254
    $region4: #{mnist_net_forward.1} parent=1 // loop_header_branch
      %23 = sbr.rel (%p21) target = $region8
    $region5: #{mnist_net_forward.1} parent=1 // loop_body
      %s25 = ssub.s32 %s20, 1
      %s26 = ssub.s32 %s20, 2
      %s27 = sadd.s32 %s20, 1
      %s28 = ssub.s32 %s20, %s27
      %p29 = scmp.eq.s32.totalorder %s28, 0
      %s31 = sadd.s32 %s30, 1
      %s32 = scalar_select %p29, %s30, %s31
      %p35 = pneg %p29
      %p36 = scmp.eq.s32.totalorder %s20, 1
      %p37 = por %p35, %p36
      %p38 = scmp.ne.s32.totalorder %s30, %s33
      %p39 = scmp.eq.s32.totalorder %s20, 0
      %p40 = por %p38, %p39
      %p41 = scmp.ne.s32.totalorder %s30, %s33
      %p42 = scmp.eq.s32.totalorder %s25, 1
      %p43 = por %p41, %p42
      %p44 = scmp.ne.s32.totalorder %s33, %s34
      %p45 = scmp.eq.s32.totalorder %s25, 0
      %p46 = por %p44, %p45
      %p47 = scmp.ne.s32.totalorder %s33, %s34
      %p48 = scmp.eq.s32.totalorder %s26, 1
      %p49 = por %p47, %p48
      %p51 = scmp.ne.s32.totalorder %s34, %s50
      %p52 = scmp.eq.s32.totalorder %s26, 0
      %p53 = por %p51, %p52
      %s54 = ssub.s32 %s20, %s27
      %p55 = scmp.eq.s32.totalorder %s54, 0
      %s57 = sadd.s32 %s56, 1
      %s58 = scalar_select %p55, %s56, %s57
      %p61 = pneg %p55
      %p62 = scmp.eq.s32.totalorder %s20, 1
      %p63 = por %p61, %p62
      %p64 = scmp.ne.s32.totalorder %s56, %s59
      %p65 = scmp.eq.s32.totalorder %s20, 0
      %p66 = por %p64, %p65
      %p67 = scmp.ne.s32.totalorder %s56, %s59
      %p68 = scmp.eq.s32.totalorder %s25, 1
      %p69 = por %p67, %p68
      %p70 = scmp.ne.s32.totalorder %s59, %s60
      %p71 = scmp.eq.s32.totalorder %s25, 0
      %p72 = por %p70, %p71
      %p73 = scmp.ne.s32.totalorder %s59, %s60
      %p74 = scmp.eq.s32.totalorder %s26, 1
      %p75 = por %p73, %p74
      %p77 = scmp.ne.s32.totalorder %s60, %s76
      %p78 = scmp.eq.s32.totalorder %s26, 0
      %p79 = por %p77, %p78
      %s81 = sadd.s32 %s80, 1
      %p84 = scmp.eq.s32.totalorder %s20, 1
      %p85 = scmp.ne.s32.totalorder %s80, %s82
      %p86 = scmp.eq.s32.totalorder %s20, 0
      %p87 = por %p85, %p86
      %p88 = scmp.ne.s32.totalorder %s80, %s82
      %p89 = scmp.eq.s32.totalorder %s25, 1
      %p90 = por %p88, %p89
      %p91 = scmp.ne.s32.totalorder %s82, %s83
      %p92 = scmp.eq.s32.totalorder %s25, 0
      %p93 = por %p91, %p92
      %p94 = scmp.ne.s32.totalorder %s82, %s83
      %p95 = scmp.eq.s32.totalorder %s26, 1
      %p96 = por %p94, %p95
      %p98 = scmp.ne.s32.totalorder %s83, %s97
      %p99 = scmp.eq.s32.totalorder %s26, 0
      %p100 = por %p98, %p99
      %s102 = sadd.s32 %s101, 1
      %p105 = scmp.eq.s32.totalorder %s20, 1
      %p106 = scmp.ne.s32.totalorder %s101, %s103
      %p107 = scmp.eq.s32.totalorder %s20, 0
      %p108 = por %p106, %p107
      %p109 = scmp.ne.s32.totalorder %s101, %s103
      %p110 = scmp.eq.s32.totalorder %s25, 1
      %p111 = por %p109, %p110
      %p112 = scmp.ne.s32.totalorder %s103, %s104
      %p113 = scmp.eq.s32.totalorder %s25, 0
      %p114 = por %p112, %p113
      %p115 = scmp.ne.s32.totalorder %s103, %s104
      %p116 = scmp.eq.s32.totalorder %s26, 1
      %p117 = por %p115, %p116
      %p119 = scmp.ne.s32.totalorder %s104, %s118
      %p120 = scmp.eq.s32.totalorder %s26, 0
      %p121 = por %p119, %p120
      %s123 = sadd.s32 %s122, 1
      %p126 = scmp.eq.s32.totalorder %s20, 1
      %p127 = scmp.ne.s32.totalorder %s122, %s124
      %p128 = scmp.eq.s32.totalorder %s20, 0
      %p129 = por %p127, %p128
      %p130 = scmp.ne.s32.totalorder %s122, %s124
      %p131 = scmp.eq.s32.totalorder %s25, 1
      %p132 = por %p130, %p131
      %p133 = scmp.ne.s32.totalorder %s124, %s125
      %p134 = scmp.eq.s32.totalorder %s25, 0
      %p135 = por %p133, %p134
      %p136 = scmp.ne.s32.totalorder %s124, %s125
      %p137 = scmp.eq.s32.totalorder %s26, 1
      %p138 = por %p136, %p137
      %p140 = scmp.ne.s32.totalorder %s125, %s139
      %p141 = scmp.eq.s32.totalorder %s26, 0
      %p142 = por %p140, %p141
      %s144 = sadd.s32 %s143, 1
      %p147 = scmp.eq.s32.totalorder %s20, 1
      %p148 = scmp.ne.s32.totalorder %s143, %s145
      %p149 = scmp.eq.s32.totalorder %s20, 0
      %p150 = por %p148, %p149
      %p151 = scmp.ne.s32.totalorder %s143, %s145
      %p152 = scmp.eq.s32.totalorder %s25, 1
      %p153 = por %p151, %p152
      %p154 = scmp.ne.s32.totalorder %s145, %s146
      %p155 = scmp.eq.s32.totalorder %s25, 0
      %p156 = por %p154, %p155
      %p157 = scmp.ne.s32.totalorder %s145, %s146
      %p158 = scmp.eq.s32.totalorder %s26, 1
      %p159 = por %p157, %p158
      %p161 = scmp.ne.s32.totalorder %s146, %s160
      %p162 = scmp.eq.s32.totalorder %s26, 0
      %p163 = por %p161, %p162
      %s165 = sadd.s32 %s164, 1
      %p168 = scmp.eq.s32.totalorder %s20, 1
      %p169 = scmp.ne.s32.totalorder %s164, %s166
      %p170 = scmp.eq.s32.totalorder %s20, 0
      %p171 = por %p169, %p170
      %p172 = scmp.ne.s32.totalorder %s164, %s166
      %p173 = scmp.eq.s32.totalorder %s25, 1
      %p174 = por %p172, %p173
      %p175 = scmp.ne.s32.totalorder %s166, %s167
      %p176 = scmp.eq.s32.totalorder %s25, 0
      %p177 = por %p175, %p176
      %p178 = scmp.ne.s32.totalorder %s166, %s167
      %p179 = scmp.eq.s32.totalorder %s26, 1
      %p180 = por %p178, %p179
      %p182 = scmp.ne.s32.totalorder %s167, %s181
      %p183 = scmp.eq.s32.totalorder %s26, 0
      %p184 = por %p182, %p183
      %s186 = sadd.s32 %s185, 1
      %p189 = scmp.eq.s32.totalorder %s20, 1
      %p190 = scmp.ne.s32.totalorder %s185, %s187
      %p191 = scmp.eq.s32.totalorder %s20, 0
      %p192 = por %p190, %p191
      %p193 = scmp.ne.s32.totalorder %s185, %s187
      %p194 = scmp.eq.s32.totalorder %s25, 1
      %p195 = por %p193, %p194
      %p196 = scmp.ne.s32.totalorder %s187, %s188
      %p197 = scmp.eq.s32.totalorder %s25, 0
      %p198 = por %p196, %p197
      %p199 = scmp.ne.s32.totalorder %s187, %s188
      %p200 = scmp.eq.s32.totalorder %s26, 1
      %p201 = por %p199, %p200
      %p203 = scmp.ne.s32.totalorder %s188, %s202
      %p204 = scmp.eq.s32.totalorder %s26, 0
      %p205 = por %p203, %p204
      %s207 = sadd.s32 %s206, 1
      %p210 = scmp.eq.s32.totalorder %s20, 1
      %p211 = scmp.ne.s32.totalorder %s206, %s208
      %p212 = scmp.eq.s32.totalorder %s20, 0
      %p213 = por %p211, %p212
      %p214 = scmp.ne.s32.totalorder %s206, %s208
      %p215 = scmp.eq.s32.totalorder %s25, 1
      %p216 = por %p214, %p215
      %p217 = scmp.ne.s32.totalorder %s208, %s209
      %p218 = scmp.eq.s32.totalorder %s25, 0
      %p219 = por %p217, %p218
      %p220 = scmp.ne.s32.totalorder %s208, %s209
      %p221 = scmp.eq.s32.totalorder %s26, 1
      %p222 = por %p220, %p221
      %p224 = scmp.ne.s32.totalorder %s209, %s223
      %p225 = scmp.eq.s32.totalorder %s26, 0
      %p226 = por %p224, %p225
      %s228 = sadd.s32 %s227, 1
      %p231 = scmp.eq.s32.totalorder %s20, 1
      %p232 = scmp.ne.s32.totalorder %s227, %s229
      %p233 = scmp.eq.s32.totalorder %s20, 0
      %p234 = por %p232, %p233
      %p235 = scmp.ne.s32.totalorder %s227, %s229
      %p236 = scmp.eq.s32.totalorder %s25, 1
      %p237 = por %p235, %p236
      %p238 = scmp.ne.s32.totalorder %s229, %s230
      %p239 = scmp.eq.s32.totalorder %s25, 0
      %p240 = por %p238, %p239
      %p241 = scmp.ne.s32.totalorder %s229, %s230
      %p242 = scmp.eq.s32.totalorder %s26, 1
      %p243 = por %p241, %p242
      %p245 = scmp.ne.s32.totalorder %s230, %s244
      %p246 = scmp.eq.s32.totalorder %s26, 0
      %p247 = por %p245, %p246
      %s248 = ssub.s32 %s20, %s27
      %p249 = scmp.eq.s32.totalorder %s248, 0
      %s251 = sadd.s32 %s250, 1
      %s252 = scalar_select %p249, %s250, %s251
      %p255 = pneg %p249
      %p256 = scmp.eq.s32.totalorder %s20, 1
      %p257 = por %p255, %p256
      %p258 = scmp.ne.s32.totalorder %s250, %s253
      %p259 = scmp.eq.s32.totalorder %s20, 0
      %p260 = por %p258, %p259
      %p261 = scmp.ne.s32.totalorder %s250, %s253
      %p262 = scmp.eq.s32.totalorder %s25, 1
      %p263 = por %p261, %p262
      %p264 = scmp.ne.s32.totalorder %s253, %s254
      %p265 = scmp.eq.s32.totalorder %s25, 0
      %p266 = por %p264, %p265
      %p267 = scmp.ne.s32.totalorder %s253, %s254
      %p268 = scmp.eq.s32.totalorder %s26, 1
      %p269 = por %p267, %p268
      %p271 = scmp.ne.s32.totalorder %s254, %s270
      %p272 = scmp.eq.s32.totalorder %s26, 0
      %p273 = por %p271, %p272
      %p274 = scmp.le.s32.totalorder 1, %s20
      %p275 = scmp.lt.s32.totalorder %s20, 3
      %p276 = pnand %p274, %p275
      %p277 = pneg %p276
      // Predicated region
      $region9: #{mnist_net_forward.1} parent=5 // pred_check
        _
      $region10: #{mnist_net_forward.1} parent=5 // pred_check_branch
        %279 = sbr.rel (%p276) target = $region12
      $region11: #{mnist_net_forward.1} parent=5 // pred_region
        %s280 = ssub.s32 %s20, 1
        // Predicated region
        $region13: #{mnist_net_forward.1} parent=11 // pred_check
          %p281 = pneg %p93
        $region14: #{mnist_net_forward.1} parent=11 // pred_check_branch
          %283 = sbr.rel (%p281) target = $region16
        $region15: #{mnist_net_forward.1} parent=11 // pred_region
          _
        $region16: #{mnist_net_forward.1} parent=11 // pred_fallthru
          _
        // Predicated region
        $region17: #{mnist_net_forward.1} parent=11 // pred_check
          %p284 = pneg %p114
        $region18: #{mnist_net_forward.1} parent=11 // pred_check_branch
          %286 = sbr.rel (%p284) target = $region20
        $region19: #{mnist_net_forward.1} parent=11 // pred_region
          _
        $region20: #{mnist_net_forward.1} parent=11 // pred_fallthru
          _
        // Predicated region
        $region21: #{mnist_net_forward.1} parent=11 // pred_check
          %p287 = pneg %p135
        $region22: #{mnist_net_forward.1} parent=11 // pred_check_branch
          %289 = sbr.rel (%p287) target = $region24
        $region23: #{mnist_net_forward.1} parent=11 // pred_region
          _
        $region24: #{mnist_net_forward.1} parent=11 // pred_fallthru
          _
        // Predicated region
        $region25: #{mnist_net_forward.1} parent=11 // pred_check
          %p290 = pneg %p156
        $region26: #{mnist_net_forward.1} parent=11 // pred_check_branch
          %292 = sbr.rel (%p290) target = $region28
        $region27: #{mnist_net_forward.1} parent=11 // pred_region
          _
        $region28: #{mnist_net_forward.1} parent=11 // pred_fallthru
          _
        // Predicated region
        $region29: #{mnist_net_forward.1} parent=11 // pred_check
          %p293 = pneg %p177
        $region30: #{mnist_net_forward.1} parent=11 // pred_check_branch
          %295 = sbr.rel (%p293) target = $region32
        $region31: #{mnist_net_forward.1} parent=11 // pred_region
          _
        $region32: #{mnist_net_forward.1} parent=11 // pred_fallthru
          _
        // Predicated region
        $region33: #{mnist_net_forward.1} parent=11 // pred_check
          %p296 = pneg %p198
        $region34: #{mnist_net_forward.1} parent=11 // pred_check_branch
          %298 = sbr.rel (%p296) target = $region36
        $region35: #{mnist_net_forward.1} parent=11 // pred_region
          %s300 = ssub.s32 16, 16
          %301 = vsyncadd [#allocation6], %s300
          %s303 = sshll.u32 %s7, 4
          %s304 = int_to_ptr.vmem [resolvable:$true] %s303
          %306 = dma.vmem_to_smem %s304, 16, [#allocation4], [#allocation6]
        $region36: #{mnist_net_forward.1} parent=11 // pred_fallthru
          _
        // Predicated region
        $region37: #{mnist_net_forward.1} parent=11 // pred_check
          %p307 = pneg %p219
        $region38: #{mnist_net_forward.1} parent=11 // pred_check_branch
          %309 = sbr.rel (%p307) target = $region40
        $region39: #{mnist_net_forward.1} parent=11 // pred_region
          _
        $region40: #{mnist_net_forward.1} parent=11 // pred_fallthru
          _
        // Predicated region
        $region41: #{mnist_net_forward.1} parent=11 // pred_check
          %p310 = pneg %p240
        $region42: #{mnist_net_forward.1} parent=11 // pred_check_branch
          %312 = sbr.rel (%p310) target = $region44
        $region43: #{mnist_net_forward.1} parent=11 // pred_region
          _
        $region44: #{mnist_net_forward.1} parent=11 // pred_fallthru
          _
      $region12: #{mnist_net_forward.1} parent=5 // pred_fallthru
        _
      %p313 = scmp.lt.s32.totalorder %s20, 2
      // Predicated region
      $region45: #{mnist_net_forward.1} parent=5 // pred_check
        %p314 = pneg %p313
      $region46: #{mnist_net_forward.1} parent=5 // pred_check_branch
        %316 = sbr.rel (%p314) target = $region48
      $region47: #{mnist_net_forward.1} parent=5 // pred_region
        // Predicated region
        $region49: #{mnist_net_forward.1} parent=47 // pred_check
          %p317 = pneg %p40
        $region50: #{mnist_net_forward.1} parent=47 // pred_check_branch
          %319 = sbr.rel (%p317) target = $region52
        $region51: #{mnist_net_forward.1} parent=47 // pred_region
          %p320 = scmp.lt.s32.totalorder %s20, 1
          %s321 = scalar_select %p320, %s20, 1
          %s322 = smul.addr %s321, 64
          %s323 = smul.addr %s322, 8
          %s324 = scalar_lea.vmem %s0, %s323
        $region52: #{mnist_net_forward.1} parent=47 // pred_fallthru
          _
        // Predicated region
        $region53: #{mnist_net_forward.1} parent=47 // pred_check
          %p325 = pneg %p66
        $region54: #{mnist_net_forward.1} parent=47 // pred_check_branch
          %327 = sbr.rel (%p325) target = $region56
        $region55: #{mnist_net_forward.1} parent=47 // pred_region
          %p328 = scmp.lt.s32.totalorder %s20, 1
          %s329 = scalar_select %p328, %s20, 1
          %s330 = smul.addr %s329, 64
          %s331 = smul.addr %s330, 8
          %s332 = scalar_lea.vmem %s1, %s331
        $region56: #{mnist_net_forward.1} parent=47 // pred_fallthru
          _
      $region48: #{mnist_net_forward.1} parent=5 // pred_fallthru
        _
      %p333 = scmp.le.s32.totalorder 1, %s20
      %p334 = scmp.lt.s32.totalorder %s20, 3
      %p335 = pnand %p333, %p334
      %p336 = pneg %p335
      // Predicated region
      $region57: #{mnist_net_forward.1} parent=5 // pred_check
        _
      $region58: #{mnist_net_forward.1} parent=5 // pred_check_branch
        %338 = sbr.rel (%p335) target = $region60
      $region59: #{mnist_net_forward.1} parent=5 // pred_region
        %s339 = ssub.s32 %s20, 1
        // Predicated region
        $region61: #{mnist_net_forward.1} parent=59 // pred_check
          %p340 = pneg %p198
        $region62: #{mnist_net_forward.1} parent=59 // pred_check_branch
          %342 = sbr.rel (%p340) target = $region64
        $region63: #{mnist_net_forward.1} parent=59 // pred_region
          %343 = dma.done [#allocation6], 16
        $region64: #{mnist_net_forward.1} parent=59 // pred_fallthru
          _
        %344 = sfence
        %p345 = scmp.lt.s32.totalorder %s25, 1
        %s346 = scalar_select %p345, %s25, 1
        %s347 = smul.addr %s346, 64
        %s348 = smul.addr %s347, 8
        %s349 = scalar_lea.vmem %s0, %s348
        %p350 = pneg %p46
        %p351 = pneg %p43
        %p352 = scmp.lt.s32.totalorder %s25, 1
        %s353 = scalar_select %p352, %s25, 1
        %s354 = smul.addr %s353, 64
        %s355 = smul.addr %s354, 8
        %s356 = scalar_lea.vmem %s1, %s355
        %p357 = pneg %p72
        %p358 = pneg %p69
        %p359 = pneg %p93
        %p360 = pneg %p90
        %p361 = pneg %p114
        %p362 = pneg %p111
        %p363 = pneg %p135
        %p364 = pneg %p132
        %p365 = pneg %p156
        %p366 = pneg %p153
        %p367 = pneg %p177
        %p368 = pneg %p174
        %p369 = pneg %p198
        %p370 = pneg %p195
        %p371 = pneg %p219
        %p372 = pneg %p216
        %p373 = pneg %p240
        %p374 = pneg %p237
        %p375 = pneg %p266
        %p376 = pneg %p263
        %s377 = sand.u32 %s253, 1
        %s378 = scalar_lea.sflag [#allocation5], %s377
        %s379 = sand.u32 %s253, 1
        %s380 = scalar_lea.vmem [#allocation7], %s379
        %p381 = scmp.lt.s32.totalorder %s25, 1
        %s382 = scalar_select %p381, %s25, 1
        %s383 = smul.addr %s382, 64
        %s384 = smul.addr %s383, 8
        %s385 = scalar_lea.vmem %s0, %s384
        %p386 = scmp.lt.s32.totalorder %s25, 1
        %s387 = scalar_select %p386, %s25, 1
        %s388 = smul.addr %s387, 64
        %s389 = smul.addr %s388, 8
        %s390 = scalar_lea.vmem %s1, %s389
        %v391 = vld [vmem:[%s385] sm:$0xff]
        %v392 = vld [vmem:[%s385 + $0x8] sm:$0xff]
        %v393 = vld [vmem:[%s385 + $0x10] sm:$0xff]
        %v394 = vld [vmem:[%s385 + $0x18] sm:$0xff]
        %v395 = vld [vmem:[%s385 + $0x20] sm:$0xff]
        %v396 = vld [vmem:[%s385 + $0x28] sm:$0xff]
        %v397 = vld [vmem:[%s385 + $0x30] sm:$0xff]
        %v398 = vld [vmem:[%s385 + $0x38] sm:$0xff]
        %v399 = vld [vmem:[%s385 + $0x40] sm:$0xff]
        %v400 = vld [vmem:[%s385 + $0x48] sm:$0xff]
        %v401 = vld [vmem:[%s385 + $0x50] sm:$0xff]
        %v402 = vld [vmem:[%s385 + $0x58] sm:$0xff]
        %v403 = vld [vmem:[%s385 + $0x60] sm:$0xff]
        %v404 = vld [vmem:[%s385 + $0x68] sm:$0xff]
        %v405 = vld [vmem:[%s385 + $0x70] sm:$0xff]
        %v406 = vld [vmem:[%s385 + $0x78] sm:$0xff]
        %v407 = vld [vmem:[%s385 + $0x80] sm:$0xff]
        %v408 = vld [vmem:[%s385 + $0x88] sm:$0xff]
        %v409 = vld [vmem:[%s385 + $0x90] sm:$0xff]
        %v410 = vld [vmem:[%s385 + $0x98] sm:$0xff]
        %v411 = vld [vmem:[%s385 + $0xa0] sm:$0xff]
        %v412 = vld [vmem:[%s385 + $0xa8] sm:$0xff]
        %v413 = vld [vmem:[%s385 + $0xb0] sm:$0xff]
        %v414 = vld [vmem:[%s385 + $0xb8] sm:$0xff]
        %v415 = vld [vmem:[%s385 + $0xc0] sm:$0xff]
        %v416 = vld [vmem:[%s385 + $0xc8] sm:$0xff]
        %v417 = vld [vmem:[%s385 + $0xd0] sm:$0xff]
        %v418 = vld [vmem:[%s385 + $0xd8] sm:$0xff]
        %v419 = vld [vmem:[%s385 + $0xe0] sm:$0xff]
        %v420 = vld [vmem:[%s385 + $0xe8] sm:$0xff]
        %v421 = vld [vmem:[%s385 + $0xf0] sm:$0xff]
        %v422 = vld [vmem:[%s385 + $0xf8] sm:$0xff]
        %v423 = vld [vmem:[%s385 + $0x100] sm:$0xff]
        %v424 = vld [vmem:[%s385 + $0x108] sm:$0xff]
        %v425 = vld [vmem:[%s385 + $0x110] sm:$0xff]
        %v426 = vld [vmem:[%s385 + $0x118] sm:$0xff]
        %v427 = vld [vmem:[%s385 + $0x120] sm:$0xff]
        %v428 = vld [vmem:[%s385 + $0x128] sm:$0xff]
        %v429 = vld [vmem:[%s385 + $0x130] sm:$0xff]
        %v430 = vld [vmem:[%s385 + $0x138] sm:$0xff]
        %v431 = vld [vmem:[%s385 + $0x140] sm:$0xff]
        %v432 = vld [vmem:[%s385 + $0x148] sm:$0xff]
        %v433 = vld [vmem:[%s385 + $0x150] sm:$0xff]
        %v434 = vld [vmem:[%s385 + $0x158] sm:$0xff]
        %v435 = vld [vmem:[%s385 + $0x160] sm:$0xff]
        %v436 = vld [vmem:[%s385 + $0x168] sm:$0xff]
        %v437 = vld [vmem:[%s385 + $0x170] sm:$0xff]
        %v438 = vld [vmem:[%s385 + $0x178] sm:$0xff]
        %v439 = vld [vmem:[%s385 + $0x180] sm:$0xff]
        %v440 = vld [vmem:[%s385 + $0x188] sm:$0xff]
        %v441 = vld [vmem:[%s385 + $0x190] sm:$0xff]
        %v442 = vld [vmem:[%s385 + $0x198] sm:$0xff]
        %v443 = vld [vmem:[%s385 + $0x1a0] sm:$0xff]
        %v444 = vld [vmem:[%s385 + $0x1a8] sm:$0xff]
        %v445 = vld [vmem:[%s385 + $0x1b0] sm:$0xff]
        %v446 = vld [vmem:[%s385 + $0x1b8] sm:$0xff]
        %v447 = vld [vmem:[%s385 + $0x1] sm:$0xff]
        %v448 = vld [vmem:[%s385 + $0x9] sm:$0xff]
        %v449 = vld [vmem:[%s385 + $0x11] sm:$0xff]
        %v450 = vld [vmem:[%s385 + $0x19] sm:$0xff]
        %v451 = vld [vmem:[%s385 + $0x21] sm:$0xff]
        %v452 = vld [vmem:[%s385 + $0x29] sm:$0xff]
        %v453 = vld [vmem:[%s385 + $0x31] sm:$0xff]
        %v454 = vld [vmem:[%s385 + $0x39] sm:$0xff]
        %v455 = vld [vmem:[%s385 + $0x41] sm:$0xff]
        %v456 = vld [vmem:[%s385 + $0x49] sm:$0xff]
        %v457 = vld [vmem:[%s385 + $0x51] sm:$0xff]
        %v458 = vld [vmem:[%s385 + $0x59] sm:$0xff]
        %v459 = vld [vmem:[%s385 + $0x61] sm:$0xff]
        %v460 = vld [vmem:[%s385 + $0x69] sm:$0xff]
        %v461 = vld [vmem:[%s385 + $0x71] sm:$0xff]
        %v462 = vld [vmem:[%s385 + $0x79] sm:$0xff]
        %v463 = vld [vmem:[%s385 + $0x81] sm:$0xff]
        %v464 = vld [vmem:[%s385 + $0x89] sm:$0xff]
        %v465 = vld [vmem:[%s385 + $0x91] sm:$0xff]
        %v466 = vld [vmem:[%s385 + $0x99] sm:$0xff]
        %v467 = vld [vmem:[%s385 + $0xa1] sm:$0xff]
        %v468 = vld [vmem:[%s385 + $0xa9] sm:$0xff]
        %v469 = vld [vmem:[%s385 + $0xb1] sm:$0xff]
        %v470 = vld [vmem:[%s385 + $0xb9] sm:$0xff]
        %v471 = vld [vmem:[%s385 + $0xc1] sm:$0xff]
        %v472 = vld [vmem:[%s385 + $0xc9] sm:$0xff]
        %v473 = vld [vmem:[%s385 + $0xd1] sm:$0xff]
        %v474 = vld [vmem:[%s385 + $0xd9] sm:$0xff]
        %v475 = vld [vmem:[%s385 + $0xe1] sm:$0xff]
        %v476 = vld [vmem:[%s385 + $0xe9] sm:$0xff]
        %v477 = vld [vmem:[%s385 + $0xf1] sm:$0xff]
        %v478 = vld [vmem:[%s385 + $0xf9] sm:$0xff]
        %v479 = vld [vmem:[%s385 + $0x101] sm:$0xff]
        %v480 = vld [vmem:[%s385 + $0x109] sm:$0xff]
        %v481 = vld [vmem:[%s385 + $0x111] sm:$0xff]
        %v482 = vld [vmem:[%s385 + $0x119] sm:$0xff]
        %v483 = vld [vmem:[%s385 + $0x121] sm:$0xff]
        %v484 = vld [vmem:[%s385 + $0x129] sm:$0xff]
        %v485 = vld [vmem:[%s385 + $0x131] sm:$0xff]
        %v486 = vld [vmem:[%s385 + $0x139] sm:$0xff]
        %v487 = vld [vmem:[%s385 + $0x141] sm:$0xff]
        %v488 = vld [vmem:[%s385 + $0x149] sm:$0xff]
        %v489 = vld [vmem:[%s385 + $0x151] sm:$0xff]
        %v490 = vld [vmem:[%s385 + $0x159] sm:$0xff]
        %v491 = vld [vmem:[%s385 + $0x161] sm:$0xff]
        %v492 = vld [vmem:[%s385 + $0x169] sm:$0xff]
        %v493 = vld [vmem:[%s385 + $0x171] sm:$0xff]
        %v494 = vld [vmem:[%s385 + $0x179] sm:$0xff]
        %v495 = vld [vmem:[%s385 + $0x181] sm:$0xff]
        %v496 = vld [vmem:[%s385 + $0x189] sm:$0xff]
        %v497 = vld [vmem:[%s385 + $0x191] sm:$0xff]
        %v498 = vld [vmem:[%s385 + $0x199] sm:$0xff]
        %v499 = vld [vmem:[%s385 + $0x1a1] sm:$0xff]
        %v500 = vld [vmem:[%s385 + $0x1a9] sm:$0xff]
        %v501 = vld [vmem:[%s385 + $0x1b1] sm:$0xff]
        %v502 = vld [vmem:[%s385 + $0x1b9] sm:$0xff]
        %v503 = vld [vmem:[%s390] sm:$0xff]
        %v504 = vld [vmem:[%s390 + $0x8] sm:$0xff]
        %v505 = vld [vmem:[%s390 + $0x10] sm:$0xff]
        %v506 = vld [vmem:[%s390 + $0x18] sm:$0xff]
        %v507 = vld [vmem:[%s390 + $0x20] sm:$0xff]
        %v508 = vld [vmem:[%s390 + $0x28] sm:$0xff]
        %v509 = vld [vmem:[%s390 + $0x30] sm:$0xff]
        %v510 = vld [vmem:[%s390 + $0x38] sm:$0xff]
        %v511 = vld [vmem:[%s390 + $0x40] sm:$0xff]
        %v512 = vld [vmem:[%s390 + $0x48] sm:$0xff]
        %v513 = vld [vmem:[%s390 + $0x50] sm:$0xff]
        %v514 = vld [vmem:[%s390 + $0x58] sm:$0xff]
        %v515 = vld [vmem:[%s390 + $0x60] sm:$0xff]
        %v516 = vld [vmem:[%s390 + $0x68] sm:$0xff]
        %v517 = vld [vmem:[%s390 + $0x70] sm:$0xff]
        %v518 = vld [vmem:[%s390 + $0x78] sm:$0xff]
        %v519 = vld [vmem:[%s390 + $0x80] sm:$0xff]
        %v520 = vld [vmem:[%s390 + $0x88] sm:$0xff]
        %v521 = vld [vmem:[%s390 + $0x90] sm:$0xff]
        %v522 = vld [vmem:[%s390 + $0x98] sm:$0xff]
        %v523 = vld [vmem:[%s390 + $0xa0] sm:$0xff]
        %v524 = vld [vmem:[%s390 + $0xa8] sm:$0xff]
        %v525 = vld [vmem:[%s390 + $0xb0] sm:$0xff]
        %v526 = vld [vmem:[%s390 + $0xb8] sm:$0xff]
        %v527 = vld [vmem:[%s390 + $0xc0] sm:$0xff]
        %v528 = vld [vmem:[%s390 + $0xc8] sm:$0xff]
        %v529 = vld [vmem:[%s390 + $0xd0] sm:$0xff]
        %v530 = vld [vmem:[%s390 + $0xd8] sm:$0xff]
        %v531 = vld [vmem:[%s390 + $0xe0] sm:$0xff]
        %v532 = vld [vmem:[%s390 + $0xe8] sm:$0xff]
        %v533 = vld [vmem:[%s390 + $0xf0] sm:$0xff]
        %v534 = vld [vmem:[%s390 + $0xf8] sm:$0xff]
        %v535 = vld [vmem:[%s390 + $0x100] sm:$0xff]
        %v536 = vld [vmem:[%s390 + $0x108] sm:$0xff]
        %v537 = vld [vmem:[%s390 + $0x110] sm:$0xff]
        %v538 = vld [vmem:[%s390 + $0x118] sm:$0xff]
        %v539 = vld [vmem:[%s390 + $0x120] sm:$0xff]
        %v540 = vld [vmem:[%s390 + $0x128] sm:$0xff]
        %v541 = vld [vmem:[%s390 + $0x130] sm:$0xff]
        %v542 = vld [vmem:[%s390 + $0x138] sm:$0xff]
        %v543 = vld [vmem:[%s390 + $0x140] sm:$0xff]
        %v544 = vld [vmem:[%s390 + $0x148] sm:$0xff]
        %v545 = vld [vmem:[%s390 + $0x150] sm:$0xff]
        %v546 = vld [vmem:[%s390 + $0x158] sm:$0xff]
        %v547 = vld [vmem:[%s390 + $0x160] sm:$0xff]
        %v548 = vld [vmem:[%s390 + $0x168] sm:$0xff]
        %v549 = vld [vmem:[%s390 + $0x170] sm:$0xff]
        %v550 = vld [vmem:[%s390 + $0x178] sm:$0xff]
        %v551 = vld [vmem:[%s390 + $0x180] sm:$0xff]
        %v552 = vld [vmem:[%s390 + $0x188] sm:$0xff]
        %v553 = vld [vmem:[%s390 + $0x190] sm:$0xff]
        %v554 = vld [vmem:[%s390 + $0x198] sm:$0xff]
        %v555 = vld [vmem:[%s390 + $0x1a0] sm:$0xff]
        %v556 = vld [vmem:[%s390 + $0x1a8] sm:$0xff]
        %v557 = vld [vmem:[%s390 + $0x1b0] sm:$0xff]
        %v558 = vld [vmem:[%s390 + $0x1b8] sm:$0xff]
        %v559 = vld [vmem:[%s390 + $0x1] sm:$0xff]
        %v560 = vld [vmem:[%s390 + $0x9] sm:$0xff]
        %v561 = vld [vmem:[%s390 + $0x11] sm:$0xff]
        %v562 = vld [vmem:[%s390 + $0x19] sm:$0xff]
        %v563 = vld [vmem:[%s390 + $0x21] sm:$0xff]
        %v564 = vld [vmem:[%s390 + $0x29] sm:$0xff]
        %v565 = vld [vmem:[%s390 + $0x31] sm:$0xff]
        %v566 = vld [vmem:[%s390 + $0x39] sm:$0xff]
        %v567 = vld [vmem:[%s390 + $0x41] sm:$0xff]
        %v568 = vld [vmem:[%s390 + $0x49] sm:$0xff]
        %v569 = vld [vmem:[%s390 + $0x51] sm:$0xff]
        %v570 = vld [vmem:[%s390 + $0x59] sm:$0xff]
        %v571 = vld [vmem:[%s390 + $0x61] sm:$0xff]
        %v572 = vld [vmem:[%s390 + $0x69] sm:$0xff]
        %v573 = vld [vmem:[%s390 + $0x71] sm:$0xff]
        %v574 = vld [vmem:[%s390 + $0x79] sm:$0xff]
        %v575 = vld [vmem:[%s390 + $0x81] sm:$0xff]
        %v576 = vld [vmem:[%s390 + $0x89] sm:$0xff]
        %v577 = vld [vmem:[%s390 + $0x91] sm:$0xff]
        %v578 = vld [vmem:[%s390 + $0x99] sm:$0xff]
        %v579 = vld [vmem:[%s390 + $0xa1] sm:$0xff]
        %v580 = vld [vmem:[%s390 + $0xa9] sm:$0xff]
        %v581 = vld [vmem:[%s390 + $0xb1] sm:$0xff]
        %v582 = vld [vmem:[%s390 + $0xb9] sm:$0xff]
        %v583 = vld [vmem:[%s390 + $0xc1] sm:$0xff]
        %v584 = vld [vmem:[%s390 + $0xc9] sm:$0xff]
        %v585 = vld [vmem:[%s390 + $0xd1] sm:$0xff]
        %v586 = vld [vmem:[%s390 + $0xd9] sm:$0xff]
        %v587 = vld [vmem:[%s390 + $0xe1] sm:$0xff]
        %v588 = vld [vmem:[%s390 + $0xe9] sm:$0xff]
        %v589 = vld [vmem:[%s390 + $0xf1] sm:$0xff]
        %v590 = vld [vmem:[%s390 + $0xf9] sm:$0xff]
        %v591 = vld [vmem:[%s390 + $0x101] sm:$0xff]
        %v592 = vld [vmem:[%s390 + $0x109] sm:$0xff]
        %v593 = vld [vmem:[%s390 + $0x111] sm:$0xff]
        %v594 = vld [vmem:[%s390 + $0x119] sm:$0xff]
        %v595 = vld [vmem:[%s390 + $0x121] sm:$0xff]
        %v596 = vld [vmem:[%s390 + $0x129] sm:$0xff]
        %v597 = vld [vmem:[%s390 + $0x131] sm:$0xff]
        %v598 = vld [vmem:[%s390 + $0x139] sm:$0xff]
        %v599 = vld [vmem:[%s390 + $0x141] sm:$0xff]
        %v600 = vld [vmem:[%s390 + $0x149] sm:$0xff]
        %v601 = vld [vmem:[%s390 + $0x151] sm:$0xff]
        %v602 = vld [vmem:[%s390 + $0x159] sm:$0xff]
        %v603 = vld [vmem:[%s390 + $0x161] sm:$0xff]
        %v604 = vld [vmem:[%s390 + $0x169] sm:$0xff]
        %v605 = vld [vmem:[%s390 + $0x171] sm:$0xff]
        %v606 = vld [vmem:[%s390 + $0x179] sm:$0xff]
        %v607 = vld [vmem:[%s390 + $0x181] sm:$0xff]
        %v608 = vld [vmem:[%s390 + $0x189] sm:$0xff]
        %v609 = vld [vmem:[%s390 + $0x191] sm:$0xff]
        %v610 = vld [vmem:[%s390 + $0x199] sm:$0xff]
        %v611 = vld [vmem:[%s390 + $0x1a1] sm:$0xff]
        %v612 = vld [vmem:[%s390 + $0x1a9] sm:$0xff]
        %v613 = vld [vmem:[%s390 + $0x1b1] sm:$0xff]
        %v614 = vld [vmem:[%s390 + $0x1b9] sm:$0xff]
        %v615 = vld [vmem:[%s2] sm:$0x1]
        %v616 = vld [vmem:[%s2 + $0x1] sm:$0x1]
        %v617 = vld [vmem:[%s2 + $0x2] sm:$0x1]
        %619 = vset.pattern.permute.xlu0 0
        %620 = vperm.xlu0 %619, %v391
        %v621 = vpop.permute.xlu0 %620
        %624 = vset.pattern.permute.xlu0 0
        %625 = vperm.xlu0 %624, %v392
        %v626 = vpop.permute.xlu0 %625
        %629 = vset.pattern.permute.xlu0 0
        %630 = vperm.xlu0 %629, %v393
        %v631 = vpop.permute.xlu0 %630
        %634 = vset.pattern.permute.xlu0 0
        %635 = vperm.xlu0 %634, %v394
        %v636 = vpop.permute.xlu0 %635
        %639 = vset.pattern.permute.xlu0 0
        %640 = vperm.xlu0 %639, %v395
        %v641 = vpop.permute.xlu0 %640
        %644 = vset.pattern.permute.xlu0 0
        %645 = vperm.xlu0 %644, %v396
        %v646 = vpop.permute.xlu0 %645
        %649 = vset.pattern.permute.xlu0 0
        %650 = vperm.xlu0 %649, %v397
        %v651 = vpop.permute.xlu0 %650
        %654 = vset.pattern.permute.xlu0 0
        %655 = vperm.xlu0 %654, %v398
        %v656 = vpop.permute.xlu0 %655
        %659 = vset.pattern.permute.xlu0 0
        %660 = vperm.xlu0 %659, %v399
        %v661 = vpop.permute.xlu0 %660
        %664 = vset.pattern.permute.xlu0 0
        %665 = vperm.xlu0 %664, %v400
        %v666 = vpop.permute.xlu0 %665
        %669 = vset.pattern.permute.xlu0 0
        %670 = vperm.xlu0 %669, %v401
        %v671 = vpop.permute.xlu0 %670
        %674 = vset.pattern.permute.xlu0 0
        %675 = vperm.xlu0 %674, %v402
        %v676 = vpop.permute.xlu0 %675
        %679 = vset.pattern.permute.xlu0 0
        %680 = vperm.xlu0 %679, %v403
        %v681 = vpop.permute.xlu0 %680
        %684 = vset.pattern.permute.xlu0 0
        %685 = vperm.xlu0 %684, %v404
        %v686 = vpop.permute.xlu0 %685
        %689 = vset.pattern.permute.xlu0 0
        %690 = vperm.xlu0 %689, %v405
        %v691 = vpop.permute.xlu0 %690
        %694 = vset.pattern.permute.xlu0 0
        %695 = vperm.xlu0 %694, %v406
        %v696 = vpop.permute.xlu0 %695
        %699 = vset.pattern.permute.xlu0 0
        %700 = vperm.xlu0 %699, %v407
        %v701 = vpop.permute.xlu0 %700
        %704 = vset.pattern.permute.xlu0 0
        %705 = vperm.xlu0 %704, %v408
        %v706 = vpop.permute.xlu0 %705
        %709 = vset.pattern.permute.xlu0 0
        %710 = vperm.xlu0 %709, %v409
        %v711 = vpop.permute.xlu0 %710
        %714 = vset.pattern.permute.xlu0 0
        %715 = vperm.xlu0 %714, %v410
        %v716 = vpop.permute.xlu0 %715
        %719 = vset.pattern.permute.xlu0 0
        %720 = vperm.xlu0 %719, %v411
        %v721 = vpop.permute.xlu0 %720
        %724 = vset.pattern.permute.xlu0 0
        %725 = vperm.xlu0 %724, %v412
        %v726 = vpop.permute.xlu0 %725
        %729 = vset.pattern.permute.xlu0 0
        %730 = vperm.xlu0 %729, %v413
        %v731 = vpop.permute.xlu0 %730
        %734 = vset.pattern.permute.xlu0 0
        %735 = vperm.xlu0 %734, %v414
        %v736 = vpop.permute.xlu0 %735
        %739 = vset.pattern.permute.xlu0 0
        %740 = vperm.xlu0 %739, %v415
        %v741 = vpop.permute.xlu0 %740
        %744 = vset.pattern.permute.xlu0 0
        %745 = vperm.xlu0 %744, %v416
        %v746 = vpop.permute.xlu0 %745
        %749 = vset.pattern.permute.xlu0 0
        %750 = vperm.xlu0 %749, %v417
        %v751 = vpop.permute.xlu0 %750
        %754 = vset.pattern.permute.xlu0 0
        %755 = vperm.xlu0 %754, %v418
        %v756 = vpop.permute.xlu0 %755
        %759 = vset.pattern.permute.xlu0 0
        %760 = vperm.xlu0 %759, %v419
        %v761 = vpop.permute.xlu0 %760
        %764 = vset.pattern.permute.xlu0 0
        %765 = vperm.xlu0 %764, %v420
        %v766 = vpop.permute.xlu0 %765
        %769 = vset.pattern.permute.xlu0 0
        %770 = vperm.xlu0 %769, %v421
        %v771 = vpop.permute.xlu0 %770
        %774 = vset.pattern.permute.xlu0 0
        %775 = vperm.xlu0 %774, %v422
        %v776 = vpop.permute.xlu0 %775
        %779 = vset.pattern.permute.xlu0 0
        %780 = vperm.xlu0 %779, %v423
        %v781 = vpop.permute.xlu0 %780
        %784 = vset.pattern.permute.xlu0 0
        %785 = vperm.xlu0 %784, %v424
        %v786 = vpop.permute.xlu0 %785
        %789 = vset.pattern.permute.xlu0 0
        %790 = vperm.xlu0 %789, %v425
        %v791 = vpop.permute.xlu0 %790
        %794 = vset.pattern.permute.xlu0 0
        %795 = vperm.xlu0 %794, %v426
        %v796 = vpop.permute.xlu0 %795
        %799 = vset.pattern.permute.xlu0 0
        %800 = vperm.xlu0 %799, %v427
        %v801 = vpop.permute.xlu0 %800
        %804 = vset.pattern.permute.xlu0 0
        %805 = vperm.xlu0 %804, %v428
        %v806 = vpop.permute.xlu0 %805
        %809 = vset.pattern.permute.xlu0 0
        %810 = vperm.xlu0 %809, %v429
        %v811 = vpop.permute.xlu0 %810
        %814 = vset.pattern.permute.xlu0 0
        %815 = vperm.xlu0 %814, %v430
        %v816 = vpop.permute.xlu0 %815
        %819 = vset.pattern.permute.xlu0 0
        %820 = vperm.xlu0 %819, %v431
        %v821 = vpop.permute.xlu0 %820
        %824 = vset.pattern.permute.xlu0 0
        %825 = vperm.xlu0 %824, %v432
        %v826 = vpop.permute.xlu0 %825
        %829 = vset.pattern.permute.xlu0 0
        %830 = vperm.xlu0 %829, %v433
        %v831 = vpop.permute.xlu0 %830
        %834 = vset.pattern.permute.xlu0 0
        %835 = vperm.xlu0 %834, %v434
        %v836 = vpop.permute.xlu0 %835
        %839 = vset.pattern.permute.xlu0 0
        %840 = vperm.xlu0 %839, %v435
        %v841 = vpop.permute.xlu0 %840
        %844 = vset.pattern.permute.xlu0 0
        %845 = vperm.xlu0 %844, %v436
        %v846 = vpop.permute.xlu0 %845
        %849 = vset.pattern.permute.xlu0 0
        %850 = vperm.xlu0 %849, %v437
        %v851 = vpop.permute.xlu0 %850
        %854 = vset.pattern.permute.xlu0 0
        %855 = vperm.xlu0 %854, %v438
        %v856 = vpop.permute.xlu0 %855
        %859 = vset.pattern.permute.xlu0 0
        %860 = vperm.xlu0 %859, %v439
        %v861 = vpop.permute.xlu0 %860
        %864 = vset.pattern.permute.xlu0 0
        %865 = vperm.xlu0 %864, %v440
        %v866 = vpop.permute.xlu0 %865
        %869 = vset.pattern.permute.xlu0 0
        %870 = vperm.xlu0 %869, %v441
        %v871 = vpop.permute.xlu0 %870
        %874 = vset.pattern.permute.xlu0 0
        %875 = vperm.xlu0 %874, %v442
        %v876 = vpop.permute.xlu0 %875
        %879 = vset.pattern.permute.xlu0 0
        %880 = vperm.xlu0 %879, %v443
        %v881 = vpop.permute.xlu0 %880
        %884 = vset.pattern.permute.xlu0 0
        %885 = vperm.xlu0 %884, %v444
        %v886 = vpop.permute.xlu0 %885
        %889 = vset.pattern.permute.xlu0 0
        %890 = vperm.xlu0 %889, %v445
        %v891 = vpop.permute.xlu0 %890
        %894 = vset.pattern.permute.xlu0 0
        %895 = vperm.xlu0 %894, %v446
        %v896 = vpop.permute.xlu0 %895
        %v898 = vlaneseq
        %v899 = vshrl.u32 %v898, 7
        %v900 = vsub.s32 0, %v899
        %v901 = vrot.slane %v615, %v900
        %v902 = vmul.f32 %v621, %v901
        %v903 = vmul.f32 %v626, %v901
        %v904 = vmul.f32 %v631, %v901
        %v905 = vmul.f32 %v636, %v901
        %v906 = vmul.f32 %v641, %v901
        %v907 = vmul.f32 %v646, %v901
        %v908 = vmul.f32 %v651, %v901
        %v909 = vmul.f32 %v656, %v901
        %v910 = vmul.f32 %v661, %v901
        %v911 = vmul.f32 %v666, %v901
        %v912 = vmul.f32 %v671, %v901
        %v913 = vmul.f32 %v676, %v901
        %v914 = vmul.f32 %v681, %v901
        %v915 = vmul.f32 %v686, %v901
        %v916 = vmul.f32 %v691, %v901
        %v917 = vmul.f32 %v696, %v901
        %v918 = vmul.f32 %v701, %v901
        %v919 = vmul.f32 %v706, %v901
        %v920 = vmul.f32 %v711, %v901
        %v921 = vmul.f32 %v716, %v901
        %v922 = vmul.f32 %v721, %v901
        %v923 = vmul.f32 %v726, %v901
        %v924 = vmul.f32 %v731, %v901
        %v925 = vmul.f32 %v736, %v901
        %v926 = vmul.f32 %v741, %v901
        %v927 = vmul.f32 %v746, %v901
        %v928 = vmul.f32 %v751, %v901
        %v929 = vmul.f32 %v756, %v901
        %v930 = vmul.f32 %v761, %v901
        %v931 = vmul.f32 %v766, %v901
        %v932 = vmul.f32 %v771, %v901
        %v933 = vmul.f32 %v776, %v901
        %v934 = vmul.f32 %v781, %v901
        %v935 = vmul.f32 %v786, %v901
        %v936 = vmul.f32 %v791, %v901
        %v937 = vmul.f32 %v796, %v901
        %v938 = vmul.f32 %v801, %v901
        %v939 = vmul.f32 %v806, %v901
        %v940 = vmul.f32 %v811, %v901
        %v941 = vmul.f32 %v816, %v901
        %v942 = vmul.f32 %v821, %v901
        %v943 = vmul.f32 %v826, %v901
        %v944 = vmul.f32 %v831, %v901
        %v945 = vmul.f32 %v836, %v901
        %v946 = vmul.f32 %v841, %v901
        %v947 = vmul.f32 %v846, %v901
        %v948 = vmul.f32 %v851, %v901
        %v949 = vmul.f32 %v856, %v901
        %v950 = vmul.f32 %v861, %v901
        %v951 = vmul.f32 %v866, %v901
        %v952 = vmul.f32 %v871, %v901
        %v953 = vmul.f32 %v876, %v901
        %v954 = vmul.f32 %v881, %v901
        %v955 = vmul.f32 %v886, %v901
        %v956 = vmul.f32 %v891, %v901
        %v957 = vmul.f32 %v896, %v901
        %v958 = vadd.f32 %v902, 0.0
        %v959 = vadd.f32 %v903, 0.0
        %v960 = vadd.f32 %v904, 0.0
        %v961 = vadd.f32 %v905, 0.0
        %v962 = vadd.f32 %v906, 0.0
        %v963 = vadd.f32 %v907, 0.0
        %v964 = vadd.f32 %v908, 0.0
        %v965 = vadd.f32 %v909, 0.0
        %v966 = vadd.f32 %v910, 0.0
        %v967 = vadd.f32 %v911, 0.0
        %v968 = vadd.f32 %v912, 0.0
        %v969 = vadd.f32 %v913, 0.0
        %v970 = vadd.f32 %v914, 0.0
        %v971 = vadd.f32 %v915, 0.0
        %v972 = vadd.f32 %v916, 0.0
        %v973 = vadd.f32 %v917, 0.0
        %v974 = vadd.f32 %v918, 0.0
        %v975 = vadd.f32 %v919, 0.0
        %v976 = vadd.f32 %v920, 0.0
        %v977 = vadd.f32 %v921, 0.0
        %v978 = vadd.f32 %v922, 0.0
        %v979 = vadd.f32 %v923, 0.0
        %v980 = vadd.f32 %v924, 0.0
        %v981 = vadd.f32 %v925, 0.0
        %v982 = vadd.f32 %v926, 0.0
        %v983 = vadd.f32 %v927, 0.0
        %v984 = vadd.f32 %v928, 0.0
        %v985 = vadd.f32 %v929, 0.0
        %v986 = vadd.f32 %v930, 0.0
        %v987 = vadd.f32 %v931, 0.0
        %v988 = vadd.f32 %v932, 0.0
        %v989 = vadd.f32 %v933, 0.0
        %v990 = vadd.f32 %v934, 0.0
        %v991 = vadd.f32 %v935, 0.0
        %v992 = vadd.f32 %v936, 0.0
        %v993 = vadd.f32 %v937, 0.0
        %v994 = vadd.f32 %v938, 0.0
        %v995 = vadd.f32 %v939, 0.0
        %v996 = vadd.f32 %v940, 0.0
        %v997 = vadd.f32 %v941, 0.0
        %v998 = vadd.f32 %v942, 0.0
        %v999 = vadd.f32 %v943, 0.0
        %v1000 = vadd.f32 %v944, 0.0
        %v1001 = vadd.f32 %v945, 0.0
        %v1002 = vadd.f32 %v946, 0.0
        %v1003 = vadd.f32 %v947, 0.0
        %v1004 = vadd.f32 %v948, 0.0
        %v1005 = vadd.f32 %v949, 0.0
        %v1006 = vadd.f32 %v950, 0.0
        %v1007 = vadd.f32 %v951, 0.0
        %v1008 = vadd.f32 %v952, 0.0
        %v1009 = vadd.f32 %v953, 0.0
        %v1010 = vadd.f32 %v954, 0.0
        %v1011 = vadd.f32 %v955, 0.0
        %v1012 = vadd.f32 %v956, 0.0
        %v1013 = vadd.f32 %v957, 0.0
        %1015 = vset.pattern.permute.xlu0 0
        %1016 = vperm.xlu0 %1015, %v503
        %v1017 = vpop.permute.xlu0 %1016
        %1020 = vset.pattern.permute.xlu0 0
        %1021 = vperm.xlu0 %1020, %v504
        %v1022 = vpop.permute.xlu0 %1021
        %1025 = vset.pattern.permute.xlu0 0
        %1026 = vperm.xlu0 %1025, %v505
        %v1027 = vpop.permute.xlu0 %1026
        %1030 = vset.pattern.permute.xlu0 0
        %1031 = vperm.xlu0 %1030, %v506
        %v1032 = vpop.permute.xlu0 %1031
        %1035 = vset.pattern.permute.xlu0 0
        %1036 = vperm.xlu0 %1035, %v507
        %v1037 = vpop.permute.xlu0 %1036
        %1040 = vset.pattern.permute.xlu0 0
        %1041 = vperm.xlu0 %1040, %v508
        %v1042 = vpop.permute.xlu0 %1041
        %1045 = vset.pattern.permute.xlu0 0
        %1046 = vperm.xlu0 %1045, %v509
        %v1047 = vpop.permute.xlu0 %1046
        %1050 = vset.pattern.permute.xlu0 0
        %1051 = vperm.xlu0 %1050, %v510
        %v1052 = vpop.permute.xlu0 %1051
        %1055 = vset.pattern.permute.xlu0 0
        %1056 = vperm.xlu0 %1055, %v511
        %v1057 = vpop.permute.xlu0 %1056
        %1060 = vset.pattern.permute.xlu0 0
        %1061 = vperm.xlu0 %1060, %v512
        %v1062 = vpop.permute.xlu0 %1061
        %1065 = vset.pattern.permute.xlu0 0
        %1066 = vperm.xlu0 %1065, %v513
        %v1067 = vpop.permute.xlu0 %1066
        %1070 = vset.pattern.permute.xlu0 0
        %1071 = vperm.xlu0 %1070, %v514
        %v1072 = vpop.permute.xlu0 %1071
        %1075 = vset.pattern.permute.xlu0 0
        %1076 = vperm.xlu0 %1075, %v515
        %v1077 = vpop.permute.xlu0 %1076
        %1080 = vset.pattern.permute.xlu0 0
        %1081 = vperm.xlu0 %1080, %v516
        %v1082 = vpop.permute.xlu0 %1081
        %1085 = vset.pattern.permute.xlu0 0
        %1086 = vperm.xlu0 %1085, %v517
        %v1087 = vpop.permute.xlu0 %1086
        %1090 = vset.pattern.permute.xlu0 0
        %1091 = vperm.xlu0 %1090, %v518
        %v1092 = vpop.permute.xlu0 %1091
        %1095 = vset.pattern.permute.xlu0 0
        %1096 = vperm.xlu0 %1095, %v519
        %v1097 = vpop.permute.xlu0 %1096
        %1100 = vset.pattern.permute.xlu0 0
        %1101 = vperm.xlu0 %1100, %v520
        %v1102 = vpop.permute.xlu0 %1101
        %1105 = vset.pattern.permute.xlu0 0
        %1106 = vperm.xlu0 %1105, %v521
        %v1107 = vpop.permute.xlu0 %1106
        %1110 = vset.pattern.permute.xlu0 0
        %1111 = vperm.xlu0 %1110, %v522
        %v1112 = vpop.permute.xlu0 %1111
        %1115 = vset.pattern.permute.xlu0 0
        %1116 = vperm.xlu0 %1115, %v523
        %v1117 = vpop.permute.xlu0 %1116
        %1120 = vset.pattern.permute.xlu0 0
        %1121 = vperm.xlu0 %1120, %v524
        %v1122 = vpop.permute.xlu0 %1121
        %1125 = vset.pattern.permute.xlu0 0
        %1126 = vperm.xlu0 %1125, %v525
        %v1127 = vpop.permute.xlu0 %1126
        %1130 = vset.pattern.permute.xlu0 0
        %1131 = vperm.xlu0 %1130, %v526
        %v1132 = vpop.permute.xlu0 %1131
        %1135 = vset.pattern.permute.xlu0 0
        %1136 = vperm.xlu0 %1135, %v527
        %v1137 = vpop.permute.xlu0 %1136
        %1140 = vset.pattern.permute.xlu0 0
        %1141 = vperm.xlu0 %1140, %v528
        %v1142 = vpop.permute.xlu0 %1141
        %1145 = vset.pattern.permute.xlu0 0
        %1146 = vperm.xlu0 %1145, %v529
        %v1147 = vpop.permute.xlu0 %1146
        %1150 = vset.pattern.permute.xlu0 0
        %1151 = vperm.xlu0 %1150, %v530
        %v1152 = vpop.permute.xlu0 %1151
        %1155 = vset.pattern.permute.xlu0 0
        %1156 = vperm.xlu0 %1155, %v531
        %v1157 = vpop.permute.xlu0 %1156
        %1160 = vset.pattern.permute.xlu0 0
        %1161 = vperm.xlu0 %1160, %v532
        %v1162 = vpop.permute.xlu0 %1161
        %1165 = vset.pattern.permute.xlu0 0
        %1166 = vperm.xlu0 %1165, %v533
        %v1167 = vpop.permute.xlu0 %1166
        %1170 = vset.pattern.permute.xlu0 0
        %1171 = vperm.xlu0 %1170, %v534
        %v1172 = vpop.permute.xlu0 %1171
        %1175 = vset.pattern.permute.xlu0 0
        %1176 = vperm.xlu0 %1175, %v535
        %v1177 = vpop.permute.xlu0 %1176
        %1180 = vset.pattern.permute.xlu0 0
        %1181 = vperm.xlu0 %1180, %v536
        %v1182 = vpop.permute.xlu0 %1181
        %1185 = vset.pattern.permute.xlu0 0
        %1186 = vperm.xlu0 %1185, %v537
        %v1187 = vpop.permute.xlu0 %1186
        %1190 = vset.pattern.permute.xlu0 0
        %1191 = vperm.xlu0 %1190, %v538
        %v1192 = vpop.permute.xlu0 %1191
        %1195 = vset.pattern.permute.xlu0 0
        %1196 = vperm.xlu0 %1195, %v539
        %v1197 = vpop.permute.xlu0 %1196
        %1200 = vset.pattern.permute.xlu0 0
        %1201 = vperm.xlu0 %1200, %v540
        %v1202 = vpop.permute.xlu0 %1201
        %1205 = vset.pattern.permute.xlu0 0
        %1206 = vperm.xlu0 %1205, %v541
        %v1207 = vpop.permute.xlu0 %1206
        %1210 = vset.pattern.permute.xlu0 0
        %1211 = vperm.xlu0 %1210, %v542
        %v1212 = vpop.permute.xlu0 %1211
        %1215 = vset.pattern.permute.xlu0 0
        %1216 = vperm.xlu0 %1215, %v543
        %v1217 = vpop.permute.xlu0 %1216
        %1220 = vset.pattern.permute.xlu0 0
        %1221 = vperm.xlu0 %1220, %v544
        %v1222 = vpop.permute.xlu0 %1221
        %1225 = vset.pattern.permute.xlu0 0
        %1226 = vperm.xlu0 %1225, %v545
        %v1227 = vpop.permute.xlu0 %1226
        %1230 = vset.pattern.permute.xlu0 0
        %1231 = vperm.xlu0 %1230, %v546
        %v1232 = vpop.permute.xlu0 %1231
        %1235 = vset.pattern.permute.xlu0 0
        %1236 = vperm.xlu0 %1235, %v547
        %v1237 = vpop.permute.xlu0 %1236
        %1240 = vset.pattern.permute.xlu0 0
        %1241 = vperm.xlu0 %1240, %v548
        %v1242 = vpop.permute.xlu0 %1241
        %1245 = vset.pattern.permute.xlu0 0
        %1246 = vperm.xlu0 %1245, %v549
        %v1247 = vpop.permute.xlu0 %1246
        %1250 = vset.pattern.permute.xlu0 0
        %1251 = vperm.xlu0 %1250, %v550
        %v1252 = vpop.permute.xlu0 %1251
        %1255 = vset.pattern.permute.xlu0 0
        %1256 = vperm.xlu0 %1255, %v551
        %v1257 = vpop.permute.xlu0 %1256
        %1260 = vset.pattern.permute.xlu0 0
        %1261 = vperm.xlu0 %1260, %v552
        %v1262 = vpop.permute.xlu0 %1261
        %1265 = vset.pattern.permute.xlu0 0
        %1266 = vperm.xlu0 %1265, %v553
        %v1267 = vpop.permute.xlu0 %1266
        %1270 = vset.pattern.permute.xlu0 0
        %1271 = vperm.xlu0 %1270, %v554
        %v1272 = vpop.permute.xlu0 %1271
        %1275 = vset.pattern.permute.xlu0 0
        %1276 = vperm.xlu0 %1275, %v555
        %v1277 = vpop.permute.xlu0 %1276
        %1280 = vset.pattern.permute.xlu0 0
        %1281 = vperm.xlu0 %1280, %v556
        %v1282 = vpop.permute.xlu0 %1281
        %1285 = vset.pattern.permute.xlu0 0
        %1286 = vperm.xlu0 %1285, %v557
        %v1287 = vpop.permute.xlu0 %1286
        %1290 = vset.pattern.permute.xlu0 0
        %1291 = vperm.xlu0 %1290, %v558
        %v1292 = vpop.permute.xlu0 %1291
        %v1294 = vlaneseq
        %v1295 = vshrl.u32 %v1294, 7
        %v1296 = vsub.s32 0, %v1295
        %v1297 = vrot.slane %v616, %v1296
        %v1298 = vmul.f32 %v1017, %v1297
        %v1299 = vmul.f32 %v1022, %v1297
        %v1300 = vmul.f32 %v1027, %v1297
        %v1301 = vmul.f32 %v1032, %v1297
        %v1302 = vmul.f32 %v1037, %v1297
        %v1303 = vmul.f32 %v1042, %v1297
        %v1304 = vmul.f32 %v1047, %v1297
        %v1305 = vmul.f32 %v1052, %v1297
        %v1306 = vmul.f32 %v1057, %v1297
        %v1307 = vmul.f32 %v1062, %v1297
        %v1308 = vmul.f32 %v1067, %v1297
        %v1309 = vmul.f32 %v1072, %v1297
        %v1310 = vmul.f32 %v1077, %v1297
        %v1311 = vmul.f32 %v1082, %v1297
        %v1312 = vmul.f32 %v1087, %v1297
        %v1313 = vmul.f32 %v1092, %v1297
        %v1314 = vmul.f32 %v1097, %v1297
        %v1315 = vmul.f32 %v1102, %v1297
        %v1316 = vmul.f32 %v1107, %v1297
        %v1317 = vmul.f32 %v1112, %v1297
        %v1318 = vmul.f32 %v1117, %v1297
        %v1319 = vmul.f32 %v1122, %v1297
        %v1320 = vmul.f32 %v1127, %v1297
        %v1321 = vmul.f32 %v1132, %v1297
        %v1322 = vmul.f32 %v1137, %v1297
        %v1323 = vmul.f32 %v1142, %v1297
        %v1324 = vmul.f32 %v1147, %v1297
        %v1325 = vmul.f32 %v1152, %v1297
        %v1326 = vmul.f32 %v1157, %v1297
        %v1327 = vmul.f32 %v1162, %v1297
        %v1328 = vmul.f32 %v1167, %v1297
        %v1329 = vmul.f32 %v1172, %v1297
        %v1330 = vmul.f32 %v1177, %v1297
        %v1331 = vmul.f32 %v1182, %v1297
        %v1332 = vmul.f32 %v1187, %v1297
        %v1333 = vmul.f32 %v1192, %v1297
        %v1334 = vmul.f32 %v1197, %v1297
        %v1335 = vmul.f32 %v1202, %v1297
        %v1336 = vmul.f32 %v1207, %v1297
        %v1337 = vmul.f32 %v1212, %v1297
        %v1338 = vmul.f32 %v1217, %v1297
        %v1339 = vmul.f32 %v1222, %v1297
        %v1340 = vmul.f32 %v1227, %v1297
        %v1341 = vmul.f32 %v1232, %v1297
        %v1342 = vmul.f32 %v1237, %v1297
        %v1343 = vmul.f32 %v1242, %v1297
        %v1344 = vmul.f32 %v1247, %v1297
        %v1345 = vmul.f32 %v1252, %v1297
        %v1346 = vmul.f32 %v1257, %v1297
        %v1347 = vmul.f32 %v1262, %v1297
        %v1348 = vmul.f32 %v1267, %v1297
        %v1349 = vmul.f32 %v1272, %v1297
        %v1350 = vmul.f32 %v1277, %v1297
        %v1351 = vmul.f32 %v1282, %v1297
        %v1352 = vmul.f32 %v1287, %v1297
        %v1353 = vmul.f32 %v1292, %v1297
        %v1354 = vadd.f32 %v958, %v1298
        %v1355 = vadd.f32 %v959, %v1299
        %v1356 = vadd.f32 %v960, %v1300
        %v1357 = vadd.f32 %v961, %v1301
        %v1358 = vadd.f32 %v962, %v1302
        %v1359 = vadd.f32 %v963, %v1303
        %v1360 = vadd.f32 %v964, %v1304
        %v1361 = vadd.f32 %v965, %v1305
        %v1362 = vadd.f32 %v966, %v1306
        %v1363 = vadd.f32 %v967, %v1307
        %v1364 = vadd.f32 %v968, %v1308
        %v1365 = vadd.f32 %v969, %v1309
        %v1366 = vadd.f32 %v970, %v1310
        %v1367 = vadd.f32 %v971, %v1311
        %v1368 = vadd.f32 %v972, %v1312
        %v1369 = vadd.f32 %v973, %v1313
        %v1370 = vadd.f32 %v974, %v1314
        %v1371 = vadd.f32 %v975, %v1315
        %v1372 = vadd.f32 %v976, %v1316
        %v1373 = vadd.f32 %v977, %v1317
        %v1374 = vadd.f32 %v978, %v1318
        %v1375 = vadd.f32 %v979, %v1319
        %v1376 = vadd.f32 %v980, %v1320
        %v1377 = vadd.f32 %v981, %v1321
        %v1378 = vadd.f32 %v982, %v1322
        %v1379 = vadd.f32 %v983, %v1323
        %v1380 = vadd.f32 %v984, %v1324
        %v1381 = vadd.f32 %v985, %v1325
        %v1382 = vadd.f32 %v986, %v1326
        %v1383 = vadd.f32 %v987, %v1327
        %v1384 = vadd.f32 %v988, %v1328
        %v1385 = vadd.f32 %v989, %v1329
        %v1386 = vadd.f32 %v990, %v1330
        %v1387 = vadd.f32 %v991, %v1331
        %v1388 = vadd.f32 %v992, %v1332
        %v1389 = vadd.f32 %v993, %v1333
        %v1390 = vadd.f32 %v994, %v1334
        %v1391 = vadd.f32 %v995, %v1335
        %v1392 = vadd.f32 %v996, %v1336
        %v1393 = vadd.f32 %v997, %v1337
        %v1394 = vadd.f32 %v998, %v1338
        %v1395 = vadd.f32 %v999, %v1339
        %v1396 = vadd.f32 %v1000, %v1340
        %v1397 = vadd.f32 %v1001, %v1341
        %v1398 = vadd.f32 %v1002, %v1342
        %v1399 = vadd.f32 %v1003, %v1343
        %v1400 = vadd.f32 %v1004, %v1344
        %v1401 = vadd.f32 %v1005, %v1345
        %v1402 = vadd.f32 %v1006, %v1346
        %v1403 = vadd.f32 %v1007, %v1347
        %v1404 = vadd.f32 %v1008, %v1348
        %v1405 = vadd.f32 %v1009, %v1349
        %v1406 = vadd.f32 %v1010, %v1350
        %v1407 = vadd.f32 %v1011, %v1351
        %v1408 = vadd.f32 %v1012, %v1352
        %v1409 = vadd.f32 %v1013, %v1353
        %1411 = vset.pattern.permute.xlu0 0
        %1412 = vperm.xlu0 %1411, %v447
        %v1413 = vpop.permute.xlu0 %1412
        %1416 = vset.pattern.permute.xlu0 0
        %1417 = vperm.xlu0 %1416, %v448
        %v1418 = vpop.permute.xlu0 %1417
        %1421 = vset.pattern.permute.xlu0 0
        %1422 = vperm.xlu0 %1421, %v449
        %v1423 = vpop.permute.xlu0 %1422
        %1426 = vset.pattern.permute.xlu0 0
        %1427 = vperm.xlu0 %1426, %v450
        %v1428 = vpop.permute.xlu0 %1427
        %1431 = vset.pattern.permute.xlu0 0
        %1432 = vperm.xlu0 %1431, %v451
        %v1433 = vpop.permute.xlu0 %1432
        %1436 = vset.pattern.permute.xlu0 0
        %1437 = vperm.xlu0 %1436, %v452
        %v1438 = vpop.permute.xlu0 %1437
        %1441 = vset.pattern.permute.xlu0 0
        %1442 = vperm.xlu0 %1441, %v453
        %v1443 = vpop.permute.xlu0 %1442
        %1446 = vset.pattern.permute.xlu0 0
        %1447 = vperm.xlu0 %1446, %v454
        %v1448 = vpop.permute.xlu0 %1447
        %1451 = vset.pattern.permute.xlu0 0
        %1452 = vperm.xlu0 %1451, %v455
        %v1453 = vpop.permute.xlu0 %1452
        %1456 = vset.pattern.permute.xlu0 0
        %1457 = vperm.xlu0 %1456, %v456
        %v1458 = vpop.permute.xlu0 %1457
        %1461 = vset.pattern.permute.xlu0 0
        %1462 = vperm.xlu0 %1461, %v457
        %v1463 = vpop.permute.xlu0 %1462
        %1466 = vset.pattern.permute.xlu0 0
        %1467 = vperm.xlu0 %1466, %v458
        %v1468 = vpop.permute.xlu0 %1467
        %1471 = vset.pattern.permute.xlu0 0
        %1472 = vperm.xlu0 %1471, %v459
        %v1473 = vpop.permute.xlu0 %1472
        %1476 = vset.pattern.permute.xlu0 0
        %1477 = vperm.xlu0 %1476, %v460
        %v1478 = vpop.permute.xlu0 %1477
        %1481 = vset.pattern.permute.xlu0 0
        %1482 = vperm.xlu0 %1481, %v461
        %v1483 = vpop.permute.xlu0 %1482
        %1486 = vset.pattern.permute.xlu0 0
        %1487 = vperm.xlu0 %1486, %v462
        %v1488 = vpop.permute.xlu0 %1487
        %1491 = vset.pattern.permute.xlu0 0
        %1492 = vperm.xlu0 %1491, %v463
        %v1493 = vpop.permute.xlu0 %1492
        %1496 = vset.pattern.permute.xlu0 0
        %1497 = vperm.xlu0 %1496, %v464
        %v1498 = vpop.permute.xlu0 %1497
        %1501 = vset.pattern.permute.xlu0 0
        %1502 = vperm.xlu0 %1501, %v465
        %v1503 = vpop.permute.xlu0 %1502
        %1506 = vset.pattern.permute.xlu0 0
        %1507 = vperm.xlu0 %1506, %v466
        %v1508 = vpop.permute.xlu0 %1507
        %1511 = vset.pattern.permute.xlu0 0
        %1512 = vperm.xlu0 %1511, %v467
        %v1513 = vpop.permute.xlu0 %1512
        %1516 = vset.pattern.permute.xlu0 0
        %1517 = vperm.xlu0 %1516, %v468
        %v1518 = vpop.permute.xlu0 %1517
        %1521 = vset.pattern.permute.xlu0 0
        %1522 = vperm.xlu0 %1521, %v469
        %v1523 = vpop.permute.xlu0 %1522
        %1526 = vset.pattern.permute.xlu0 0
        %1527 = vperm.xlu0 %1526, %v470
        %v1528 = vpop.permute.xlu0 %1527
        %1531 = vset.pattern.permute.xlu0 0
        %1532 = vperm.xlu0 %1531, %v471
        %v1533 = vpop.permute.xlu0 %1532
        %1536 = vset.pattern.permute.xlu0 0
        %1537 = vperm.xlu0 %1536, %v472
        %v1538 = vpop.permute.xlu0 %1537
        %1541 = vset.pattern.permute.xlu0 0
        %1542 = vperm.xlu0 %1541, %v473
        %v1543 = vpop.permute.xlu0 %1542
        %1546 = vset.pattern.permute.xlu0 0
        %1547 = vperm.xlu0 %1546, %v474
        %v1548 = vpop.permute.xlu0 %1547
        %1551 = vset.pattern.permute.xlu0 0
        %1552 = vperm.xlu0 %1551, %v475
        %v1553 = vpop.permute.xlu0 %1552
        %1556 = vset.pattern.permute.xlu0 0
        %1557 = vperm.xlu0 %1556, %v476
        %v1558 = vpop.permute.xlu0 %1557
        %1561 = vset.pattern.permute.xlu0 0
        %1562 = vperm.xlu0 %1561, %v477
        %v1563 = vpop.permute.xlu0 %1562
        %1566 = vset.pattern.permute.xlu0 0
        %1567 = vperm.xlu0 %1566, %v478
        %v1568 = vpop.permute.xlu0 %1567
        %1571 = vset.pattern.permute.xlu0 0
        %1572 = vperm.xlu0 %1571, %v479
        %v1573 = vpop.permute.xlu0 %1572
        %1576 = vset.pattern.permute.xlu0 0
        %1577 = vperm.xlu0 %1576, %v480
        %v1578 = vpop.permute.xlu0 %1577
        %1581 = vset.pattern.permute.xlu0 0
        %1582 = vperm.xlu0 %1581, %v481
        %v1583 = vpop.permute.xlu0 %1582
        %1586 = vset.pattern.permute.xlu0 0
        %1587 = vperm.xlu0 %1586, %v482
        %v1588 = vpop.permute.xlu0 %1587
        %1591 = vset.pattern.permute.xlu0 0
        %1592 = vperm.xlu0 %1591, %v483
        %v1593 = vpop.permute.xlu0 %1592
        %1596 = vset.pattern.permute.xlu0 0
        %1597 = vperm.xlu0 %1596, %v484
        %v1598 = vpop.permute.xlu0 %1597
        %1601 = vset.pattern.permute.xlu0 0
        %1602 = vperm.xlu0 %1601, %v485
        %v1603 = vpop.permute.xlu0 %1602
        %1606 = vset.pattern.permute.xlu0 0
        %1607 = vperm.xlu0 %1606, %v486
        %v1608 = vpop.permute.xlu0 %1607
        %1611 = vset.pattern.permute.xlu0 0
        %1612 = vperm.xlu0 %1611, %v487
        %v1613 = vpop.permute.xlu0 %1612
        %1616 = vset.pattern.permute.xlu0 0
        %1617 = vperm.xlu0 %1616, %v488
        %v1618 = vpop.permute.xlu0 %1617
        %1621 = vset.pattern.permute.xlu0 0
        %1622 = vperm.xlu0 %1621, %v489
        %v1623 = vpop.permute.xlu0 %1622
        %1626 = vset.pattern.permute.xlu0 0
        %1627 = vperm.xlu0 %1626, %v490
        %v1628 = vpop.permute.xlu0 %1627
        %1631 = vset.pattern.permute.xlu0 0
        %1632 = vperm.xlu0 %1631, %v491
        %v1633 = vpop.permute.xlu0 %1632
        %1636 = vset.pattern.permute.xlu0 0
        %1637 = vperm.xlu0 %1636, %v492
        %v1638 = vpop.permute.xlu0 %1637
        %1641 = vset.pattern.permute.xlu0 0
        %1642 = vperm.xlu0 %1641, %v493
        %v1643 = vpop.permute.xlu0 %1642
        %1646 = vset.pattern.permute.xlu0 0
        %1647 = vperm.xlu0 %1646, %v494
        %v1648 = vpop.permute.xlu0 %1647
        %1651 = vset.pattern.permute.xlu0 0
        %1652 = vperm.xlu0 %1651, %v495
        %v1653 = vpop.permute.xlu0 %1652
        %1656 = vset.pattern.permute.xlu0 0
        %1657 = vperm.xlu0 %1656, %v496
        %v1658 = vpop.permute.xlu0 %1657
        %1661 = vset.pattern.permute.xlu0 0
        %1662 = vperm.xlu0 %1661, %v497
        %v1663 = vpop.permute.xlu0 %1662
        %1666 = vset.pattern.permute.xlu0 0
        %1667 = vperm.xlu0 %1666, %v498
        %v1668 = vpop.permute.xlu0 %1667
        %1671 = vset.pattern.permute.xlu0 0
        %1672 = vperm.xlu0 %1671, %v499
        %v1673 = vpop.permute.xlu0 %1672
        %1676 = vset.pattern.permute.xlu0 0
        %1677 = vperm.xlu0 %1676, %v500
        %v1678 = vpop.permute.xlu0 %1677
        %1681 = vset.pattern.permute.xlu0 0
        %1682 = vperm.xlu0 %1681, %v501
        %v1683 = vpop.permute.xlu0 %1682
        %1686 = vset.pattern.permute.xlu0 0
        %1687 = vperm.xlu0 %1686, %v502
        %v1688 = vpop.permute.xlu0 %1687
        %v1690 = vlaneseq
        %v1691 = vshrl.u32 %v1690, 7
        %v1692 = vsub.s32 0, %v1691
        %v1693 = vrot.slane %v617, %v1692
        %v1694 = vmul.f32 %v1413, %v1693
        %v1695 = vmul.f32 %v1418, %v1693
        %v1696 = vmul.f32 %v1423, %v1693
        %v1697 = vmul.f32 %v1428, %v1693
        %v1698 = vmul.f32 %v1433, %v1693
        %v1699 = vmul.f32 %v1438, %v1693
        %v1700 = vmul.f32 %v1443, %v1693
        %v1701 = vmul.f32 %v1448, %v1693
        %v1702 = vmul.f32 %v1453, %v1693
        %v1703 = vmul.f32 %v1458, %v1693
        %v1704 = vmul.f32 %v1463, %v1693
        %v1705 = vmul.f32 %v1468, %v1693
        %v1706 = vmul.f32 %v1473, %v1693
        %v1707 = vmul.f32 %v1478, %v1693
        %v1708 = vmul.f32 %v1483, %v1693
        %v1709 = vmul.f32 %v1488, %v1693
        %v1710 = vmul.f32 %v1493, %v1693
        %v1711 = vmul.f32 %v1498, %v1693
        %v1712 = vmul.f32 %v1503, %v1693
        %v1713 = vmul.f32 %v1508, %v1693
        %v1714 = vmul.f32 %v1513, %v1693
        %v1715 = vmul.f32 %v1518, %v1693
        %v1716 = vmul.f32 %v1523, %v1693
        %v1717 = vmul.f32 %v1528, %v1693
        %v1718 = vmul.f32 %v1533, %v1693
        %v1719 = vmul.f32 %v1538, %v1693
        %v1720 = vmul.f32 %v1543, %v1693
        %v1721 = vmul.f32 %v1548, %v1693
        %v1722 = vmul.f32 %v1553, %v1693
        %v1723 = vmul.f32 %v1558, %v1693
        %v1724 = vmul.f32 %v1563, %v1693
        %v1725 = vmul.f32 %v1568, %v1693
        %v1726 = vmul.f32 %v1573, %v1693
        %v1727 = vmul.f32 %v1578, %v1693
        %v1728 = vmul.f32 %v1583, %v1693
        %v1729 = vmul.f32 %v1588, %v1693
        %v1730 = vmul.f32 %v1593, %v1693
        %v1731 = vmul.f32 %v1598, %v1693
        %v1732 = vmul.f32 %v1603, %v1693
        %v1733 = vmul.f32 %v1608, %v1693
        %v1734 = vmul.f32 %v1613, %v1693
        %v1735 = vmul.f32 %v1618, %v1693
        %v1736 = vmul.f32 %v1623, %v1693
        %v1737 = vmul.f32 %v1628, %v1693
        %v1738 = vmul.f32 %v1633, %v1693
        %v1739 = vmul.f32 %v1638, %v1693
        %v1740 = vmul.f32 %v1643, %v1693
        %v1741 = vmul.f32 %v1648, %v1693
        %v1742 = vmul.f32 %v1653, %v1693
        %v1743 = vmul.f32 %v1658, %v1693
        %v1744 = vmul.f32 %v1663, %v1693
        %v1745 = vmul.f32 %v1668, %v1693
        %v1746 = vmul.f32 %v1673, %v1693
        %v1747 = vmul.f32 %v1678, %v1693
        %v1748 = vmul.f32 %v1683, %v1693
        %v1749 = vmul.f32 %v1688, %v1693
        %v1750 = vadd.f32 %v1354, %v1694
        %v1751 = vadd.f32 %v1355, %v1695
        %v1752 = vadd.f32 %v1356, %v1696
        %v1753 = vadd.f32 %v1357, %v1697
        %v1754 = vadd.f32 %v1358, %v1698
        %v1755 = vadd.f32 %v1359, %v1699
        %v1756 = vadd.f32 %v1360, %v1700
        %v1757 = vadd.f32 %v1361, %v1701
        %v1758 = vadd.f32 %v1362, %v1702
        %v1759 = vadd.f32 %v1363, %v1703
        %v1760 = vadd.f32 %v1364, %v1704
        %v1761 = vadd.f32 %v1365, %v1705
        %v1762 = vadd.f32 %v1366, %v1706
        %v1763 = vadd.f32 %v1367, %v1707
        %v1764 = vadd.f32 %v1368, %v1708
        %v1765 = vadd.f32 %v1369, %v1709
        %v1766 = vadd.f32 %v1370, %v1710
        %v1767 = vadd.f32 %v1371, %v1711
        %v1768 = vadd.f32 %v1372, %v1712
        %v1769 = vadd.f32 %v1373, %v1713
        %v1770 = vadd.f32 %v1374, %v1714
        %v1771 = vadd.f32 %v1375, %v1715
        %v1772 = vadd.f32 %v1376, %v1716
        %v1773 = vadd.f32 %v1377, %v1717
        %v1774 = vadd.f32 %v1378, %v1718
        %v1775 = vadd.f32 %v1379, %v1719
        %v1776 = vadd.f32 %v1380, %v1720
        %v1777 = vadd.f32 %v1381, %v1721
        %v1778 = vadd.f32 %v1382, %v1722
        %v1779 = vadd.f32 %v1383, %v1723
        %v1780 = vadd.f32 %v1384, %v1724
        %v1781 = vadd.f32 %v1385, %v1725
        %v1782 = vadd.f32 %v1386, %v1726
        %v1783 = vadd.f32 %v1387, %v1727
        %v1784 = vadd.f32 %v1388, %v1728
        %v1785 = vadd.f32 %v1389, %v1729
        %v1786 = vadd.f32 %v1390, %v1730
        %v1787 = vadd.f32 %v1391, %v1731
        %v1788 = vadd.f32 %v1392, %v1732
        %v1789 = vadd.f32 %v1393, %v1733
        %v1790 = vadd.f32 %v1394, %v1734
        %v1791 = vadd.f32 %v1395, %v1735
        %v1792 = vadd.f32 %v1396, %v1736
        %v1793 = vadd.f32 %v1397, %v1737
        %v1794 = vadd.f32 %v1398, %v1738
        %v1795 = vadd.f32 %v1399, %v1739
        %v1796 = vadd.f32 %v1400, %v1740
        %v1797 = vadd.f32 %v1401, %v1741
        %v1798 = vadd.f32 %v1402, %v1742
        %v1799 = vadd.f32 %v1403, %v1743
        %v1800 = vadd.f32 %v1404, %v1744
        %v1801 = vadd.f32 %v1405, %v1745
        %v1802 = vadd.f32 %v1406, %v1746
        %v1803 = vadd.f32 %v1407, %v1747
        %v1804 = vadd.f32 %v1408, %v1748
        %v1805 = vadd.f32 %v1409, %v1749
        %v1806 = vmul.f32 %v1017, %v901
        %v1807 = vmul.f32 %v1022, %v901
        %v1808 = vmul.f32 %v1027, %v901
        %v1809 = vmul.f32 %v1032, %v901
        %v1810 = vmul.f32 %v1037, %v901
        %v1811 = vmul.f32 %v1042, %v901
        %v1812 = vmul.f32 %v1047, %v901
        %v1813 = vmul.f32 %v1052, %v901
        %v1814 = vmul.f32 %v1057, %v901
        %v1815 = vmul.f32 %v1062, %v901
        %v1816 = vmul.f32 %v1067, %v901
        %v1817 = vmul.f32 %v1072, %v901
        %v1818 = vmul.f32 %v1077, %v901
        %v1819 = vmul.f32 %v1082, %v901
        %v1820 = vmul.f32 %v1087, %v901
        %v1821 = vmul.f32 %v1092, %v901
        %v1822 = vmul.f32 %v1097, %v901
        %v1823 = vmul.f32 %v1102, %v901
        %v1824 = vmul.f32 %v1107, %v901
        %v1825 = vmul.f32 %v1112, %v901
        %v1826 = vmul.f32 %v1117, %v901
        %v1827 = vmul.f32 %v1122, %v901
        %v1828 = vmul.f32 %v1127, %v901
        %v1829 = vmul.f32 %v1132, %v901
        %v1830 = vmul.f32 %v1137, %v901
        %v1831 = vmul.f32 %v1142, %v901
        %v1832 = vmul.f32 %v1147, %v901
        %v1833 = vmul.f32 %v1152, %v901
        %v1834 = vmul.f32 %v1157, %v901
        %v1835 = vmul.f32 %v1162, %v901
        %v1836 = vmul.f32 %v1167, %v901
        %v1837 = vmul.f32 %v1172, %v901
        %v1838 = vmul.f32 %v1177, %v901
        %v1839 = vmul.f32 %v1182, %v901
        %v1840 = vmul.f32 %v1187, %v901
        %v1841 = vmul.f32 %v1192, %v901
        %v1842 = vmul.f32 %v1197, %v901
        %v1843 = vmul.f32 %v1202, %v901
        %v1844 = vmul.f32 %v1207, %v901
        %v1845 = vmul.f32 %v1212, %v901
        %v1846 = vmul.f32 %v1217, %v901
        %v1847 = vmul.f32 %v1222, %v901
        %v1848 = vmul.f32 %v1227, %v901
        %v1849 = vmul.f32 %v1232, %v901
        %v1850 = vmul.f32 %v1237, %v901
        %v1851 = vmul.f32 %v1242, %v901
        %v1852 = vmul.f32 %v1247, %v901
        %v1853 = vmul.f32 %v1252, %v901
        %v1854 = vmul.f32 %v1257, %v901
        %v1855 = vmul.f32 %v1262, %v901
        %v1856 = vmul.f32 %v1267, %v901
        %v1857 = vmul.f32 %v1272, %v901
        %v1858 = vmul.f32 %v1277, %v901
        %v1859 = vmul.f32 %v1282, %v901
        %v1860 = vmul.f32 %v1287, %v901
        %v1861 = vmul.f32 %v1292, %v901
        %v1862 = vadd.f32 %v1806, 0.0
        %v1863 = vadd.f32 %v1807, 0.0
        %v1864 = vadd.f32 %v1808, 0.0
        %v1865 = vadd.f32 %v1809, 0.0
        %v1866 = vadd.f32 %v1810, 0.0
        %v1867 = vadd.f32 %v1811, 0.0
        %v1868 = vadd.f32 %v1812, 0.0
        %v1869 = vadd.f32 %v1813, 0.0
        %v1870 = vadd.f32 %v1814, 0.0
        %v1871 = vadd.f32 %v1815, 0.0
        %v1872 = vadd.f32 %v1816, 0.0
        %v1873 = vadd.f32 %v1817, 0.0
        %v1874 = vadd.f32 %v1818, 0.0
        %v1875 = vadd.f32 %v1819, 0.0
        %v1876 = vadd.f32 %v1820, 0.0
        %v1877 = vadd.f32 %v1821, 0.0
        %v1878 = vadd.f32 %v1822, 0.0
        %v1879 = vadd.f32 %v1823, 0.0
        %v1880 = vadd.f32 %v1824, 0.0
        %v1881 = vadd.f32 %v1825, 0.0
        %v1882 = vadd.f32 %v1826, 0.0
        %v1883 = vadd.f32 %v1827, 0.0
        %v1884 = vadd.f32 %v1828, 0.0
        %v1885 = vadd.f32 %v1829, 0.0
        %v1886 = vadd.f32 %v1830, 0.0
        %v1887 = vadd.f32 %v1831, 0.0
        %v1888 = vadd.f32 %v1832, 0.0
        %v1889 = vadd.f32 %v1833, 0.0
        %v1890 = vadd.f32 %v1834, 0.0
        %v1891 = vadd.f32 %v1835, 0.0
        %v1892 = vadd.f32 %v1836, 0.0
        %v1893 = vadd.f32 %v1837, 0.0
        %v1894 = vadd.f32 %v1838, 0.0
        %v1895 = vadd.f32 %v1839, 0.0
        %v1896 = vadd.f32 %v1840, 0.0
        %v1897 = vadd.f32 %v1841, 0.0
        %v1898 = vadd.f32 %v1842, 0.0
        %v1899 = vadd.f32 %v1843, 0.0
        %v1900 = vadd.f32 %v1844, 0.0
        %v1901 = vadd.f32 %v1845, 0.0
        %v1902 = vadd.f32 %v1846, 0.0
        %v1903 = vadd.f32 %v1847, 0.0
        %v1904 = vadd.f32 %v1848, 0.0
        %v1905 = vadd.f32 %v1849, 0.0
        %v1906 = vadd.f32 %v1850, 0.0
        %v1907 = vadd.f32 %v1851, 0.0
        %v1908 = vadd.f32 %v1852, 0.0
        %v1909 = vadd.f32 %v1853, 0.0
        %v1910 = vadd.f32 %v1854, 0.0
        %v1911 = vadd.f32 %v1855, 0.0
        %v1912 = vadd.f32 %v1856, 0.0
        %v1913 = vadd.f32 %v1857, 0.0
        %v1914 = vadd.f32 %v1858, 0.0
        %v1915 = vadd.f32 %v1859, 0.0
        %v1916 = vadd.f32 %v1860, 0.0
        %v1917 = vadd.f32 %v1861, 0.0
        %v1918 = vmul.f32 %v1413, %v1297
        %v1919 = vmul.f32 %v1418, %v1297
        %v1920 = vmul.f32 %v1423, %v1297
        %v1921 = vmul.f32 %v1428, %v1297
        %v1922 = vmul.f32 %v1433, %v1297
        %v1923 = vmul.f32 %v1438, %v1297
        %v1924 = vmul.f32 %v1443, %v1297
        %v1925 = vmul.f32 %v1448, %v1297
        %v1926 = vmul.f32 %v1453, %v1297
        %v1927 = vmul.f32 %v1458, %v1297
        %v1928 = vmul.f32 %v1463, %v1297
        %v1929 = vmul.f32 %v1468, %v1297
        %v1930 = vmul.f32 %v1473, %v1297
        %v1931 = vmul.f32 %v1478, %v1297
        %v1932 = vmul.f32 %v1483, %v1297
        %v1933 = vmul.f32 %v1488, %v1297
        %v1934 = vmul.f32 %v1493, %v1297
        %v1935 = vmul.f32 %v1498, %v1297
        %v1936 = vmul.f32 %v1503, %v1297
        %v1937 = vmul.f32 %v1508, %v1297
        %v1938 = vmul.f32 %v1513, %v1297
        %v1939 = vmul.f32 %v1518, %v1297
        %v1940 = vmul.f32 %v1523, %v1297
        %v1941 = vmul.f32 %v1528, %v1297
        %v1942 = vmul.f32 %v1533, %v1297
        %v1943 = vmul.f32 %v1538, %v1297
        %v1944 = vmul.f32 %v1543, %v1297
        %v1945 = vmul.f32 %v1548, %v1297
        %v1946 = vmul.f32 %v1553, %v1297
        %v1947 = vmul.f32 %v1558, %v1297
        %v1948 = vmul.f32 %v1563, %v1297
        %v1949 = vmul.f32 %v1568, %v1297
        %v1950 = vmul.f32 %v1573, %v1297
        %v1951 = vmul.f32 %v1578, %v1297
        %v1952 = vmul.f32 %v1583, %v1297
        %v1953 = vmul.f32 %v1588, %v1297
        %v1954 = vmul.f32 %v1593, %v1297
        %v1955 = vmul.f32 %v1598, %v1297
        %v1956 = vmul.f32 %v1603, %v1297
        %v1957 = vmul.f32 %v1608, %v1297
        %v1958 = vmul.f32 %v1613, %v1297
        %v1959 = vmul.f32 %v1618, %v1297
        %v1960 = vmul.f32 %v1623, %v1297
        %v1961 = vmul.f32 %v1628, %v1297
        %v1962 = vmul.f32 %v1633, %v1297
        %v1963 = vmul.f32 %v1638, %v1297
        %v1964 = vmul.f32 %v1643, %v1297
        %v1965 = vmul.f32 %v1648, %v1297
        %v1966 = vmul.f32 %v1653, %v1297
        %v1967 = vmul.f32 %v1658, %v1297
        %v1968 = vmul.f32 %v1663, %v1297
        %v1969 = vmul.f32 %v1668, %v1297
        %v1970 = vmul.f32 %v1673, %v1297
        %v1971 = vmul.f32 %v1678, %v1297
        %v1972 = vmul.f32 %v1683, %v1297
        %v1973 = vmul.f32 %v1688, %v1297
        %v1974 = vadd.f32 %v1862, %v1918
        %v1975 = vadd.f32 %v1863, %v1919
        %v1976 = vadd.f32 %v1864, %v1920
        %v1977 = vadd.f32 %v1865, %v1921
        %v1978 = vadd.f32 %v1866, %v1922
        %v1979 = vadd.f32 %v1867, %v1923
        %v1980 = vadd.f32 %v1868, %v1924
        %v1981 = vadd.f32 %v1869, %v1925
        %v1982 = vadd.f32 %v1870, %v1926
        %v1983 = vadd.f32 %v1871, %v1927
        %v1984 = vadd.f32 %v1872, %v1928
        %v1985 = vadd.f32 %v1873, %v1929
        %v1986 = vadd.f32 %v1874, %v1930
        %v1987 = vadd.f32 %v1875, %v1931
        %v1988 = vadd.f32 %v1876, %v1932
        %v1989 = vadd.f32 %v1877, %v1933
        %v1990 = vadd.f32 %v1878, %v1934
        %v1991 = vadd.f32 %v1879, %v1935
        %v1992 = vadd.f32 %v1880, %v1936
        %v1993 = vadd.f32 %v1881, %v1937
        %v1994 = vadd.f32 %v1882, %v1938
        %v1995 = vadd.f32 %v1883, %v1939
        %v1996 = vadd.f32 %v1884, %v1940
        %v1997 = vadd.f32 %v1885, %v1941
        %v1998 = vadd.f32 %v1886, %v1942
        %v1999 = vadd.f32 %v1887, %v1943
        %v2000 = vadd.f32 %v1888, %v1944
        %v2001 = vadd.f32 %v1889, %v1945
        %v2002 = vadd.f32 %v1890, %v1946
        %v2003 = vadd.f32 %v1891, %v1947
        %v2004 = vadd.f32 %v1892, %v1948
        %v2005 = vadd.f32 %v1893, %v1949
        %v2006 = vadd.f32 %v1894, %v1950
        %v2007 = vadd.f32 %v1895, %v1951
        %v2008 = vadd.f32 %v1896, %v1952
        %v2009 = vadd.f32 %v1897, %v1953
        %v2010 = vadd.f32 %v1898, %v1954
        %v2011 = vadd.f32 %v1899, %v1955
        %v2012 = vadd.f32 %v1900, %v1956
        %v2013 = vadd.f32 %v1901, %v1957
        %v2014 = vadd.f32 %v1902, %v1958
        %v2015 = vadd.f32 %v1903, %v1959
        %v2016 = vadd.f32 %v1904, %v1960
        %v2017 = vadd.f32 %v1905, %v1961
        %v2018 = vadd.f32 %v1906, %v1962
        %v2019 = vadd.f32 %v1907, %v1963
        %v2020 = vadd.f32 %v1908, %v1964
        %v2021 = vadd.f32 %v1909, %v1965
        %v2022 = vadd.f32 %v1910, %v1966
        %v2023 = vadd.f32 %v1911, %v1967
        %v2024 = vadd.f32 %v1912, %v1968
        %v2025 = vadd.f32 %v1913, %v1969
        %v2026 = vadd.f32 %v1914, %v1970
        %v2027 = vadd.f32 %v1915, %v1971
        %v2028 = vadd.f32 %v1916, %v1972
        %v2029 = vadd.f32 %v1917, %v1973
        %2031 = vset.pattern.permute.xlu0 0
        %2032 = vperm.xlu0 %2031, %v559
        %v2033 = vpop.permute.xlu0 %2032
        %2036 = vset.pattern.permute.xlu0 0
        %2037 = vperm.xlu0 %2036, %v560
        %v2038 = vpop.permute.xlu0 %2037
        %2041 = vset.pattern.permute.xlu0 0
        %2042 = vperm.xlu0 %2041, %v561
        %v2043 = vpop.permute.xlu0 %2042
        %2046 = vset.pattern.permute.xlu0 0
        %2047 = vperm.xlu0 %2046, %v562
        %v2048 = vpop.permute.xlu0 %2047
        %2051 = vset.pattern.permute.xlu0 0
        %2052 = vperm.xlu0 %2051, %v563
        %v2053 = vpop.permute.xlu0 %2052
        %2056 = vset.pattern.permute.xlu0 0
        %2057 = vperm.xlu0 %2056, %v564
        %v2058 = vpop.permute.xlu0 %2057
        %2061 = vset.pattern.permute.xlu0 0
        %2062 = vperm.xlu0 %2061, %v565
        %v2063 = vpop.permute.xlu0 %2062
        %2066 = vset.pattern.permute.xlu0 0
        %2067 = vperm.xlu0 %2066, %v566
        %v2068 = vpop.permute.xlu0 %2067
        %2071 = vset.pattern.permute.xlu0 0
        %2072 = vperm.xlu0 %2071, %v567
        %v2073 = vpop.permute.xlu0 %2072
        %2076 = vset.pattern.permute.xlu0 0
        %2077 = vperm.xlu0 %2076, %v568
        %v2078 = vpop.permute.xlu0 %2077
        %2081 = vset.pattern.permute.xlu0 0
        %2082 = vperm.xlu0 %2081, %v569
        %v2083 = vpop.permute.xlu0 %2082
        %2086 = vset.pattern.permute.xlu0 0
        %2087 = vperm.xlu0 %2086, %v570
        %v2088 = vpop.permute.xlu0 %2087
        %2091 = vset.pattern.permute.xlu0 0
        %2092 = vperm.xlu0 %2091, %v571
        %v2093 = vpop.permute.xlu0 %2092
        %2096 = vset.pattern.permute.xlu0 0
        %2097 = vperm.xlu0 %2096, %v572
        %v2098 = vpop.permute.xlu0 %2097
        %2101 = vset.pattern.permute.xlu0 0
        %2102 = vperm.xlu0 %2101, %v573
        %v2103 = vpop.permute.xlu0 %2102
        %2106 = vset.pattern.permute.xlu0 0
        %2107 = vperm.xlu0 %2106, %v574
        %v2108 = vpop.permute.xlu0 %2107
        %2111 = vset.pattern.permute.xlu0 0
        %2112 = vperm.xlu0 %2111, %v575
        %v2113 = vpop.permute.xlu0 %2112
        %2116 = vset.pattern.permute.xlu0 0
        %2117 = vperm.xlu0 %2116, %v576
        %v2118 = vpop.permute.xlu0 %2117
        %2121 = vset.pattern.permute.xlu0 0
        %2122 = vperm.xlu0 %2121, %v577
        %v2123 = vpop.permute.xlu0 %2122
        %2126 = vset.pattern.permute.xlu0 0
        %2127 = vperm.xlu0 %2126, %v578
        %v2128 = vpop.permute.xlu0 %2127
        %2131 = vset.pattern.permute.xlu0 0
        %2132 = vperm.xlu0 %2131, %v579
        %v2133 = vpop.permute.xlu0 %2132
        %2136 = vset.pattern.permute.xlu0 0
        %2137 = vperm.xlu0 %2136, %v580
        %v2138 = vpop.permute.xlu0 %2137
        %2141 = vset.pattern.permute.xlu0 0
        %2142 = vperm.xlu0 %2141, %v581
        %v2143 = vpop.permute.xlu0 %2142
        %2146 = vset.pattern.permute.xlu0 0
        %2147 = vperm.xlu0 %2146, %v582
        %v2148 = vpop.permute.xlu0 %2147
        %2151 = vset.pattern.permute.xlu0 0
        %2152 = vperm.xlu0 %2151, %v583
        %v2153 = vpop.permute.xlu0 %2152
        %2156 = vset.pattern.permute.xlu0 0
        %2157 = vperm.xlu0 %2156, %v584
        %v2158 = vpop.permute.xlu0 %2157
        %2161 = vset.pattern.permute.xlu0 0
        %2162 = vperm.xlu0 %2161, %v585
        %v2163 = vpop.permute.xlu0 %2162
        %2166 = vset.pattern.permute.xlu0 0
        %2167 = vperm.xlu0 %2166, %v586
        %v2168 = vpop.permute.xlu0 %2167
        %2171 = vset.pattern.permute.xlu0 0
        %2172 = vperm.xlu0 %2171, %v587
        %v2173 = vpop.permute.xlu0 %2172
        %2176 = vset.pattern.permute.xlu0 0
        %2177 = vperm.xlu0 %2176, %v588
        %v2178 = vpop.permute.xlu0 %2177
        %2181 = vset.pattern.permute.xlu0 0
        %2182 = vperm.xlu0 %2181, %v589
        %v2183 = vpop.permute.xlu0 %2182
        %2186 = vset.pattern.permute.xlu0 0
        %2187 = vperm.xlu0 %2186, %v590
        %v2188 = vpop.permute.xlu0 %2187
        %2191 = vset.pattern.permute.xlu0 0
        %2192 = vperm.xlu0 %2191, %v591
        %v2193 = vpop.permute.xlu0 %2192
        %2196 = vset.pattern.permute.xlu0 0
        %2197 = vperm.xlu0 %2196, %v592
        %v2198 = vpop.permute.xlu0 %2197
        %2201 = vset.pattern.permute.xlu0 0
        %2202 = vperm.xlu0 %2201, %v593
        %v2203 = vpop.permute.xlu0 %2202
        %2206 = vset.pattern.permute.xlu0 0
        %2207 = vperm.xlu0 %2206, %v594
        %v2208 = vpop.permute.xlu0 %2207
        %2211 = vset.pattern.permute.xlu0 0
        %2212 = vperm.xlu0 %2211, %v595
        %v2213 = vpop.permute.xlu0 %2212
        %2216 = vset.pattern.permute.xlu0 0
        %2217 = vperm.xlu0 %2216, %v596
        %v2218 = vpop.permute.xlu0 %2217
        %2221 = vset.pattern.permute.xlu0 0
        %2222 = vperm.xlu0 %2221, %v597
        %v2223 = vpop.permute.xlu0 %2222
        %2226 = vset.pattern.permute.xlu0 0
        %2227 = vperm.xlu0 %2226, %v598
        %v2228 = vpop.permute.xlu0 %2227
        %2231 = vset.pattern.permute.xlu0 0
        %2232 = vperm.xlu0 %2231, %v599
        %v2233 = vpop.permute.xlu0 %2232
        %2236 = vset.pattern.permute.xlu0 0
        %2237 = vperm.xlu0 %2236, %v600
        %v2238 = vpop.permute.xlu0 %2237
        %2241 = vset.pattern.permute.xlu0 0
        %2242 = vperm.xlu0 %2241, %v601
        %v2243 = vpop.permute.xlu0 %2242
        %2246 = vset.pattern.permute.xlu0 0
        %2247 = vperm.xlu0 %2246, %v602
        %v2248 = vpop.permute.xlu0 %2247
        %2251 = vset.pattern.permute.xlu0 0
        %2252 = vperm.xlu0 %2251, %v603
        %v2253 = vpop.permute.xlu0 %2252
        %2256 = vset.pattern.permute.xlu0 0
        %2257 = vperm.xlu0 %2256, %v604
        %v2258 = vpop.permute.xlu0 %2257
        %2261 = vset.pattern.permute.xlu0 0
        %2262 = vperm.xlu0 %2261, %v605
        %v2263 = vpop.permute.xlu0 %2262
        %2266 = vset.pattern.permute.xlu0 0
        %2267 = vperm.xlu0 %2266, %v606
        %v2268 = vpop.permute.xlu0 %2267
        %2271 = vset.pattern.permute.xlu0 0
        %2272 = vperm.xlu0 %2271, %v607
        %v2273 = vpop.permute.xlu0 %2272
        %2276 = vset.pattern.permute.xlu0 0
        %2277 = vperm.xlu0 %2276, %v608
        %v2278 = vpop.permute.xlu0 %2277
        %2281 = vset.pattern.permute.xlu0 0
        %2282 = vperm.xlu0 %2281, %v609
        %v2283 = vpop.permute.xlu0 %2282
        %2286 = vset.pattern.permute.xlu0 0
        %2287 = vperm.xlu0 %2286, %v610
        %v2288 = vpop.permute.xlu0 %2287
        %2291 = vset.pattern.permute.xlu0 0
        %2292 = vperm.xlu0 %2291, %v611
        %v2293 = vpop.permute.xlu0 %2292
        %2296 = vset.pattern.permute.xlu0 0
        %2297 = vperm.xlu0 %2296, %v612
        %v2298 = vpop.permute.xlu0 %2297
        %2301 = vset.pattern.permute.xlu0 0
        %2302 = vperm.xlu0 %2301, %v613
        %v2303 = vpop.permute.xlu0 %2302
        %2306 = vset.pattern.permute.xlu0 0
        %2307 = vperm.xlu0 %2306, %v614
        %v2308 = vpop.permute.xlu0 %2307
        %v2310 = vmul.f32 %v2033, %v1693
        %v2311 = vmul.f32 %v2038, %v1693
        %v2312 = vmul.f32 %v2043, %v1693
        %v2313 = vmul.f32 %v2048, %v1693
        %v2314 = vmul.f32 %v2053, %v1693
        %v2315 = vmul.f32 %v2058, %v1693
        %v2316 = vmul.f32 %v2063, %v1693
        %v2317 = vmul.f32 %v2068, %v1693
        %v2318 = vmul.f32 %v2073, %v1693
        %v2319 = vmul.f32 %v2078, %v1693
        %v2320 = vmul.f32 %v2083, %v1693
        %v2321 = vmul.f32 %v2088, %v1693
        %v2322 = vmul.f32 %v2093, %v1693
        %v2323 = vmul.f32 %v2098, %v1693
        %v2324 = vmul.f32 %v2103, %v1693
        %v2325 = vmul.f32 %v2108, %v1693
        %v2326 = vmul.f32 %v2113, %v1693
        %v2327 = vmul.f32 %v2118, %v1693
        %v2328 = vmul.f32 %v2123, %v1693
        %v2329 = vmul.f32 %v2128, %v1693
        %v2330 = vmul.f32 %v2133, %v1693
        %v2331 = vmul.f32 %v2138, %v1693
        %v2332 = vmul.f32 %v2143, %v1693
        %v2333 = vmul.f32 %v2148, %v1693
        %v2334 = vmul.f32 %v2153, %v1693
        %v2335 = vmul.f32 %v2158, %v1693
        %v2336 = vmul.f32 %v2163, %v1693
        %v2337 = vmul.f32 %v2168, %v1693
        %v2338 = vmul.f32 %v2173, %v1693
        %v2339 = vmul.f32 %v2178, %v1693
        %v2340 = vmul.f32 %v2183, %v1693
        %v2341 = vmul.f32 %v2188, %v1693
        %v2342 = vmul.f32 %v2193, %v1693
        %v2343 = vmul.f32 %v2198, %v1693
        %v2344 = vmul.f32 %v2203, %v1693
        %v2345 = vmul.f32 %v2208, %v1693
        %v2346 = vmul.f32 %v2213, %v1693
        %v2347 = vmul.f32 %v2218, %v1693
        %v2348 = vmul.f32 %v2223, %v1693
        %v2349 = vmul.f32 %v2228, %v1693
        %v2350 = vmul.f32 %v2233, %v1693
        %v2351 = vmul.f32 %v2238, %v1693
        %v2352 = vmul.f32 %v2243, %v1693
        %v2353 = vmul.f32 %v2248, %v1693
        %v2354 = vmul.f32 %v2253, %v1693
        %v2355 = vmul.f32 %v2258, %v1693
        %v2356 = vmul.f32 %v2263, %v1693
        %v2357 = vmul.f32 %v2268, %v1693
        %v2358 = vmul.f32 %v2273, %v1693
        %v2359 = vmul.f32 %v2278, %v1693
        %v2360 = vmul.f32 %v2283, %v1693
        %v2361 = vmul.f32 %v2288, %v1693
        %v2362 = vmul.f32 %v2293, %v1693
        %v2363 = vmul.f32 %v2298, %v1693
        %v2364 = vmul.f32 %v2303, %v1693
        %v2365 = vmul.f32 %v2308, %v1693
        %v2366 = vadd.f32 %v1974, %v2310
        %v2367 = vadd.f32 %v1975, %v2311
        %v2368 = vadd.f32 %v1976, %v2312
        %v2369 = vadd.f32 %v1977, %v2313
        %v2370 = vadd.f32 %v1978, %v2314
        %v2371 = vadd.f32 %v1979, %v2315
        %v2372 = vadd.f32 %v1980, %v2316
        %v2373 = vadd.f32 %v1981, %v2317
        %v2374 = vadd.f32 %v1982, %v2318
        %v2375 = vadd.f32 %v1983, %v2319
        %v2376 = vadd.f32 %v1984, %v2320
        %v2377 = vadd.f32 %v1985, %v2321
        %v2378 = vadd.f32 %v1986, %v2322
        %v2379 = vadd.f32 %v1987, %v2323
        %v2380 = vadd.f32 %v1988, %v2324
        %v2381 = vadd.f32 %v1989, %v2325
        %v2382 = vadd.f32 %v1990, %v2326
        %v2383 = vadd.f32 %v1991, %v2327
        %v2384 = vadd.f32 %v1992, %v2328
        %v2385 = vadd.f32 %v1993, %v2329
        %v2386 = vadd.f32 %v1994, %v2330
        %v2387 = vadd.f32 %v1995, %v2331
        %v2388 = vadd.f32 %v1996, %v2332
        %v2389 = vadd.f32 %v1997, %v2333
        %v2390 = vadd.f32 %v1998, %v2334
        %v2391 = vadd.f32 %v1999, %v2335
        %v2392 = vadd.f32 %v2000, %v2336
        %v2393 = vadd.f32 %v2001, %v2337
        %v2394 = vadd.f32 %v2002, %v2338
        %v2395 = vadd.f32 %v2003, %v2339
        %v2396 = vadd.f32 %v2004, %v2340
        %v2397 = vadd.f32 %v2005, %v2341
        %v2398 = vadd.f32 %v2006, %v2342
        %v2399 = vadd.f32 %v2007, %v2343
        %v2400 = vadd.f32 %v2008, %v2344
        %v2401 = vadd.f32 %v2009, %v2345
        %v2402 = vadd.f32 %v2010, %v2346
        %v2403 = vadd.f32 %v2011, %v2347
        %v2404 = vadd.f32 %v2012, %v2348
        %v2405 = vadd.f32 %v2013, %v2349
        %v2406 = vadd.f32 %v2014, %v2350
        %v2407 = vadd.f32 %v2015, %v2351
        %v2408 = vadd.f32 %v2016, %v2352
        %v2409 = vadd.f32 %v2017, %v2353
        %v2410 = vadd.f32 %v2018, %v2354
        %v2411 = vadd.f32 %v2019, %v2355
        %v2412 = vadd.f32 %v2020, %v2356
        %v2413 = vadd.f32 %v2021, %v2357
        %v2414 = vadd.f32 %v2022, %v2358
        %v2415 = vadd.f32 %v2023, %v2359
        %v2416 = vadd.f32 %v2024, %v2360
        %v2417 = vadd.f32 %v2025, %v2361
        %v2418 = vadd.f32 %v2026, %v2362
        %v2419 = vadd.f32 %v2027, %v2363
        %v2420 = vadd.f32 %v2028, %v2364
        %v2421 = vadd.f32 %v2029, %v2365
        %v2422 = vld [vmem:[%s385 + $0x10] sm:$0xff]
        %v2423 = vld [vmem:[%s385 + $0x18] sm:$0xff]
        %v2424 = vld [vmem:[%s385 + $0x20] sm:$0xff]
        %v2425 = vld [vmem:[%s385 + $0x28] sm:$0xff]
        %v2426 = vld [vmem:[%s385 + $0x30] sm:$0xff]
        %v2427 = vld [vmem:[%s385 + $0x38] sm:$0xff]
        %v2428 = vld [vmem:[%s385 + $0x40] sm:$0xff]
        %v2429 = vld [vmem:[%s385 + $0x48] sm:$0xff]
        %v2430 = vld [vmem:[%s385 + $0x50] sm:$0xff]
        %v2431 = vld [vmem:[%s385 + $0x58] sm:$0xff]
        %v2432 = vld [vmem:[%s385 + $0x60] sm:$0xff]
        %v2433 = vld [vmem:[%s385 + $0x68] sm:$0xff]
        %v2434 = vld [vmem:[%s385 + $0x70] sm:$0xff]
        %v2435 = vld [vmem:[%s385 + $0x78] sm:$0xff]
        %v2436 = vld [vmem:[%s385 + $0x80] sm:$0xff]
        %v2437 = vld [vmem:[%s385 + $0x88] sm:$0xff]
        %v2438 = vld [vmem:[%s385 + $0x90] sm:$0xff]
        %v2439 = vld [vmem:[%s385 + $0x98] sm:$0xff]
        %v2440 = vld [vmem:[%s385 + $0xa0] sm:$0xff]
        %v2441 = vld [vmem:[%s385 + $0xa8] sm:$0xff]
        %v2442 = vld [vmem:[%s385 + $0xb0] sm:$0xff]
        %v2443 = vld [vmem:[%s385 + $0xb8] sm:$0xff]
        %v2444 = vld [vmem:[%s385 + $0xc0] sm:$0xff]
        %v2445 = vld [vmem:[%s385 + $0xc8] sm:$0xff]
        %v2446 = vld [vmem:[%s385 + $0xd0] sm:$0xff]
        %v2447 = vld [vmem:[%s385 + $0xd8] sm:$0xff]
        %v2448 = vld [vmem:[%s385 + $0xe0] sm:$0xff]
        %v2449 = vld [vmem:[%s385 + $0xe8] sm:$0xff]
        %v2450 = vld [vmem:[%s385 + $0xf0] sm:$0xff]
        %v2451 = vld [vmem:[%s385 + $0xf8] sm:$0xff]
        %v2452 = vld [vmem:[%s385 + $0x100] sm:$0xff]
        %v2453 = vld [vmem:[%s385 + $0x108] sm:$0xff]
        %v2454 = vld [vmem:[%s385 + $0x110] sm:$0xff]
        %v2455 = vld [vmem:[%s385 + $0x118] sm:$0xff]
        %v2456 = vld [vmem:[%s385 + $0x120] sm:$0xff]
        %v2457 = vld [vmem:[%s385 + $0x128] sm:$0xff]
        %v2458 = vld [vmem:[%s385 + $0x130] sm:$0xff]
        %v2459 = vld [vmem:[%s385 + $0x138] sm:$0xff]
        %v2460 = vld [vmem:[%s385 + $0x140] sm:$0xff]
        %v2461 = vld [vmem:[%s385 + $0x148] sm:$0xff]
        %v2462 = vld [vmem:[%s385 + $0x150] sm:$0xff]
        %v2463 = vld [vmem:[%s385 + $0x158] sm:$0xff]
        %v2464 = vld [vmem:[%s385 + $0x160] sm:$0xff]
        %v2465 = vld [vmem:[%s385 + $0x168] sm:$0xff]
        %v2466 = vld [vmem:[%s385 + $0x170] sm:$0xff]
        %v2467 = vld [vmem:[%s385 + $0x178] sm:$0xff]
        %v2468 = vld [vmem:[%s385 + $0x180] sm:$0xff]
        %v2469 = vld [vmem:[%s385 + $0x188] sm:$0xff]
        %v2470 = vld [vmem:[%s385 + $0x190] sm:$0xff]
        %v2471 = vld [vmem:[%s385 + $0x198] sm:$0xff]
        %v2472 = vld [vmem:[%s385 + $0x1a0] sm:$0xff]
        %v2473 = vld [vmem:[%s385 + $0x1a8] sm:$0xff]
        %v2474 = vld [vmem:[%s385 + $0x1b0] sm:$0xff]
        %v2475 = vld [vmem:[%s385 + $0x1b8] sm:$0xff]
        %v2476 = vld [vmem:[%s385 + $0x1c0] sm:$0xff]
        %v2477 = vld [vmem:[%s385 + $0x1c8] sm:$0xff]
        %v2478 = vld [vmem:[%s385 + $0x11] sm:$0xff]
        %v2479 = vld [vmem:[%s385 + $0x19] sm:$0xff]
        %v2480 = vld [vmem:[%s385 + $0x21] sm:$0xff]
        %v2481 = vld [vmem:[%s385 + $0x29] sm:$0xff]
        %v2482 = vld [vmem:[%s385 + $0x31] sm:$0xff]
        %v2483 = vld [vmem:[%s385 + $0x39] sm:$0xff]
        %v2484 = vld [vmem:[%s385 + $0x41] sm:$0xff]
        %v2485 = vld [vmem:[%s385 + $0x49] sm:$0xff]
        %v2486 = vld [vmem:[%s385 + $0x51] sm:$0xff]
        %v2487 = vld [vmem:[%s385 + $0x59] sm:$0xff]
        %v2488 = vld [vmem:[%s385 + $0x61] sm:$0xff]
        %v2489 = vld [vmem:[%s385 + $0x69] sm:$0xff]
        %v2490 = vld [vmem:[%s385 + $0x71] sm:$0xff]
        %v2491 = vld [vmem:[%s385 + $0x79] sm:$0xff]
        %v2492 = vld [vmem:[%s385 + $0x81] sm:$0xff]
        %v2493 = vld [vmem:[%s385 + $0x89] sm:$0xff]
        %v2494 = vld [vmem:[%s385 + $0x91] sm:$0xff]
        %v2495 = vld [vmem:[%s385 + $0x99] sm:$0xff]
        %v2496 = vld [vmem:[%s385 + $0xa1] sm:$0xff]
        %v2497 = vld [vmem:[%s385 + $0xa9] sm:$0xff]
        %v2498 = vld [vmem:[%s385 + $0xb1] sm:$0xff]
        %v2499 = vld [vmem:[%s385 + $0xb9] sm:$0xff]
        %v2500 = vld [vmem:[%s385 + $0xc1] sm:$0xff]
        %v2501 = vld [vmem:[%s385 + $0xc9] sm:$0xff]
        %v2502 = vld [vmem:[%s385 + $0xd1] sm:$0xff]
        %v2503 = vld [vmem:[%s385 + $0xd9] sm:$0xff]
        %v2504 = vld [vmem:[%s385 + $0xe1] sm:$0xff]
        %v2505 = vld [vmem:[%s385 + $0xe9] sm:$0xff]
        %v2506 = vld [vmem:[%s385 + $0xf1] sm:$0xff]
        %v2507 = vld [vmem:[%s385 + $0xf9] sm:$0xff]
        %v2508 = vld [vmem:[%s385 + $0x101] sm:$0xff]
        %v2509 = vld [vmem:[%s385 + $0x109] sm:$0xff]
        %v2510 = vld [vmem:[%s385 + $0x111] sm:$0xff]
        %v2511 = vld [vmem:[%s385 + $0x119] sm:$0xff]
        %v2512 = vld [vmem:[%s385 + $0x121] sm:$0xff]
        %v2513 = vld [vmem:[%s385 + $0x129] sm:$0xff]
        %v2514 = vld [vmem:[%s385 + $0x131] sm:$0xff]
        %v2515 = vld [vmem:[%s385 + $0x139] sm:$0xff]
        %v2516 = vld [vmem:[%s385 + $0x141] sm:$0xff]
        %v2517 = vld [vmem:[%s385 + $0x149] sm:$0xff]
        %v2518 = vld [vmem:[%s385 + $0x151] sm:$0xff]
        %v2519 = vld [vmem:[%s385 + $0x159] sm:$0xff]
        %v2520 = vld [vmem:[%s385 + $0x161] sm:$0xff]
        %v2521 = vld [vmem:[%s385 + $0x169] sm:$0xff]
        %v2522 = vld [vmem:[%s385 + $0x171] sm:$0xff]
        %v2523 = vld [vmem:[%s385 + $0x179] sm:$0xff]
        %v2524 = vld [vmem:[%s385 + $0x181] sm:$0xff]
        %v2525 = vld [vmem:[%s385 + $0x189] sm:$0xff]
        %v2526 = vld [vmem:[%s385 + $0x191] sm:$0xff]
        %v2527 = vld [vmem:[%s385 + $0x199] sm:$0xff]
        %v2528 = vld [vmem:[%s385 + $0x1a1] sm:$0xff]
        %v2529 = vld [vmem:[%s385 + $0x1a9] sm:$0xff]
        %v2530 = vld [vmem:[%s385 + $0x1b1] sm:$0xff]
        %v2531 = vld [vmem:[%s385 + $0x1b9] sm:$0xff]
        %v2532 = vld [vmem:[%s385 + $0x1c1] sm:$0xff]
        %v2533 = vld [vmem:[%s385 + $0x1c9] sm:$0xff]
        %v2534 = vld [vmem:[%s390 + $0x10] sm:$0xff]
        %v2535 = vld [vmem:[%s390 + $0x18] sm:$0xff]
        %v2536 = vld [vmem:[%s390 + $0x20] sm:$0xff]
        %v2537 = vld [vmem:[%s390 + $0x28] sm:$0xff]
        %v2538 = vld [vmem:[%s390 + $0x30] sm:$0xff]
        %v2539 = vld [vmem:[%s390 + $0x38] sm:$0xff]
        %v2540 = vld [vmem:[%s390 + $0x40] sm:$0xff]
        %v2541 = vld [vmem:[%s390 + $0x48] sm:$0xff]
        %v2542 = vld [vmem:[%s390 + $0x50] sm:$0xff]
        %v2543 = vld [vmem:[%s390 + $0x58] sm:$0xff]
        %v2544 = vld [vmem:[%s390 + $0x60] sm:$0xff]
        %v2545 = vld [vmem:[%s390 + $0x68] sm:$0xff]
        %v2546 = vld [vmem:[%s390 + $0x70] sm:$0xff]
        %v2547 = vld [vmem:[%s390 + $0x78] sm:$0xff]
        %v2548 = vld [vmem:[%s390 + $0x80] sm:$0xff]
        %v2549 = vld [vmem:[%s390 + $0x88] sm:$0xff]
        %v2550 = vld [vmem:[%s390 + $0x90] sm:$0xff]
        %v2551 = vld [vmem:[%s390 + $0x98] sm:$0xff]
        %v2552 = vld [vmem:[%s390 + $0xa0] sm:$0xff]
        %v2553 = vld [vmem:[%s390 + $0xa8] sm:$0xff]
        %v2554 = vld [vmem:[%s390 + $0xb0] sm:$0xff]
        %v2555 = vld [vmem:[%s390 + $0xb8] sm:$0xff]
        %v2556 = vld [vmem:[%s390 + $0xc0] sm:$0xff]
        %v2557 = vld [vmem:[%s390 + $0xc8] sm:$0xff]
        %v2558 = vld [vmem:[%s390 + $0xd0] sm:$0xff]
        %v2559 = vld [vmem:[%s390 + $0xd8] sm:$0xff]
        %v2560 = vld [vmem:[%s390 + $0xe0] sm:$0xff]
        %v2561 = vld [vmem:[%s390 + $0xe8] sm:$0xff]
        %v2562 = vld [vmem:[%s390 + $0xf0] sm:$0xff]
        %v2563 = vld [vmem:[%s390 + $0xf8] sm:$0xff]
        %v2564 = vld [vmem:[%s390 + $0x100] sm:$0xff]
        %v2565 = vld [vmem:[%s390 + $0x108] sm:$0xff]
        %v2566 = vld [vmem:[%s390 + $0x110] sm:$0xff]
        %v2567 = vld [vmem:[%s390 + $0x118] sm:$0xff]
        %v2568 = vld [vmem:[%s390 + $0x120] sm:$0xff]
        %v2569 = vld [vmem:[%s390 + $0x128] sm:$0xff]
        %v2570 = vld [vmem:[%s390 + $0x130] sm:$0xff]
        %v2571 = vld [vmem:[%s390 + $0x138] sm:$0xff]
        %v2572 = vld [vmem:[%s390 + $0x140] sm:$0xff]
        %v2573 = vld [vmem:[%s390 + $0x148] sm:$0xff]
        %v2574 = vld [vmem:[%s390 + $0x150] sm:$0xff]
        %v2575 = vld [vmem:[%s390 + $0x158] sm:$0xff]
        %v2576 = vld [vmem:[%s390 + $0x160] sm:$0xff]
        %v2577 = vld [vmem:[%s390 + $0x168] sm:$0xff]
        %v2578 = vld [vmem:[%s390 + $0x170] sm:$0xff]
        %v2579 = vld [vmem:[%s390 + $0x178] sm:$0xff]
        %v2580 = vld [vmem:[%s390 + $0x180] sm:$0xff]
        %v2581 = vld [vmem:[%s390 + $0x188] sm:$0xff]
        %v2582 = vld [vmem:[%s390 + $0x190] sm:$0xff]
        %v2583 = vld [vmem:[%s390 + $0x198] sm:$0xff]
        %v2584 = vld [vmem:[%s390 + $0x1a0] sm:$0xff]
        %v2585 = vld [vmem:[%s390 + $0x1a8] sm:$0xff]
        %v2586 = vld [vmem:[%s390 + $0x1b0] sm:$0xff]
        %v2587 = vld [vmem:[%s390 + $0x1b8] sm:$0xff]
        %v2588 = vld [vmem:[%s390 + $0x1c0] sm:$0xff]
        %v2589 = vld [vmem:[%s390 + $0x1c8] sm:$0xff]
        %v2590 = vld [vmem:[%s390 + $0x11] sm:$0xff]
        %v2591 = vld [vmem:[%s390 + $0x19] sm:$0xff]
        %v2592 = vld [vmem:[%s390 + $0x21] sm:$0xff]
        %v2593 = vld [vmem:[%s390 + $0x29] sm:$0xff]
        %v2594 = vld [vmem:[%s390 + $0x31] sm:$0xff]
        %v2595 = vld [vmem:[%s390 + $0x39] sm:$0xff]
        %v2596 = vld [vmem:[%s390 + $0x41] sm:$0xff]
        %v2597 = vld [vmem:[%s390 + $0x49] sm:$0xff]
        %v2598 = vld [vmem:[%s390 + $0x51] sm:$0xff]
        %v2599 = vld [vmem:[%s390 + $0x59] sm:$0xff]
        %v2600 = vld [vmem:[%s390 + $0x61] sm:$0xff]
        %v2601 = vld [vmem:[%s390 + $0x69] sm:$0xff]
        %v2602 = vld [vmem:[%s390 + $0x71] sm:$0xff]
        %v2603 = vld [vmem:[%s390 + $0x79] sm:$0xff]
        %v2604 = vld [vmem:[%s390 + $0x81] sm:$0xff]
        %v2605 = vld [vmem:[%s390 + $0x89] sm:$0xff]
        %v2606 = vld [vmem:[%s390 + $0x91] sm:$0xff]
        %v2607 = vld [vmem:[%s390 + $0x99] sm:$0xff]
        %v2608 = vld [vmem:[%s390 + $0xa1] sm:$0xff]
        %v2609 = vld [vmem:[%s390 + $0xa9] sm:$0xff]
        %v2610 = vld [vmem:[%s390 + $0xb1] sm:$0xff]
        %v2611 = vld [vmem:[%s390 + $0xb9] sm:$0xff]
        %v2612 = vld [vmem:[%s390 + $0xc1] sm:$0xff]
        %v2613 = vld [vmem:[%s390 + $0xc9] sm:$0xff]
        %v2614 = vld [vmem:[%s390 + $0xd1] sm:$0xff]
        %v2615 = vld [vmem:[%s390 + $0xd9] sm:$0xff]
        %v2616 = vld [vmem:[%s390 + $0xe1] sm:$0xff]
        %v2617 = vld [vmem:[%s390 + $0xe9] sm:$0xff]
        %v2618 = vld [vmem:[%s390 + $0xf1] sm:$0xff]
        %v2619 = vld [vmem:[%s390 + $0xf9] sm:$0xff]
        %v2620 = vld [vmem:[%s390 + $0x101] sm:$0xff]
        %v2621 = vld [vmem:[%s390 + $0x109] sm:$0xff]
        %v2622 = vld [vmem:[%s390 + $0x111] sm:$0xff]
        %v2623 = vld [vmem:[%s390 + $0x119] sm:$0xff]
        %v2624 = vld [vmem:[%s390 + $0x121] sm:$0xff]
        %v2625 = vld [vmem:[%s390 + $0x129] sm:$0xff]
        %v2626 = vld [vmem:[%s390 + $0x131] sm:$0xff]
        %v2627 = vld [vmem:[%s390 + $0x139] sm:$0xff]
        %v2628 = vld [vmem:[%s390 + $0x141] sm:$0xff]
        %v2629 = vld [vmem:[%s390 + $0x149] sm:$0xff]
        %v2630 = vld [vmem:[%s390 + $0x151] sm:$0xff]
        %v2631 = vld [vmem:[%s390 + $0x159] sm:$0xff]
        %v2632 = vld [vmem:[%s390 + $0x161] sm:$0xff]
        %v2633 = vld [vmem:[%s390 + $0x169] sm:$0xff]
        %v2634 = vld [vmem:[%s390 + $0x171] sm:$0xff]
        %v2635 = vld [vmem:[%s390 + $0x179] sm:$0xff]
        %v2636 = vld [vmem:[%s390 + $0x181] sm:$0xff]
        %v2637 = vld [vmem:[%s390 + $0x189] sm:$0xff]
        %v2638 = vld [vmem:[%s390 + $0x191] sm:$0xff]
        %v2639 = vld [vmem:[%s390 + $0x199] sm:$0xff]
        %v2640 = vld [vmem:[%s390 + $0x1a1] sm:$0xff]
        %v2641 = vld [vmem:[%s390 + $0x1a9] sm:$0xff]
        %v2642 = vld [vmem:[%s390 + $0x1b1] sm:$0xff]
        %v2643 = vld [vmem:[%s390 + $0x1b9] sm:$0xff]
        %v2644 = vld [vmem:[%s390 + $0x1c1] sm:$0xff]
        %v2645 = vld [vmem:[%s390 + $0x1c9] sm:$0xff]
        %s2646 = scalar_lea.vmem %s2, 4
        %v2647 = vld [vmem:[%s2646] sm:$0x1]
        %v2648 = vld [vmem:[%s2646 + $0x1] sm:$0x1]
        %v2649 = vld [vmem:[%s2646 + $0x2] sm:$0x1]
        %2651 = vset.pattern.permute.xlu0 0
        %2652 = vperm.xlu0 %2651, %v2422
        %v2653 = vpop.permute.xlu0 %2652
        %2656 = vset.pattern.permute.xlu0 0
        %2657 = vperm.xlu0 %2656, %v2423
        %v2658 = vpop.permute.xlu0 %2657
        %2661 = vset.pattern.permute.xlu0 0
        %2662 = vperm.xlu0 %2661, %v2424
        %v2663 = vpop.permute.xlu0 %2662
        %2666 = vset.pattern.permute.xlu0 0
        %2667 = vperm.xlu0 %2666, %v2425
        %v2668 = vpop.permute.xlu0 %2667
        %2671 = vset.pattern.permute.xlu0 0
        %2672 = vperm.xlu0 %2671, %v2426
        %v2673 = vpop.permute.xlu0 %2672
        %2676 = vset.pattern.permute.xlu0 0
        %2677 = vperm.xlu0 %2676, %v2427
        %v2678 = vpop.permute.xlu0 %2677
        %2681 = vset.pattern.permute.xlu0 0
        %2682 = vperm.xlu0 %2681, %v2428
        %v2683 = vpop.permute.xlu0 %2682
        %2686 = vset.pattern.permute.xlu0 0
        %2687 = vperm.xlu0 %2686, %v2429
        %v2688 = vpop.permute.xlu0 %2687
        %2691 = vset.pattern.permute.xlu0 0
        %2692 = vperm.xlu0 %2691, %v2430
        %v2693 = vpop.permute.xlu0 %2692
        %2696 = vset.pattern.permute.xlu0 0
        %2697 = vperm.xlu0 %2696, %v2431
        %v2698 = vpop.permute.xlu0 %2697
        %2701 = vset.pattern.permute.xlu0 0
        %2702 = vperm.xlu0 %2701, %v2432
        %v2703 = vpop.permute.xlu0 %2702
        %2706 = vset.pattern.permute.xlu0 0
        %2707 = vperm.xlu0 %2706, %v2433
        %v2708 = vpop.permute.xlu0 %2707
        %2711 = vset.pattern.permute.xlu0 0
        %2712 = vperm.xlu0 %2711, %v2434
        %v2713 = vpop.permute.xlu0 %2712
        %2716 = vset.pattern.permute.xlu0 0
        %2717 = vperm.xlu0 %2716, %v2435
        %v2718 = vpop.permute.xlu0 %2717
        %2721 = vset.pattern.permute.xlu0 0
        %2722 = vperm.xlu0 %2721, %v2436
        %v2723 = vpop.permute.xlu0 %2722
        %2726 = vset.pattern.permute.xlu0 0
        %2727 = vperm.xlu0 %2726, %v2437
        %v2728 = vpop.permute.xlu0 %2727
        %2731 = vset.pattern.permute.xlu0 0
        %2732 = vperm.xlu0 %2731, %v2438
        %v2733 = vpop.permute.xlu0 %2732
        %2736 = vset.pattern.permute.xlu0 0
        %2737 = vperm.xlu0 %2736, %v2439
        %v2738 = vpop.permute.xlu0 %2737
        %2741 = vset.pattern.permute.xlu0 0
        %2742 = vperm.xlu0 %2741, %v2440
        %v2743 = vpop.permute.xlu0 %2742
        %2746 = vset.pattern.permute.xlu0 0
        %2747 = vperm.xlu0 %2746, %v2441
        %v2748 = vpop.permute.xlu0 %2747
        %2751 = vset.pattern.permute.xlu0 0
        %2752 = vperm.xlu0 %2751, %v2442
        %v2753 = vpop.permute.xlu0 %2752
        %2756 = vset.pattern.permute.xlu0 0
        %2757 = vperm.xlu0 %2756, %v2443
        %v2758 = vpop.permute.xlu0 %2757
        %2761 = vset.pattern.permute.xlu0 0
        %2762 = vperm.xlu0 %2761, %v2444
        %v2763 = vpop.permute.xlu0 %2762
        %2766 = vset.pattern.permute.xlu0 0
        %2767 = vperm.xlu0 %2766, %v2445
        %v2768 = vpop.permute.xlu0 %2767
        %2771 = vset.pattern.permute.xlu0 0
        %2772 = vperm.xlu0 %2771, %v2446
        %v2773 = vpop.permute.xlu0 %2772
        %2776 = vset.pattern.permute.xlu0 0
        %2777 = vperm.xlu0 %2776, %v2447
        %v2778 = vpop.permute.xlu0 %2777
        %2781 = vset.pattern.permute.xlu0 0
        %2782 = vperm.xlu0 %2781, %v2448
        %v2783 = vpop.permute.xlu0 %2782
        %2786 = vset.pattern.permute.xlu0 0
        %2787 = vperm.xlu0 %2786, %v2449
        %v2788 = vpop.permute.xlu0 %2787
        %2791 = vset.pattern.permute.xlu0 0
        %2792 = vperm.xlu0 %2791, %v2450
        %v2793 = vpop.permute.xlu0 %2792
        %2796 = vset.pattern.permute.xlu0 0
        %2797 = vperm.xlu0 %2796, %v2451
        %v2798 = vpop.permute.xlu0 %2797
        %2801 = vset.pattern.permute.xlu0 0
        %2802 = vperm.xlu0 %2801, %v2452
        %v2803 = vpop.permute.xlu0 %2802
        %2806 = vset.pattern.permute.xlu0 0
        %2807 = vperm.xlu0 %2806, %v2453
        %v2808 = vpop.permute.xlu0 %2807
        %2811 = vset.pattern.permute.xlu0 0
        %2812 = vperm.xlu0 %2811, %v2454
        %v2813 = vpop.permute.xlu0 %2812
        %2816 = vset.pattern.permute.xlu0 0
        %2817 = vperm.xlu0 %2816, %v2455
        %v2818 = vpop.permute.xlu0 %2817
        %2821 = vset.pattern.permute.xlu0 0
        %2822 = vperm.xlu0 %2821, %v2456
        %v2823 = vpop.permute.xlu0 %2822
        %2826 = vset.pattern.permute.xlu0 0
        %2827 = vperm.xlu0 %2826, %v2457
        %v2828 = vpop.permute.xlu0 %2827
        %2831 = vset.pattern.permute.xlu0 0
        %2832 = vperm.xlu0 %2831, %v2458
        %v2833 = vpop.permute.xlu0 %2832
        %2836 = vset.pattern.permute.xlu0 0
        %2837 = vperm.xlu0 %2836, %v2459
        %v2838 = vpop.permute.xlu0 %2837
        %2841 = vset.pattern.permute.xlu0 0
        %2842 = vperm.xlu0 %2841, %v2460
        %v2843 = vpop.permute.xlu0 %2842
        %2846 = vset.pattern.permute.xlu0 0
        %2847 = vperm.xlu0 %2846, %v2461
        %v2848 = vpop.permute.xlu0 %2847
        %2851 = vset.pattern.permute.xlu0 0
        %2852 = vperm.xlu0 %2851, %v2462
        %v2853 = vpop.permute.xlu0 %2852
        %2856 = vset.pattern.permute.xlu0 0
        %2857 = vperm.xlu0 %2856, %v2463
        %v2858 = vpop.permute.xlu0 %2857
        %2861 = vset.pattern.permute.xlu0 0
        %2862 = vperm.xlu0 %2861, %v2464
        %v2863 = vpop.permute.xlu0 %2862
        %2866 = vset.pattern.permute.xlu0 0
        %2867 = vperm.xlu0 %2866, %v2465
        %v2868 = vpop.permute.xlu0 %2867
        %2871 = vset.pattern.permute.xlu0 0
        %2872 = vperm.xlu0 %2871, %v2466
        %v2873 = vpop.permute.xlu0 %2872
        %2876 = vset.pattern.permute.xlu0 0
        %2877 = vperm.xlu0 %2876, %v2467
        %v2878 = vpop.permute.xlu0 %2877
        %2881 = vset.pattern.permute.xlu0 0
        %2882 = vperm.xlu0 %2881, %v2468
        %v2883 = vpop.permute.xlu0 %2882
        %2886 = vset.pattern.permute.xlu0 0
        %2887 = vperm.xlu0 %2886, %v2469
        %v2888 = vpop.permute.xlu0 %2887
        %2891 = vset.pattern.permute.xlu0 0
        %2892 = vperm.xlu0 %2891, %v2470
        %v2893 = vpop.permute.xlu0 %2892
        %2896 = vset.pattern.permute.xlu0 0
        %2897 = vperm.xlu0 %2896, %v2471
        %v2898 = vpop.permute.xlu0 %2897
        %2901 = vset.pattern.permute.xlu0 0
        %2902 = vperm.xlu0 %2901, %v2472
        %v2903 = vpop.permute.xlu0 %2902
        %2906 = vset.pattern.permute.xlu0 0
        %2907 = vperm.xlu0 %2906, %v2473
        %v2908 = vpop.permute.xlu0 %2907
        %2911 = vset.pattern.permute.xlu0 0
        %2912 = vperm.xlu0 %2911, %v2474
        %v2913 = vpop.permute.xlu0 %2912
        %2916 = vset.pattern.permute.xlu0 0
        %2917 = vperm.xlu0 %2916, %v2475
        %v2918 = vpop.permute.xlu0 %2917
        %2921 = vset.pattern.permute.xlu0 0
        %2922 = vperm.xlu0 %2921, %v2476
        %v2923 = vpop.permute.xlu0 %2922
        %2926 = vset.pattern.permute.xlu0 0
        %2927 = vperm.xlu0 %2926, %v2477
        %v2928 = vpop.permute.xlu0 %2927
        %v2930 = vlaneseq
        %v2931 = vshrl.u32 %v2930, 7
        %v2932 = vsub.s32 0, %v2931
        %v2933 = vrot.slane %v2647, %v2932
        %v2934 = vmul.f32 %v2653, %v2933
        %v2935 = vmul.f32 %v2658, %v2933
        %v2936 = vmul.f32 %v2663, %v2933
        %v2937 = vmul.f32 %v2668, %v2933
        %v2938 = vmul.f32 %v2673, %v2933
        %v2939 = vmul.f32 %v2678, %v2933
        %v2940 = vmul.f32 %v2683, %v2933
        %v2941 = vmul.f32 %v2688, %v2933
        %v2942 = vmul.f32 %v2693, %v2933
        %v2943 = vmul.f32 %v2698, %v2933
        %v2944 = vmul.f32 %v2703, %v2933
        %v2945 = vmul.f32 %v2708, %v2933
        %v2946 = vmul.f32 %v2713, %v2933
        %v2947 = vmul.f32 %v2718, %v2933
        %v2948 = vmul.f32 %v2723, %v2933
        %v2949 = vmul.f32 %v2728, %v2933
        %v2950 = vmul.f32 %v2733, %v2933
        %v2951 = vmul.f32 %v2738, %v2933
        %v2952 = vmul.f32 %v2743, %v2933
        %v2953 = vmul.f32 %v2748, %v2933
        %v2954 = vmul.f32 %v2753, %v2933
        %v2955 = vmul.f32 %v2758, %v2933
        %v2956 = vmul.f32 %v2763, %v2933
        %v2957 = vmul.f32 %v2768, %v2933
        %v2958 = vmul.f32 %v2773, %v2933
        %v2959 = vmul.f32 %v2778, %v2933
        %v2960 = vmul.f32 %v2783, %v2933
        %v2961 = vmul.f32 %v2788, %v2933
        %v2962 = vmul.f32 %v2793, %v2933
        %v2963 = vmul.f32 %v2798, %v2933
        %v2964 = vmul.f32 %v2803, %v2933
        %v2965 = vmul.f32 %v2808, %v2933
        %v2966 = vmul.f32 %v2813, %v2933
        %v2967 = vmul.f32 %v2818, %v2933
        %v2968 = vmul.f32 %v2823, %v2933
        %v2969 = vmul.f32 %v2828, %v2933
        %v2970 = vmul.f32 %v2833, %v2933
        %v2971 = vmul.f32 %v2838, %v2933
        %v2972 = vmul.f32 %v2843, %v2933
        %v2973 = vmul.f32 %v2848, %v2933
        %v2974 = vmul.f32 %v2853, %v2933
        %v2975 = vmul.f32 %v2858, %v2933
        %v2976 = vmul.f32 %v2863, %v2933
        %v2977 = vmul.f32 %v2868, %v2933
        %v2978 = vmul.f32 %v2873, %v2933
        %v2979 = vmul.f32 %v2878, %v2933
        %v2980 = vmul.f32 %v2883, %v2933
        %v2981 = vmul.f32 %v2888, %v2933
        %v2982 = vmul.f32 %v2893, %v2933
        %v2983 = vmul.f32 %v2898, %v2933
        %v2984 = vmul.f32 %v2903, %v2933
        %v2985 = vmul.f32 %v2908, %v2933
        %v2986 = vmul.f32 %v2913, %v2933
        %v2987 = vmul.f32 %v2918, %v2933
        %v2988 = vmul.f32 %v2923, %v2933
        %v2989 = vmul.f32 %v2928, %v2933
        %v2990 = vadd.f32 %v1750, %v2934
        %v2991 = vadd.f32 %v1751, %v2935
        %v2992 = vadd.f32 %v1752, %v2936
        %v2993 = vadd.f32 %v1753, %v2937
        %v2994 = vadd.f32 %v1754, %v2938
        %v2995 = vadd.f32 %v1755, %v2939
        %v2996 = vadd.f32 %v1756, %v2940
        %v2997 = vadd.f32 %v1757, %v2941
        %v2998 = vadd.f32 %v1758, %v2942
        %v2999 = vadd.f32 %v1759, %v2943
        %v3000 = vadd.f32 %v1760, %v2944
        %v3001 = vadd.f32 %v1761, %v2945
        %v3002 = vadd.f32 %v1762, %v2946
        %v3003 = vadd.f32 %v1763, %v2947
        %v3004 = vadd.f32 %v1764, %v2948
        %v3005 = vadd.f32 %v1765, %v2949
        %v3006 = vadd.f32 %v1766, %v2950
        %v3007 = vadd.f32 %v1767, %v2951
        %v3008 = vadd.f32 %v1768, %v2952
        %v3009 = vadd.f32 %v1769, %v2953
        %v3010 = vadd.f32 %v1770, %v2954
        %v3011 = vadd.f32 %v1771, %v2955
        %v3012 = vadd.f32 %v1772, %v2956
        %v3013 = vadd.f32 %v1773, %v2957
        %v3014 = vadd.f32 %v1774, %v2958
        %v3015 = vadd.f32 %v1775, %v2959
        %v3016 = vadd.f32 %v1776, %v2960
        %v3017 = vadd.f32 %v1777, %v2961
        %v3018 = vadd.f32 %v1778, %v2962
        %v3019 = vadd.f32 %v1779, %v2963
        %v3020 = vadd.f32 %v1780, %v2964
        %v3021 = vadd.f32 %v1781, %v2965
        %v3022 = vadd.f32 %v1782, %v2966
        %v3023 = vadd.f32 %v1783, %v2967
        %v3024 = vadd.f32 %v1784, %v2968
        %v3025 = vadd.f32 %v1785, %v2969
        %v3026 = vadd.f32 %v1786, %v2970
        %v3027 = vadd.f32 %v1787, %v2971
        %v3028 = vadd.f32 %v1788, %v2972
        %v3029 = vadd.f32 %v1789, %v2973
        %v3030 = vadd.f32 %v1790, %v2974
        %v3031 = vadd.f32 %v1791, %v2975
        %v3032 = vadd.f32 %v1792, %v2976
        %v3033 = vadd.f32 %v1793, %v2977
        %v3034 = vadd.f32 %v1794, %v2978
        %v3035 = vadd.f32 %v1795, %v2979
        %v3036 = vadd.f32 %v1796, %v2980
        %v3037 = vadd.f32 %v1797, %v2981
        %v3038 = vadd.f32 %v1798, %v2982
        %v3039 = vadd.f32 %v1799, %v2983
        %v3040 = vadd.f32 %v1800, %v2984
        %v3041 = vadd.f32 %v1801, %v2985
        %v3042 = vadd.f32 %v1802, %v2986
        %v3043 = vadd.f32 %v1803, %v2987
        %v3044 = vadd.f32 %v1804, %v2988
        %v3045 = vadd.f32 %v1805, %v2989
        %3047 = vset.pattern.permute.xlu0 0
        %3048 = vperm.xlu0 %3047, %v2534
        %v3049 = vpop.permute.xlu0 %3048
        %3052 = vset.pattern.permute.xlu0 0
        %3053 = vperm.xlu0 %3052, %v2535
        %v3054 = vpop.permute.xlu0 %3053
        %3057 = vset.pattern.permute.xlu0 0
        %3058 = vperm.xlu0 %3057, %v2536
        %v3059 = vpop.permute.xlu0 %3058
        %3062 = vset.pattern.permute.xlu0 0
        %3063 = vperm.xlu0 %3062, %v2537
        %v3064 = vpop.permute.xlu0 %3063
        %3067 = vset.pattern.permute.xlu0 0
        %3068 = vperm.xlu0 %3067, %v2538
        %v3069 = vpop.permute.xlu0 %3068
        %3072 = vset.pattern.permute.xlu0 0
        %3073 = vperm.xlu0 %3072, %v2539
        %v3074 = vpop.permute.xlu0 %3073
        %3077 = vset.pattern.permute.xlu0 0
        %3078 = vperm.xlu0 %3077, %v2540
        %v3079 = vpop.permute.xlu0 %3078
        %3082 = vset.pattern.permute.xlu0 0
        %3083 = vperm.xlu0 %3082, %v2541
        %v3084 = vpop.permute.xlu0 %3083
        %3087 = vset.pattern.permute.xlu0 0
        %3088 = vperm.xlu0 %3087, %v2542
        %v3089 = vpop.permute.xlu0 %3088
        %3092 = vset.pattern.permute.xlu0 0
        %3093 = vperm.xlu0 %3092, %v2543
        %v3094 = vpop.permute.xlu0 %3093
        %3097 = vset.pattern.permute.xlu0 0
        %3098 = vperm.xlu0 %3097, %v2544
        %v3099 = vpop.permute.xlu0 %3098
        %3102 = vset.pattern.permute.xlu0 0
        %3103 = vperm.xlu0 %3102, %v2545
        %v3104 = vpop.permute.xlu0 %3103
        %3107 = vset.pattern.permute.xlu0 0
        %3108 = vperm.xlu0 %3107, %v2546
        %v3109 = vpop.permute.xlu0 %3108
        %3112 = vset.pattern.permute.xlu0 0
        %3113 = vperm.xlu0 %3112, %v2547
        %v3114 = vpop.permute.xlu0 %3113
        %3117 = vset.pattern.permute.xlu0 0
        %3118 = vperm.xlu0 %3117, %v2548
        %v3119 = vpop.permute.xlu0 %3118
        %3122 = vset.pattern.permute.xlu0 0
        %3123 = vperm.xlu0 %3122, %v2549
        %v3124 = vpop.permute.xlu0 %3123
        %3127 = vset.pattern.permute.xlu0 0
        %3128 = vperm.xlu0 %3127, %v2550
        %v3129 = vpop.permute.xlu0 %3128
        %3132 = vset.pattern.permute.xlu0 0
        %3133 = vperm.xlu0 %3132, %v2551
        %v3134 = vpop.permute.xlu0 %3133
        %3137 = vset.pattern.permute.xlu0 0
        %3138 = vperm.xlu0 %3137, %v2552
        %v3139 = vpop.permute.xlu0 %3138
        %3142 = vset.pattern.permute.xlu0 0
        %3143 = vperm.xlu0 %3142, %v2553
        %v3144 = vpop.permute.xlu0 %3143
        %3147 = vset.pattern.permute.xlu0 0
        %3148 = vperm.xlu0 %3147, %v2554
        %v3149 = vpop.permute.xlu0 %3148
        %3152 = vset.pattern.permute.xlu0 0
        %3153 = vperm.xlu0 %3152, %v2555
        %v3154 = vpop.permute.xlu0 %3153
        %3157 = vset.pattern.permute.xlu0 0
        %3158 = vperm.xlu0 %3157, %v2556
        %v3159 = vpop.permute.xlu0 %3158
        %3162 = vset.pattern.permute.xlu0 0
        %3163 = vperm.xlu0 %3162, %v2557
        %v3164 = vpop.permute.xlu0 %3163
        %3167 = vset.pattern.permute.xlu0 0
        %3168 = vperm.xlu0 %3167, %v2558
        %v3169 = vpop.permute.xlu0 %3168
        %3172 = vset.pattern.permute.xlu0 0
        %3173 = vperm.xlu0 %3172, %v2559
        %v3174 = vpop.permute.xlu0 %3173
        %3177 = vset.pattern.permute.xlu0 0
        %3178 = vperm.xlu0 %3177, %v2560
        %v3179 = vpop.permute.xlu0 %3178
        %3182 = vset.pattern.permute.xlu0 0
        %3183 = vperm.xlu0 %3182, %v2561
        %v3184 = vpop.permute.xlu0 %3183
        %3187 = vset.pattern.permute.xlu0 0
        %3188 = vperm.xlu0 %3187, %v2562
        %v3189 = vpop.permute.xlu0 %3188
        %3192 = vset.pattern.permute.xlu0 0
        %3193 = vperm.xlu0 %3192, %v2563
        %v3194 = vpop.permute.xlu0 %3193
        %3197 = vset.pattern.permute.xlu0 0
        %3198 = vperm.xlu0 %3197, %v2564
        %v3199 = vpop.permute.xlu0 %3198
        %3202 = vset.pattern.permute.xlu0 0
        %3203 = vperm.xlu0 %3202, %v2565
        %v3204 = vpop.permute.xlu0 %3203
        %3207 = vset.pattern.permute.xlu0 0
        %3208 = vperm.xlu0 %3207, %v2566
        %v3209 = vpop.permute.xlu0 %3208
        %3212 = vset.pattern.permute.xlu0 0
        %3213 = vperm.xlu0 %3212, %v2567
        %v3214 = vpop.permute.xlu0 %3213
        %3217 = vset.pattern.permute.xlu0 0
        %3218 = vperm.xlu0 %3217, %v2568
        %v3219 = vpop.permute.xlu0 %3218
        %3222 = vset.pattern.permute.xlu0 0
        %3223 = vperm.xlu0 %3222, %v2569
        %v3224 = vpop.permute.xlu0 %3223
        %3227 = vset.pattern.permute.xlu0 0
        %3228 = vperm.xlu0 %3227, %v2570
        %v3229 = vpop.permute.xlu0 %3228
        %3232 = vset.pattern.permute.xlu0 0
        %3233 = vperm.xlu0 %3232, %v2571
        %v3234 = vpop.permute.xlu0 %3233
        %3237 = vset.pattern.permute.xlu0 0
        %3238 = vperm.xlu0 %3237, %v2572
        %v3239 = vpop.permute.xlu0 %3238
        %3242 = vset.pattern.permute.xlu0 0
        %3243 = vperm.xlu0 %3242, %v2573
        %v3244 = vpop.permute.xlu0 %3243
        %3247 = vset.pattern.permute.xlu0 0
        %3248 = vperm.xlu0 %3247, %v2574
        %v3249 = vpop.permute.xlu0 %3248
        %3252 = vset.pattern.permute.xlu0 0
        %3253 = vperm.xlu0 %3252, %v2575
        %v3254 = vpop.permute.xlu0 %3253
        %3257 = vset.pattern.permute.xlu0 0
        %3258 = vperm.xlu0 %3257, %v2576
        %v3259 = vpop.permute.xlu0 %3258
        %3262 = vset.pattern.permute.xlu0 0
        %3263 = vperm.xlu0 %3262, %v2577
        %v3264 = vpop.permute.xlu0 %3263
        %3267 = vset.pattern.permute.xlu0 0
        %3268 = vperm.xlu0 %3267, %v2578
        %v3269 = vpop.permute.xlu0 %3268
        %3272 = vset.pattern.permute.xlu0 0
        %3273 = vperm.xlu0 %3272, %v2579
        %v3274 = vpop.permute.xlu0 %3273
        %3277 = vset.pattern.permute.xlu0 0
        %3278 = vperm.xlu0 %3277, %v2580
        %v3279 = vpop.permute.xlu0 %3278
        %3282 = vset.pattern.permute.xlu0 0
        %3283 = vperm.xlu0 %3282, %v2581
        %v3284 = vpop.permute.xlu0 %3283
        %3287 = vset.pattern.permute.xlu0 0
        %3288 = vperm.xlu0 %3287, %v2582
        %v3289 = vpop.permute.xlu0 %3288
        %3292 = vset.pattern.permute.xlu0 0
        %3293 = vperm.xlu0 %3292, %v2583
        %v3294 = vpop.permute.xlu0 %3293
        %3297 = vset.pattern.permute.xlu0 0
        %3298 = vperm.xlu0 %3297, %v2584
        %v3299 = vpop.permute.xlu0 %3298
        %3302 = vset.pattern.permute.xlu0 0
        %3303 = vperm.xlu0 %3302, %v2585
        %v3304 = vpop.permute.xlu0 %3303
        %3307 = vset.pattern.permute.xlu0 0
        %3308 = vperm.xlu0 %3307, %v2586
        %v3309 = vpop.permute.xlu0 %3308
        %3312 = vset.pattern.permute.xlu0 0
        %3313 = vperm.xlu0 %3312, %v2587
        %v3314 = vpop.permute.xlu0 %3313
        %3317 = vset.pattern.permute.xlu0 0
        %3318 = vperm.xlu0 %3317, %v2588
        %v3319 = vpop.permute.xlu0 %3318
        %3322 = vset.pattern.permute.xlu0 0
        %3323 = vperm.xlu0 %3322, %v2589
        %v3324 = vpop.permute.xlu0 %3323
        %v3326 = vlaneseq
        %v3327 = vshrl.u32 %v3326, 7
        %v3328 = vsub.s32 0, %v3327
        %v3329 = vrot.slane %v2648, %v3328
        %v3330 = vmul.f32 %v3049, %v3329
        %v3331 = vmul.f32 %v3054, %v3329
        %v3332 = vmul.f32 %v3059, %v3329
        %v3333 = vmul.f32 %v3064, %v3329
        %v3334 = vmul.f32 %v3069, %v3329
        %v3335 = vmul.f32 %v3074, %v3329
        %v3336 = vmul.f32 %v3079, %v3329
        %v3337 = vmul.f32 %v3084, %v3329
        %v3338 = vmul.f32 %v3089, %v3329
        %v3339 = vmul.f32 %v3094, %v3329
        %v3340 = vmul.f32 %v3099, %v3329
        %v3341 = vmul.f32 %v3104, %v3329
        %v3342 = vmul.f32 %v3109, %v3329
        %v3343 = vmul.f32 %v3114, %v3329
        %v3344 = vmul.f32 %v3119, %v3329
        %v3345 = vmul.f32 %v3124, %v3329
        %v3346 = vmul.f32 %v3129, %v3329
        %v3347 = vmul.f32 %v3134, %v3329
        %v3348 = vmul.f32 %v3139, %v3329
        %v3349 = vmul.f32 %v3144, %v3329
        %v3350 = vmul.f32 %v3149, %v3329
        %v3351 = vmul.f32 %v3154, %v3329
        %v3352 = vmul.f32 %v3159, %v3329
        %v3353 = vmul.f32 %v3164, %v3329
        %v3354 = vmul.f32 %v3169, %v3329
        %v3355 = vmul.f32 %v3174, %v3329
        %v3356 = vmul.f32 %v3179, %v3329
        %v3357 = vmul.f32 %v3184, %v3329
        %v3358 = vmul.f32 %v3189, %v3329
        %v3359 = vmul.f32 %v3194, %v3329
        %v3360 = vmul.f32 %v3199, %v3329
        %v3361 = vmul.f32 %v3204, %v3329
        %v3362 = vmul.f32 %v3209, %v3329
        %v3363 = vmul.f32 %v3214, %v3329
        %v3364 = vmul.f32 %v3219, %v3329
        %v3365 = vmul.f32 %v3224, %v3329
        %v3366 = vmul.f32 %v3229, %v3329
        %v3367 = vmul.f32 %v3234, %v3329
        %v3368 = vmul.f32 %v3239, %v3329
        %v3369 = vmul.f32 %v3244, %v3329
        %v3370 = vmul.f32 %v3249, %v3329
        %v3371 = vmul.f32 %v3254, %v3329
        %v3372 = vmul.f32 %v3259, %v3329
        %v3373 = vmul.f32 %v3264, %v3329
        %v3374 = vmul.f32 %v3269, %v3329
        %v3375 = vmul.f32 %v3274, %v3329
        %v3376 = vmul.f32 %v3279, %v3329
        %v3377 = vmul.f32 %v3284, %v3329
        %v3378 = vmul.f32 %v3289, %v3329
        %v3379 = vmul.f32 %v3294, %v3329
        %v3380 = vmul.f32 %v3299, %v3329
        %v3381 = vmul.f32 %v3304, %v3329
        %v3382 = vmul.f32 %v3309, %v3329
        %v3383 = vmul.f32 %v3314, %v3329
        %v3384 = vmul.f32 %v3319, %v3329
        %v3385 = vmul.f32 %v3324, %v3329
        %v3386 = vadd.f32 %v2990, %v3330
        %v3387 = vadd.f32 %v2991, %v3331
        %v3388 = vadd.f32 %v2992, %v3332
        %v3389 = vadd.f32 %v2993, %v3333
        %v3390 = vadd.f32 %v2994, %v3334
        %v3391 = vadd.f32 %v2995, %v3335
        %v3392 = vadd.f32 %v2996, %v3336
        %v3393 = vadd.f32 %v2997, %v3337
        %v3394 = vadd.f32 %v2998, %v3338
        %v3395 = vadd.f32 %v2999, %v3339
        %v3396 = vadd.f32 %v3000, %v3340
        %v3397 = vadd.f32 %v3001, %v3341
        %v3398 = vadd.f32 %v3002, %v3342
        %v3399 = vadd.f32 %v3003, %v3343
        %v3400 = vadd.f32 %v3004, %v3344
        %v3401 = vadd.f32 %v3005, %v3345
        %v3402 = vadd.f32 %v3006, %v3346
        %v3403 = vadd.f32 %v3007, %v3347
        %v3404 = vadd.f32 %v3008, %v3348
        %v3405 = vadd.f32 %v3009, %v3349
        %v3406 = vadd.f32 %v3010, %v3350
        %v3407 = vadd.f32 %v3011, %v3351
        %v3408 = vadd.f32 %v3012, %v3352
        %v3409 = vadd.f32 %v3013, %v3353
        %v3410 = vadd.f32 %v3014, %v3354
        %v3411 = vadd.f32 %v3015, %v3355
        %v3412 = vadd.f32 %v3016, %v3356
        %v3413 = vadd.f32 %v3017, %v3357
        %v3414 = vadd.f32 %v3018, %v3358
        %v3415 = vadd.f32 %v3019, %v3359
        %v3416 = vadd.f32 %v3020, %v3360
        %v3417 = vadd.f32 %v3021, %v3361
        %v3418 = vadd.f32 %v3022, %v3362
        %v3419 = vadd.f32 %v3023, %v3363
        %v3420 = vadd.f32 %v3024, %v3364
        %v3421 = vadd.f32 %v3025, %v3365
        %v3422 = vadd.f32 %v3026, %v3366
        %v3423 = vadd.f32 %v3027, %v3367
        %v3424 = vadd.f32 %v3028, %v3368
        %v3425 = vadd.f32 %v3029, %v3369
        %v3426 = vadd.f32 %v3030, %v3370
        %v3427 = vadd.f32 %v3031, %v3371
        %v3428 = vadd.f32 %v3032, %v3372
        %v3429 = vadd.f32 %v3033, %v3373
        %v3430 = vadd.f32 %v3034, %v3374
        %v3431 = vadd.f32 %v3035, %v3375
        %v3432 = vadd.f32 %v3036, %v3376
        %v3433 = vadd.f32 %v3037, %v3377
        %v3434 = vadd.f32 %v3038, %v3378
        %v3435 = vadd.f32 %v3039, %v3379
        %v3436 = vadd.f32 %v3040, %v3380
        %v3437 = vadd.f32 %v3041, %v3381
        %v3438 = vadd.f32 %v3042, %v3382
        %v3439 = vadd.f32 %v3043, %v3383
        %v3440 = vadd.f32 %v3044, %v3384
        %v3441 = vadd.f32 %v3045, %v3385
        %3443 = vset.pattern.permute.xlu0 0
        %3444 = vperm.xlu0 %3443, %v2478
        %v3445 = vpop.permute.xlu0 %3444
        %3448 = vset.pattern.permute.xlu0 0
        %3449 = vperm.xlu0 %3448, %v2479
        %v3450 = vpop.permute.xlu0 %3449
        %3453 = vset.pattern.permute.xlu0 0
        %3454 = vperm.xlu0 %3453, %v2480
        %v3455 = vpop.permute.xlu0 %3454
        %3458 = vset.pattern.permute.xlu0 0
        %3459 = vperm.xlu0 %3458, %v2481
        %v3460 = vpop.permute.xlu0 %3459
        %3463 = vset.pattern.permute.xlu0 0
        %3464 = vperm.xlu0 %3463, %v2482
        %v3465 = vpop.permute.xlu0 %3464
        %3468 = vset.pattern.permute.xlu0 0
        %3469 = vperm.xlu0 %3468, %v2483
        %v3470 = vpop.permute.xlu0 %3469
        %3473 = vset.pattern.permute.xlu0 0
        %3474 = vperm.xlu0 %3473, %v2484
        %v3475 = vpop.permute.xlu0 %3474
        %3478 = vset.pattern.permute.xlu0 0
        %3479 = vperm.xlu0 %3478, %v2485
        %v3480 = vpop.permute.xlu0 %3479
        %3483 = vset.pattern.permute.xlu0 0
        %3484 = vperm.xlu0 %3483, %v2486
        %v3485 = vpop.permute.xlu0 %3484
        %3488 = vset.pattern.permute.xlu0 0
        %3489 = vperm.xlu0 %3488, %v2487
        %v3490 = vpop.permute.xlu0 %3489
        %3493 = vset.pattern.permute.xlu0 0
        %3494 = vperm.xlu0 %3493, %v2488
        %v3495 = vpop.permute.xlu0 %3494
        %3498 = vset.pattern.permute.xlu0 0
        %3499 = vperm.xlu0 %3498, %v2489
        %v3500 = vpop.permute.xlu0 %3499
        %3503 = vset.pattern.permute.xlu0 0
        %3504 = vperm.xlu0 %3503, %v2490
        %v3505 = vpop.permute.xlu0 %3504
        %3508 = vset.pattern.permute.xlu0 0
        %3509 = vperm.xlu0 %3508, %v2491
        %v3510 = vpop.permute.xlu0 %3509
        %3513 = vset.pattern.permute.xlu0 0
        %3514 = vperm.xlu0 %3513, %v2492
        %v3515 = vpop.permute.xlu0 %3514
        %3518 = vset.pattern.permute.xlu0 0
        %3519 = vperm.xlu0 %3518, %v2493
        %v3520 = vpop.permute.xlu0 %3519
        %3523 = vset.pattern.permute.xlu0 0
        %3524 = vperm.xlu0 %3523, %v2494
        %v3525 = vpop.permute.xlu0 %3524
        %3528 = vset.pattern.permute.xlu0 0
        %3529 = vperm.xlu0 %3528, %v2495
        %v3530 = vpop.permute.xlu0 %3529
        %3533 = vset.pattern.permute.xlu0 0
        %3534 = vperm.xlu0 %3533, %v2496
        %v3535 = vpop.permute.xlu0 %3534
        %3538 = vset.pattern.permute.xlu0 0
        %3539 = vperm.xlu0 %3538, %v2497
        %v3540 = vpop.permute.xlu0 %3539
        %3543 = vset.pattern.permute.xlu0 0
        %3544 = vperm.xlu0 %3543, %v2498
        %v3545 = vpop.permute.xlu0 %3544
        %3548 = vset.pattern.permute.xlu0 0
        %3549 = vperm.xlu0 %3548, %v2499
        %v3550 = vpop.permute.xlu0 %3549
        %3553 = vset.pattern.permute.xlu0 0
        %3554 = vperm.xlu0 %3553, %v2500
        %v3555 = vpop.permute.xlu0 %3554
        %3558 = vset.pattern.permute.xlu0 0
        %3559 = vperm.xlu0 %3558, %v2501
        %v3560 = vpop.permute.xlu0 %3559
        %3563 = vset.pattern.permute.xlu0 0
        %3564 = vperm.xlu0 %3563, %v2502
        %v3565 = vpop.permute.xlu0 %3564
        %3568 = vset.pattern.permute.xlu0 0
        %3569 = vperm.xlu0 %3568, %v2503
        %v3570 = vpop.permute.xlu0 %3569
        %3573 = vset.pattern.permute.xlu0 0
        %3574 = vperm.xlu0 %3573, %v2504
        %v3575 = vpop.permute.xlu0 %3574
        %3578 = vset.pattern.permute.xlu0 0
        %3579 = vperm.xlu0 %3578, %v2505
        %v3580 = vpop.permute.xlu0 %3579
        %3583 = vset.pattern.permute.xlu0 0
        %3584 = vperm.xlu0 %3583, %v2506
        %v3585 = vpop.permute.xlu0 %3584
        %3588 = vset.pattern.permute.xlu0 0
        %3589 = vperm.xlu0 %3588, %v2507
        %v3590 = vpop.permute.xlu0 %3589
        %3593 = vset.pattern.permute.xlu0 0
        %3594 = vperm.xlu0 %3593, %v2508
        %v3595 = vpop.permute.xlu0 %3594
        %3598 = vset.pattern.permute.xlu0 0
        %3599 = vperm.xlu0 %3598, %v2509
        %v3600 = vpop.permute.xlu0 %3599
        %3603 = vset.pattern.permute.xlu0 0
        %3604 = vperm.xlu0 %3603, %v2510
        %v3605 = vpop.permute.xlu0 %3604
        %3608 = vset.pattern.permute.xlu0 0
        %3609 = vperm.xlu0 %3608, %v2511
        %v3610 = vpop.permute.xlu0 %3609
        %3613 = vset.pattern.permute.xlu0 0
        %3614 = vperm.xlu0 %3613, %v2512
        %v3615 = vpop.permute.xlu0 %3614
        %3618 = vset.pattern.permute.xlu0 0
        %3619 = vperm.xlu0 %3618, %v2513
        %v3620 = vpop.permute.xlu0 %3619
        %3623 = vset.pattern.permute.xlu0 0
        %3624 = vperm.xlu0 %3623, %v2514
        %v3625 = vpop.permute.xlu0 %3624
        %3628 = vset.pattern.permute.xlu0 0
        %3629 = vperm.xlu0 %3628, %v2515
        %v3630 = vpop.permute.xlu0 %3629
        %3633 = vset.pattern.permute.xlu0 0
        %3634 = vperm.xlu0 %3633, %v2516
        %v3635 = vpop.permute.xlu0 %3634
        %3638 = vset.pattern.permute.xlu0 0
        %3639 = vperm.xlu0 %3638, %v2517
        %v3640 = vpop.permute.xlu0 %3639
        %3643 = vset.pattern.permute.xlu0 0
        %3644 = vperm.xlu0 %3643, %v2518
        %v3645 = vpop.permute.xlu0 %3644
        %3648 = vset.pattern.permute.xlu0 0
        %3649 = vperm.xlu0 %3648, %v2519
        %v3650 = vpop.permute.xlu0 %3649
        %3653 = vset.pattern.permute.xlu0 0
        %3654 = vperm.xlu0 %3653, %v2520
        %v3655 = vpop.permute.xlu0 %3654
        %3658 = vset.pattern.permute.xlu0 0
        %3659 = vperm.xlu0 %3658, %v2521
        %v3660 = vpop.permute.xlu0 %3659
        %3663 = vset.pattern.permute.xlu0 0
        %3664 = vperm.xlu0 %3663, %v2522
        %v3665 = vpop.permute.xlu0 %3664
        %3668 = vset.pattern.permute.xlu0 0
        %3669 = vperm.xlu0 %3668, %v2523
        %v3670 = vpop.permute.xlu0 %3669
        %3673 = vset.pattern.permute.xlu0 0
        %3674 = vperm.xlu0 %3673, %v2524
        %v3675 = vpop.permute.xlu0 %3674
        %3678 = vset.pattern.permute.xlu0 0
        %3679 = vperm.xlu0 %3678, %v2525
        %v3680 = vpop.permute.xlu0 %3679
        %3683 = vset.pattern.permute.xlu0 0
        %3684 = vperm.xlu0 %3683, %v2526
        %v3685 = vpop.permute.xlu0 %3684
        %3688 = vset.pattern.permute.xlu0 0
        %3689 = vperm.xlu0 %3688, %v2527
        %v3690 = vpop.permute.xlu0 %3689
        %3693 = vset.pattern.permute.xlu0 0
        %3694 = vperm.xlu0 %3693, %v2528
        %v3695 = vpop.permute.xlu0 %3694
        %3698 = vset.pattern.permute.xlu0 0
        %3699 = vperm.xlu0 %3698, %v2529
        %v3700 = vpop.permute.xlu0 %3699
        %3703 = vset.pattern.permute.xlu0 0
        %3704 = vperm.xlu0 %3703, %v2530
        %v3705 = vpop.permute.xlu0 %3704
        %3708 = vset.pattern.permute.xlu0 0
        %3709 = vperm.xlu0 %3708, %v2531
        %v3710 = vpop.permute.xlu0 %3709
        %3713 = vset.pattern.permute.xlu0 0
        %3714 = vperm.xlu0 %3713, %v2532
        %v3715 = vpop.permute.xlu0 %3714
        %3718 = vset.pattern.permute.xlu0 0
        %3719 = vperm.xlu0 %3718, %v2533
        %v3720 = vpop.permute.xlu0 %3719
        %v3722 = vlaneseq
        %v3723 = vshrl.u32 %v3722, 7
        %v3724 = vsub.s32 0, %v3723
        %v3725 = vrot.slane %v2649, %v3724
        %v3726 = vmul.f32 %v3445, %v3725
        %v3727 = vmul.f32 %v3450, %v3725
        %v3728 = vmul.f32 %v3455, %v3725
        %v3729 = vmul.f32 %v3460, %v3725
        %v3730 = vmul.f32 %v3465, %v3725
        %v3731 = vmul.f32 %v3470, %v3725
        %v3732 = vmul.f32 %v3475, %v3725
        %v3733 = vmul.f32 %v3480, %v3725
        %v3734 = vmul.f32 %v3485, %v3725
        %v3735 = vmul.f32 %v3490, %v3725
        %v3736 = vmul.f32 %v3495, %v3725
        %v3737 = vmul.f32 %v3500, %v3725
        %v3738 = vmul.f32 %v3505, %v3725
        %v3739 = vmul.f32 %v3510, %v3725
        %v3740 = vmul.f32 %v3515, %v3725
        %v3741 = vmul.f32 %v3520, %v3725
        %v3742 = vmul.f32 %v3525, %v3725
        %v3743 = vmul.f32 %v3530, %v3725
        %v3744 = vmul.f32 %v3535, %v3725
        %v3745 = vmul.f32 %v3540, %v3725
        %v3746 = vmul.f32 %v3545, %v3725
        %v3747 = vmul.f32 %v3550, %v3725
        %v3748 = vmul.f32 %v3555, %v3725
        %v3749 = vmul.f32 %v3560, %v3725
        %v3750 = vmul.f32 %v3565, %v3725
        %v3751 = vmul.f32 %v3570, %v3725
        %v3752 = vmul.f32 %v3575, %v3725
        %v3753 = vmul.f32 %v3580, %v3725
        %v3754 = vmul.f32 %v3585, %v3725
        %v3755 = vmul.f32 %v3590, %v3725
        %v3756 = vmul.f32 %v3595, %v3725
        %v3757 = vmul.f32 %v3600, %v3725
        %v3758 = vmul.f32 %v3605, %v3725
        %v3759 = vmul.f32 %v3610, %v3725
        %v3760 = vmul.f32 %v3615, %v3725
        %v3761 = vmul.f32 %v3620, %v3725
        %v3762 = vmul.f32 %v3625, %v3725
        %v3763 = vmul.f32 %v3630, %v3725
        %v3764 = vmul.f32 %v3635, %v3725
        %v3765 = vmul.f32 %v3640, %v3725
        %v3766 = vmul.f32 %v3645, %v3725
        %v3767 = vmul.f32 %v3650, %v3725
        %v3768 = vmul.f32 %v3655, %v3725
        %v3769 = vmul.f32 %v3660, %v3725
        %v3770 = vmul.f32 %v3665, %v3725
        %v3771 = vmul.f32 %v3670, %v3725
        %v3772 = vmul.f32 %v3675, %v3725
        %v3773 = vmul.f32 %v3680, %v3725
        %v3774 = vmul.f32 %v3685, %v3725
        %v3775 = vmul.f32 %v3690, %v3725
        %v3776 = vmul.f32 %v3695, %v3725
        %v3777 = vmul.f32 %v3700, %v3725
        %v3778 = vmul.f32 %v3705, %v3725
        %v3779 = vmul.f32 %v3710, %v3725
        %v3780 = vmul.f32 %v3715, %v3725
        %v3781 = vmul.f32 %v3720, %v3725
        %v3782 = vadd.f32 %v3386, %v3726
        %v3783 = vadd.f32 %v3387, %v3727
        %v3784 = vadd.f32 %v3388, %v3728
        %v3785 = vadd.f32 %v3389, %v3729
        %v3786 = vadd.f32 %v3390, %v3730
        %v3787 = vadd.f32 %v3391, %v3731
        %v3788 = vadd.f32 %v3392, %v3732
        %v3789 = vadd.f32 %v3393, %v3733
        %v3790 = vadd.f32 %v3394, %v3734
        %v3791 = vadd.f32 %v3395, %v3735
        %v3792 = vadd.f32 %v3396, %v3736
        %v3793 = vadd.f32 %v3397, %v3737
        %v3794 = vadd.f32 %v3398, %v3738
        %v3795 = vadd.f32 %v3399, %v3739
        %v3796 = vadd.f32 %v3400, %v3740
        %v3797 = vadd.f32 %v3401, %v3741
        %v3798 = vadd.f32 %v3402, %v3742
        %v3799 = vadd.f32 %v3403, %v3743
        %v3800 = vadd.f32 %v3404, %v3744
        %v3801 = vadd.f32 %v3405, %v3745
        %v3802 = vadd.f32 %v3406, %v3746
        %v3803 = vadd.f32 %v3407, %v3747
        %v3804 = vadd.f32 %v3408, %v3748
        %v3805 = vadd.f32 %v3409, %v3749
        %v3806 = vadd.f32 %v3410, %v3750
        %v3807 = vadd.f32 %v3411, %v3751
        %v3808 = vadd.f32 %v3412, %v3752
        %v3809 = vadd.f32 %v3413, %v3753
        %v3810 = vadd.f32 %v3414, %v3754
        %v3811 = vadd.f32 %v3415, %v3755
        %v3812 = vadd.f32 %v3416, %v3756
        %v3813 = vadd.f32 %v3417, %v3757
        %v3814 = vadd.f32 %v3418, %v3758
        %v3815 = vadd.f32 %v3419, %v3759
        %v3816 = vadd.f32 %v3420, %v3760
        %v3817 = vadd.f32 %v3421, %v3761
        %v3818 = vadd.f32 %v3422, %v3762
        %v3819 = vadd.f32 %v3423, %v3763
        %v3820 = vadd.f32 %v3424, %v3764
        %v3821 = vadd.f32 %v3425, %v3765
        %v3822 = vadd.f32 %v3426, %v3766
        %v3823 = vadd.f32 %v3427, %v3767
        %v3824 = vadd.f32 %v3428, %v3768
        %v3825 = vadd.f32 %v3429, %v3769
        %v3826 = vadd.f32 %v3430, %v3770
        %v3827 = vadd.f32 %v3431, %v3771
        %v3828 = vadd.f32 %v3432, %v3772
        %v3829 = vadd.f32 %v3433, %v3773
        %v3830 = vadd.f32 %v3434, %v3774
        %v3831 = vadd.f32 %v3435, %v3775
        %v3832 = vadd.f32 %v3436, %v3776
        %v3833 = vadd.f32 %v3437, %v3777
        %v3834 = vadd.f32 %v3438, %v3778
        %v3835 = vadd.f32 %v3439, %v3779
        %v3836 = vadd.f32 %v3440, %v3780
        %v3837 = vadd.f32 %v3441, %v3781
        %v3838 = vmul.f32 %v3049, %v2933
        %v3839 = vmul.f32 %v3054, %v2933
        %v3840 = vmul.f32 %v3059, %v2933
        %v3841 = vmul.f32 %v3064, %v2933
        %v3842 = vmul.f32 %v3069, %v2933
        %v3843 = vmul.f32 %v3074, %v2933
        %v3844 = vmul.f32 %v3079, %v2933
        %v3845 = vmul.f32 %v3084, %v2933
        %v3846 = vmul.f32 %v3089, %v2933
        %v3847 = vmul.f32 %v3094, %v2933
        %v3848 = vmul.f32 %v3099, %v2933
        %v3849 = vmul.f32 %v3104, %v2933
        %v3850 = vmul.f32 %v3109, %v2933
        %v3851 = vmul.f32 %v3114, %v2933
        %v3852 = vmul.f32 %v3119, %v2933
        %v3853 = vmul.f32 %v3124, %v2933
        %v3854 = vmul.f32 %v3129, %v2933
        %v3855 = vmul.f32 %v3134, %v2933
        %v3856 = vmul.f32 %v3139, %v2933
        %v3857 = vmul.f32 %v3144, %v2933
        %v3858 = vmul.f32 %v3149, %v2933
        %v3859 = vmul.f32 %v3154, %v2933
        %v3860 = vmul.f32 %v3159, %v2933
        %v3861 = vmul.f32 %v3164, %v2933
        %v3862 = vmul.f32 %v3169, %v2933
        %v3863 = vmul.f32 %v3174, %v2933
        %v3864 = vmul.f32 %v3179, %v2933
        %v3865 = vmul.f32 %v3184, %v2933
        %v3866 = vmul.f32 %v3189, %v2933
        %v3867 = vmul.f32 %v3194, %v2933
        %v3868 = vmul.f32 %v3199, %v2933
        %v3869 = vmul.f32 %v3204, %v2933
        %v3870 = vmul.f32 %v3209, %v2933
        %v3871 = vmul.f32 %v3214, %v2933
        %v3872 = vmul.f32 %v3219, %v2933
        %v3873 = vmul.f32 %v3224, %v2933
        %v3874 = vmul.f32 %v3229, %v2933
        %v3875 = vmul.f32 %v3234, %v2933
        %v3876 = vmul.f32 %v3239, %v2933
        %v3877 = vmul.f32 %v3244, %v2933
        %v3878 = vmul.f32 %v3249, %v2933
        %v3879 = vmul.f32 %v3254, %v2933
        %v3880 = vmul.f32 %v3259, %v2933
        %v3881 = vmul.f32 %v3264, %v2933
        %v3882 = vmul.f32 %v3269, %v2933
        %v3883 = vmul.f32 %v3274, %v2933
        %v3884 = vmul.f32 %v3279, %v2933
        %v3885 = vmul.f32 %v3284, %v2933
        %v3886 = vmul.f32 %v3289, %v2933
        %v3887 = vmul.f32 %v3294, %v2933
        %v3888 = vmul.f32 %v3299, %v2933
        %v3889 = vmul.f32 %v3304, %v2933
        %v3890 = vmul.f32 %v3309, %v2933
        %v3891 = vmul.f32 %v3314, %v2933
        %v3892 = vmul.f32 %v3319, %v2933
        %v3893 = vmul.f32 %v3324, %v2933
        %v3894 = vadd.f32 %v2366, %v3838
        %v3895 = vadd.f32 %v2367, %v3839
        %v3896 = vadd.f32 %v2368, %v3840
        %v3897 = vadd.f32 %v2369, %v3841
        %v3898 = vadd.f32 %v2370, %v3842
        %v3899 = vadd.f32 %v2371, %v3843
        %v3900 = vadd.f32 %v2372, %v3844
        %v3901 = vadd.f32 %v2373, %v3845
        %v3902 = vadd.f32 %v2374, %v3846
        %v3903 = vadd.f32 %v2375, %v3847
        %v3904 = vadd.f32 %v2376, %v3848
        %v3905 = vadd.f32 %v2377, %v3849
        %v3906 = vadd.f32 %v2378, %v3850
        %v3907 = vadd.f32 %v2379, %v3851
        %v3908 = vadd.f32 %v2380, %v3852
        %v3909 = vadd.f32 %v2381, %v3853
        %v3910 = vadd.f32 %v2382, %v3854
        %v3911 = vadd.f32 %v2383, %v3855
        %v3912 = vadd.f32 %v2384, %v3856
        %v3913 = vadd.f32 %v2385, %v3857
        %v3914 = vadd.f32 %v2386, %v3858
        %v3915 = vadd.f32 %v2387, %v3859
        %v3916 = vadd.f32 %v2388, %v3860
        %v3917 = vadd.f32 %v2389, %v3861
        %v3918 = vadd.f32 %v2390, %v3862
        %v3919 = vadd.f32 %v2391, %v3863
        %v3920 = vadd.f32 %v2392, %v3864
        %v3921 = vadd.f32 %v2393, %v3865
        %v3922 = vadd.f32 %v2394, %v3866
        %v3923 = vadd.f32 %v2395, %v3867
        %v3924 = vadd.f32 %v2396, %v3868
        %v3925 = vadd.f32 %v2397, %v3869
        %v3926 = vadd.f32 %v2398, %v3870
        %v3927 = vadd.f32 %v2399, %v3871
        %v3928 = vadd.f32 %v2400, %v3872
        %v3929 = vadd.f32 %v2401, %v3873
        %v3930 = vadd.f32 %v2402, %v3874
        %v3931 = vadd.f32 %v2403, %v3875
        %v3932 = vadd.f32 %v2404, %v3876
        %v3933 = vadd.f32 %v2405, %v3877
        %v3934 = vadd.f32 %v2406, %v3878
        %v3935 = vadd.f32 %v2407, %v3879
        %v3936 = vadd.f32 %v2408, %v3880
        %v3937 = vadd.f32 %v2409, %v3881
        %v3938 = vadd.f32 %v2410, %v3882
        %v3939 = vadd.f32 %v2411, %v3883
        %v3940 = vadd.f32 %v2412, %v3884
        %v3941 = vadd.f32 %v2413, %v3885
        %v3942 = vadd.f32 %v2414, %v3886
        %v3943 = vadd.f32 %v2415, %v3887
        %v3944 = vadd.f32 %v2416, %v3888
        %v3945 = vadd.f32 %v2417, %v3889
        %v3946 = vadd.f32 %v2418, %v3890
        %v3947 = vadd.f32 %v2419, %v3891
        %v3948 = vadd.f32 %v2420, %v3892
        %v3949 = vadd.f32 %v2421, %v3893
        %v3950 = vmul.f32 %v3445, %v3329
        %v3951 = vmul.f32 %v3450, %v3329
        %v3952 = vmul.f32 %v3455, %v3329
        %v3953 = vmul.f32 %v3460, %v3329
        %v3954 = vmul.f32 %v3465, %v3329
        %v3955 = vmul.f32 %v3470, %v3329
        %v3956 = vmul.f32 %v3475, %v3329
        %v3957 = vmul.f32 %v3480, %v3329
        %v3958 = vmul.f32 %v3485, %v3329
        %v3959 = vmul.f32 %v3490, %v3329
        %v3960 = vmul.f32 %v3495, %v3329
        %v3961 = vmul.f32 %v3500, %v3329
        %v3962 = vmul.f32 %v3505, %v3329
        %v3963 = vmul.f32 %v3510, %v3329
        %v3964 = vmul.f32 %v3515, %v3329
        %v3965 = vmul.f32 %v3520, %v3329
        %v3966 = vmul.f32 %v3525, %v3329
        %v3967 = vmul.f32 %v3530, %v3329
        %v3968 = vmul.f32 %v3535, %v3329
        %v3969 = vmul.f32 %v3540, %v3329
        %v3970 = vmul.f32 %v3545, %v3329
        %v3971 = vmul.f32 %v3550, %v3329
        %v3972 = vmul.f32 %v3555, %v3329
        %v3973 = vmul.f32 %v3560, %v3329
        %v3974 = vmul.f32 %v3565, %v3329
        %v3975 = vmul.f32 %v3570, %v3329
        %v3976 = vmul.f32 %v3575, %v3329
        %v3977 = vmul.f32 %v3580, %v3329
        %v3978 = vmul.f32 %v3585, %v3329
        %v3979 = vmul.f32 %v3590, %v3329
        %v3980 = vmul.f32 %v3595, %v3329
        %v3981 = vmul.f32 %v3600, %v3329
        %v3982 = vmul.f32 %v3605, %v3329
        %v3983 = vmul.f32 %v3610, %v3329
        %v3984 = vmul.f32 %v3615, %v3329
        %v3985 = vmul.f32 %v3620, %v3329
        %v3986 = vmul.f32 %v3625, %v3329
        %v3987 = vmul.f32 %v3630, %v3329
        %v3988 = vmul.f32 %v3635, %v3329
        %v3989 = vmul.f32 %v3640, %v3329
        %v3990 = vmul.f32 %v3645, %v3329
        %v3991 = vmul.f32 %v3650, %v3329
        %v3992 = vmul.f32 %v3655, %v3329
        %v3993 = vmul.f32 %v3660, %v3329
        %v3994 = vmul.f32 %v3665, %v3329
        %v3995 = vmul.f32 %v3670, %v3329
        %v3996 = vmul.f32 %v3675, %v3329
        %v3997 = vmul.f32 %v3680, %v3329
        %v3998 = vmul.f32 %v3685, %v3329
        %v3999 = vmul.f32 %v3690, %v3329
        %v4000 = vmul.f32 %v3695, %v3329
        %v4001 = vmul.f32 %v3700, %v3329
        %v4002 = vmul.f32 %v3705, %v3329
        %v4003 = vmul.f32 %v3710, %v3329
        %v4004 = vmul.f32 %v3715, %v3329
        %v4005 = vmul.f32 %v3720, %v3329
        %v4006 = vadd.f32 %v3894, %v3950
        %v4007 = vadd.f32 %v3895, %v3951
        %v4008 = vadd.f32 %v3896, %v3952
        %v4009 = vadd.f32 %v3897, %v3953
        %v4010 = vadd.f32 %v3898, %v3954
        %v4011 = vadd.f32 %v3899, %v3955
        %v4012 = vadd.f32 %v3900, %v3956
        %v4013 = vadd.f32 %v3901, %v3957
        %v4014 = vadd.f32 %v3902, %v3958
        %v4015 = vadd.f32 %v3903, %v3959
        %v4016 = vadd.f32 %v3904, %v3960
        %v4017 = vadd.f32 %v3905, %v3961
        %v4018 = vadd.f32 %v3906, %v3962
        %v4019 = vadd.f32 %v3907, %v3963
        %v4020 = vadd.f32 %v3908, %v3964
        %v4021 = vadd.f32 %v3909, %v3965
        %v4022 = vadd.f32 %v3910, %v3966
        %v4023 = vadd.f32 %v3911, %v3967
        %v4024 = vadd.f32 %v3912, %v3968
        %v4025 = vadd.f32 %v3913, %v3969
        %v4026 = vadd.f32 %v3914, %v3970
        %v4027 = vadd.f32 %v3915, %v3971
        %v4028 = vadd.f32 %v3916, %v3972
        %v4029 = vadd.f32 %v3917, %v3973
        %v4030 = vadd.f32 %v3918, %v3974
        %v4031 = vadd.f32 %v3919, %v3975
        %v4032 = vadd.f32 %v3920, %v3976
        %v4033 = vadd.f32 %v3921, %v3977
        %v4034 = vadd.f32 %v3922, %v3978
        %v4035 = vadd.f32 %v3923, %v3979
        %v4036 = vadd.f32 %v3924, %v3980
        %v4037 = vadd.f32 %v3925, %v3981
        %v4038 = vadd.f32 %v3926, %v3982
        %v4039 = vadd.f32 %v3927, %v3983
        %v4040 = vadd.f32 %v3928, %v3984
        %v4041 = vadd.f32 %v3929, %v3985
        %v4042 = vadd.f32 %v3930, %v3986
        %v4043 = vadd.f32 %v3931, %v3987
        %v4044 = vadd.f32 %v3932, %v3988
        %v4045 = vadd.f32 %v3933, %v3989
        %v4046 = vadd.f32 %v3934, %v3990
        %v4047 = vadd.f32 %v3935, %v3991
        %v4048 = vadd.f32 %v3936, %v3992
        %v4049 = vadd.f32 %v3937, %v3993
        %v4050 = vadd.f32 %v3938, %v3994
        %v4051 = vadd.f32 %v3939, %v3995
        %v4052 = vadd.f32 %v3940, %v3996
        %v4053 = vadd.f32 %v3941, %v3997
        %v4054 = vadd.f32 %v3942, %v3998
        %v4055 = vadd.f32 %v3943, %v3999
        %v4056 = vadd.f32 %v3944, %v4000
        %v4057 = vadd.f32 %v3945, %v4001
        %v4058 = vadd.f32 %v3946, %v4002
        %v4059 = vadd.f32 %v3947, %v4003
        %v4060 = vadd.f32 %v3948, %v4004
        %v4061 = vadd.f32 %v3949, %v4005
        %4063 = vset.pattern.permute.xlu0 0
        %4064 = vperm.xlu0 %4063, %v2590
        %v4065 = vpop.permute.xlu0 %4064
        %4068 = vset.pattern.permute.xlu0 0
        %4069 = vperm.xlu0 %4068, %v2591
        %v4070 = vpop.permute.xlu0 %4069
        %4073 = vset.pattern.permute.xlu0 0
        %4074 = vperm.xlu0 %4073, %v2592
        %v4075 = vpop.permute.xlu0 %4074
        %4078 = vset.pattern.permute.xlu0 0
        %4079 = vperm.xlu0 %4078, %v2593
        %v4080 = vpop.permute.xlu0 %4079
        %4083 = vset.pattern.permute.xlu0 0
        %4084 = vperm.xlu0 %4083, %v2594
        %v4085 = vpop.permute.xlu0 %4084
        %4088 = vset.pattern.permute.xlu0 0
        %4089 = vperm.xlu0 %4088, %v2595
        %v4090 = vpop.permute.xlu0 %4089
        %4093 = vset.pattern.permute.xlu0 0
        %4094 = vperm.xlu0 %4093, %v2596
        %v4095 = vpop.permute.xlu0 %4094
        %4098 = vset.pattern.permute.xlu0 0
        %4099 = vperm.xlu0 %4098, %v2597
        %v4100 = vpop.permute.xlu0 %4099
        %4103 = vset.pattern.permute.xlu0 0
        %4104 = vperm.xlu0 %4103, %v2598
        %v4105 = vpop.permute.xlu0 %4104
        %4108 = vset.pattern.permute.xlu0 0
        %4109 = vperm.xlu0 %4108, %v2599
        %v4110 = vpop.permute.xlu0 %4109
        %4113 = vset.pattern.permute.xlu0 0
        %4114 = vperm.xlu0 %4113, %v2600
        %v4115 = vpop.permute.xlu0 %4114
        %4118 = vset.pattern.permute.xlu0 0
        %4119 = vperm.xlu0 %4118, %v2601
        %v4120 = vpop.permute.xlu0 %4119
        %4123 = vset.pattern.permute.xlu0 0
        %4124 = vperm.xlu0 %4123, %v2602
        %v4125 = vpop.permute.xlu0 %4124
        %4128 = vset.pattern.permute.xlu0 0
        %4129 = vperm.xlu0 %4128, %v2603
        %v4130 = vpop.permute.xlu0 %4129
        %4133 = vset.pattern.permute.xlu0 0
        %4134 = vperm.xlu0 %4133, %v2604
        %v4135 = vpop.permute.xlu0 %4134
        %4138 = vset.pattern.permute.xlu0 0
        %4139 = vperm.xlu0 %4138, %v2605
        %v4140 = vpop.permute.xlu0 %4139
        %4143 = vset.pattern.permute.xlu0 0
        %4144 = vperm.xlu0 %4143, %v2606
        %v4145 = vpop.permute.xlu0 %4144
        %4148 = vset.pattern.permute.xlu0 0
        %4149 = vperm.xlu0 %4148, %v2607
        %v4150 = vpop.permute.xlu0 %4149
        %4153 = vset.pattern.permute.xlu0 0
        %4154 = vperm.xlu0 %4153, %v2608
        %v4155 = vpop.permute.xlu0 %4154
        %4158 = vset.pattern.permute.xlu0 0
        %4159 = vperm.xlu0 %4158, %v2609
        %v4160 = vpop.permute.xlu0 %4159
        %4163 = vset.pattern.permute.xlu0 0
        %4164 = vperm.xlu0 %4163, %v2610
        %v4165 = vpop.permute.xlu0 %4164
        %4168 = vset.pattern.permute.xlu0 0
        %4169 = vperm.xlu0 %4168, %v2611
        %v4170 = vpop.permute.xlu0 %4169
        %4173 = vset.pattern.permute.xlu0 0
        %4174 = vperm.xlu0 %4173, %v2612
        %v4175 = vpop.permute.xlu0 %4174
        %4178 = vset.pattern.permute.xlu0 0
        %4179 = vperm.xlu0 %4178, %v2613
        %v4180 = vpop.permute.xlu0 %4179
        %4183 = vset.pattern.permute.xlu0 0
        %4184 = vperm.xlu0 %4183, %v2614
        %v4185 = vpop.permute.xlu0 %4184
        %4188 = vset.pattern.permute.xlu0 0
        %4189 = vperm.xlu0 %4188, %v2615
        %v4190 = vpop.permute.xlu0 %4189
        %4193 = vset.pattern.permute.xlu0 0
        %4194 = vperm.xlu0 %4193, %v2616
        %v4195 = vpop.permute.xlu0 %4194
        %4198 = vset.pattern.permute.xlu0 0
        %4199 = vperm.xlu0 %4198, %v2617
        %v4200 = vpop.permute.xlu0 %4199
        %4203 = vset.pattern.permute.xlu0 0
        %4204 = vperm.xlu0 %4203, %v2618
        %v4205 = vpop.permute.xlu0 %4204
        %4208 = vset.pattern.permute.xlu0 0
        %4209 = vperm.xlu0 %4208, %v2619
        %v4210 = vpop.permute.xlu0 %4209
        %4213 = vset.pattern.permute.xlu0 0
        %4214 = vperm.xlu0 %4213, %v2620
        %v4215 = vpop.permute.xlu0 %4214
        %4218 = vset.pattern.permute.xlu0 0
        %4219 = vperm.xlu0 %4218, %v2621
        %v4220 = vpop.permute.xlu0 %4219
        %4223 = vset.pattern.permute.xlu0 0
        %4224 = vperm.xlu0 %4223, %v2622
        %v4225 = vpop.permute.xlu0 %4224
        %4228 = vset.pattern.permute.xlu0 0
        %4229 = vperm.xlu0 %4228, %v2623
        %v4230 = vpop.permute.xlu0 %4229
        %4233 = vset.pattern.permute.xlu0 0
        %4234 = vperm.xlu0 %4233, %v2624
        %v4235 = vpop.permute.xlu0 %4234
        %4238 = vset.pattern.permute.xlu0 0
        %4239 = vperm.xlu0 %4238, %v2625
        %v4240 = vpop.permute.xlu0 %4239
        %4243 = vset.pattern.permute.xlu0 0
        %4244 = vperm.xlu0 %4243, %v2626
        %v4245 = vpop.permute.xlu0 %4244
        %4248 = vset.pattern.permute.xlu0 0
        %4249 = vperm.xlu0 %4248, %v2627
        %v4250 = vpop.permute.xlu0 %4249
        %4253 = vset.pattern.permute.xlu0 0
        %4254 = vperm.xlu0 %4253, %v2628
        %v4255 = vpop.permute.xlu0 %4254
        %4258 = vset.pattern.permute.xlu0 0
        %4259 = vperm.xlu0 %4258, %v2629
        %v4260 = vpop.permute.xlu0 %4259
        %4263 = vset.pattern.permute.xlu0 0
        %4264 = vperm.xlu0 %4263, %v2630
        %v4265 = vpop.permute.xlu0 %4264
        %4268 = vset.pattern.permute.xlu0 0
        %4269 = vperm.xlu0 %4268, %v2631
        %v4270 = vpop.permute.xlu0 %4269
        %4273 = vset.pattern.permute.xlu0 0
        %4274 = vperm.xlu0 %4273, %v2632
        %v4275 = vpop.permute.xlu0 %4274
        %4278 = vset.pattern.permute.xlu0 0
        %4279 = vperm.xlu0 %4278, %v2633
        %v4280 = vpop.permute.xlu0 %4279
        %4283 = vset.pattern.permute.xlu0 0
        %4284 = vperm.xlu0 %4283, %v2634
        %v4285 = vpop.permute.xlu0 %4284
        %4288 = vset.pattern.permute.xlu0 0
        %4289 = vperm.xlu0 %4288, %v2635
        %v4290 = vpop.permute.xlu0 %4289
        %4293 = vset.pattern.permute.xlu0 0
        %4294 = vperm.xlu0 %4293, %v2636
        %v4295 = vpop.permute.xlu0 %4294
        %4298 = vset.pattern.permute.xlu0 0
        %4299 = vperm.xlu0 %4298, %v2637
        %v4300 = vpop.permute.xlu0 %4299
        %4303 = vset.pattern.permute.xlu0 0
        %4304 = vperm.xlu0 %4303, %v2638
        %v4305 = vpop.permute.xlu0 %4304
        %4308 = vset.pattern.permute.xlu0 0
        %4309 = vperm.xlu0 %4308, %v2639
        %v4310 = vpop.permute.xlu0 %4309
        %4313 = vset.pattern.permute.xlu0 0
        %4314 = vperm.xlu0 %4313, %v2640
        %v4315 = vpop.permute.xlu0 %4314
        %4318 = vset.pattern.permute.xlu0 0
        %4319 = vperm.xlu0 %4318, %v2641
        %v4320 = vpop.permute.xlu0 %4319
        %4323 = vset.pattern.permute.xlu0 0
        %4324 = vperm.xlu0 %4323, %v2642
        %v4325 = vpop.permute.xlu0 %4324
        %4328 = vset.pattern.permute.xlu0 0
        %4329 = vperm.xlu0 %4328, %v2643
        %v4330 = vpop.permute.xlu0 %4329
        %4333 = vset.pattern.permute.xlu0 0
        %4334 = vperm.xlu0 %4333, %v2644
        %v4335 = vpop.permute.xlu0 %4334
        %4338 = vset.pattern.permute.xlu0 0
        %4339 = vperm.xlu0 %4338, %v2645
        %v4340 = vpop.permute.xlu0 %4339
        %v4342 = vmul.f32 %v4065, %v3725
        %v4343 = vmul.f32 %v4070, %v3725
        %v4344 = vmul.f32 %v4075, %v3725
        %v4345 = vmul.f32 %v4080, %v3725
        %v4346 = vmul.f32 %v4085, %v3725
        %v4347 = vmul.f32 %v4090, %v3725
        %v4348 = vmul.f32 %v4095, %v3725
        %v4349 = vmul.f32 %v4100, %v3725
        %v4350 = vmul.f32 %v4105, %v3725
        %v4351 = vmul.f32 %v4110, %v3725
        %v4352 = vmul.f32 %v4115, %v3725
        %v4353 = vmul.f32 %v4120, %v3725
        %v4354 = vmul.f32 %v4125, %v3725
        %v4355 = vmul.f32 %v4130, %v3725
        %v4356 = vmul.f32 %v4135, %v3725
        %v4357 = vmul.f32 %v4140, %v3725
        %v4358 = vmul.f32 %v4145, %v3725
        %v4359 = vmul.f32 %v4150, %v3725
        %v4360 = vmul.f32 %v4155, %v3725
        %v4361 = vmul.f32 %v4160, %v3725
        %v4362 = vmul.f32 %v4165, %v3725
        %v4363 = vmul.f32 %v4170, %v3725
        %v4364 = vmul.f32 %v4175, %v3725
        %v4365 = vmul.f32 %v4180, %v3725
        %v4366 = vmul.f32 %v4185, %v3725
        %v4367 = vmul.f32 %v4190, %v3725
        %v4368 = vmul.f32 %v4195, %v3725
        %v4369 = vmul.f32 %v4200, %v3725
        %v4370 = vmul.f32 %v4205, %v3725
        %v4371 = vmul.f32 %v4210, %v3725
        %v4372 = vmul.f32 %v4215, %v3725
        %v4373 = vmul.f32 %v4220, %v3725
        %v4374 = vmul.f32 %v4225, %v3725
        %v4375 = vmul.f32 %v4230, %v3725
        %v4376 = vmul.f32 %v4235, %v3725
        %v4377 = vmul.f32 %v4240, %v3725
        %v4378 = vmul.f32 %v4245, %v3725
        %v4379 = vmul.f32 %v4250, %v3725
        %v4380 = vmul.f32 %v4255, %v3725
        %v4381 = vmul.f32 %v4260, %v3725
        %v4382 = vmul.f32 %v4265, %v3725
        %v4383 = vmul.f32 %v4270, %v3725
        %v4384 = vmul.f32 %v4275, %v3725
        %v4385 = vmul.f32 %v4280, %v3725
        %v4386 = vmul.f32 %v4285, %v3725
        %v4387 = vmul.f32 %v4290, %v3725
        %v4388 = vmul.f32 %v4295, %v3725
        %v4389 = vmul.f32 %v4300, %v3725
        %v4390 = vmul.f32 %v4305, %v3725
        %v4391 = vmul.f32 %v4310, %v3725
        %v4392 = vmul.f32 %v4315, %v3725
        %v4393 = vmul.f32 %v4320, %v3725
        %v4394 = vmul.f32 %v4325, %v3725
        %v4395 = vmul.f32 %v4330, %v3725
        %v4396 = vmul.f32 %v4335, %v3725
        %v4397 = vmul.f32 %v4340, %v3725
        %v4398 = vadd.f32 %v4006, %v4342
        %v4399 = vadd.f32 %v4007, %v4343
        %v4400 = vadd.f32 %v4008, %v4344
        %v4401 = vadd.f32 %v4009, %v4345
        %v4402 = vadd.f32 %v4010, %v4346
        %v4403 = vadd.f32 %v4011, %v4347
        %v4404 = vadd.f32 %v4012, %v4348
        %v4405 = vadd.f32 %v4013, %v4349
        %v4406 = vadd.f32 %v4014, %v4350
        %v4407 = vadd.f32 %v4015, %v4351
        %v4408 = vadd.f32 %v4016, %v4352
        %v4409 = vadd.f32 %v4017, %v4353
        %v4410 = vadd.f32 %v4018, %v4354
        %v4411 = vadd.f32 %v4019, %v4355
        %v4412 = vadd.f32 %v4020, %v4356
        %v4413 = vadd.f32 %v4021, %v4357
        %v4414 = vadd.f32 %v4022, %v4358
        %v4415 = vadd.f32 %v4023, %v4359
        %v4416 = vadd.f32 %v4024, %v4360
        %v4417 = vadd.f32 %v4025, %v4361
        %v4418 = vadd.f32 %v4026, %v4362
        %v4419 = vadd.f32 %v4027, %v4363
        %v4420 = vadd.f32 %v4028, %v4364
        %v4421 = vadd.f32 %v4029, %v4365
        %v4422 = vadd.f32 %v4030, %v4366
        %v4423 = vadd.f32 %v4031, %v4367
        %v4424 = vadd.f32 %v4032, %v4368
        %v4425 = vadd.f32 %v4033, %v4369
        %v4426 = vadd.f32 %v4034, %v4370
        %v4427 = vadd.f32 %v4035, %v4371
        %v4428 = vadd.f32 %v4036, %v4372
        %v4429 = vadd.f32 %v4037, %v4373
        %v4430 = vadd.f32 %v4038, %v4374
        %v4431 = vadd.f32 %v4039, %v4375
        %v4432 = vadd.f32 %v4040, %v4376
        %v4433 = vadd.f32 %v4041, %v4377
        %v4434 = vadd.f32 %v4042, %v4378
        %v4435 = vadd.f32 %v4043, %v4379
        %v4436 = vadd.f32 %v4044, %v4380
        %v4437 = vadd.f32 %v4045, %v4381
        %v4438 = vadd.f32 %v4046, %v4382
        %v4439 = vadd.f32 %v4047, %v4383
        %v4440 = vadd.f32 %v4048, %v4384
        %v4441 = vadd.f32 %v4049, %v4385
        %v4442 = vadd.f32 %v4050, %v4386
        %v4443 = vadd.f32 %v4051, %v4387
        %v4444 = vadd.f32 %v4052, %v4388
        %v4445 = vadd.f32 %v4053, %v4389
        %v4446 = vadd.f32 %v4054, %v4390
        %v4447 = vadd.f32 %v4055, %v4391
        %v4448 = vadd.f32 %v4056, %v4392
        %v4449 = vadd.f32 %v4057, %v4393
        %v4450 = vadd.f32 %v4058, %v4394
        %v4451 = vadd.f32 %v4059, %v4395
        %v4452 = vadd.f32 %v4060, %v4396
        %v4453 = vadd.f32 %v4061, %v4397
        %v4454 = vld [vmem:[%s385 + $0x20] sm:$0xff]
        %v4455 = vld [vmem:[%s385 + $0x28] sm:$0xff]
        %v4456 = vld [vmem:[%s385 + $0x30] sm:$0xff]
        %v4457 = vld [vmem:[%s385 + $0x38] sm:$0xff]
        %v4458 = vld [vmem:[%s385 + $0x40] sm:$0xff]
        %v4459 = vld [vmem:[%s385 + $0x48] sm:$0xff]
        %v4460 = vld [vmem:[%s385 + $0x50] sm:$0xff]
        %v4461 = vld [vmem:[%s385 + $0x58] sm:$0xff]
        %v4462 = vld [vmem:[%s385 + $0x60] sm:$0xff]
        %v4463 = vld [vmem:[%s385 + $0x68] sm:$0xff]
        %v4464 = vld [vmem:[%s385 + $0x70] sm:$0xff]
        %v4465 = vld [vmem:[%s385 + $0x78] sm:$0xff]
        %v4466 = vld [vmem:[%s385 + $0x80] sm:$0xff]
        %v4467 = vld [vmem:[%s385 + $0x88] sm:$0xff]
        %v4468 = vld [vmem:[%s385 + $0x90] sm:$0xff]
        %v4469 = vld [vmem:[%s385 + $0x98] sm:$0xff]
        %v4470 = vld [vmem:[%s385 + $0xa0] sm:$0xff]
        %v4471 = vld [vmem:[%s385 + $0xa8] sm:$0xff]
        %v4472 = vld [vmem:[%s385 + $0xb0] sm:$0xff]
        %v4473 = vld [vmem:[%s385 + $0xb8] sm:$0xff]
        %v4474 = vld [vmem:[%s385 + $0xc0] sm:$0xff]
        %v4475 = vld [vmem:[%s385 + $0xc8] sm:$0xff]
        %v4476 = vld [vmem:[%s385 + $0xd0] sm:$0xff]
        %v4477 = vld [vmem:[%s385 + $0xd8] sm:$0xff]
        %v4478 = vld [vmem:[%s385 + $0xe0] sm:$0xff]
        %v4479 = vld [vmem:[%s385 + $0xe8] sm:$0xff]
        %v4480 = vld [vmem:[%s385 + $0xf0] sm:$0xff]
        %v4481 = vld [vmem:[%s385 + $0xf8] sm:$0xff]
        %v4482 = vld [vmem:[%s385 + $0x100] sm:$0xff]
        %v4483 = vld [vmem:[%s385 + $0x108] sm:$0xff]
        %v4484 = vld [vmem:[%s385 + $0x110] sm:$0xff]
        %v4485 = vld [vmem:[%s385 + $0x118] sm:$0xff]
        %v4486 = vld [vmem:[%s385 + $0x120] sm:$0xff]
        %v4487 = vld [vmem:[%s385 + $0x128] sm:$0xff]
        %v4488 = vld [vmem:[%s385 + $0x130] sm:$0xff]
        %v4489 = vld [vmem:[%s385 + $0x138] sm:$0xff]
        %v4490 = vld [vmem:[%s385 + $0x140] sm:$0xff]
        %v4491 = vld [vmem:[%s385 + $0x148] sm:$0xff]
        %v4492 = vld [vmem:[%s385 + $0x150] sm:$0xff]
        %v4493 = vld [vmem:[%s385 + $0x158] sm:$0xff]
        %v4494 = vld [vmem:[%s385 + $0x160] sm:$0xff]
        %v4495 = vld [vmem:[%s385 + $0x168] sm:$0xff]
        %v4496 = vld [vmem:[%s385 + $0x170] sm:$0xff]
        %v4497 = vld [vmem:[%s385 + $0x178] sm:$0xff]
        %v4498 = vld [vmem:[%s385 + $0x180] sm:$0xff]
        %v4499 = vld [vmem:[%s385 + $0x188] sm:$0xff]
        %v4500 = vld [vmem:[%s385 + $0x190] sm:$0xff]
        %v4501 = vld [vmem:[%s385 + $0x198] sm:$0xff]
        %v4502 = vld [vmem:[%s385 + $0x1a0] sm:$0xff]
        %v4503 = vld [vmem:[%s385 + $0x1a8] sm:$0xff]
        %v4504 = vld [vmem:[%s385 + $0x1b0] sm:$0xff]
        %v4505 = vld [vmem:[%s385 + $0x1b8] sm:$0xff]
        %v4506 = vld [vmem:[%s385 + $0x1c0] sm:$0xff]
        %v4507 = vld [vmem:[%s385 + $0x1c8] sm:$0xff]
        %v4508 = vld [vmem:[%s385 + $0x1d0] sm:$0xff]
        %v4509 = vld [vmem:[%s385 + $0x1d8] sm:$0xff]
        %v4510 = vld [vmem:[%s385 + $0x21] sm:$0xff]
        %v4511 = vld [vmem:[%s385 + $0x29] sm:$0xff]
        %v4512 = vld [vmem:[%s385 + $0x31] sm:$0xff]
        %v4513 = vld [vmem:[%s385 + $0x39] sm:$0xff]
        %v4514 = vld [vmem:[%s385 + $0x41] sm:$0xff]
        %v4515 = vld [vmem:[%s385 + $0x49] sm:$0xff]
        %v4516 = vld [vmem:[%s385 + $0x51] sm:$0xff]
        %v4517 = vld [vmem:[%s385 + $0x59] sm:$0xff]
        %v4518 = vld [vmem:[%s385 + $0x61] sm:$0xff]
        %v4519 = vld [vmem:[%s385 + $0x69] sm:$0xff]
        %v4520 = vld [vmem:[%s385 + $0x71] sm:$0xff]
        %v4521 = vld [vmem:[%s385 + $0x79] sm:$0xff]
        %v4522 = vld [vmem:[%s385 + $0x81] sm:$0xff]
        %v4523 = vld [vmem:[%s385 + $0x89] sm:$0xff]
        %v4524 = vld [vmem:[%s385 + $0x91] sm:$0xff]
        %v4525 = vld [vmem:[%s385 + $0x99] sm:$0xff]
        %v4526 = vld [vmem:[%s385 + $0xa1] sm:$0xff]
        %v4527 = vld [vmem:[%s385 + $0xa9] sm:$0xff]
        %v4528 = vld [vmem:[%s385 + $0xb1] sm:$0xff]
        %v4529 = vld [vmem:[%s385 + $0xb9] sm:$0xff]
        %v4530 = vld [vmem:[%s385 + $0xc1] sm:$0xff]
        %v4531 = vld [vmem:[%s385 + $0xc9] sm:$0xff]
        %v4532 = vld [vmem:[%s385 + $0xd1] sm:$0xff]
        %v4533 = vld [vmem:[%s385 + $0xd9] sm:$0xff]
        %v4534 = vld [vmem:[%s385 + $0xe1] sm:$0xff]
        %v4535 = vld [vmem:[%s385 + $0xe9] sm:$0xff]
        %v4536 = vld [vmem:[%s385 + $0xf1] sm:$0xff]
        %v4537 = vld [vmem:[%s385 + $0xf9] sm:$0xff]
        %v4538 = vld [vmem:[%s385 + $0x101] sm:$0xff]
        %v4539 = vld [vmem:[%s385 + $0x109] sm:$0xff]
        %v4540 = vld [vmem:[%s385 + $0x111] sm:$0xff]
        %v4541 = vld [vmem:[%s385 + $0x119] sm:$0xff]
        %v4542 = vld [vmem:[%s385 + $0x121] sm:$0xff]
        %v4543 = vld [vmem:[%s385 + $0x129] sm:$0xff]
        %v4544 = vld [vmem:[%s385 + $0x131] sm:$0xff]
        %v4545 = vld [vmem:[%s385 + $0x139] sm:$0xff]
        %v4546 = vld [vmem:[%s385 + $0x141] sm:$0xff]
        %v4547 = vld [vmem:[%s385 + $0x149] sm:$0xff]
        %v4548 = vld [vmem:[%s385 + $0x151] sm:$0xff]
        %v4549 = vld [vmem:[%s385 + $0x159] sm:$0xff]
        %v4550 = vld [vmem:[%s385 + $0x161] sm:$0xff]
        %v4551 = vld [vmem:[%s385 + $0x169] sm:$0xff]
        %v4552 = vld [vmem:[%s385 + $0x171] sm:$0xff]
        %v4553 = vld [vmem:[%s385 + $0x179] sm:$0xff]
        %v4554 = vld [vmem:[%s385 + $0x181] sm:$0xff]
        %v4555 = vld [vmem:[%s385 + $0x189] sm:$0xff]
        %v4556 = vld [vmem:[%s385 + $0x191] sm:$0xff]
        %v4557 = vld [vmem:[%s385 + $0x199] sm:$0xff]
        %v4558 = vld [vmem:[%s385 + $0x1a1] sm:$0xff]
        %v4559 = vld [vmem:[%s385 + $0x1a9] sm:$0xff]
        %v4560 = vld [vmem:[%s385 + $0x1b1] sm:$0xff]
        %v4561 = vld [vmem:[%s385 + $0x1b9] sm:$0xff]
        %v4562 = vld [vmem:[%s385 + $0x1c1] sm:$0xff]
        %v4563 = vld [vmem:[%s385 + $0x1c9] sm:$0xff]
        %v4564 = vld [vmem:[%s385 + $0x1d1] sm:$0xff]
        %v4565 = vld [vmem:[%s385 + $0x1d9] sm:$0xff]
        %v4566 = vld [vmem:[%s390 + $0x20] sm:$0xff]
        %v4567 = vld [vmem:[%s390 + $0x28] sm:$0xff]
        %v4568 = vld [vmem:[%s390 + $0x30] sm:$0xff]
        %v4569 = vld [vmem:[%s390 + $0x38] sm:$0xff]
        %v4570 = vld [vmem:[%s390 + $0x40] sm:$0xff]
        %v4571 = vld [vmem:[%s390 + $0x48] sm:$0xff]
        %v4572 = vld [vmem:[%s390 + $0x50] sm:$0xff]
        %v4573 = vld [vmem:[%s390 + $0x58] sm:$0xff]
        %v4574 = vld [vmem:[%s390 + $0x60] sm:$0xff]
        %v4575 = vld [vmem:[%s390 + $0x68] sm:$0xff]
        %v4576 = vld [vmem:[%s390 + $0x70] sm:$0xff]
        %v4577 = vld [vmem:[%s390 + $0x78] sm:$0xff]
        %v4578 = vld [vmem:[%s390 + $0x80] sm:$0xff]
        %v4579 = vld [vmem:[%s390 + $0x88] sm:$0xff]
        %v4580 = vld [vmem:[%s390 + $0x90] sm:$0xff]
        %v4581 = vld [vmem:[%s390 + $0x98] sm:$0xff]
        %v4582 = vld [vmem:[%s390 + $0xa0] sm:$0xff]
        %v4583 = vld [vmem:[%s390 + $0xa8] sm:$0xff]
        %v4584 = vld [vmem:[%s390 + $0xb0] sm:$0xff]
        %v4585 = vld [vmem:[%s390 + $0xb8] sm:$0xff]
        %v4586 = vld [vmem:[%s390 + $0xc0] sm:$0xff]
        %v4587 = vld [vmem:[%s390 + $0xc8] sm:$0xff]
        %v4588 = vld [vmem:[%s390 + $0xd0] sm:$0xff]
        %v4589 = vld [vmem:[%s390 + $0xd8] sm:$0xff]
        %v4590 = vld [vmem:[%s390 + $0xe0] sm:$0xff]
        %v4591 = vld [vmem:[%s390 + $0xe8] sm:$0xff]
        %v4592 = vld [vmem:[%s390 + $0xf0] sm:$0xff]
        %v4593 = vld [vmem:[%s390 + $0xf8] sm:$0xff]
        %v4594 = vld [vmem:[%s390 + $0x100] sm:$0xff]
        %v4595 = vld [vmem:[%s390 + $0x108] sm:$0xff]
        %v4596 = vld [vmem:[%s390 + $0x110] sm:$0xff]
        %v4597 = vld [vmem:[%s390 + $0x118] sm:$0xff]
        %v4598 = vld [vmem:[%s390 + $0x120] sm:$0xff]
        %v4599 = vld [vmem:[%s390 + $0x128] sm:$0xff]
        %v4600 = vld [vmem:[%s390 + $0x130] sm:$0xff]
        %v4601 = vld [vmem:[%s390 + $0x138] sm:$0xff]
        %v4602 = vld [vmem:[%s390 + $0x140] sm:$0xff]
        %v4603 = vld [vmem:[%s390 + $0x148] sm:$0xff]
        %v4604 = vld [vmem:[%s390 + $0x150] sm:$0xff]
        %v4605 = vld [vmem:[%s390 + $0x158] sm:$0xff]
        %v4606 = vld [vmem:[%s390 + $0x160] sm:$0xff]
        %v4607 = vld [vmem:[%s390 + $0x168] sm:$0xff]
        %v4608 = vld [vmem:[%s390 + $0x170] sm:$0xff]
        %v4609 = vld [vmem:[%s390 + $0x178] sm:$0xff]
        %v4610 = vld [vmem:[%s390 + $0x180] sm:$0xff]
        %v4611 = vld [vmem:[%s390 + $0x188] sm:$0xff]
        %v4612 = vld [vmem:[%s390 + $0x190] sm:$0xff]
        %v4613 = vld [vmem:[%s390 + $0x198] sm:$0xff]
        %v4614 = vld [vmem:[%s390 + $0x1a0] sm:$0xff]
        %v4615 = vld [vmem:[%s390 + $0x1a8] sm:$0xff]
        %v4616 = vld [vmem:[%s390 + $0x1b0] sm:$0xff]
        %v4617 = vld [vmem:[%s390 + $0x1b8] sm:$0xff]
        %v4618 = vld [vmem:[%s390 + $0x1c0] sm:$0xff]
        %v4619 = vld [vmem:[%s390 + $0x1c8] sm:$0xff]
        %v4620 = vld [vmem:[%s390 + $0x1d0] sm:$0xff]
        %v4621 = vld [vmem:[%s390 + $0x1d8] sm:$0xff]
        %v4622 = vld [vmem:[%s390 + $0x21] sm:$0xff]
        %v4623 = vld [vmem:[%s390 + $0x29] sm:$0xff]
        %v4624 = vld [vmem:[%s390 + $0x31] sm:$0xff]
        %v4625 = vld [vmem:[%s390 + $0x39] sm:$0xff]
        %v4626 = vld [vmem:[%s390 + $0x41] sm:$0xff]
        %v4627 = vld [vmem:[%s390 + $0x49] sm:$0xff]
        %v4628 = vld [vmem:[%s390 + $0x51] sm:$0xff]
        %v4629 = vld [vmem:[%s390 + $0x59] sm:$0xff]
        %v4630 = vld [vmem:[%s390 + $0x61] sm:$0xff]
        %v4631 = vld [vmem:[%s390 + $0x69] sm:$0xff]
        %v4632 = vld [vmem:[%s390 + $0x71] sm:$0xff]
        %v4633 = vld [vmem:[%s390 + $0x79] sm:$0xff]
        %v4634 = vld [vmem:[%s390 + $0x81] sm:$0xff]
        %v4635 = vld [vmem:[%s390 + $0x89] sm:$0xff]
        %v4636 = vld [vmem:[%s390 + $0x91] sm:$0xff]
        %v4637 = vld [vmem:[%s390 + $0x99] sm:$0xff]
        %v4638 = vld [vmem:[%s390 + $0xa1] sm:$0xff]
        %v4639 = vld [vmem:[%s390 + $0xa9] sm:$0xff]
        %v4640 = vld [vmem:[%s390 + $0xb1] sm:$0xff]
        %v4641 = vld [vmem:[%s390 + $0xb9] sm:$0xff]
        %v4642 = vld [vmem:[%s390 + $0xc1] sm:$0xff]
        %v4643 = vld [vmem:[%s390 + $0xc9] sm:$0xff]
        %v4644 = vld [vmem:[%s390 + $0xd1] sm:$0xff]
        %v4645 = vld [vmem:[%s390 + $0xd9] sm:$0xff]
        %v4646 = vld [vmem:[%s390 + $0xe1] sm:$0xff]
        %v4647 = vld [vmem:[%s390 + $0xe9] sm:$0xff]
        %v4648 = vld [vmem:[%s390 + $0xf1] sm:$0xff]
        %v4649 = vld [vmem:[%s390 + $0xf9] sm:$0xff]
        %v4650 = vld [vmem:[%s390 + $0x101] sm:$0xff]
        %v4651 = vld [vmem:[%s390 + $0x109] sm:$0xff]
        %v4652 = vld [vmem:[%s390 + $0x111] sm:$0xff]
        %v4653 = vld [vmem:[%s390 + $0x119] sm:$0xff]
        %v4654 = vld [vmem:[%s390 + $0x121] sm:$0xff]
        %v4655 = vld [vmem:[%s390 + $0x129] sm:$0xff]
        %v4656 = vld [vmem:[%s390 + $0x131] sm:$0xff]
        %v4657 = vld [vmem:[%s390 + $0x139] sm:$0xff]
        %v4658 = vld [vmem:[%s390 + $0x141] sm:$0xff]
        %v4659 = vld [vmem:[%s390 + $0x149] sm:$0xff]
        %v4660 = vld [vmem:[%s390 + $0x151] sm:$0xff]
        %v4661 = vld [vmem:[%s390 + $0x159] sm:$0xff]
        %v4662 = vld [vmem:[%s390 + $0x161] sm:$0xff]
        %v4663 = vld [vmem:[%s390 + $0x169] sm:$0xff]
        %v4664 = vld [vmem:[%s390 + $0x171] sm:$0xff]
        %v4665 = vld [vmem:[%s390 + $0x179] sm:$0xff]
        %v4666 = vld [vmem:[%s390 + $0x181] sm:$0xff]
        %v4667 = vld [vmem:[%s390 + $0x189] sm:$0xff]
        %v4668 = vld [vmem:[%s390 + $0x191] sm:$0xff]
        %v4669 = vld [vmem:[%s390 + $0x199] sm:$0xff]
        %v4670 = vld [vmem:[%s390 + $0x1a1] sm:$0xff]
        %v4671 = vld [vmem:[%s390 + $0x1a9] sm:$0xff]
        %v4672 = vld [vmem:[%s390 + $0x1b1] sm:$0xff]
        %v4673 = vld [vmem:[%s390 + $0x1b9] sm:$0xff]
        %v4674 = vld [vmem:[%s390 + $0x1c1] sm:$0xff]
        %v4675 = vld [vmem:[%s390 + $0x1c9] sm:$0xff]
        %v4676 = vld [vmem:[%s390 + $0x1d1] sm:$0xff]
        %v4677 = vld [vmem:[%s390 + $0x1d9] sm:$0xff]
        %s4678 = scalar_lea.vmem %s2, 8
        %v4679 = vld [vmem:[%s4678] sm:$0x1]
        %v4680 = vld [vmem:[%s4678 + $0x1] sm:$0x1]
        %v4681 = vld [vmem:[%s4678 + $0x2] sm:$0x1]
        %4683 = vset.pattern.permute.xlu0 0
        %4684 = vperm.xlu0 %4683, %v4454
        %v4685 = vpop.permute.xlu0 %4684
        %4688 = vset.pattern.permute.xlu0 0
        %4689 = vperm.xlu0 %4688, %v4455
        %v4690 = vpop.permute.xlu0 %4689
        %4693 = vset.pattern.permute.xlu0 0
        %4694 = vperm.xlu0 %4693, %v4456
        %v4695 = vpop.permute.xlu0 %4694
        %4698 = vset.pattern.permute.xlu0 0
        %4699 = vperm.xlu0 %4698, %v4457
        %v4700 = vpop.permute.xlu0 %4699
        %4703 = vset.pattern.permute.xlu0 0
        %4704 = vperm.xlu0 %4703, %v4458
        %v4705 = vpop.permute.xlu0 %4704
        %4708 = vset.pattern.permute.xlu0 0
        %4709 = vperm.xlu0 %4708, %v4459
        %v4710 = vpop.permute.xlu0 %4709
        %4713 = vset.pattern.permute.xlu0 0
        %4714 = vperm.xlu0 %4713, %v4460
        %v4715 = vpop.permute.xlu0 %4714
        %4718 = vset.pattern.permute.xlu0 0
        %4719 = vperm.xlu0 %4718, %v4461
        %v4720 = vpop.permute.xlu0 %4719
        %4723 = vset.pattern.permute.xlu0 0
        %4724 = vperm.xlu0 %4723, %v4462
        %v4725 = vpop.permute.xlu0 %4724
        %4728 = vset.pattern.permute.xlu0 0
        %4729 = vperm.xlu0 %4728, %v4463
        %v4730 = vpop.permute.xlu0 %4729
        %4733 = vset.pattern.permute.xlu0 0
        %4734 = vperm.xlu0 %4733, %v4464
        %v4735 = vpop.permute.xlu0 %4734
        %4738 = vset.pattern.permute.xlu0 0
        %4739 = vperm.xlu0 %4738, %v4465
        %v4740 = vpop.permute.xlu0 %4739
        %4743 = vset.pattern.permute.xlu0 0
        %4744 = vperm.xlu0 %4743, %v4466
        %v4745 = vpop.permute.xlu0 %4744
        %4748 = vset.pattern.permute.xlu0 0
        %4749 = vperm.xlu0 %4748, %v4467
        %v4750 = vpop.permute.xlu0 %4749
        %4753 = vset.pattern.permute.xlu0 0
        %4754 = vperm.xlu0 %4753, %v4468
        %v4755 = vpop.permute.xlu0 %4754
        %4758 = vset.pattern.permute.xlu0 0
        %4759 = vperm.xlu0 %4758, %v4469
        %v4760 = vpop.permute.xlu0 %4759
        %4763 = vset.pattern.permute.xlu0 0
        %4764 = vperm.xlu0 %4763, %v4470
        %v4765 = vpop.permute.xlu0 %4764
        %4768 = vset.pattern.permute.xlu0 0
        %4769 = vperm.xlu0 %4768, %v4471
        %v4770 = vpop.permute.xlu0 %4769
        %4773 = vset.pattern.permute.xlu0 0
        %4774 = vperm.xlu0 %4773, %v4472
        %v4775 = vpop.permute.xlu0 %4774
        %4778 = vset.pattern.permute.xlu0 0
        %4779 = vperm.xlu0 %4778, %v4473
        %v4780 = vpop.permute.xlu0 %4779
        %4783 = vset.pattern.permute.xlu0 0
        %4784 = vperm.xlu0 %4783, %v4474
        %v4785 = vpop.permute.xlu0 %4784
        %4788 = vset.pattern.permute.xlu0 0
        %4789 = vperm.xlu0 %4788, %v4475
        %v4790 = vpop.permute.xlu0 %4789
        %4793 = vset.pattern.permute.xlu0 0
        %4794 = vperm.xlu0 %4793, %v4476
        %v4795 = vpop.permute.xlu0 %4794
        %4798 = vset.pattern.permute.xlu0 0
        %4799 = vperm.xlu0 %4798, %v4477
        %v4800 = vpop.permute.xlu0 %4799
        %4803 = vset.pattern.permute.xlu0 0
        %4804 = vperm.xlu0 %4803, %v4478
        %v4805 = vpop.permute.xlu0 %4804
        %4808 = vset.pattern.permute.xlu0 0
        %4809 = vperm.xlu0 %4808, %v4479
        %v4810 = vpop.permute.xlu0 %4809
        %4813 = vset.pattern.permute.xlu0 0
        %4814 = vperm.xlu0 %4813, %v4480
        %v4815 = vpop.permute.xlu0 %4814
        %4818 = vset.pattern.permute.xlu0 0
        %4819 = vperm.xlu0 %4818, %v4481
        %v4820 = vpop.permute.xlu0 %4819
        %4823 = vset.pattern.permute.xlu0 0
        %4824 = vperm.xlu0 %4823, %v4482
        %v4825 = vpop.permute.xlu0 %4824
        %4828 = vset.pattern.permute.xlu0 0
        %4829 = vperm.xlu0 %4828, %v4483
        %v4830 = vpop.permute.xlu0 %4829
        %4833 = vset.pattern.permute.xlu0 0
        %4834 = vperm.xlu0 %4833, %v4484
        %v4835 = vpop.permute.xlu0 %4834
        %4838 = vset.pattern.permute.xlu0 0
        %4839 = vperm.xlu0 %4838, %v4485
        %v4840 = vpop.permute.xlu0 %4839
        %4843 = vset.pattern.permute.xlu0 0
        %4844 = vperm.xlu0 %4843, %v4486
        %v4845 = vpop.permute.xlu0 %4844
        %4848 = vset.pattern.permute.xlu0 0
        %4849 = vperm.xlu0 %4848, %v4487
        %v4850 = vpop.permute.xlu0 %4849
        %4853 = vset.pattern.permute.xlu0 0
        %4854 = vperm.xlu0 %4853, %v4488
        %v4855 = vpop.permute.xlu0 %4854
        %4858 = vset.pattern.permute.xlu0 0
        %4859 = vperm.xlu0 %4858, %v4489
        %v4860 = vpop.permute.xlu0 %4859
        %4863 = vset.pattern.permute.xlu0 0
        %4864 = vperm.xlu0 %4863, %v4490
        %v4865 = vpop.permute.xlu0 %4864
        %4868 = vset.pattern.permute.xlu0 0
        %4869 = vperm.xlu0 %4868, %v4491
        %v4870 = vpop.permute.xlu0 %4869
        %4873 = vset.pattern.permute.xlu0 0
        %4874 = vperm.xlu0 %4873, %v4492
        %v4875 = vpop.permute.xlu0 %4874
        %4878 = vset.pattern.permute.xlu0 0
        %4879 = vperm.xlu0 %4878, %v4493
        %v4880 = vpop.permute.xlu0 %4879
        %4883 = vset.pattern.permute.xlu0 0
        %4884 = vperm.xlu0 %4883, %v4494
        %v4885 = vpop.permute.xlu0 %4884
        %4888 = vset.pattern.permute.xlu0 0
        %4889 = vperm.xlu0 %4888, %v4495
        %v4890 = vpop.permute.xlu0 %4889
        %4893 = vset.pattern.permute.xlu0 0
        %4894 = vperm.xlu0 %4893, %v4496
        %v4895 = vpop.permute.xlu0 %4894
        %4898 = vset.pattern.permute.xlu0 0
        %4899 = vperm.xlu0 %4898, %v4497
        %v4900 = vpop.permute.xlu0 %4899
        %4903 = vset.pattern.permute.xlu0 0
        %4904 = vperm.xlu0 %4903, %v4498
        %v4905 = vpop.permute.xlu0 %4904
        %4908 = vset.pattern.permute.xlu0 0
        %4909 = vperm.xlu0 %4908, %v4499
        %v4910 = vpop.permute.xlu0 %4909
        %4913 = vset.pattern.permute.xlu0 0
        %4914 = vperm.xlu0 %4913, %v4500
        %v4915 = vpop.permute.xlu0 %4914
        %4918 = vset.pattern.permute.xlu0 0
        %4919 = vperm.xlu0 %4918, %v4501
        %v4920 = vpop.permute.xlu0 %4919
        %4923 = vset.pattern.permute.xlu0 0
        %4924 = vperm.xlu0 %4923, %v4502
        %v4925 = vpop.permute.xlu0 %4924
        %4928 = vset.pattern.permute.xlu0 0
        %4929 = vperm.xlu0 %4928, %v4503
        %v4930 = vpop.permute.xlu0 %4929
        %4933 = vset.pattern.permute.xlu0 0
        %4934 = vperm.xlu0 %4933, %v4504
        %v4935 = vpop.permute.xlu0 %4934
        %4938 = vset.pattern.permute.xlu0 0
        %4939 = vperm.xlu0 %4938, %v4505
        %v4940 = vpop.permute.xlu0 %4939
        %4943 = vset.pattern.permute.xlu0 0
        %4944 = vperm.xlu0 %4943, %v4506
        %v4945 = vpop.permute.xlu0 %4944
        %4948 = vset.pattern.permute.xlu0 0
        %4949 = vperm.xlu0 %4948, %v4507
        %v4950 = vpop.permute.xlu0 %4949
        %4953 = vset.pattern.permute.xlu0 0
        %4954 = vperm.xlu0 %4953, %v4508
        %v4955 = vpop.permute.xlu0 %4954
        %4958 = vset.pattern.permute.xlu0 0
        %4959 = vperm.xlu0 %4958, %v4509
        %v4960 = vpop.permute.xlu0 %4959
        %v4962 = vlaneseq
        %v4963 = vshrl.u32 %v4962, 7
        %v4964 = vsub.s32 0, %v4963
        %v4965 = vrot.slane %v4679, %v4964
        %v4966 = vmul.f32 %v4685, %v4965
        %v4967 = vmul.f32 %v4690, %v4965
        %v4968 = vmul.f32 %v4695, %v4965
        %v4969 = vmul.f32 %v4700, %v4965
        %v4970 = vmul.f32 %v4705, %v4965
        %v4971 = vmul.f32 %v4710, %v4965
        %v4972 = vmul.f32 %v4715, %v4965
        %v4973 = vmul.f32 %v4720, %v4965
        %v4974 = vmul.f32 %v4725, %v4965
        %v4975 = vmul.f32 %v4730, %v4965
        %v4976 = vmul.f32 %v4735, %v4965
        %v4977 = vmul.f32 %v4740, %v4965
        %v4978 = vmul.f32 %v4745, %v4965
        %v4979 = vmul.f32 %v4750, %v4965
        %v4980 = vmul.f32 %v4755, %v4965
        %v4981 = vmul.f32 %v4760, %v4965
        %v4982 = vmul.f32 %v4765, %v4965
        %v4983 = vmul.f32 %v4770, %v4965
        %v4984 = vmul.f32 %v4775, %v4965
        %v4985 = vmul.f32 %v4780, %v4965
        %v4986 = vmul.f32 %v4785, %v4965
        %v4987 = vmul.f32 %v4790, %v4965
        %v4988 = vmul.f32 %v4795, %v4965
        %v4989 = vmul.f32 %v4800, %v4965
        %v4990 = vmul.f32 %v4805, %v4965
        %v4991 = vmul.f32 %v4810, %v4965
        %v4992 = vmul.f32 %v4815, %v4965
        %v4993 = vmul.f32 %v4820, %v4965
        %v4994 = vmul.f32 %v4825, %v4965
        %v4995 = vmul.f32 %v4830, %v4965
        %v4996 = vmul.f32 %v4835, %v4965
        %v4997 = vmul.f32 %v4840, %v4965
        %v4998 = vmul.f32 %v4845, %v4965
        %v4999 = vmul.f32 %v4850, %v4965
        %v5000 = vmul.f32 %v4855, %v4965
        %v5001 = vmul.f32 %v4860, %v4965
        %v5002 = vmul.f32 %v4865, %v4965
        %v5003 = vmul.f32 %v4870, %v4965
        %v5004 = vmul.f32 %v4875, %v4965
        %v5005 = vmul.f32 %v4880, %v4965
        %v5006 = vmul.f32 %v4885, %v4965
        %v5007 = vmul.f32 %v4890, %v4965
        %v5008 = vmul.f32 %v4895, %v4965
        %v5009 = vmul.f32 %v4900, %v4965
        %v5010 = vmul.f32 %v4905, %v4965
        %v5011 = vmul.f32 %v4910, %v4965
        %v5012 = vmul.f32 %v4915, %v4965
        %v5013 = vmul.f32 %v4920, %v4965
        %v5014 = vmul.f32 %v4925, %v4965
        %v5015 = vmul.f32 %v4930, %v4965
        %v5016 = vmul.f32 %v4935, %v4965
        %v5017 = vmul.f32 %v4940, %v4965
        %v5018 = vmul.f32 %v4945, %v4965
        %v5019 = vmul.f32 %v4950, %v4965
        %v5020 = vmul.f32 %v4955, %v4965
        %v5021 = vmul.f32 %v4960, %v4965
        %v5022 = vadd.f32 %v3782, %v4966
        %v5023 = vadd.f32 %v3783, %v4967
        %v5024 = vadd.f32 %v3784, %v4968
        %v5025 = vadd.f32 %v3785, %v4969
        %v5026 = vadd.f32 %v3786, %v4970
        %v5027 = vadd.f32 %v3787, %v4971
        %v5028 = vadd.f32 %v3788, %v4972
        %v5029 = vadd.f32 %v3789, %v4973
        %v5030 = vadd.f32 %v3790, %v4974
        %v5031 = vadd.f32 %v3791, %v4975
        %v5032 = vadd.f32 %v3792, %v4976
        %v5033 = vadd.f32 %v3793, %v4977
        %v5034 = vadd.f32 %v3794, %v4978
        %v5035 = vadd.f32 %v3795, %v4979
        %v5036 = vadd.f32 %v3796, %v4980
        %v5037 = vadd.f32 %v3797, %v4981
        %v5038 = vadd.f32 %v3798, %v4982
        %v5039 = vadd.f32 %v3799, %v4983
        %v5040 = vadd.f32 %v3800, %v4984
        %v5041 = vadd.f32 %v3801, %v4985
        %v5042 = vadd.f32 %v3802, %v4986
        %v5043 = vadd.f32 %v3803, %v4987
        %v5044 = vadd.f32 %v3804, %v4988
        %v5045 = vadd.f32 %v3805, %v4989
        %v5046 = vadd.f32 %v3806, %v4990
        %v5047 = vadd.f32 %v3807, %v4991
        %v5048 = vadd.f32 %v3808, %v4992
        %v5049 = vadd.f32 %v3809, %v4993
        %v5050 = vadd.f32 %v3810, %v4994
        %v5051 = vadd.f32 %v3811, %v4995
        %v5052 = vadd.f32 %v3812, %v4996
        %v5053 = vadd.f32 %v3813, %v4997
        %v5054 = vadd.f32 %v3814, %v4998
        %v5055 = vadd.f32 %v3815, %v4999
        %v5056 = vadd.f32 %v3816, %v5000
        %v5057 = vadd.f32 %v3817, %v5001
        %v5058 = vadd.f32 %v3818, %v5002
        %v5059 = vadd.f32 %v3819, %v5003
        %v5060 = vadd.f32 %v3820, %v5004
        %v5061 = vadd.f32 %v3821, %v5005
        %v5062 = vadd.f32 %v3822, %v5006
        %v5063 = vadd.f32 %v3823, %v5007
        %v5064 = vadd.f32 %v3824, %v5008
        %v5065 = vadd.f32 %v3825, %v5009
        %v5066 = vadd.f32 %v3826, %v5010
        %v5067 = vadd.f32 %v3827, %v5011
        %v5068 = vadd.f32 %v3828, %v5012
        %v5069 = vadd.f32 %v3829, %v5013
        %v5070 = vadd.f32 %v3830, %v5014
        %v5071 = vadd.f32 %v3831, %v5015
        %v5072 = vadd.f32 %v3832, %v5016
        %v5073 = vadd.f32 %v3833, %v5017
        %v5074 = vadd.f32 %v3834, %v5018
        %v5075 = vadd.f32 %v3835, %v5019
        %v5076 = vadd.f32 %v3836, %v5020
        %v5077 = vadd.f32 %v3837, %v5021
        %5079 = vset.pattern.permute.xlu0 0
        %5080 = vperm.xlu0 %5079, %v4566
        %v5081 = vpop.permute.xlu0 %5080
        %5084 = vset.pattern.permute.xlu0 0
        %5085 = vperm.xlu0 %5084, %v4567
        %v5086 = vpop.permute.xlu0 %5085
        %5089 = vset.pattern.permute.xlu0 0
        %5090 = vperm.xlu0 %5089, %v4568
        %v5091 = vpop.permute.xlu0 %5090
        %5094 = vset.pattern.permute.xlu0 0
        %5095 = vperm.xlu0 %5094, %v4569
        %v5096 = vpop.permute.xlu0 %5095
        %5099 = vset.pattern.permute.xlu0 0
        %5100 = vperm.xlu0 %5099, %v4570
        %v5101 = vpop.permute.xlu0 %5100
        %5104 = vset.pattern.permute.xlu0 0
        %5105 = vperm.xlu0 %5104, %v4571
        %v5106 = vpop.permute.xlu0 %5105
        %5109 = vset.pattern.permute.xlu0 0
        %5110 = vperm.xlu0 %5109, %v4572
        %v5111 = vpop.permute.xlu0 %5110
        %5114 = vset.pattern.permute.xlu0 0
        %5115 = vperm.xlu0 %5114, %v4573
        %v5116 = vpop.permute.xlu0 %5115
        %5119 = vset.pattern.permute.xlu0 0
        %5120 = vperm.xlu0 %5119, %v4574
        %v5121 = vpop.permute.xlu0 %5120
        %5124 = vset.pattern.permute.xlu0 0
        %5125 = vperm.xlu0 %5124, %v4575
        %v5126 = vpop.permute.xlu0 %5125
        %5129 = vset.pattern.permute.xlu0 0
        %5130 = vperm.xlu0 %5129, %v4576
        %v5131 = vpop.permute.xlu0 %5130
        %5134 = vset.pattern.permute.xlu0 0
        %5135 = vperm.xlu0 %5134, %v4577
        %v5136 = vpop.permute.xlu0 %5135
        %5139 = vset.pattern.permute.xlu0 0
        %5140 = vperm.xlu0 %5139, %v4578
        %v5141 = vpop.permute.xlu0 %5140
        %5144 = vset.pattern.permute.xlu0 0
        %5145 = vperm.xlu0 %5144, %v4579
        %v5146 = vpop.permute.xlu0 %5145
        %5149 = vset.pattern.permute.xlu0 0
        %5150 = vperm.xlu0 %5149, %v4580
        %v5151 = vpop.permute.xlu0 %5150
        %5154 = vset.pattern.permute.xlu0 0
        %5155 = vperm.xlu0 %5154, %v4581
        %v5156 = vpop.permute.xlu0 %5155
        %5159 = vset.pattern.permute.xlu0 0
        %5160 = vperm.xlu0 %5159, %v4582
        %v5161 = vpop.permute.xlu0 %5160
        %5164 = vset.pattern.permute.xlu0 0
        %5165 = vperm.xlu0 %5164, %v4583
        %v5166 = vpop.permute.xlu0 %5165
        %5169 = vset.pattern.permute.xlu0 0
        %5170 = vperm.xlu0 %5169, %v4584
        %v5171 = vpop.permute.xlu0 %5170
        %5174 = vset.pattern.permute.xlu0 0
        %5175 = vperm.xlu0 %5174, %v4585
        %v5176 = vpop.permute.xlu0 %5175
        %5179 = vset.pattern.permute.xlu0 0
        %5180 = vperm.xlu0 %5179, %v4586
        %v5181 = vpop.permute.xlu0 %5180
        %5184 = vset.pattern.permute.xlu0 0
        %5185 = vperm.xlu0 %5184, %v4587
        %v5186 = vpop.permute.xlu0 %5185
        %5189 = vset.pattern.permute.xlu0 0
        %5190 = vperm.xlu0 %5189, %v4588
        %v5191 = vpop.permute.xlu0 %5190
        %5194 = vset.pattern.permute.xlu0 0
        %5195 = vperm.xlu0 %5194, %v4589
        %v5196 = vpop.permute.xlu0 %5195
        %5199 = vset.pattern.permute.xlu0 0
        %5200 = vperm.xlu0 %5199, %v4590
        %v5201 = vpop.permute.xlu0 %5200
        %5204 = vset.pattern.permute.xlu0 0
        %5205 = vperm.xlu0 %5204, %v4591
        %v5206 = vpop.permute.xlu0 %5205
        %5209 = vset.pattern.permute.xlu0 0
        %5210 = vperm.xlu0 %5209, %v4592
        %v5211 = vpop.permute.xlu0 %5210
        %5214 = vset.pattern.permute.xlu0 0
        %5215 = vperm.xlu0 %5214, %v4593
        %v5216 = vpop.permute.xlu0 %5215
        %5219 = vset.pattern.permute.xlu0 0
        %5220 = vperm.xlu0 %5219, %v4594
        %v5221 = vpop.permute.xlu0 %5220
        %5224 = vset.pattern.permute.xlu0 0
        %5225 = vperm.xlu0 %5224, %v4595
        %v5226 = vpop.permute.xlu0 %5225
        %5229 = vset.pattern.permute.xlu0 0
        %5230 = vperm.xlu0 %5229, %v4596
        %v5231 = vpop.permute.xlu0 %5230
        %5234 = vset.pattern.permute.xlu0 0
        %5235 = vperm.xlu0 %5234, %v4597
        %v5236 = vpop.permute.xlu0 %5235
        %5239 = vset.pattern.permute.xlu0 0
        %5240 = vperm.xlu0 %5239, %v4598
        %v5241 = vpop.permute.xlu0 %5240
        %5244 = vset.pattern.permute.xlu0 0
        %5245 = vperm.xlu0 %5244, %v4599
        %v5246 = vpop.permute.xlu0 %5245
        %5249 = vset.pattern.permute.xlu0 0
        %5250 = vperm.xlu0 %5249, %v4600
        %v5251 = vpop.permute.xlu0 %5250
        %5254 = vset.pattern.permute.xlu0 0
        %5255 = vperm.xlu0 %5254, %v4601
        %v5256 = vpop.permute.xlu0 %5255
        %5259 = vset.pattern.permute.xlu0 0
        %5260 = vperm.xlu0 %5259, %v4602
        %v5261 = vpop.permute.xlu0 %5260
        %5264 = vset.pattern.permute.xlu0 0
        %5265 = vperm.xlu0 %5264, %v4603
        %v5266 = vpop.permute.xlu0 %5265
        %5269 = vset.pattern.permute.xlu0 0
        %5270 = vperm.xlu0 %5269, %v4604
        %v5271 = vpop.permute.xlu0 %5270
        %5274 = vset.pattern.permute.xlu0 0
        %5275 = vperm.xlu0 %5274, %v4605
        %v5276 = vpop.permute.xlu0 %5275
        %5279 = vset.pattern.permute.xlu0 0
        %5280 = vperm.xlu0 %5279, %v4606
        %v5281 = vpop.permute.xlu0 %5280
        %5284 = vset.pattern.permute.xlu0 0
        %5285 = vperm.xlu0 %5284, %v4607
        %v5286 = vpop.permute.xlu0 %5285
        %5289 = vset.pattern.permute.xlu0 0
        %5290 = vperm.xlu0 %5289, %v4608
        %v5291 = vpop.permute.xlu0 %5290
        %5294 = vset.pattern.permute.xlu0 0
        %5295 = vperm.xlu0 %5294, %v4609
        %v5296 = vpop.permute.xlu0 %5295
        %5299 = vset.pattern.permute.xlu0 0
        %5300 = vperm.xlu0 %5299, %v4610
        %v5301 = vpop.permute.xlu0 %5300
        %5304 = vset.pattern.permute.xlu0 0
        %5305 = vperm.xlu0 %5304, %v4611
        %v5306 = vpop.permute.xlu0 %5305
        %5309 = vset.pattern.permute.xlu0 0
        %5310 = vperm.xlu0 %5309, %v4612
        %v5311 = vpop.permute.xlu0 %5310
        %5314 = vset.pattern.permute.xlu0 0
        %5315 = vperm.xlu0 %5314, %v4613
        %v5316 = vpop.permute.xlu0 %5315
        %5319 = vset.pattern.permute.xlu0 0
        %5320 = vperm.xlu0 %5319, %v4614
        %v5321 = vpop.permute.xlu0 %5320
        %5324 = vset.pattern.permute.xlu0 0
        %5325 = vperm.xlu0 %5324, %v4615
        %v5326 = vpop.permute.xlu0 %5325
        %5329 = vset.pattern.permute.xlu0 0
        %5330 = vperm.xlu0 %5329, %v4616
        %v5331 = vpop.permute.xlu0 %5330
        %5334 = vset.pattern.permute.xlu0 0
        %5335 = vperm.xlu0 %5334, %v4617
        %v5336 = vpop.permute.xlu0 %5335
        %5339 = vset.pattern.permute.xlu0 0
        %5340 = vperm.xlu0 %5339, %v4618
        %v5341 = vpop.permute.xlu0 %5340
        %5344 = vset.pattern.permute.xlu0 0
        %5345 = vperm.xlu0 %5344, %v4619
        %v5346 = vpop.permute.xlu0 %5345
        %5349 = vset.pattern.permute.xlu0 0
        %5350 = vperm.xlu0 %5349, %v4620
        %v5351 = vpop.permute.xlu0 %5350
        %5354 = vset.pattern.permute.xlu0 0
        %5355 = vperm.xlu0 %5354, %v4621
        %v5356 = vpop.permute.xlu0 %5355
        %v5358 = vlaneseq
        %v5359 = vshrl.u32 %v5358, 7
        %v5360 = vsub.s32 0, %v5359
        %v5361 = vrot.slane %v4680, %v5360
        %v5362 = vmul.f32 %v5081, %v5361
        %v5363 = vmul.f32 %v5086, %v5361
        %v5364 = vmul.f32 %v5091, %v5361
        %v5365 = vmul.f32 %v5096, %v5361
        %v5366 = vmul.f32 %v5101, %v5361
        %v5367 = vmul.f32 %v5106, %v5361
        %v5368 = vmul.f32 %v5111, %v5361
        %v5369 = vmul.f32 %v5116, %v5361
        %v5370 = vmul.f32 %v5121, %v5361
        %v5371 = vmul.f32 %v5126, %v5361
        %v5372 = vmul.f32 %v5131, %v5361
        %v5373 = vmul.f32 %v5136, %v5361
        %v5374 = vmul.f32 %v5141, %v5361
        %v5375 = vmul.f32 %v5146, %v5361
        %v5376 = vmul.f32 %v5151, %v5361
        %v5377 = vmul.f32 %v5156, %v5361
        %v5378 = vmul.f32 %v5161, %v5361
        %v5379 = vmul.f32 %v5166, %v5361
        %v5380 = vmul.f32 %v5171, %v5361
        %v5381 = vmul.f32 %v5176, %v5361
        %v5382 = vmul.f32 %v5181, %v5361
        %v5383 = vmul.f32 %v5186, %v5361
        %v5384 = vmul.f32 %v5191, %v5361
        %v5385 = vmul.f32 %v5196, %v5361
        %v5386 = vmul.f32 %v5201, %v5361
        %v5387 = vmul.f32 %v5206, %v5361
        %v5388 = vmul.f32 %v5211, %v5361
        %v5389 = vmul.f32 %v5216, %v5361
        %v5390 = vmul.f32 %v5221, %v5361
        %v5391 = vmul.f32 %v5226, %v5361
        %v5392 = vmul.f32 %v5231, %v5361
        %v5393 = vmul.f32 %v5236, %v5361
        %v5394 = vmul.f32 %v5241, %v5361
        %v5395 = vmul.f32 %v5246, %v5361
        %v5396 = vmul.f32 %v5251, %v5361
        %v5397 = vmul.f32 %v5256, %v5361
        %v5398 = vmul.f32 %v5261, %v5361
        %v5399 = vmul.f32 %v5266, %v5361
        %v5400 = vmul.f32 %v5271, %v5361
        %v5401 = vmul.f32 %v5276, %v5361
        %v5402 = vmul.f32 %v5281, %v5361
        %v5403 = vmul.f32 %v5286, %v5361
        %v5404 = vmul.f32 %v5291, %v5361
        %v5405 = vmul.f32 %v5296, %v5361
        %v5406 = vmul.f32 %v5301, %v5361
        %v5407 = vmul.f32 %v5306, %v5361
        %v5408 = vmul.f32 %v5311, %v5361
        %v5409 = vmul.f32 %v5316, %v5361
        %v5410 = vmul.f32 %v5321, %v5361
        %v5411 = vmul.f32 %v5326, %v5361
        %v5412 = vmul.f32 %v5331, %v5361
        %v5413 = vmul.f32 %v5336, %v5361
        %v5414 = vmul.f32 %v5341, %v5361
        %v5415 = vmul.f32 %v5346, %v5361
        %v5416 = vmul.f32 %v5351, %v5361
        %v5417 = vmul.f32 %v5356, %v5361
        %v5418 = vadd.f32 %v5022, %v5362
        %v5419 = vadd.f32 %v5023, %v5363
        %v5420 = vadd.f32 %v5024, %v5364
        %v5421 = vadd.f32 %v5025, %v5365
        %v5422 = vadd.f32 %v5026, %v5366
        %v5423 = vadd.f32 %v5027, %v5367
        %v5424 = vadd.f32 %v5028, %v5368
        %v5425 = vadd.f32 %v5029, %v5369
        %v5426 = vadd.f32 %v5030, %v5370
        %v5427 = vadd.f32 %v5031, %v5371
        %v5428 = vadd.f32 %v5032, %v5372
        %v5429 = vadd.f32 %v5033, %v5373
        %v5430 = vadd.f32 %v5034, %v5374
        %v5431 = vadd.f32 %v5035, %v5375
        %v5432 = vadd.f32 %v5036, %v5376
        %v5433 = vadd.f32 %v5037, %v5377
        %v5434 = vadd.f32 %v5038, %v5378
        %v5435 = vadd.f32 %v5039, %v5379
        %v5436 = vadd.f32 %v5040, %v5380
        %v5437 = vadd.f32 %v5041, %v5381
        %v5438 = vadd.f32 %v5042, %v5382
        %v5439 = vadd.f32 %v5043, %v5383
        %v5440 = vadd.f32 %v5044, %v5384
        %v5441 = vadd.f32 %v5045, %v5385
        %v5442 = vadd.f32 %v5046, %v5386
        %v5443 = vadd.f32 %v5047, %v5387
        %v5444 = vadd.f32 %v5048, %v5388
        %v5445 = vadd.f32 %v5049, %v5389
        %v5446 = vadd.f32 %v5050, %v5390
        %v5447 = vadd.f32 %v5051, %v5391
        %v5448 = vadd.f32 %v5052, %v5392
        %v5449 = vadd.f32 %v5053, %v5393
        %v5450 = vadd.f32 %v5054, %v5394
        %v5451 = vadd.f32 %v5055, %v5395
        %v5452 = vadd.f32 %v5056, %v5396
        %v5453 = vadd.f32 %v5057, %v5397
        %v5454 = vadd.f32 %v5058, %v5398
        %v5455 = vadd.f32 %v5059, %v5399
        %v5456 = vadd.f32 %v5060, %v5400
        %v5457 = vadd.f32 %v5061, %v5401
        %v5458 = vadd.f32 %v5062, %v5402
        %v5459 = vadd.f32 %v5063, %v5403
        %v5460 = vadd.f32 %v5064, %v5404
        %v5461 = vadd.f32 %v5065, %v5405
        %v5462 = vadd.f32 %v5066, %v5406
        %v5463 = vadd.f32 %v5067, %v5407
        %v5464 = vadd.f32 %v5068, %v5408
        %v5465 = vadd.f32 %v5069, %v5409
        %v5466 = vadd.f32 %v5070, %v5410
        %v5467 = vadd.f32 %v5071, %v5411
        %v5468 = vadd.f32 %v5072, %v5412
        %v5469 = vadd.f32 %v5073, %v5413
        %v5470 = vadd.f32 %v5074, %v5414
        %v5471 = vadd.f32 %v5075, %v5415
        %v5472 = vadd.f32 %v5076, %v5416
        %v5473 = vadd.f32 %v5077, %v5417
        %5475 = vset.pattern.permute.xlu0 0
        %5476 = vperm.xlu0 %5475, %v4510
        %v5477 = vpop.permute.xlu0 %5476
        %5480 = vset.pattern.permute.xlu0 0
        %5481 = vperm.xlu0 %5480, %v4511
        %v5482 = vpop.permute.xlu0 %5481
        %5485 = vset.pattern.permute.xlu0 0
        %5486 = vperm.xlu0 %5485, %v4512
        %v5487 = vpop.permute.xlu0 %5486
        %5490 = vset.pattern.permute.xlu0 0
        %5491 = vperm.xlu0 %5490, %v4513
        %v5492 = vpop.permute.xlu0 %5491
        %5495 = vset.pattern.permute.xlu0 0
        %5496 = vperm.xlu0 %5495, %v4514
        %v5497 = vpop.permute.xlu0 %5496
        %5500 = vset.pattern.permute.xlu0 0
        %5501 = vperm.xlu0 %5500, %v4515
        %v5502 = vpop.permute.xlu0 %5501
        %5505 = vset.pattern.permute.xlu0 0
        %5506 = vperm.xlu0 %5505, %v4516
        %v5507 = vpop.permute.xlu0 %5506
        %5510 = vset.pattern.permute.xlu0 0
        %5511 = vperm.xlu0 %5510, %v4517
        %v5512 = vpop.permute.xlu0 %5511
        %5515 = vset.pattern.permute.xlu0 0
        %5516 = vperm.xlu0 %5515, %v4518
        %v5517 = vpop.permute.xlu0 %5516
        %5520 = vset.pattern.permute.xlu0 0
        %5521 = vperm.xlu0 %5520, %v4519
        %v5522 = vpop.permute.xlu0 %5521
        %5525 = vset.pattern.permute.xlu0 0
        %5526 = vperm.xlu0 %5525, %v4520
        %v5527 = vpop.permute.xlu0 %5526
        %5530 = vset.pattern.permute.xlu0 0
        %5531 = vperm.xlu0 %5530, %v4521
        %v5532 = vpop.permute.xlu0 %5531
        %5535 = vset.pattern.permute.xlu0 0
        %5536 = vperm.xlu0 %5535, %v4522
        %v5537 = vpop.permute.xlu0 %5536
        %5540 = vset.pattern.permute.xlu0 0
        %5541 = vperm.xlu0 %5540, %v4523
        %v5542 = vpop.permute.xlu0 %5541
        %5545 = vset.pattern.permute.xlu0 0
        %5546 = vperm.xlu0 %5545, %v4524
        %v5547 = vpop.permute.xlu0 %5546
        %5550 = vset.pattern.permute.xlu0 0
        %5551 = vperm.xlu0 %5550, %v4525
        %v5552 = vpop.permute.xlu0 %5551
        %5555 = vset.pattern.permute.xlu0 0
        %5556 = vperm.xlu0 %5555, %v4526
        %v5557 = vpop.permute.xlu0 %5556
        %5560 = vset.pattern.permute.xlu0 0
        %5561 = vperm.xlu0 %5560, %v4527
        %v5562 = vpop.permute.xlu0 %5561
        %5565 = vset.pattern.permute.xlu0 0
        %5566 = vperm.xlu0 %5565, %v4528
        %v5567 = vpop.permute.xlu0 %5566
        %5570 = vset.pattern.permute.xlu0 0
        %5571 = vperm.xlu0 %5570, %v4529
        %v5572 = vpop.permute.xlu0 %5571
        %5575 = vset.pattern.permute.xlu0 0
        %5576 = vperm.xlu0 %5575, %v4530
        %v5577 = vpop.permute.xlu0 %5576
        %5580 = vset.pattern.permute.xlu0 0
        %5581 = vperm.xlu0 %5580, %v4531
        %v5582 = vpop.permute.xlu0 %5581
        %5585 = vset.pattern.permute.xlu0 0
        %5586 = vperm.xlu0 %5585, %v4532
        %v5587 = vpop.permute.xlu0 %5586
        %5590 = vset.pattern.permute.xlu0 0
        %5591 = vperm.xlu0 %5590, %v4533
        %v5592 = vpop.permute.xlu0 %5591
        %5595 = vset.pattern.permute.xlu0 0
        %5596 = vperm.xlu0 %5595, %v4534
        %v5597 = vpop.permute.xlu0 %5596
        %5600 = vset.pattern.permute.xlu0 0
        %5601 = vperm.xlu0 %5600, %v4535
        %v5602 = vpop.permute.xlu0 %5601
        %5605 = vset.pattern.permute.xlu0 0
        %5606 = vperm.xlu0 %5605, %v4536
        %v5607 = vpop.permute.xlu0 %5606
        %5610 = vset.pattern.permute.xlu0 0
        %5611 = vperm.xlu0 %5610, %v4537
        %v5612 = vpop.permute.xlu0 %5611
        %5615 = vset.pattern.permute.xlu0 0
        %5616 = vperm.xlu0 %5615, %v4538
        %v5617 = vpop.permute.xlu0 %5616
        %5620 = vset.pattern.permute.xlu0 0
        %5621 = vperm.xlu0 %5620, %v4539
        %v5622 = vpop.permute.xlu0 %5621
        %5625 = vset.pattern.permute.xlu0 0
        %5626 = vperm.xlu0 %5625, %v4540
        %v5627 = vpop.permute.xlu0 %5626
        %5630 = vset.pattern.permute.xlu0 0
        %5631 = vperm.xlu0 %5630, %v4541
        %v5632 = vpop.permute.xlu0 %5631
        %5635 = vset.pattern.permute.xlu0 0
        %5636 = vperm.xlu0 %5635, %v4542
        %v5637 = vpop.permute.xlu0 %5636
        %5640 = vset.pattern.permute.xlu0 0
        %5641 = vperm.xlu0 %5640, %v4543
        %v5642 = vpop.permute.xlu0 %5641
        %5645 = vset.pattern.permute.xlu0 0
        %5646 = vperm.xlu0 %5645, %v4544
        %v5647 = vpop.permute.xlu0 %5646
        %5650 = vset.pattern.permute.xlu0 0
        %5651 = vperm.xlu0 %5650, %v4545
        %v5652 = vpop.permute.xlu0 %5651
        %5655 = vset.pattern.permute.xlu0 0
        %5656 = vperm.xlu0 %5655, %v4546
        %v5657 = vpop.permute.xlu0 %5656
        %5660 = vset.pattern.permute.xlu0 0
        %5661 = vperm.xlu0 %5660, %v4547
        %v5662 = vpop.permute.xlu0 %5661
        %5665 = vset.pattern.permute.xlu0 0
        %5666 = vperm.xlu0 %5665, %v4548
        %v5667 = vpop.permute.xlu0 %5666
        %5670 = vset.pattern.permute.xlu0 0
        %5671 = vperm.xlu0 %5670, %v4549
        %v5672 = vpop.permute.xlu0 %5671
        %5675 = vset.pattern.permute.xlu0 0
        %5676 = vperm.xlu0 %5675, %v4550
        %v5677 = vpop.permute.xlu0 %5676
        %5680 = vset.pattern.permute.xlu0 0
        %5681 = vperm.xlu0 %5680, %v4551
        %v5682 = vpop.permute.xlu0 %5681
        %5685 = vset.pattern.permute.xlu0 0
        %5686 = vperm.xlu0 %5685, %v4552
        %v5687 = vpop.permute.xlu0 %5686
        %5690 = vset.pattern.permute.xlu0 0
        %5691 = vperm.xlu0 %5690, %v4553
        %v5692 = vpop.permute.xlu0 %5691
        %5695 = vset.pattern.permute.xlu0 0
        %5696 = vperm.xlu0 %5695, %v4554
        %v5697 = vpop.permute.xlu0 %5696
        %5700 = vset.pattern.permute.xlu0 0
        %5701 = vperm.xlu0 %5700, %v4555
        %v5702 = vpop.permute.xlu0 %5701
        %5705 = vset.pattern.permute.xlu0 0
        %5706 = vperm.xlu0 %5705, %v4556
        %v5707 = vpop.permute.xlu0 %5706
        %5710 = vset.pattern.permute.xlu0 0
        %5711 = vperm.xlu0 %5710, %v4557
        %v5712 = vpop.permute.xlu0 %5711
        %5715 = vset.pattern.permute.xlu0 0
        %5716 = vperm.xlu0 %5715, %v4558
        %v5717 = vpop.permute.xlu0 %5716
        %5720 = vset.pattern.permute.xlu0 0
        %5721 = vperm.xlu0 %5720, %v4559
        %v5722 = vpop.permute.xlu0 %5721
        %5725 = vset.pattern.permute.xlu0 0
        %5726 = vperm.xlu0 %5725, %v4560
        %v5727 = vpop.permute.xlu0 %5726
        %5730 = vset.pattern.permute.xlu0 0
        %5731 = vperm.xlu0 %5730, %v4561
        %v5732 = vpop.permute.xlu0 %5731
        %5735 = vset.pattern.permute.xlu0 0
        %5736 = vperm.xlu0 %5735, %v4562
        %v5737 = vpop.permute.xlu0 %5736
        %5740 = vset.pattern.permute.xlu0 0
        %5741 = vperm.xlu0 %5740, %v4563
        %v5742 = vpop.permute.xlu0 %5741
        %5745 = vset.pattern.permute.xlu0 0
        %5746 = vperm.xlu0 %5745, %v4564
        %v5747 = vpop.permute.xlu0 %5746
        %5750 = vset.pattern.permute.xlu0 0
        %5751 = vperm.xlu0 %5750, %v4565
        %v5752 = vpop.permute.xlu0 %5751
        %v5754 = vlaneseq
        %v5755 = vshrl.u32 %v5754, 7
        %v5756 = vsub.s32 0, %v5755
        %v5757 = vrot.slane %v4681, %v5756
        %v5758 = vmul.f32 %v5477, %v5757
        %v5759 = vmul.f32 %v5482, %v5757
        %v5760 = vmul.f32 %v5487, %v5757
        %v5761 = vmul.f32 %v5492, %v5757
        %v5762 = vmul.f32 %v5497, %v5757
        %v5763 = vmul.f32 %v5502, %v5757
        %v5764 = vmul.f32 %v5507, %v5757
        %v5765 = vmul.f32 %v5512, %v5757
        %v5766 = vmul.f32 %v5517, %v5757
        %v5767 = vmul.f32 %v5522, %v5757
        %v5768 = vmul.f32 %v5527, %v5757
        %v5769 = vmul.f32 %v5532, %v5757
        %v5770 = vmul.f32 %v5537, %v5757
        %v5771 = vmul.f32 %v5542, %v5757
        %v5772 = vmul.f32 %v5547, %v5757
        %v5773 = vmul.f32 %v5552, %v5757
        %v5774 = vmul.f32 %v5557, %v5757
        %v5775 = vmul.f32 %v5562, %v5757
        %v5776 = vmul.f32 %v5567, %v5757
        %v5777 = vmul.f32 %v5572, %v5757
        %v5778 = vmul.f32 %v5577, %v5757
        %v5779 = vmul.f32 %v5582, %v5757
        %v5780 = vmul.f32 %v5587, %v5757
        %v5781 = vmul.f32 %v5592, %v5757
        %v5782 = vmul.f32 %v5597, %v5757
        %v5783 = vmul.f32 %v5602, %v5757
        %v5784 = vmul.f32 %v5607, %v5757
        %v5785 = vmul.f32 %v5612, %v5757
        %v5786 = vmul.f32 %v5617, %v5757
        %v5787 = vmul.f32 %v5622, %v5757
        %v5788 = vmul.f32 %v5627, %v5757
        %v5789 = vmul.f32 %v5632, %v5757
        %v5790 = vmul.f32 %v5637, %v5757
        %v5791 = vmul.f32 %v5642, %v5757
        %v5792 = vmul.f32 %v5647, %v5757
        %v5793 = vmul.f32 %v5652, %v5757
        %v5794 = vmul.f32 %v5657, %v5757
        %v5795 = vmul.f32 %v5662, %v5757
        %v5796 = vmul.f32 %v5667, %v5757
        %v5797 = vmul.f32 %v5672, %v5757
        %v5798 = vmul.f32 %v5677, %v5757
        %v5799 = vmul.f32 %v5682, %v5757
        %v5800 = vmul.f32 %v5687, %v5757
        %v5801 = vmul.f32 %v5692, %v5757
        %v5802 = vmul.f32 %v5697, %v5757
        %v5803 = vmul.f32 %v5702, %v5757
        %v5804 = vmul.f32 %v5707, %v5757
        %v5805 = vmul.f32 %v5712, %v5757
        %v5806 = vmul.f32 %v5717, %v5757
        %v5807 = vmul.f32 %v5722, %v5757
        %v5808 = vmul.f32 %v5727, %v5757
        %v5809 = vmul.f32 %v5732, %v5757
        %v5810 = vmul.f32 %v5737, %v5757
        %v5811 = vmul.f32 %v5742, %v5757
        %v5812 = vmul.f32 %v5747, %v5757
        %v5813 = vmul.f32 %v5752, %v5757
        %v5814 = vadd.f32 %v5418, %v5758
        %v5815 = vadd.f32 %v5419, %v5759
        %v5816 = vadd.f32 %v5420, %v5760
        %v5817 = vadd.f32 %v5421, %v5761
        %v5818 = vadd.f32 %v5422, %v5762
        %v5819 = vadd.f32 %v5423, %v5763
        %v5820 = vadd.f32 %v5424, %v5764
        %v5821 = vadd.f32 %v5425, %v5765
        %v5822 = vadd.f32 %v5426, %v5766
        %v5823 = vadd.f32 %v5427, %v5767
        %v5824 = vadd.f32 %v5428, %v5768
        %v5825 = vadd.f32 %v5429, %v5769
        %v5826 = vadd.f32 %v5430, %v5770
        %v5827 = vadd.f32 %v5431, %v5771
        %v5828 = vadd.f32 %v5432, %v5772
        %v5829 = vadd.f32 %v5433, %v5773
        %v5830 = vadd.f32 %v5434, %v5774
        %v5831 = vadd.f32 %v5435, %v5775
        %v5832 = vadd.f32 %v5436, %v5776
        %v5833 = vadd.f32 %v5437, %v5777
        %v5834 = vadd.f32 %v5438, %v5778
        %v5835 = vadd.f32 %v5439, %v5779
        %v5836 = vadd.f32 %v5440, %v5780
        %v5837 = vadd.f32 %v5441, %v5781
        %v5838 = vadd.f32 %v5442, %v5782
        %v5839 = vadd.f32 %v5443, %v5783
        %v5840 = vadd.f32 %v5444, %v5784
        %v5841 = vadd.f32 %v5445, %v5785
        %v5842 = vadd.f32 %v5446, %v5786
        %v5843 = vadd.f32 %v5447, %v5787
        %v5844 = vadd.f32 %v5448, %v5788
        %v5845 = vadd.f32 %v5449, %v5789
        %v5846 = vadd.f32 %v5450, %v5790
        %v5847 = vadd.f32 %v5451, %v5791
        %v5848 = vadd.f32 %v5452, %v5792
        %v5849 = vadd.f32 %v5453, %v5793
        %v5850 = vadd.f32 %v5454, %v5794
        %v5851 = vadd.f32 %v5455, %v5795
        %v5852 = vadd.f32 %v5456, %v5796
        %v5853 = vadd.f32 %v5457, %v5797
        %v5854 = vadd.f32 %v5458, %v5798
        %v5855 = vadd.f32 %v5459, %v5799
        %v5856 = vadd.f32 %v5460, %v5800
        %v5857 = vadd.f32 %v5461, %v5801
        %v5858 = vadd.f32 %v5462, %v5802
        %v5859 = vadd.f32 %v5463, %v5803
        %v5860 = vadd.f32 %v5464, %v5804
        %v5861 = vadd.f32 %v5465, %v5805
        %v5862 = vadd.f32 %v5466, %v5806
        %v5863 = vadd.f32 %v5467, %v5807
        %v5864 = vadd.f32 %v5468, %v5808
        %v5865 = vadd.f32 %v5469, %v5809
        %v5866 = vadd.f32 %v5470, %v5810
        %v5867 = vadd.f32 %v5471, %v5811
        %v5868 = vadd.f32 %v5472, %v5812
        %v5869 = vadd.f32 %v5473, %v5813
        %v5870 = vmul.f32 %v5081, %v4965
        %v5871 = vmul.f32 %v5086, %v4965
        %v5872 = vmul.f32 %v5091, %v4965
        %v5873 = vmul.f32 %v5096, %v4965
        %v5874 = vmul.f32 %v5101, %v4965
        %v5875 = vmul.f32 %v5106, %v4965
        %v5876 = vmul.f32 %v5111, %v4965
        %v5877 = vmul.f32 %v5116, %v4965
        %v5878 = vmul.f32 %v5121, %v4965
        %v5879 = vmul.f32 %v5126, %v4965
        %v5880 = vmul.f32 %v5131, %v4965
        %v5881 = vmul.f32 %v5136, %v4965
        %v5882 = vmul.f32 %v5141, %v4965
        %v5883 = vmul.f32 %v5146, %v4965
        %v5884 = vmul.f32 %v5151, %v4965
        %v5885 = vmul.f32 %v5156, %v4965
        %v5886 = vmul.f32 %v5161, %v4965
        %v5887 = vmul.f32 %v5166, %v4965
        %v5888 = vmul.f32 %v5171, %v4965
        %v5889 = vmul.f32 %v5176, %v4965
        %v5890 = vmul.f32 %v5181, %v4965
        %v5891 = vmul.f32 %v5186, %v4965
        %v5892 = vmul.f32 %v5191, %v4965
        %v5893 = vmul.f32 %v5196, %v4965
        %v5894 = vmul.f32 %v5201, %v4965
        %v5895 = vmul.f32 %v5206, %v4965
        %v5896 = vmul.f32 %v5211, %v4965
        %v5897 = vmul.f32 %v5216, %v4965
        %v5898 = vmul.f32 %v5221, %v4965
        %v5899 = vmul.f32 %v5226, %v4965
        %v5900 = vmul.f32 %v5231, %v4965
        %v5901 = vmul.f32 %v5236, %v4965
        %v5902 = vmul.f32 %v5241, %v4965
        %v5903 = vmul.f32 %v5246, %v4965
        %v5904 = vmul.f32 %v5251, %v4965
        %v5905 = vmul.f32 %v5256, %v4965
        %v5906 = vmul.f32 %v5261, %v4965
        %v5907 = vmul.f32 %v5266, %v4965
        %v5908 = vmul.f32 %v5271, %v4965
        %v5909 = vmul.f32 %v5276, %v4965
        %v5910 = vmul.f32 %v5281, %v4965
        %v5911 = vmul.f32 %v5286, %v4965
        %v5912 = vmul.f32 %v5291, %v4965
        %v5913 = vmul.f32 %v5296, %v4965
        %v5914 = vmul.f32 %v5301, %v4965
        %v5915 = vmul.f32 %v5306, %v4965
        %v5916 = vmul.f32 %v5311, %v4965
        %v5917 = vmul.f32 %v5316, %v4965
        %v5918 = vmul.f32 %v5321, %v4965
        %v5919 = vmul.f32 %v5326, %v4965
        %v5920 = vmul.f32 %v5331, %v4965
        %v5921 = vmul.f32 %v5336, %v4965
        %v5922 = vmul.f32 %v5341, %v4965
        %v5923 = vmul.f32 %v5346, %v4965
        %v5924 = vmul.f32 %v5351, %v4965
        %v5925 = vmul.f32 %v5356, %v4965
        %v5926 = vadd.f32 %v4398, %v5870
        %v5927 = vadd.f32 %v4399, %v5871
        %v5928 = vadd.f32 %v4400, %v5872
        %v5929 = vadd.f32 %v4401, %v5873
        %v5930 = vadd.f32 %v4402, %v5874
        %v5931 = vadd.f32 %v4403, %v5875
        %v5932 = vadd.f32 %v4404, %v5876
        %v5933 = vadd.f32 %v4405, %v5877
        %v5934 = vadd.f32 %v4406, %v5878
        %v5935 = vadd.f32 %v4407, %v5879
        %v5936 = vadd.f32 %v4408, %v5880
        %v5937 = vadd.f32 %v4409, %v5881
        %v5938 = vadd.f32 %v4410, %v5882
        %v5939 = vadd.f32 %v4411, %v5883
        %v5940 = vadd.f32 %v4412, %v5884
        %v5941 = vadd.f32 %v4413, %v5885
        %v5942 = vadd.f32 %v4414, %v5886
        %v5943 = vadd.f32 %v4415, %v5887
        %v5944 = vadd.f32 %v4416, %v5888
        %v5945 = vadd.f32 %v4417, %v5889
        %v5946 = vadd.f32 %v4418, %v5890
        %v5947 = vadd.f32 %v4419, %v5891
        %v5948 = vadd.f32 %v4420, %v5892
        %v5949 = vadd.f32 %v4421, %v5893
        %v5950 = vadd.f32 %v4422, %v5894
        %v5951 = vadd.f32 %v4423, %v5895
        %v5952 = vadd.f32 %v4424, %v5896
        %v5953 = vadd.f32 %v4425, %v5897
        %v5954 = vadd.f32 %v4426, %v5898
        %v5955 = vadd.f32 %v4427, %v5899
        %v5956 = vadd.f32 %v4428, %v5900
        %v5957 = vadd.f32 %v4429, %v5901
        %v5958 = vadd.f32 %v4430, %v5902
        %v5959 = vadd.f32 %v4431, %v5903
        %v5960 = vadd.f32 %v4432, %v5904
        %v5961 = vadd.f32 %v4433, %v5905
        %v5962 = vadd.f32 %v4434, %v5906
        %v5963 = vadd.f32 %v4435, %v5907
        %v5964 = vadd.f32 %v4436, %v5908
        %v5965 = vadd.f32 %v4437, %v5909
        %v5966 = vadd.f32 %v4438, %v5910
        %v5967 = vadd.f32 %v4439, %v5911
        %v5968 = vadd.f32 %v4440, %v5912
        %v5969 = vadd.f32 %v4441, %v5913
        %v5970 = vadd.f32 %v4442, %v5914
        %v5971 = vadd.f32 %v4443, %v5915
        %v5972 = vadd.f32 %v4444, %v5916
        %v5973 = vadd.f32 %v4445, %v5917
        %v5974 = vadd.f32 %v4446, %v5918
        %v5975 = vadd.f32 %v4447, %v5919
        %v5976 = vadd.f32 %v4448, %v5920
        %v5977 = vadd.f32 %v4449, %v5921
        %v5978 = vadd.f32 %v4450, %v5922
        %v5979 = vadd.f32 %v4451, %v5923
        %v5980 = vadd.f32 %v4452, %v5924
        %v5981 = vadd.f32 %v4453, %v5925
        %v5982 = vmul.f32 %v5477, %v5361
        %v5983 = vmul.f32 %v5482, %v5361
        %v5984 = vmul.f32 %v5487, %v5361
        %v5985 = vmul.f32 %v5492, %v5361
        %v5986 = vmul.f32 %v5497, %v5361
        %v5987 = vmul.f32 %v5502, %v5361
        %v5988 = vmul.f32 %v5507, %v5361
        %v5989 = vmul.f32 %v5512, %v5361
        %v5990 = vmul.f32 %v5517, %v5361
        %v5991 = vmul.f32 %v5522, %v5361
        %v5992 = vmul.f32 %v5527, %v5361
        %v5993 = vmul.f32 %v5532, %v5361
        %v5994 = vmul.f32 %v5537, %v5361
        %v5995 = vmul.f32 %v5542, %v5361
        %v5996 = vmul.f32 %v5547, %v5361
        %v5997 = vmul.f32 %v5552, %v5361
        %v5998 = vmul.f32 %v5557, %v5361
        %v5999 = vmul.f32 %v5562, %v5361
        %v6000 = vmul.f32 %v5567, %v5361
        %v6001 = vmul.f32 %v5572, %v5361
        %v6002 = vmul.f32 %v5577, %v5361
        %v6003 = vmul.f32 %v5582, %v5361
        %v6004 = vmul.f32 %v5587, %v5361
        %v6005 = vmul.f32 %v5592, %v5361
        %v6006 = vmul.f32 %v5597, %v5361
        %v6007 = vmul.f32 %v5602, %v5361
        %v6008 = vmul.f32 %v5607, %v5361
        %v6009 = vmul.f32 %v5612, %v5361
        %v6010 = vmul.f32 %v5617, %v5361
        %v6011 = vmul.f32 %v5622, %v5361
        %v6012 = vmul.f32 %v5627, %v5361
        %v6013 = vmul.f32 %v5632, %v5361
        %v6014 = vmul.f32 %v5637, %v5361
        %v6015 = vmul.f32 %v5642, %v5361
        %v6016 = vmul.f32 %v5647, %v5361
        %v6017 = vmul.f32 %v5652, %v5361
        %v6018 = vmul.f32 %v5657, %v5361
        %v6019 = vmul.f32 %v5662, %v5361
        %v6020 = vmul.f32 %v5667, %v5361
        %v6021 = vmul.f32 %v5672, %v5361
        %v6022 = vmul.f32 %v5677, %v5361
        %v6023 = vmul.f32 %v5682, %v5361
        %v6024 = vmul.f32 %v5687, %v5361
        %v6025 = vmul.f32 %v5692, %v5361
        %v6026 = vmul.f32 %v5697, %v5361
        %v6027 = vmul.f32 %v5702, %v5361
        %v6028 = vmul.f32 %v5707, %v5361
        %v6029 = vmul.f32 %v5712, %v5361
        %v6030 = vmul.f32 %v5717, %v5361
        %v6031 = vmul.f32 %v5722, %v5361
        %v6032 = vmul.f32 %v5727, %v5361
        %v6033 = vmul.f32 %v5732, %v5361
        %v6034 = vmul.f32 %v5737, %v5361
        %v6035 = vmul.f32 %v5742, %v5361
        %v6036 = vmul.f32 %v5747, %v5361
        %v6037 = vmul.f32 %v5752, %v5361
        %v6038 = vadd.f32 %v5926, %v5982
        %v6039 = vadd.f32 %v5927, %v5983
        %v6040 = vadd.f32 %v5928, %v5984
        %v6041 = vadd.f32 %v5929, %v5985
        %v6042 = vadd.f32 %v5930, %v5986
        %v6043 = vadd.f32 %v5931, %v5987
        %v6044 = vadd.f32 %v5932, %v5988
        %v6045 = vadd.f32 %v5933, %v5989
        %v6046 = vadd.f32 %v5934, %v5990
        %v6047 = vadd.f32 %v5935, %v5991
        %v6048 = vadd.f32 %v5936, %v5992
        %v6049 = vadd.f32 %v5937, %v5993
        %v6050 = vadd.f32 %v5938, %v5994
        %v6051 = vadd.f32 %v5939, %v5995
        %v6052 = vadd.f32 %v5940, %v5996
        %v6053 = vadd.f32 %v5941, %v5997
        %v6054 = vadd.f32 %v5942, %v5998
        %v6055 = vadd.f32 %v5943, %v5999
        %v6056 = vadd.f32 %v5944, %v6000
        %v6057 = vadd.f32 %v5945, %v6001
        %v6058 = vadd.f32 %v5946, %v6002
        %v6059 = vadd.f32 %v5947, %v6003
        %v6060 = vadd.f32 %v5948, %v6004
        %v6061 = vadd.f32 %v5949, %v6005
        %v6062 = vadd.f32 %v5950, %v6006
        %v6063 = vadd.f32 %v5951, %v6007
        %v6064 = vadd.f32 %v5952, %v6008
        %v6065 = vadd.f32 %v5953, %v6009
        %v6066 = vadd.f32 %v5954, %v6010
        %v6067 = vadd.f32 %v5955, %v6011
        %v6068 = vadd.f32 %v5956, %v6012
        %v6069 = vadd.f32 %v5957, %v6013
        %v6070 = vadd.f32 %v5958, %v6014
        %v6071 = vadd.f32 %v5959, %v6015
        %v6072 = vadd.f32 %v5960, %v6016
        %v6073 = vadd.f32 %v5961, %v6017
        %v6074 = vadd.f32 %v5962, %v6018
        %v6075 = vadd.f32 %v5963, %v6019
        %v6076 = vadd.f32 %v5964, %v6020
        %v6077 = vadd.f32 %v5965, %v6021
        %v6078 = vadd.f32 %v5966, %v6022
        %v6079 = vadd.f32 %v5967, %v6023
        %v6080 = vadd.f32 %v5968, %v6024
        %v6081 = vadd.f32 %v5969, %v6025
        %v6082 = vadd.f32 %v5970, %v6026
        %v6083 = vadd.f32 %v5971, %v6027
        %v6084 = vadd.f32 %v5972, %v6028
        %v6085 = vadd.f32 %v5973, %v6029
        %v6086 = vadd.f32 %v5974, %v6030
        %v6087 = vadd.f32 %v5975, %v6031
        %v6088 = vadd.f32 %v5976, %v6032
        %v6089 = vadd.f32 %v5977, %v6033
        %v6090 = vadd.f32 %v5978, %v6034
        %v6091 = vadd.f32 %v5979, %v6035
        %v6092 = vadd.f32 %v5980, %v6036
        %v6093 = vadd.f32 %v5981, %v6037
        %6095 = vset.pattern.permute.xlu0 0
        %6096 = vperm.xlu0 %6095, %v4622
        %v6097 = vpop.permute.xlu0 %6096
        %6100 = vset.pattern.permute.xlu0 0
        %6101 = vperm.xlu0 %6100, %v4623
        %v6102 = vpop.permute.xlu0 %6101
        %6105 = vset.pattern.permute.xlu0 0
        %6106 = vperm.xlu0 %6105, %v4624
        %v6107 = vpop.permute.xlu0 %6106
        %6110 = vset.pattern.permute.xlu0 0
        %6111 = vperm.xlu0 %6110, %v4625
        %v6112 = vpop.permute.xlu0 %6111
        %6115 = vset.pattern.permute.xlu0 0
        %6116 = vperm.xlu0 %6115, %v4626
        %v6117 = vpop.permute.xlu0 %6116
        %6120 = vset.pattern.permute.xlu0 0
        %6121 = vperm.xlu0 %6120, %v4627
        %v6122 = vpop.permute.xlu0 %6121
        %6125 = vset.pattern.permute.xlu0 0
        %6126 = vperm.xlu0 %6125, %v4628
        %v6127 = vpop.permute.xlu0 %6126
        %6130 = vset.pattern.permute.xlu0 0
        %6131 = vperm.xlu0 %6130, %v4629
        %v6132 = vpop.permute.xlu0 %6131
        %6135 = vset.pattern.permute.xlu0 0
        %6136 = vperm.xlu0 %6135, %v4630
        %v6137 = vpop.permute.xlu0 %6136
        %6140 = vset.pattern.permute.xlu0 0
        %6141 = vperm.xlu0 %6140, %v4631
        %v6142 = vpop.permute.xlu0 %6141
        %6145 = vset.pattern.permute.xlu0 0
        %6146 = vperm.xlu0 %6145, %v4632
        %v6147 = vpop.permute.xlu0 %6146
        %6150 = vset.pattern.permute.xlu0 0
        %6151 = vperm.xlu0 %6150, %v4633
        %v6152 = vpop.permute.xlu0 %6151
        %6155 = vset.pattern.permute.xlu0 0
        %6156 = vperm.xlu0 %6155, %v4634
        %v6157 = vpop.permute.xlu0 %6156
        %6160 = vset.pattern.permute.xlu0 0
        %6161 = vperm.xlu0 %6160, %v4635
        %v6162 = vpop.permute.xlu0 %6161
        %6165 = vset.pattern.permute.xlu0 0
        %6166 = vperm.xlu0 %6165, %v4636
        %v6167 = vpop.permute.xlu0 %6166
        %6170 = vset.pattern.permute.xlu0 0
        %6171 = vperm.xlu0 %6170, %v4637
        %v6172 = vpop.permute.xlu0 %6171
        %6175 = vset.pattern.permute.xlu0 0
        %6176 = vperm.xlu0 %6175, %v4638
        %v6177 = vpop.permute.xlu0 %6176
        %6180 = vset.pattern.permute.xlu0 0
        %6181 = vperm.xlu0 %6180, %v4639
        %v6182 = vpop.permute.xlu0 %6181
        %6185 = vset.pattern.permute.xlu0 0
        %6186 = vperm.xlu0 %6185, %v4640
        %v6187 = vpop.permute.xlu0 %6186
        %6190 = vset.pattern.permute.xlu0 0
        %6191 = vperm.xlu0 %6190, %v4641
        %v6192 = vpop.permute.xlu0 %6191
        %6195 = vset.pattern.permute.xlu0 0
        %6196 = vperm.xlu0 %6195, %v4642
        %v6197 = vpop.permute.xlu0 %6196
        %6200 = vset.pattern.permute.xlu0 0
        %6201 = vperm.xlu0 %6200, %v4643
        %v6202 = vpop.permute.xlu0 %6201
        %6205 = vset.pattern.permute.xlu0 0
        %6206 = vperm.xlu0 %6205, %v4644
        %v6207 = vpop.permute.xlu0 %6206
        %6210 = vset.pattern.permute.xlu0 0
        %6211 = vperm.xlu0 %6210, %v4645
        %v6212 = vpop.permute.xlu0 %6211
        %6215 = vset.pattern.permute.xlu0 0
        %6216 = vperm.xlu0 %6215, %v4646
        %v6217 = vpop.permute.xlu0 %6216
        %6220 = vset.pattern.permute.xlu0 0
        %6221 = vperm.xlu0 %6220, %v4647
        %v6222 = vpop.permute.xlu0 %6221
        %6225 = vset.pattern.permute.xlu0 0
        %6226 = vperm.xlu0 %6225, %v4648
        %v6227 = vpop.permute.xlu0 %6226
        %6230 = vset.pattern.permute.xlu0 0
        %6231 = vperm.xlu0 %6230, %v4649
        %v6232 = vpop.permute.xlu0 %6231
        %6235 = vset.pattern.permute.xlu0 0
        %6236 = vperm.xlu0 %6235, %v4650
        %v6237 = vpop.permute.xlu0 %6236
        %6240 = vset.pattern.permute.xlu0 0
        %6241 = vperm.xlu0 %6240, %v4651
        %v6242 = vpop.permute.xlu0 %6241
        %6245 = vset.pattern.permute.xlu0 0
        %6246 = vperm.xlu0 %6245, %v4652
        %v6247 = vpop.permute.xlu0 %6246
        %6250 = vset.pattern.permute.xlu0 0
        %6251 = vperm.xlu0 %6250, %v4653
        %v6252 = vpop.permute.xlu0 %6251
        %6255 = vset.pattern.permute.xlu0 0
        %6256 = vperm.xlu0 %6255, %v4654
        %v6257 = vpop.permute.xlu0 %6256
        %6260 = vset.pattern.permute.xlu0 0
        %6261 = vperm.xlu0 %6260, %v4655
        %v6262 = vpop.permute.xlu0 %6261
        %6265 = vset.pattern.permute.xlu0 0
        %6266 = vperm.xlu0 %6265, %v4656
        %v6267 = vpop.permute.xlu0 %6266
        %6270 = vset.pattern.permute.xlu0 0
        %6271 = vperm.xlu0 %6270, %v4657
        %v6272 = vpop.permute.xlu0 %6271
        %6275 = vset.pattern.permute.xlu0 0
        %6276 = vperm.xlu0 %6275, %v4658
        %v6277 = vpop.permute.xlu0 %6276
        %6280 = vset.pattern.permute.xlu0 0
        %6281 = vperm.xlu0 %6280, %v4659
        %v6282 = vpop.permute.xlu0 %6281
        %6285 = vset.pattern.permute.xlu0 0
        %6286 = vperm.xlu0 %6285, %v4660
        %v6287 = vpop.permute.xlu0 %6286
        %6290 = vset.pattern.permute.xlu0 0
        %6291 = vperm.xlu0 %6290, %v4661
        %v6292 = vpop.permute.xlu0 %6291
        %6295 = vset.pattern.permute.xlu0 0
        %6296 = vperm.xlu0 %6295, %v4662
        %v6297 = vpop.permute.xlu0 %6296
        %6300 = vset.pattern.permute.xlu0 0
        %6301 = vperm.xlu0 %6300, %v4663
        %v6302 = vpop.permute.xlu0 %6301
        %6305 = vset.pattern.permute.xlu0 0
        %6306 = vperm.xlu0 %6305, %v4664
        %v6307 = vpop.permute.xlu0 %6306
        %6310 = vset.pattern.permute.xlu0 0
        %6311 = vperm.xlu0 %6310, %v4665
        %v6312 = vpop.permute.xlu0 %6311
        %6315 = vset.pattern.permute.xlu0 0
        %6316 = vperm.xlu0 %6315, %v4666
        %v6317 = vpop.permute.xlu0 %6316
        %6320 = vset.pattern.permute.xlu0 0
        %6321 = vperm.xlu0 %6320, %v4667
        %v6322 = vpop.permute.xlu0 %6321
        %6325 = vset.pattern.permute.xlu0 0
        %6326 = vperm.xlu0 %6325, %v4668
        %v6327 = vpop.permute.xlu0 %6326
        %6330 = vset.pattern.permute.xlu0 0
        %6331 = vperm.xlu0 %6330, %v4669
        %v6332 = vpop.permute.xlu0 %6331
        %6335 = vset.pattern.permute.xlu0 0
        %6336 = vperm.xlu0 %6335, %v4670
        %v6337 = vpop.permute.xlu0 %6336
        %6340 = vset.pattern.permute.xlu0 0
        %6341 = vperm.xlu0 %6340, %v4671
        %v6342 = vpop.permute.xlu0 %6341
        %6345 = vset.pattern.permute.xlu0 0
        %6346 = vperm.xlu0 %6345, %v4672
        %v6347 = vpop.permute.xlu0 %6346
        %6350 = vset.pattern.permute.xlu0 0
        %6351 = vperm.xlu0 %6350, %v4673
        %v6352 = vpop.permute.xlu0 %6351
        %6355 = vset.pattern.permute.xlu0 0
        %6356 = vperm.xlu0 %6355, %v4674
        %v6357 = vpop.permute.xlu0 %6356
        %6360 = vset.pattern.permute.xlu0 0
        %6361 = vperm.xlu0 %6360, %v4675
        %v6362 = vpop.permute.xlu0 %6361
        %6365 = vset.pattern.permute.xlu0 0
        %6366 = vperm.xlu0 %6365, %v4676
        %v6367 = vpop.permute.xlu0 %6366
        %6370 = vset.pattern.permute.xlu0 0
        %6371 = vperm.xlu0 %6370, %v4677
        %v6372 = vpop.permute.xlu0 %6371
        %v6374 = vmul.f32 %v6097, %v5757
        %v6375 = vmul.f32 %v6102, %v5757
        %v6376 = vmul.f32 %v6107, %v5757
        %v6377 = vmul.f32 %v6112, %v5757
        %v6378 = vmul.f32 %v6117, %v5757
        %v6379 = vmul.f32 %v6122, %v5757
        %v6380 = vmul.f32 %v6127, %v5757
        %v6381 = vmul.f32 %v6132, %v5757
        %v6382 = vmul.f32 %v6137, %v5757
        %v6383 = vmul.f32 %v6142, %v5757
        %v6384 = vmul.f32 %v6147, %v5757
        %v6385 = vmul.f32 %v6152, %v5757
        %v6386 = vmul.f32 %v6157, %v5757
        %v6387 = vmul.f32 %v6162, %v5757
        %v6388 = vmul.f32 %v6167, %v5757
        %v6389 = vmul.f32 %v6172, %v5757
        %v6390 = vmul.f32 %v6177, %v5757
        %v6391 = vmul.f32 %v6182, %v5757
        %v6392 = vmul.f32 %v6187, %v5757
        %v6393 = vmul.f32 %v6192, %v5757
        %v6394 = vmul.f32 %v6197, %v5757
        %v6395 = vmul.f32 %v6202, %v5757
        %v6396 = vmul.f32 %v6207, %v5757
        %v6397 = vmul.f32 %v6212, %v5757
        %v6398 = vmul.f32 %v6217, %v5757
        %v6399 = vmul.f32 %v6222, %v5757
        %v6400 = vmul.f32 %v6227, %v5757
        %v6401 = vmul.f32 %v6232, %v5757
        %v6402 = vmul.f32 %v6237, %v5757
        %v6403 = vmul.f32 %v6242, %v5757
        %v6404 = vmul.f32 %v6247, %v5757
        %v6405 = vmul.f32 %v6252, %v5757
        %v6406 = vmul.f32 %v6257, %v5757
        %v6407 = vmul.f32 %v6262, %v5757
        %v6408 = vmul.f32 %v6267, %v5757
        %v6409 = vmul.f32 %v6272, %v5757
        %v6410 = vmul.f32 %v6277, %v5757
        %v6411 = vmul.f32 %v6282, %v5757
        %v6412 = vmul.f32 %v6287, %v5757
        %v6413 = vmul.f32 %v6292, %v5757
        %v6414 = vmul.f32 %v6297, %v5757
        %v6415 = vmul.f32 %v6302, %v5757
        %v6416 = vmul.f32 %v6307, %v5757
        %v6417 = vmul.f32 %v6312, %v5757
        %v6418 = vmul.f32 %v6317, %v5757
        %v6419 = vmul.f32 %v6322, %v5757
        %v6420 = vmul.f32 %v6327, %v5757
        %v6421 = vmul.f32 %v6332, %v5757
        %v6422 = vmul.f32 %v6337, %v5757
        %v6423 = vmul.f32 %v6342, %v5757
        %v6424 = vmul.f32 %v6347, %v5757
        %v6425 = vmul.f32 %v6352, %v5757
        %v6426 = vmul.f32 %v6357, %v5757
        %v6427 = vmul.f32 %v6362, %v5757
        %v6428 = vmul.f32 %v6367, %v5757
        %v6429 = vmul.f32 %v6372, %v5757
        %v6430 = vadd.f32 %v6038, %v6374
        %v6431 = vadd.f32 %v6039, %v6375
        %v6432 = vadd.f32 %v6040, %v6376
        %v6433 = vadd.f32 %v6041, %v6377
        %v6434 = vadd.f32 %v6042, %v6378
        %v6435 = vadd.f32 %v6043, %v6379
        %v6436 = vadd.f32 %v6044, %v6380
        %v6437 = vadd.f32 %v6045, %v6381
        %v6438 = vadd.f32 %v6046, %v6382
        %v6439 = vadd.f32 %v6047, %v6383
        %v6440 = vadd.f32 %v6048, %v6384
        %v6441 = vadd.f32 %v6049, %v6385
        %v6442 = vadd.f32 %v6050, %v6386
        %v6443 = vadd.f32 %v6051, %v6387
        %v6444 = vadd.f32 %v6052, %v6388
        %v6445 = vadd.f32 %v6053, %v6389
        %v6446 = vadd.f32 %v6054, %v6390
        %v6447 = vadd.f32 %v6055, %v6391
        %v6448 = vadd.f32 %v6056, %v6392
        %v6449 = vadd.f32 %v6057, %v6393
        %v6450 = vadd.f32 %v6058, %v6394
        %v6451 = vadd.f32 %v6059, %v6395
        %v6452 = vadd.f32 %v6060, %v6396
        %v6453 = vadd.f32 %v6061, %v6397
        %v6454 = vadd.f32 %v6062, %v6398
        %v6455 = vadd.f32 %v6063, %v6399
        %v6456 = vadd.f32 %v6064, %v6400
        %v6457 = vadd.f32 %v6065, %v6401
        %v6458 = vadd.f32 %v6066, %v6402
        %v6459 = vadd.f32 %v6067, %v6403
        %v6460 = vadd.f32 %v6068, %v6404
        %v6461 = vadd.f32 %v6069, %v6405
        %v6462 = vadd.f32 %v6070, %v6406
        %v6463 = vadd.f32 %v6071, %v6407
        %v6464 = vadd.f32 %v6072, %v6408
        %v6465 = vadd.f32 %v6073, %v6409
        %v6466 = vadd.f32 %v6074, %v6410
        %v6467 = vadd.f32 %v6075, %v6411
        %v6468 = vadd.f32 %v6076, %v6412
        %v6469 = vadd.f32 %v6077, %v6413
        %v6470 = vadd.f32 %v6078, %v6414
        %v6471 = vadd.f32 %v6079, %v6415
        %v6472 = vadd.f32 %v6080, %v6416
        %v6473 = vadd.f32 %v6081, %v6417
        %v6474 = vadd.f32 %v6082, %v6418
        %v6475 = vadd.f32 %v6083, %v6419
        %v6476 = vadd.f32 %v6084, %v6420
        %v6477 = vadd.f32 %v6085, %v6421
        %v6478 = vadd.f32 %v6086, %v6422
        %v6479 = vadd.f32 %v6087, %v6423
        %v6480 = vadd.f32 %v6088, %v6424
        %v6481 = vadd.f32 %v6089, %v6425
        %v6482 = vadd.f32 %v6090, %v6426
        %v6483 = vadd.f32 %v6091, %v6427
        %v6484 = vadd.f32 %v6092, %v6428
        %v6485 = vadd.f32 %v6093, %v6429
        %v6486 = vld [vmem:[%s3] sm:$0x1]
        %v6488 = vlaneseq
        %v6489 = vshrl.u32 %v6488, 7
        %v6490 = vsub.s32 0, %v6489
        %v6491 = vrot.slane %v6486, %v6490
        %v6493 = vadd.f32 %v5814, %v6491
        %v6494 = vadd.f32 %v5815, %v6491
        %v6495 = vadd.f32 %v5816, %v6491
        %v6496 = vadd.f32 %v5817, %v6491
        %v6497 = vadd.f32 %v5818, %v6491
        %v6498 = vadd.f32 %v5819, %v6491
        %v6499 = vadd.f32 %v5820, %v6491
        %v6500 = vadd.f32 %v5821, %v6491
        %v6501 = vadd.f32 %v5822, %v6491
        %v6502 = vadd.f32 %v5823, %v6491
        %v6503 = vadd.f32 %v5824, %v6491
        %v6504 = vadd.f32 %v5825, %v6491
        %v6505 = vadd.f32 %v5826, %v6491
        %v6506 = vadd.f32 %v5827, %v6491
        %v6507 = vadd.f32 %v5828, %v6491
        %v6508 = vadd.f32 %v5829, %v6491
        %v6509 = vadd.f32 %v5830, %v6491
        %v6510 = vadd.f32 %v5831, %v6491
        %v6511 = vadd.f32 %v5832, %v6491
        %v6512 = vadd.f32 %v5833, %v6491
        %v6513 = vadd.f32 %v5834, %v6491
        %v6514 = vadd.f32 %v5835, %v6491
        %v6515 = vadd.f32 %v5836, %v6491
        %v6516 = vadd.f32 %v5837, %v6491
        %v6517 = vadd.f32 %v5838, %v6491
        %v6518 = vadd.f32 %v5839, %v6491
        %v6519 = vadd.f32 %v5840, %v6491
        %v6520 = vadd.f32 %v5841, %v6491
        %v6521 = vadd.f32 %v5842, %v6491
        %v6522 = vadd.f32 %v5843, %v6491
        %v6523 = vadd.f32 %v5844, %v6491
        %v6524 = vadd.f32 %v5845, %v6491
        %v6525 = vadd.f32 %v5846, %v6491
        %v6526 = vadd.f32 %v5847, %v6491
        %v6527 = vadd.f32 %v5848, %v6491
        %v6528 = vadd.f32 %v5849, %v6491
        %v6529 = vadd.f32 %v5850, %v6491
        %v6530 = vadd.f32 %v5851, %v6491
        %v6531 = vadd.f32 %v5852, %v6491
        %v6532 = vadd.f32 %v5853, %v6491
        %v6533 = vadd.f32 %v5854, %v6491
        %v6534 = vadd.f32 %v5855, %v6491
        %v6535 = vadd.f32 %v5856, %v6491
        %v6536 = vadd.f32 %v5857, %v6491
        %v6537 = vadd.f32 %v5858, %v6491
        %v6538 = vadd.f32 %v5859, %v6491
        %v6539 = vadd.f32 %v5860, %v6491
        %v6540 = vadd.f32 %v5861, %v6491
        %v6541 = vadd.f32 %v5862, %v6491
        %v6542 = vadd.f32 %v5863, %v6491
        %v6543 = vadd.f32 %v5864, %v6491
        %v6544 = vadd.f32 %v5865, %v6491
        %v6545 = vadd.f32 %v5866, %v6491
        %v6546 = vadd.f32 %v5867, %v6491
        %v6547 = vadd.f32 %v5868, %v6491
        %v6548 = vadd.f32 %v5869, %v6491
        %v6549 = vmax.f32 %v6493, 0.0
        %v6550 = vmax.f32 %v6494, 0.0
        %v6551 = vmax.f32 %v6495, 0.0
        %v6552 = vmax.f32 %v6496, 0.0
        %v6553 = vmax.f32 %v6497, 0.0
        %v6554 = vmax.f32 %v6498, 0.0
        %v6555 = vmax.f32 %v6499, 0.0
        %v6556 = vmax.f32 %v6500, 0.0
        %v6557 = vmax.f32 %v6501, 0.0
        %v6558 = vmax.f32 %v6502, 0.0
        %v6559 = vmax.f32 %v6503, 0.0
        %v6560 = vmax.f32 %v6504, 0.0
        %v6561 = vmax.f32 %v6505, 0.0
        %v6562 = vmax.f32 %v6506, 0.0
        %v6563 = vmax.f32 %v6507, 0.0
        %v6564 = vmax.f32 %v6508, 0.0
        %v6565 = vmax.f32 %v6509, 0.0
        %v6566 = vmax.f32 %v6510, 0.0
        %v6567 = vmax.f32 %v6511, 0.0
        %v6568 = vmax.f32 %v6512, 0.0
        %v6569 = vmax.f32 %v6513, 0.0
        %v6570 = vmax.f32 %v6514, 0.0
        %v6571 = vmax.f32 %v6515, 0.0
        %v6572 = vmax.f32 %v6516, 0.0
        %v6573 = vmax.f32 %v6517, 0.0
        %v6574 = vmax.f32 %v6518, 0.0
        %v6575 = vmax.f32 %v6519, 0.0
        %v6576 = vmax.f32 %v6520, 0.0
        %v6577 = vmax.f32 %v6521, 0.0
        %v6578 = vmax.f32 %v6522, 0.0
        %v6579 = vmax.f32 %v6523, 0.0
        %v6580 = vmax.f32 %v6524, 0.0
        %v6581 = vmax.f32 %v6525, 0.0
        %v6582 = vmax.f32 %v6526, 0.0
        %v6583 = vmax.f32 %v6527, 0.0
        %v6584 = vmax.f32 %v6528, 0.0
        %v6585 = vmax.f32 %v6529, 0.0
        %v6586 = vmax.f32 %v6530, 0.0
        %v6587 = vmax.f32 %v6531, 0.0
        %v6588 = vmax.f32 %v6532, 0.0
        %v6589 = vmax.f32 %v6533, 0.0
        %v6590 = vmax.f32 %v6534, 0.0
        %v6591 = vmax.f32 %v6535, 0.0
        %v6592 = vmax.f32 %v6536, 0.0
        %v6593 = vmax.f32 %v6537, 0.0
        %v6594 = vmax.f32 %v6538, 0.0
        %v6595 = vmax.f32 %v6539, 0.0
        %v6596 = vmax.f32 %v6540, 0.0
        %v6597 = vmax.f32 %v6541, 0.0
        %v6598 = vmax.f32 %v6542, 0.0
        %v6599 = vmax.f32 %v6543, 0.0
        %v6600 = vmax.f32 %v6544, 0.0
        %v6601 = vmax.f32 %v6545, 0.0
        %v6602 = vmax.f32 %v6546, 0.0
        %v6603 = vmax.f32 %v6547, 0.0
        %v6604 = vmax.f32 %v6548, 0.0
        %v6605 = vadd.f32 %v6430, %v6491
        %v6606 = vadd.f32 %v6431, %v6491
        %v6607 = vadd.f32 %v6432, %v6491
        %v6608 = vadd.f32 %v6433, %v6491
        %v6609 = vadd.f32 %v6434, %v6491
        %v6610 = vadd.f32 %v6435, %v6491
        %v6611 = vadd.f32 %v6436, %v6491
        %v6612 = vadd.f32 %v6437, %v6491
        %v6613 = vadd.f32 %v6438, %v6491
        %v6614 = vadd.f32 %v6439, %v6491
        %v6615 = vadd.f32 %v6440, %v6491
        %v6616 = vadd.f32 %v6441, %v6491
        %v6617 = vadd.f32 %v6442, %v6491
        %v6618 = vadd.f32 %v6443, %v6491
        %v6619 = vadd.f32 %v6444, %v6491
        %v6620 = vadd.f32 %v6445, %v6491
        %v6621 = vadd.f32 %v6446, %v6491
        %v6622 = vadd.f32 %v6447, %v6491
        %v6623 = vadd.f32 %v6448, %v6491
        %v6624 = vadd.f32 %v6449, %v6491
        %v6625 = vadd.f32 %v6450, %v6491
        %v6626 = vadd.f32 %v6451, %v6491
        %v6627 = vadd.f32 %v6452, %v6491
        %v6628 = vadd.f32 %v6453, %v6491
        %v6629 = vadd.f32 %v6454, %v6491
        %v6630 = vadd.f32 %v6455, %v6491
        %v6631 = vadd.f32 %v6456, %v6491
        %v6632 = vadd.f32 %v6457, %v6491
        %v6633 = vadd.f32 %v6458, %v6491
        %v6634 = vadd.f32 %v6459, %v6491
        %v6635 = vadd.f32 %v6460, %v6491
        %v6636 = vadd.f32 %v6461, %v6491
        %v6637 = vadd.f32 %v6462, %v6491
        %v6638 = vadd.f32 %v6463, %v6491
        %v6639 = vadd.f32 %v6464, %v6491
        %v6640 = vadd.f32 %v6465, %v6491
        %v6641 = vadd.f32 %v6466, %v6491
        %v6642 = vadd.f32 %v6467, %v6491
        %v6643 = vadd.f32 %v6468, %v6491
        %v6644 = vadd.f32 %v6469, %v6491
        %v6645 = vadd.f32 %v6470, %v6491
        %v6646 = vadd.f32 %v6471, %v6491
        %v6647 = vadd.f32 %v6472, %v6491
        %v6648 = vadd.f32 %v6473, %v6491
        %v6649 = vadd.f32 %v6474, %v6491
        %v6650 = vadd.f32 %v6475, %v6491
        %v6651 = vadd.f32 %v6476, %v6491
        %v6652 = vadd.f32 %v6477, %v6491
        %v6653 = vadd.f32 %v6478, %v6491
        %v6654 = vadd.f32 %v6479, %v6491
        %v6655 = vadd.f32 %v6480, %v6491
        %v6656 = vadd.f32 %v6481, %v6491
        %v6657 = vadd.f32 %v6482, %v6491
        %v6658 = vadd.f32 %v6483, %v6491
        %v6659 = vadd.f32 %v6484, %v6491
        %v6660 = vadd.f32 %v6485, %v6491
        %v6661 = vmax.f32 %v6605, 0.0
        %v6662 = vmax.f32 %v6606, 0.0
        %v6663 = vmax.f32 %v6607, 0.0
        %v6664 = vmax.f32 %v6608, 0.0
        %v6665 = vmax.f32 %v6609, 0.0
        %v6666 = vmax.f32 %v6610, 0.0
        %v6667 = vmax.f32 %v6611, 0.0
        %v6668 = vmax.f32 %v6612, 0.0
        %v6669 = vmax.f32 %v6613, 0.0
        %v6670 = vmax.f32 %v6614, 0.0
        %v6671 = vmax.f32 %v6615, 0.0
        %v6672 = vmax.f32 %v6616, 0.0
        %v6673 = vmax.f32 %v6617, 0.0
        %v6674 = vmax.f32 %v6618, 0.0
        %v6675 = vmax.f32 %v6619, 0.0
        %v6676 = vmax.f32 %v6620, 0.0
        %v6677 = vmax.f32 %v6621, 0.0
        %v6678 = vmax.f32 %v6622, 0.0
        %v6679 = vmax.f32 %v6623, 0.0
        %v6680 = vmax.f32 %v6624, 0.0
        %v6681 = vmax.f32 %v6625, 0.0
        %v6682 = vmax.f32 %v6626, 0.0
        %v6683 = vmax.f32 %v6627, 0.0
        %v6684 = vmax.f32 %v6628, 0.0
        %v6685 = vmax.f32 %v6629, 0.0
        %v6686 = vmax.f32 %v6630, 0.0
        %v6687 = vmax.f32 %v6631, 0.0
        %v6688 = vmax.f32 %v6632, 0.0
        %v6689 = vmax.f32 %v6633, 0.0
        %v6690 = vmax.f32 %v6634, 0.0
        %v6691 = vmax.f32 %v6635, 0.0
        %v6692 = vmax.f32 %v6636, 0.0
        %v6693 = vmax.f32 %v6637, 0.0
        %v6694 = vmax.f32 %v6638, 0.0
        %v6695 = vmax.f32 %v6639, 0.0
        %v6696 = vmax.f32 %v6640, 0.0
        %v6697 = vmax.f32 %v6641, 0.0
        %v6698 = vmax.f32 %v6642, 0.0
        %v6699 = vmax.f32 %v6643, 0.0
        %v6700 = vmax.f32 %v6644, 0.0
        %v6701 = vmax.f32 %v6645, 0.0
        %v6702 = vmax.f32 %v6646, 0.0
        %v6703 = vmax.f32 %v6647, 0.0
        %v6704 = vmax.f32 %v6648, 0.0
        %v6705 = vmax.f32 %v6649, 0.0
        %v6706 = vmax.f32 %v6650, 0.0
        %v6707 = vmax.f32 %v6651, 0.0
        %v6708 = vmax.f32 %v6652, 0.0
        %v6709 = vmax.f32 %v6653, 0.0
        %v6710 = vmax.f32 %v6654, 0.0
        %v6711 = vmax.f32 %v6655, 0.0
        %v6712 = vmax.f32 %v6656, 0.0
        %v6713 = vmax.f32 %v6657, 0.0
        %v6714 = vmax.f32 %v6658, 0.0
        %v6715 = vmax.f32 %v6659, 0.0
        %v6716 = vmax.f32 %v6660, 0.0
        %v6717 = vmax.f32 %v6549, %v6661
        %v6718 = vmax.f32 %v6550, %v6662
        %v6719 = vmax.f32 %v6551, %v6663
        %v6720 = vmax.f32 %v6552, %v6664
        %v6721 = vmax.f32 %v6553, %v6665
        %v6722 = vmax.f32 %v6554, %v6666
        %v6723 = vmax.f32 %v6555, %v6667
        %v6724 = vmax.f32 %v6556, %v6668
        %v6725 = vmax.f32 %v6557, %v6669
        %v6726 = vmax.f32 %v6558, %v6670
        %v6727 = vmax.f32 %v6559, %v6671
        %v6728 = vmax.f32 %v6560, %v6672
        %v6729 = vmax.f32 %v6561, %v6673
        %v6730 = vmax.f32 %v6562, %v6674
        %v6731 = vmax.f32 %v6563, %v6675
        %v6732 = vmax.f32 %v6564, %v6676
        %v6733 = vmax.f32 %v6565, %v6677
        %v6734 = vmax.f32 %v6566, %v6678
        %v6735 = vmax.f32 %v6567, %v6679
        %v6736 = vmax.f32 %v6568, %v6680
        %v6737 = vmax.f32 %v6569, %v6681
        %v6738 = vmax.f32 %v6570, %v6682
        %v6739 = vmax.f32 %v6571, %v6683
        %v6740 = vmax.f32 %v6572, %v6684
        %v6741 = vmax.f32 %v6573, %v6685
        %v6742 = vmax.f32 %v6574, %v6686
        %v6743 = vmax.f32 %v6575, %v6687
        %v6744 = vmax.f32 %v6576, %v6688
        %v6745 = vmax.f32 %v6577, %v6689
        %v6746 = vmax.f32 %v6578, %v6690
        %v6747 = vmax.f32 %v6579, %v6691
        %v6748 = vmax.f32 %v6580, %v6692
        %v6749 = vmax.f32 %v6581, %v6693
        %v6750 = vmax.f32 %v6582, %v6694
        %v6751 = vmax.f32 %v6583, %v6695
        %v6752 = vmax.f32 %v6584, %v6696
        %v6753 = vmax.f32 %v6585, %v6697
        %v6754 = vmax.f32 %v6586, %v6698
        %v6755 = vmax.f32 %v6587, %v6699
        %v6756 = vmax.f32 %v6588, %v6700
        %v6757 = vmax.f32 %v6589, %v6701
        %v6758 = vmax.f32 %v6590, %v6702
        %v6759 = vmax.f32 %v6591, %v6703
        %v6760 = vmax.f32 %v6592, %v6704
        %v6761 = vmax.f32 %v6593, %v6705
        %v6762 = vmax.f32 %v6594, %v6706
        %v6763 = vmax.f32 %v6595, %v6707
        %v6764 = vmax.f32 %v6596, %v6708
        %v6765 = vmax.f32 %v6597, %v6709
        %v6766 = vmax.f32 %v6598, %v6710
        %v6767 = vmax.f32 %v6599, %v6711
        %v6768 = vmax.f32 %v6600, %v6712
        %v6769 = vmax.f32 %v6601, %v6713
        %v6770 = vmax.f32 %v6602, %v6714
        %v6771 = vmax.f32 %v6603, %v6715
        %v6772 = vmax.f32 %v6604, %v6716
        %vm6773 = vcmask 64512
        %v6774 = vsel %vm6773, %v6717, -inf
        %v6775 = vsel %vm6773, %v6719, -inf
        %v6776 = vmax.f32 %v6774, %v6775
        %v6777 = vsel %vm6773, %v6718, -inf
        %v6778 = vsel %vm6773, %v6720, -inf
        %v6779 = vmax.f32 %v6777, %v6778
        %v6780 = vsel %vm6773, %v6721, -inf
        %v6781 = vsel %vm6773, %v6723, -inf
        %v6782 = vmax.f32 %v6780, %v6781
        %v6783 = vsel %vm6773, %v6722, -inf
        %v6784 = vsel %vm6773, %v6724, -inf
        %v6785 = vmax.f32 %v6783, %v6784
        %v6786 = vsel %vm6773, %v6725, -inf
        %v6787 = vsel %vm6773, %v6727, -inf
        %v6788 = vmax.f32 %v6786, %v6787
        %v6789 = vsel %vm6773, %v6726, -inf
        %v6790 = vsel %vm6773, %v6728, -inf
        %v6791 = vmax.f32 %v6789, %v6790
        %v6792 = vsel %vm6773, %v6729, -inf
        %v6793 = vsel %vm6773, %v6731, -inf
        %v6794 = vmax.f32 %v6792, %v6793
        %v6795 = vsel %vm6773, %v6730, -inf
        %v6796 = vsel %vm6773, %v6732, -inf
        %v6797 = vmax.f32 %v6795, %v6796
        %v6798 = vsel %vm6773, %v6733, -inf
        %v6799 = vsel %vm6773, %v6735, -inf
        %v6800 = vmax.f32 %v6798, %v6799
        %v6801 = vsel %vm6773, %v6734, -inf
        %v6802 = vsel %vm6773, %v6736, -inf
        %v6803 = vmax.f32 %v6801, %v6802
        %v6804 = vsel %vm6773, %v6737, -inf
        %v6805 = vsel %vm6773, %v6739, -inf
        %v6806 = vmax.f32 %v6804, %v6805
        %v6807 = vsel %vm6773, %v6738, -inf
        %v6808 = vsel %vm6773, %v6740, -inf
        %v6809 = vmax.f32 %v6807, %v6808
        %v6810 = vsel %vm6773, %v6741, -inf
        %v6811 = vsel %vm6773, %v6743, -inf
        %v6812 = vmax.f32 %v6810, %v6811
        %v6813 = vsel %vm6773, %v6742, -inf
        %v6814 = vsel %vm6773, %v6744, -inf
        %v6815 = vmax.f32 %v6813, %v6814
        %v6816 = vsel %vm6773, %v6745, -inf
        %v6817 = vsel %vm6773, %v6747, -inf
        %v6818 = vmax.f32 %v6816, %v6817
        %v6819 = vsel %vm6773, %v6746, -inf
        %v6820 = vsel %vm6773, %v6748, -inf
        %v6821 = vmax.f32 %v6819, %v6820
        %v6822 = vsel %vm6773, %v6749, -inf
        %v6823 = vsel %vm6773, %v6751, -inf
        %v6824 = vmax.f32 %v6822, %v6823
        %v6825 = vsel %vm6773, %v6750, -inf
        %v6826 = vsel %vm6773, %v6752, -inf
        %v6827 = vmax.f32 %v6825, %v6826
        %v6828 = vsel %vm6773, %v6753, -inf
        %v6829 = vsel %vm6773, %v6755, -inf
        %v6830 = vmax.f32 %v6828, %v6829
        %v6831 = vsel %vm6773, %v6754, -inf
        %v6832 = vsel %vm6773, %v6756, -inf
        %v6833 = vmax.f32 %v6831, %v6832
        %v6834 = vsel %vm6773, %v6757, -inf
        %v6835 = vsel %vm6773, %v6759, -inf
        %v6836 = vmax.f32 %v6834, %v6835
        %v6837 = vsel %vm6773, %v6758, -inf
        %v6838 = vsel %vm6773, %v6760, -inf
        %v6839 = vmax.f32 %v6837, %v6838
        %v6840 = vsel %vm6773, %v6761, -inf
        %v6841 = vsel %vm6773, %v6763, -inf
        %v6842 = vmax.f32 %v6840, %v6841
        %v6843 = vsel %vm6773, %v6762, -inf
        %v6844 = vsel %vm6773, %v6764, -inf
        %v6845 = vmax.f32 %v6843, %v6844
        %v6846 = vsel %vm6773, %v6765, -inf
        %v6847 = vsel %vm6773, %v6767, -inf
        %v6848 = vmax.f32 %v6846, %v6847
        %v6849 = vsel %vm6773, %v6766, -inf
        %v6850 = vsel %vm6773, %v6768, -inf
        %v6851 = vmax.f32 %v6849, %v6850
        %v6852 = vsel %vm6773, %v6769, -inf
        %v6853 = vsel %vm6773, %v6771, -inf
        %v6854 = vmax.f32 %v6852, %v6853
        %v6855 = vsel %vm6773, %v6770, -inf
        %v6856 = vsel %vm6773, %v6772, -inf
        %v6857 = vmax.f32 %v6855, %v6856
        %v6858 = vlaneseq
        %v6859 = vshrl.u32 %v6858, 7
        %v6860 = vadd.s32 %v6859, 8
        %vm6861 = vcmp.lt.s32.totalorder %v6859, 14
        %vm6862 = vcmp.lt.s32.totalorder %v6860, 14
        %v6863 = vsel %vm6861, %v6776, 0.0
        %v6864 = vsel %vm6862, %v6779, 0.0
        %v6865 = vsel %vm6861, %v6782, 0.0
        %v6866 = vsel %vm6862, %v6785, 0.0
        %v6867 = vsel %vm6861, %v6788, 0.0
        %v6868 = vsel %vm6862, %v6791, 0.0
        %v6869 = vsel %vm6861, %v6794, 0.0
        %v6870 = vsel %vm6862, %v6797, 0.0
        %v6871 = vsel %vm6861, %v6800, 0.0
        %v6872 = vsel %vm6862, %v6803, 0.0
        %v6873 = vsel %vm6861, %v6806, 0.0
        %v6874 = vsel %vm6862, %v6809, 0.0
        %v6875 = vsel %vm6861, %v6812, 0.0
        %v6876 = vsel %vm6862, %v6815, 0.0
        %v6877 = vsel %vm6861, %v6818, 0.0
        %v6878 = vsel %vm6862, %v6821, 0.0
        %v6879 = vsel %vm6861, %v6824, 0.0
        %v6880 = vsel %vm6862, %v6827, 0.0
        %v6881 = vsel %vm6861, %v6830, 0.0
        %v6882 = vsel %vm6862, %v6833, 0.0
        %v6883 = vsel %vm6861, %v6836, 0.0
        %v6884 = vsel %vm6862, %v6839, 0.0
        %v6885 = vsel %vm6861, %v6842, 0.0
        %v6886 = vsel %vm6862, %v6845, 0.0
        %v6887 = vsel %vm6861, %v6848, 0.0
        %v6888 = vsel %vm6862, %v6851, 0.0
        %v6889 = vsel %vm6861, %v6854, 0.0
        %v6890 = vsel %vm6862, %v6857, 0.0
        %6891 = vst.msk [vmem:[#allocation2] sm:$0xff] %vm6773, 0.0
        %6892 = vst.msk [vmem:[#allocation2 + $0x8] sm:$0xff] %vm6773, 0.0
        %6893 = vst.msk [vmem:[#allocation2 + $0x10] sm:$0xff] %vm6773, 0.0
        %6894 = vst.msk [vmem:[#allocation2 + $0x18] sm:$0xff] %vm6773, 0.0
        %6895 = vst.msk [vmem:[#allocation2 + $0x20] sm:$0xff] %vm6773, 0.0
        %6896 = vst.msk [vmem:[#allocation2 + $0x28] sm:$0xff] %vm6773, 0.0
        %6897 = vst.msk [vmem:[#allocation2 + $0x30] sm:$0xff] %vm6773, 0.0
        %6898 = vst.msk [vmem:[#allocation2 + $0x38] sm:$0xff] %vm6773, 0.0
        %6899 = vst.msk [vmem:[#allocation2 + $0x40] sm:$0xff] %vm6773, 0.0
        %6900 = vst.msk [vmem:[#allocation2 + $0x48] sm:$0xff] %vm6773, 0.0
        %6901 = vst.msk [vmem:[#allocation2 + $0x50] sm:$0xff] %vm6773, 0.0
        %6902 = vst.msk [vmem:[#allocation2 + $0x58] sm:$0xff] %vm6773, 0.0
        %6903 = vst.msk [vmem:[#allocation2 + $0x60] sm:$0xff] %vm6773, 0.0
        %6904 = vst.msk [vmem:[#allocation2 + $0x68] sm:$0xff] %vm6773, 0.0
        %6905 = vst.msk [vmem:[#allocation2 + $0x70] sm:$0xff] %vm6773, 0.0
        %6906 = vst.msk [vmem:[#allocation2 + $0x78] sm:$0xff] %vm6773, 0.0
        %6907 = vst.msk [vmem:[#allocation2 + $0x80] sm:$0xff] %vm6773, 0.0
        %6908 = vst.msk [vmem:[#allocation2 + $0x88] sm:$0xff] %vm6773, 0.0
        %6909 = vst.msk [vmem:[#allocation2 + $0x90] sm:$0xff] %vm6773, 0.0
        %6910 = vst.msk [vmem:[#allocation2 + $0x98] sm:$0xff] %vm6773, 0.0
        %6911 = vst.msk [vmem:[#allocation2 + $0xa0] sm:$0xff] %vm6773, 0.0
        %6912 = vst.msk [vmem:[#allocation2 + $0xa8] sm:$0xff] %vm6773, 0.0
        %6913 = vst.msk [vmem:[#allocation2 + $0xb0] sm:$0xff] %vm6773, 0.0
        %6914 = vst.msk [vmem:[#allocation2 + $0xb8] sm:$0xff] %vm6773, 0.0
        %6915 = vst.msk [vmem:[#allocation2 + $0xc0] sm:$0xff] %vm6773, 0.0
        %6916 = vst.msk [vmem:[#allocation2 + $0xc8] sm:$0xff] %vm6773, 0.0
        %6917 = vst.msk [vmem:[#allocation2 + $0xd0] sm:$0xff] %vm6773, 0.0
        %6918 = vst.msk [vmem:[#allocation2 + $0xd8] sm:$0xff] %vm6773, 0.0
        %6919 = vst.msk [vmem:[#allocation2 + $0xe0] sm:$0xff] %vm6773, 0.0
        %6920 = vst.msk [vmem:[#allocation2 + $0xe8] sm:$0xff] %vm6773, 0.0
        %6921 = vst.msk [vmem:[#allocation2 + $0xf0] sm:$0xff] %vm6773, 0.0
        %6922 = vst.msk [vmem:[#allocation2 + $0xf8] sm:$0xff] %vm6773, 0.0
        %6923 = vst.msk [vmem:[#allocation2 + $0x100] sm:$0xff] %vm6773, 0.0
        %6924 = vst.msk [vmem:[#allocation2 + $0x108] sm:$0xff] %vm6773, 0.0
        %6925 = vst.msk [vmem:[#allocation2 + $0x11] sm:$0xff] %vm6773, %v6863
        %6926 = vst.msk [vmem:[#allocation2 + $0x19] sm:$0xff] %vm6773, %v6864
        %6927 = vst.msk [vmem:[#allocation2 + $0x21] sm:$0xff] %vm6773, %v6865
        %6928 = vst.msk [vmem:[#allocation2 + $0x29] sm:$0xff] %vm6773, %v6866
        %6929 = vst.msk [vmem:[#allocation2 + $0x31] sm:$0xff] %vm6773, %v6867
        %6930 = vst.msk [vmem:[#allocation2 + $0x39] sm:$0xff] %vm6773, %v6868
        %6931 = vst.msk [vmem:[#allocation2 + $0x41] sm:$0xff] %vm6773, %v6869
        %6932 = vst.msk [vmem:[#allocation2 + $0x49] sm:$0xff] %vm6773, %v6870
        %6933 = vst.msk [vmem:[#allocation2 + $0x51] sm:$0xff] %vm6773, %v6871
        %6934 = vst.msk [vmem:[#allocation2 + $0x59] sm:$0xff] %vm6773, %v6872
        %6935 = vst.msk [vmem:[#allocation2 + $0x61] sm:$0xff] %vm6773, %v6873
        %6936 = vst.msk [vmem:[#allocation2 + $0x69] sm:$0xff] %vm6773, %v6874
        %6937 = vst.msk [vmem:[#allocation2 + $0x71] sm:$0xff] %vm6773, %v6875
        %6938 = vst.msk [vmem:[#allocation2 + $0x79] sm:$0xff] %vm6773, %v6876
        %6939 = vst.msk [vmem:[#allocation2 + $0x81] sm:$0xff] %vm6773, %v6877
        %6940 = vst.msk [vmem:[#allocation2 + $0x89] sm:$0xff] %vm6773, %v6878
        %6941 = vst.msk [vmem:[#allocation2 + $0x91] sm:$0xff] %vm6773, %v6879
        %6942 = vst.msk [vmem:[#allocation2 + $0x99] sm:$0xff] %vm6773, %v6880
        %6943 = vst.msk [vmem:[#allocation2 + $0xa1] sm:$0xff] %vm6773, %v6881
        %6944 = vst.msk [vmem:[#allocation2 + $0xa9] sm:$0xff] %vm6773, %v6882
        %6945 = vst.msk [vmem:[#allocation2 + $0xb1] sm:$0xff] %vm6773, %v6883
        %6946 = vst.msk [vmem:[#allocation2 + $0xb9] sm:$0xff] %vm6773, %v6884
        %6947 = vst.msk [vmem:[#allocation2 + $0xc1] sm:$0xff] %vm6773, %v6885
        %6948 = vst.msk [vmem:[#allocation2 + $0xc9] sm:$0xff] %vm6773, %v6886
        %6949 = vst.msk [vmem:[#allocation2 + $0xd1] sm:$0xff] %vm6773, %v6887
        %6950 = vst.msk [vmem:[#allocation2 + $0xd9] sm:$0xff] %vm6773, %v6888
        %6951 = vst.msk [vmem:[#allocation2 + $0xe1] sm:$0xff] %vm6773, %v6889
        %6952 = vst.msk [vmem:[#allocation2 + $0xe9] sm:$0xff] %vm6773, %v6890
        %v6953 = vld [vmem:[#allocation2] sm:$0xff]
        %v6954 = vld [vmem:[#allocation2 + $0x8] sm:$0xff]
        %v6955 = vld [vmem:[#allocation2 + $0x10] sm:$0xff]
        %v6956 = vld [vmem:[#allocation2 + $0x18] sm:$0xff]
        %v6957 = vld [vmem:[#allocation2 + $0x20] sm:$0xff]
        %v6958 = vld [vmem:[#allocation2 + $0x28] sm:$0xff]
        %v6959 = vld [vmem:[#allocation2 + $0x30] sm:$0xff]
        %v6960 = vld [vmem:[#allocation2 + $0x38] sm:$0xff]
        %v6961 = vld [vmem:[#allocation2 + $0x40] sm:$0xff]
        %v6962 = vld [vmem:[#allocation2 + $0x48] sm:$0xff]
        %v6963 = vld [vmem:[#allocation2 + $0x50] sm:$0xff]
        %v6964 = vld [vmem:[#allocation2 + $0x58] sm:$0xff]
        %v6965 = vld [vmem:[#allocation2 + $0x60] sm:$0xff]
        %v6966 = vld [vmem:[#allocation2 + $0x68] sm:$0xff]
        %v6967 = vld [vmem:[#allocation2 + $0x70] sm:$0xff]
        %v6968 = vld [vmem:[#allocation2 + $0x78] sm:$0xff]
        %v6969 = vld [vmem:[#allocation2 + $0x80] sm:$0xff]
        %v6970 = vld [vmem:[#allocation2 + $0x88] sm:$0xff]
        %v6971 = vld [vmem:[#allocation2 + $0x90] sm:$0xff]
        %v6972 = vld [vmem:[#allocation2 + $0x98] sm:$0xff]
        %v6973 = vld [vmem:[#allocation2 + $0xa0] sm:$0xff]
        %v6974 = vld [vmem:[#allocation2 + $0xa8] sm:$0xff]
        %v6975 = vld [vmem:[#allocation2 + $0xb0] sm:$0xff]
        %v6976 = vld [vmem:[#allocation2 + $0xb8] sm:$0xff]
        %v6977 = vld [vmem:[#allocation2 + $0xc0] sm:$0xff]
        %v6978 = vld [vmem:[#allocation2 + $0xc8] sm:$0xff]
        %v6979 = vld [vmem:[#allocation2 + $0xd0] sm:$0xff]
        %v6980 = vld [vmem:[#allocation2 + $0xd8] sm:$0xff]
        %v6981 = vld [vmem:[%s4] sm:$0xff]
        %v6982 = vld [vmem:[#allocation2 + $0x1] sm:$0xff]
        %v6983 = vld [vmem:[#allocation2 + $0x9] sm:$0xff]
        %v6984 = vld [vmem:[#allocation2 + $0x11] sm:$0xff]
        %v6985 = vld [vmem:[#allocation2 + $0x19] sm:$0xff]
        %v6986 = vld [vmem:[#allocation2 + $0x21] sm:$0xff]
        %v6987 = vld [vmem:[#allocation2 + $0x29] sm:$0xff]
        %v6988 = vld [vmem:[#allocation2 + $0x31] sm:$0xff]
        %v6989 = vld [vmem:[#allocation2 + $0x39] sm:$0xff]
        %v6990 = vld [vmem:[#allocation2 + $0x41] sm:$0xff]
        %v6991 = vld [vmem:[#allocation2 + $0x49] sm:$0xff]
        %v6992 = vld [vmem:[#allocation2 + $0x51] sm:$0xff]
        %v6993 = vld [vmem:[#allocation2 + $0x59] sm:$0xff]
        %v6994 = vld [vmem:[#allocation2 + $0x61] sm:$0xff]
        %v6995 = vld [vmem:[#allocation2 + $0x69] sm:$0xff]
        %v6996 = vld [vmem:[#allocation2 + $0x71] sm:$0xff]
        %v6997 = vld [vmem:[#allocation2 + $0x79] sm:$0xff]
        %v6998 = vld [vmem:[#allocation2 + $0x81] sm:$0xff]
        %v6999 = vld [vmem:[#allocation2 + $0x89] sm:$0xff]
        %v7000 = vld [vmem:[#allocation2 + $0x91] sm:$0xff]
        %v7001 = vld [vmem:[#allocation2 + $0x99] sm:$0xff]
        %v7002 = vld [vmem:[#allocation2 + $0xa1] sm:$0xff]
        %v7003 = vld [vmem:[#allocation2 + $0xa9] sm:$0xff]
        %v7004 = vld [vmem:[#allocation2 + $0xb1] sm:$0xff]
        %v7005 = vld [vmem:[#allocation2 + $0xb9] sm:$0xff]
        %v7006 = vld [vmem:[#allocation2 + $0xc1] sm:$0xff]
        %v7007 = vld [vmem:[#allocation2 + $0xc9] sm:$0xff]
        %v7008 = vld [vmem:[#allocation2 + $0xd1] sm:$0xff]
        %v7009 = vld [vmem:[#allocation2 + $0xd9] sm:$0xff]
        %s7010 = scalar_lea.vmem %s4, 8
        %v7011 = vld [vmem:[%s7010] sm:$0xff]
        %v7013 = vsel %vm6773, %v6982, 0
        %v7016 = vsel %vm6773, %v6983, 0
        %v7019 = vsel %vm6773, %v6984, 0
        %v7022 = vsel %vm6773, %v6985, 0
        %v7025 = vsel %vm6773, %v6986, 0
        %v7028 = vsel %vm6773, %v6987, 0
        %v7031 = vsel %vm6773, %v6988, 0
        %v7034 = vsel %vm6773, %v6989, 0
        %v7037 = vsel %vm6773, %v6990, 0
        %v7040 = vsel %vm6773, %v6991, 0
        %v7043 = vsel %vm6773, %v6992, 0
        %v7046 = vsel %vm6773, %v6993, 0
        %v7049 = vsel %vm6773, %v6994, 0
        %v7052 = vsel %vm6773, %v6995, 0
        %v7055 = vsel %vm6773, %v6996, 0
        %v7058 = vsel %vm6773, %v6997, 0
        %v7061 = vsel %vm6773, %v6998, 0
        %v7064 = vsel %vm6773, %v6999, 0
        %v7067 = vsel %vm6773, %v7000, 0
        %v7070 = vsel %vm6773, %v7001, 0
        %v7073 = vsel %vm6773, %v7002, 0
        %v7076 = vsel %vm6773, %v7003, 0
        %v7079 = vsel %vm6773, %v7004, 0
        %v7082 = vsel %vm6773, %v7005, 0
        %v7085 = vsel %vm6773, %v7006, 0
        %v7088 = vsel %vm6773, %v7007, 0
        %v7091 = vsel %vm6773, %v7008, 0
        %v7094 = vsel %vm6773, %v7009, 0
        %7096 = vmatprep.subr.mxu0 0.0
        %7097 = vmatpush1.msra.mxu0 0.0
        %7098 = vmatprep.subr.mxu0 0.0
        %7099 = vmatpush1.msra.mxu0 0.0
        %7100 = vmatprep.subr.mxu0 0.0
        %7101 = vmatpush1.msra.mxu0 0.0
        %7102 = vmatprep.subr.mxu0 0.0
        %7103 = vmatpush1.msra.mxu0 0.0
        %7104 = vmatprep.subr.mxu0 0.0
        %7105 = vmatpush1.msra.mxu0 0.0
        %7106 = vmatprep.subr.mxu0 0.0
        %7107 = vmatpush1.msra.mxu0 0.0
        %7108 = vmatprep.subr.mxu0 0.0
        %7109 = vmatpush1.msra.mxu0 0.0
        %7110 = vmatprep.subr.mxu0 0.0
        %7111 = vmatpush1.msra.mxu0 0.0
        %7112 = vmatprep.subr.mxu0 0.0
        %7113 = vmatpush1.msra.mxu0 0.0
        %7114 = vmatprep.subr.mxu0 0.0
        %7115 = vmatpush1.msra.mxu0 0.0
        %7116 = vmatprep.subr.mxu0 0.0
        %7117 = vmatpush1.msra.mxu0 0.0
        %7118 = vmatprep.subr.mxu0 0.0
        %7119 = vmatpush1.msra.mxu0 0.0
        %7120 = vmatprep.subr.mxu0 0.0
        %7121 = vmatpush1.msra.mxu0 0.0
        %7122 = vmatprep.subr.mxu0 0.0
        %7123 = vmatpush1.msra.mxu0 0.0
        %7124 = vmatprep.subr.mxu0 0.0
        %7125 = vmatpush1.msra.mxu0 0.0
        %7126 = vmatprep.subr.mxu0 0.0
        %7127 = vmatpush1.msra.mxu0 %v7011
        %7128 = vmatprep.subr.mxu0 0.0
        %7129 = vmatpush2.msra.mxu0 0.0
        %7130 = vmatprep.subr.mxu0 0.0
        %7131 = vmatpush2.msra.mxu0 0.0
        %7132 = vmatprep.subr.mxu0 0.0
        %7133 = vmatpush2.msra.mxu0 0.0
        %7134 = vmatprep.subr.mxu0 0.0
        %7135 = vmatpush2.msra.mxu0 0.0
        %7136 = vmatprep.subr.mxu0 0.0
        %7137 = vmatpush2.msra.mxu0 0.0
        %7138 = vmatprep.subr.mxu0 0.0
        %7139 = vmatpush2.msra.mxu0 0.0
        %7140 = vmatprep.subr.mxu0 0.0
        %7141 = vmatpush2.msra.mxu0 0.0
        %7142 = vmatprep.subr.mxu0 0.0
        %7143 = vmatpush2.msra.mxu0 0.0
        %7144 = vmatprep.subr.mxu0 0.0
        %7145 = vmatpush2.msra.mxu0 0.0
        %7146 = vmatprep.subr.mxu0 0.0
        %7147 = vmatpush2.msra.mxu0 0.0
        %7148 = vmatprep.subr.mxu0 0.0
        %7149 = vmatpush2.msra.mxu0 0.0
        %7150 = vmatprep.subr.mxu0 0.0
        %7151 = vmatpush2.msra.mxu0 0.0
        %7152 = vmatprep.subr.mxu0 0.0
        %7153 = vmatpush2.msra.mxu0 0.0
        %7154 = vmatprep.subr.mxu0 0.0
        %7155 = vmatpush2.msra.mxu0 0.0
        %7156 = vmatprep.subr.mxu0 0.0
        %7157 = vmatpush2.msra.mxu0 0.0
        %7158 = vmatprep.subr.mxu0 0.0
        %7159 = vmatpush2.msra.mxu0 0.0
        %7160 = vmatprep.mubr.f32.mxu0 0.0
        %7161 = vmatmul.mubr.f32.gmra.mxu0 %v7013
        %v7162 = vpop.f32.mrf.mxu0
        %v7163 = vadd.f32 0.0, %v7162
        %v7164 = vpop.f32.mrf.mxu0
        %7165 = vmatprep.mubr.f32.mxu0 0.0
        %7166 = vmatmul.mubr.f32.gmra.mxu0 %v7016
        %v7167 = vpop.f32.mrf.mxu0
        %v7168 = vadd.f32 0.0, %v7167
        %v7169 = vpop.f32.mrf.mxu0
        %7170 = vmatprep.mubr.f32.mxu0 0.0
        %7171 = vmatmul.mubr.f32.gmra.mxu0 %v7019
        %v7172 = vpop.f32.mrf.mxu0
        %v7173 = vadd.f32 0.0, %v7172
        %v7174 = vpop.f32.mrf.mxu0
        %7175 = vmatprep.mubr.f32.mxu0 0.0
        %7176 = vmatmul.mubr.f32.gmra.mxu0 %v7022
        %v7177 = vpop.f32.mrf.mxu0
        %v7178 = vadd.f32 0.0, %v7177
        %v7179 = vpop.f32.mrf.mxu0
        %7180 = vmatprep.mubr.f32.mxu0 0.0
        %7181 = vmatmul.mubr.f32.gmra.mxu0 %v7025
        %v7182 = vpop.f32.mrf.mxu0
        %v7183 = vadd.f32 0.0, %v7182
        %v7184 = vpop.f32.mrf.mxu0
        %7185 = vmatprep.mubr.f32.mxu0 0.0
        %7186 = vmatmul.mubr.f32.gmra.mxu0 %v7028
        %v7187 = vpop.f32.mrf.mxu0
        %v7188 = vadd.f32 0.0, %v7187
        %v7189 = vpop.f32.mrf.mxu0
        %7190 = vmatprep.mubr.f32.mxu0 0.0
        %7191 = vmatmul.mubr.f32.gmra.mxu0 %v7031
        %v7192 = vpop.f32.mrf.mxu0
        %v7193 = vadd.f32 0.0, %v7192
        %v7194 = vpop.f32.mrf.mxu0
        %7195 = vmatprep.mubr.f32.mxu0 0.0
        %7196 = vmatmul.mubr.f32.gmra.mxu0 %v7034
        %v7197 = vpop.f32.mrf.mxu0
        %v7198 = vadd.f32 0.0, %v7197
        %v7199 = vpop.f32.mrf.mxu0
        %7200 = vmatprep.mubr.f32.mxu0 0.0
        %7201 = vmatmul.mubr.f32.gmra.mxu0 %v7037
        %v7202 = vpop.f32.mrf.mxu0
        %v7203 = vadd.f32 0.0, %v7202
        %v7204 = vpop.f32.mrf.mxu0
        %7205 = vmatprep.mubr.f32.mxu0 0.0
        %7206 = vmatmul.mubr.f32.gmra.mxu0 %v7040
        %v7207 = vpop.f32.mrf.mxu0
        %v7208 = vadd.f32 0.0, %v7207
        %v7209 = vpop.f32.mrf.mxu0
        %7210 = vmatprep.mubr.f32.mxu0 0.0
        %7211 = vmatmul.mubr.f32.gmra.mxu0 %v7043
        %v7212 = vpop.f32.mrf.mxu0
        %v7213 = vadd.f32 0.0, %v7212
        %v7214 = vpop.f32.mrf.mxu0
        %7215 = vmatprep.mubr.f32.mxu0 0.0
        %7216 = vmatmul.mubr.f32.gmra.mxu0 %v7046
        %v7217 = vpop.f32.mrf.mxu0
        %v7218 = vadd.f32 0.0, %v7217
        %v7219 = vpop.f32.mrf.mxu0
        %7220 = vmatprep.mubr.f32.mxu0 0.0
        %7221 = vmatmul.mubr.f32.gmra.mxu0 %v7049
        %v7222 = vpop.f32.mrf.mxu0
        %v7223 = vadd.f32 0.0, %v7222
        %v7224 = vpop.f32.mrf.mxu0
        %7225 = vmatprep.mubr.f32.mxu0 0.0
        %7226 = vmatmul.mubr.f32.gmra.mxu0 %v7052
        %v7227 = vpop.f32.mrf.mxu0
        %v7228 = vadd.f32 0.0, %v7227
        %v7229 = vpop.f32.mrf.mxu0
        %7230 = vmatprep.mubr.f32.mxu0 0.0
        %7231 = vmatmul.mubr.f32.gmra.mxu0 %v7055
        %v7232 = vpop.f32.mrf.mxu0
        %v7233 = vadd.f32 0.0, %v7232
        %v7234 = vpop.f32.mrf.mxu0
        %7235 = vmatprep.mubr.f32.mxu0 0.0
        %7236 = vmatmul.mubr.f32.gmra.mxu0 %v7058
        %v7237 = vpop.f32.mrf.mxu0
        %v7238 = vadd.f32 0.0, %v7237
        %v7239 = vpop.f32.mrf.mxu0
        %7240 = vmatprep.mubr.f32.mxu0 0.0
        %7241 = vmatmul.mubr.f32.gmra.mxu0 %v7061
        %v7242 = vpop.f32.mrf.mxu0
        %v7243 = vadd.f32 0.0, %v7242
        %v7244 = vpop.f32.mrf.mxu0
        %7245 = vmatprep.mubr.f32.mxu0 0.0
        %7246 = vmatmul.mubr.f32.gmra.mxu0 %v7064
        %v7247 = vpop.f32.mrf.mxu0
        %v7248 = vadd.f32 0.0, %v7247
        %v7249 = vpop.f32.mrf.mxu0
        %7250 = vmatprep.mubr.f32.mxu0 0.0
        %7251 = vmatmul.mubr.f32.gmra.mxu0 %v7067
        %v7252 = vpop.f32.mrf.mxu0
        %v7253 = vadd.f32 0.0, %v7252
        %v7254 = vpop.f32.mrf.mxu0
        %7255 = vmatprep.mubr.f32.mxu0 0.0
        %7256 = vmatmul.mubr.f32.gmra.mxu0 %v7070
        %v7257 = vpop.f32.mrf.mxu0
        %v7258 = vadd.f32 0.0, %v7257
        %v7259 = vpop.f32.mrf.mxu0
        %7260 = vmatprep.mubr.f32.mxu0 0.0
        %7261 = vmatmul.mubr.f32.gmra.mxu0 %v7073
        %v7262 = vpop.f32.mrf.mxu0
        %v7263 = vadd.f32 0.0, %v7262
        %v7264 = vpop.f32.mrf.mxu0
        %7265 = vmatprep.mubr.f32.mxu0 0.0
        %7266 = vmatmul.mubr.f32.gmra.mxu0 %v7076
        %v7267 = vpop.f32.mrf.mxu0
        %v7268 = vadd.f32 0.0, %v7267
        %v7269 = vpop.f32.mrf.mxu0
        %7270 = vmatprep.mubr.f32.mxu0 0.0
        %7271 = vmatmul.mubr.f32.gmra.mxu0 %v7079
        %v7272 = vpop.f32.mrf.mxu0
        %v7273 = vadd.f32 0.0, %v7272
        %v7274 = vpop.f32.mrf.mxu0
        %7275 = vmatprep.mubr.f32.mxu0 0.0
        %7276 = vmatmul.mubr.f32.gmra.mxu0 %v7082
        %v7277 = vpop.f32.mrf.mxu0
        %v7278 = vadd.f32 0.0, %v7277
        %v7279 = vpop.f32.mrf.mxu0
        %7280 = vmatprep.mubr.f32.mxu0 0.0
        %7281 = vmatmul.mubr.f32.gmra.mxu0 %v7085
        %v7282 = vpop.f32.mrf.mxu0
        %v7283 = vadd.f32 0.0, %v7282
        %v7284 = vpop.f32.mrf.mxu0
        %7285 = vmatprep.mubr.f32.mxu0 0.0
        %7286 = vmatmul.mubr.f32.gmra.mxu0 %v7088
        %v7287 = vpop.f32.mrf.mxu0
        %v7288 = vadd.f32 0.0, %v7287
        %v7289 = vpop.f32.mrf.mxu0
        %7290 = vmatprep.mubr.f32.mxu0 0.0
        %7291 = vmatmul.mubr.f32.gmra.mxu0 %v7091
        %v7292 = vpop.f32.mrf.mxu0
        %v7293 = vadd.f32 0.0, %v7292
        %v7294 = vpop.f32.mrf.mxu0
        %7295 = vmatprep.mubr.f32.mxu0 0.0
        %7296 = vmatmul.mubr.f32.gmra.mxu0 %v7094
        %v7297 = vpop.f32.mrf.mxu0
        %v7298 = vadd.f32 0.0, %v7297
        %v7299 = vpop.f32.mrf.mxu0
        %7300 = vdwg.mxu0
        %v7302 = vsel %vm6773, %v6953, 0
        %v7305 = vsel %vm6773, %v6954, 0
        %v7308 = vsel %vm6773, %v6955, 0
        %v7311 = vsel %vm6773, %v6956, 0
        %v7314 = vsel %vm6773, %v6957, 0
        %v7317 = vsel %vm6773, %v6958, 0
        %v7320 = vsel %vm6773, %v6959, 0
        %v7323 = vsel %vm6773, %v6960, 0
        %v7326 = vsel %vm6773, %v6961, 0
        %v7329 = vsel %vm6773, %v6962, 0
        %v7332 = vsel %vm6773, %v6963, 0
        %v7335 = vsel %vm6773, %v6964, 0
        %v7338 = vsel %vm6773, %v6965, 0
        %v7341 = vsel %vm6773, %v6966, 0
        %v7344 = vsel %vm6773, %v6967, 0
        %v7347 = vsel %vm6773, %v6968, 0
        %v7350 = vsel %vm6773, %v6969, 0
        %v7353 = vsel %vm6773, %v6970, 0
        %v7356 = vsel %vm6773, %v6971, 0
        %v7359 = vsel %vm6773, %v6972, 0
        %v7362 = vsel %vm6773, %v6973, 0
        %v7365 = vsel %vm6773, %v6974, 0
        %v7368 = vsel %vm6773, %v6975, 0
        %v7371 = vsel %vm6773, %v6976, 0
        %v7374 = vsel %vm6773, %v6977, 0
        %v7377 = vsel %vm6773, %v6978, 0
        %v7380 = vsel %vm6773, %v6979, 0
        %v7383 = vsel %vm6773, %v6980, 0
        %7385 = vmatprep.subr.mxu0 0.0
        %7386 = vmatpush1.msra.mxu0 0.0
        %7387 = vmatprep.subr.mxu0 0.0
        %7388 = vmatpush1.msra.mxu0 0.0
        %7389 = vmatprep.subr.mxu0 0.0
        %7390 = vmatpush1.msra.mxu0 0.0
        %7391 = vmatprep.subr.mxu0 0.0
        %7392 = vmatpush1.msra.mxu0 0.0
        %7393 = vmatprep.subr.mxu0 0.0
        %7394 = vmatpush1.msra.mxu0 0.0
        %7395 = vmatprep.subr.mxu0 0.0
        %7396 = vmatpush1.msra.mxu0 0.0
        %7397 = vmatprep.subr.mxu0 0.0
        %7398 = vmatpush1.msra.mxu0 0.0
        %7399 = vmatprep.subr.mxu0 0.0
        %7400 = vmatpush1.msra.mxu0 0.0
        %7401 = vmatprep.subr.mxu0 0.0
        %7402 = vmatpush1.msra.mxu0 0.0
        %7403 = vmatprep.subr.mxu0 0.0
        %7404 = vmatpush1.msra.mxu0 0.0
        %7405 = vmatprep.subr.mxu0 0.0
        %7406 = vmatpush1.msra.mxu0 0.0
        %7407 = vmatprep.subr.mxu0 0.0
        %7408 = vmatpush1.msra.mxu0 0.0
        %7409 = vmatprep.subr.mxu0 0.0
        %7410 = vmatpush1.msra.mxu0 0.0
        %7411 = vmatprep.subr.mxu0 0.0
        %7412 = vmatpush1.msra.mxu0 0.0
        %7413 = vmatprep.subr.mxu0 0.0
        %7414 = vmatpush1.msra.mxu0 0.0
        %7415 = vmatprep.subr.mxu0 0.0
        %7416 = vmatpush1.msra.mxu0 %v6981
        %7417 = vmatprep.subr.mxu0 0.0
        %7418 = vmatpush2.msra.mxu0 0.0
        %7419 = vmatprep.subr.mxu0 0.0
        %7420 = vmatpush2.msra.mxu0 0.0
        %7421 = vmatprep.subr.mxu0 0.0
        %7422 = vmatpush2.msra.mxu0 0.0
        %7423 = vmatprep.subr.mxu0 0.0
        %7424 = vmatpush2.msra.mxu0 0.0
        %7425 = vmatprep.subr.mxu0 0.0
        %7426 = vmatpush2.msra.mxu0 0.0
        %7427 = vmatprep.subr.mxu0 0.0
        %7428 = vmatpush2.msra.mxu0 0.0
        %7429 = vmatprep.subr.mxu0 0.0
        %7430 = vmatpush2.msra.mxu0 0.0
        %7431 = vmatprep.subr.mxu0 0.0
        %7432 = vmatpush2.msra.mxu0 0.0
        %7433 = vmatprep.subr.mxu0 0.0
        %7434 = vmatpush2.msra.mxu0 0.0
        %7435 = vmatprep.subr.mxu0 0.0
        %7436 = vmatpush2.msra.mxu0 0.0
        %7437 = vmatprep.subr.mxu0 0.0
        %7438 = vmatpush2.msra.mxu0 0.0
        %7439 = vmatprep.subr.mxu0 0.0
        %7440 = vmatpush2.msra.mxu0 0.0
        %7441 = vmatprep.subr.mxu0 0.0
        %7442 = vmatpush2.msra.mxu0 0.0
        %7443 = vmatprep.subr.mxu0 0.0
        %7444 = vmatpush2.msra.mxu0 0.0
        %7445 = vmatprep.subr.mxu0 0.0
        %7446 = vmatpush2.msra.mxu0 0.0
        %7447 = vmatprep.subr.mxu0 0.0
        %7448 = vmatpush2.msra.mxu0 0.0
        %7449 = vmatprep.mubr.f32.mxu0 0.0
        %7450 = vmatmul.mubr.f32.gmra.mxu0 %v7302
        %v7451 = vpop.f32.mrf.mxu0
        %v7452 = vadd.f32 %v7163, %v7451
        %v7453 = vpop.f32.mrf.mxu0
        %7454 = vmatprep.mubr.f32.mxu0 0.0
        %7455 = vmatmul.mubr.f32.gmra.mxu0 %v7305
        %v7456 = vpop.f32.mrf.mxu0
        %v7457 = vadd.f32 %v7168, %v7456
        %v7458 = vpop.f32.mrf.mxu0
        %7459 = vmatprep.mubr.f32.mxu0 0.0
        %7460 = vmatmul.mubr.f32.gmra.mxu0 %v7308
        %v7461 = vpop.f32.mrf.mxu0
        %v7462 = vadd.f32 %v7173, %v7461
        %v7463 = vpop.f32.mrf.mxu0
        %7464 = vmatprep.mubr.f32.mxu0 0.0
        %7465 = vmatmul.mubr.f32.gmra.mxu0 %v7311
        %v7466 = vpop.f32.mrf.mxu0
        %v7467 = vadd.f32 %v7178, %v7466
        %v7468 = vpop.f32.mrf.mxu0
        %7469 = vmatprep.mubr.f32.mxu0 0.0
        %7470 = vmatmul.mubr.f32.gmra.mxu0 %v7314
        %v7471 = vpop.f32.mrf.mxu0
        %v7472 = vadd.f32 %v7183, %v7471
        %v7473 = vpop.f32.mrf.mxu0
        %7474 = vmatprep.mubr.f32.mxu0 0.0
        %7475 = vmatmul.mubr.f32.gmra.mxu0 %v7317
        %v7476 = vpop.f32.mrf.mxu0
        %v7477 = vadd.f32 %v7188, %v7476
        %v7478 = vpop.f32.mrf.mxu0
        %7479 = vmatprep.mubr.f32.mxu0 0.0
        %7480 = vmatmul.mubr.f32.gmra.mxu0 %v7320
        %v7481 = vpop.f32.mrf.mxu0
        %v7482 = vadd.f32 %v7193, %v7481
        %v7483 = vpop.f32.mrf.mxu0
        %7484 = vmatprep.mubr.f32.mxu0 0.0
        %7485 = vmatmul.mubr.f32.gmra.mxu0 %v7323
        %v7486 = vpop.f32.mrf.mxu0
        %v7487 = vadd.f32 %v7198, %v7486
        %v7488 = vpop.f32.mrf.mxu0
        %7489 = vmatprep.mubr.f32.mxu0 0.0
        %7490 = vmatmul.mubr.f32.gmra.mxu0 %v7326
        %v7491 = vpop.f32.mrf.mxu0
        %v7492 = vadd.f32 %v7203, %v7491
        %v7493 = vpop.f32.mrf.mxu0
        %7494 = vmatprep.mubr.f32.mxu0 0.0
        %7495 = vmatmul.mubr.f32.gmra.mxu0 %v7329
        %v7496 = vpop.f32.mrf.mxu0
        %v7497 = vadd.f32 %v7208, %v7496
        %v7498 = vpop.f32.mrf.mxu0
        %7499 = vmatprep.mubr.f32.mxu0 0.0
        %7500 = vmatmul.mubr.f32.gmra.mxu0 %v7332
        %v7501 = vpop.f32.mrf.mxu0
        %v7502 = vadd.f32 %v7213, %v7501
        %v7503 = vpop.f32.mrf.mxu0
        %7504 = vmatprep.mubr.f32.mxu0 0.0
        %7505 = vmatmul.mubr.f32.gmra.mxu0 %v7335
        %v7506 = vpop.f32.mrf.mxu0
        %v7507 = vadd.f32 %v7218, %v7506
        %v7508 = vpop.f32.mrf.mxu0
        %7509 = vmatprep.mubr.f32.mxu0 0.0
        %7510 = vmatmul.mubr.f32.gmra.mxu0 %v7338
        %v7511 = vpop.f32.mrf.mxu0
        %v7512 = vadd.f32 %v7223, %v7511
        %v7513 = vpop.f32.mrf.mxu0
        %7514 = vmatprep.mubr.f32.mxu0 0.0
        %7515 = vmatmul.mubr.f32.gmra.mxu0 %v7341
        %v7516 = vpop.f32.mrf.mxu0
        %v7517 = vadd.f32 %v7228, %v7516
        %v7518 = vpop.f32.mrf.mxu0
        %7519 = vmatprep.mubr.f32.mxu0 0.0
        %7520 = vmatmul.mubr.f32.gmra.mxu0 %v7344
        %v7521 = vpop.f32.mrf.mxu0
        %v7522 = vadd.f32 %v7233, %v7521
        %v7523 = vpop.f32.mrf.mxu0
        %7524 = vmatprep.mubr.f32.mxu0 0.0
        %7525 = vmatmul.mubr.f32.gmra.mxu0 %v7347
        %v7526 = vpop.f32.mrf.mxu0
        %v7527 = vadd.f32 %v7238, %v7526
        %v7528 = vpop.f32.mrf.mxu0
        %7529 = vmatprep.mubr.f32.mxu0 0.0
        %7530 = vmatmul.mubr.f32.gmra.mxu0 %v7350
        %v7531 = vpop.f32.mrf.mxu0
        %v7532 = vadd.f32 %v7243, %v7531
        %v7533 = vpop.f32.mrf.mxu0
        %7534 = vmatprep.mubr.f32.mxu0 0.0
        %7535 = vmatmul.mubr.f32.gmra.mxu0 %v7353
        %v7536 = vpop.f32.mrf.mxu0
        %v7537 = vadd.f32 %v7248, %v7536
        %v7538 = vpop.f32.mrf.mxu0
        %7539 = vmatprep.mubr.f32.mxu0 0.0
        %7540 = vmatmul.mubr.f32.gmra.mxu0 %v7356
        %v7541 = vpop.f32.mrf.mxu0
        %v7542 = vadd.f32 %v7253, %v7541
        %v7543 = vpop.f32.mrf.mxu0
        %7544 = vmatprep.mubr.f32.mxu0 0.0
        %7545 = vmatmul.mubr.f32.gmra.mxu0 %v7359
        %v7546 = vpop.f32.mrf.mxu0
        %v7547 = vadd.f32 %v7258, %v7546
        %v7548 = vpop.f32.mrf.mxu0
        %7549 = vmatprep.mubr.f32.mxu0 0.0
        %7550 = vmatmul.mubr.f32.gmra.mxu0 %v7362
        %v7551 = vpop.f32.mrf.mxu0
        %v7552 = vadd.f32 %v7263, %v7551
        %v7553 = vpop.f32.mrf.mxu0
        %7554 = vmatprep.mubr.f32.mxu0 0.0
        %7555 = vmatmul.mubr.f32.gmra.mxu0 %v7365
        %v7556 = vpop.f32.mrf.mxu0
        %v7557 = vadd.f32 %v7268, %v7556
        %v7558 = vpop.f32.mrf.mxu0
        %7559 = vmatprep.mubr.f32.mxu0 0.0
        %7560 = vmatmul.mubr.f32.gmra.mxu0 %v7368
        %v7561 = vpop.f32.mrf.mxu0
        %v7562 = vadd.f32 %v7273, %v7561
        %v7563 = vpop.f32.mrf.mxu0
        %7564 = vmatprep.mubr.f32.mxu0 0.0
        %7565 = vmatmul.mubr.f32.gmra.mxu0 %v7371
        %v7566 = vpop.f32.mrf.mxu0
        %v7567 = vadd.f32 %v7278, %v7566
        %v7568 = vpop.f32.mrf.mxu0
        %7569 = vmatprep.mubr.f32.mxu0 0.0
        %7570 = vmatmul.mubr.f32.gmra.mxu0 %v7374
        %v7571 = vpop.f32.mrf.mxu0
        %v7572 = vadd.f32 %v7283, %v7571
        %v7573 = vpop.f32.mrf.mxu0
        %7574 = vmatprep.mubr.f32.mxu0 0.0
        %7575 = vmatmul.mubr.f32.gmra.mxu0 %v7377
        %v7576 = vpop.f32.mrf.mxu0
        %v7577 = vadd.f32 %v7288, %v7576
        %v7578 = vpop.f32.mrf.mxu0
        %7579 = vmatprep.mubr.f32.mxu0 0.0
        %7580 = vmatmul.mubr.f32.gmra.mxu0 %v7380
        %v7581 = vpop.f32.mrf.mxu0
        %v7582 = vadd.f32 %v7293, %v7581
        %v7583 = vpop.f32.mrf.mxu0
        %7584 = vmatprep.mubr.f32.mxu0 0.0
        %7585 = vmatmul.mubr.f32.gmra.mxu0 %v7383
        %v7586 = vpop.f32.mrf.mxu0
        %v7587 = vadd.f32 %v7298, %v7586
        %v7588 = vpop.f32.mrf.mxu0
        %7589 = vdwg.mxu0
        %v7590 = vld [vmem:[#allocation2 + $0x2] sm:$0xff]
        %v7591 = vld [vmem:[#allocation2 + $0xa] sm:$0xff]
        %v7592 = vld [vmem:[#allocation2 + $0x12] sm:$0xff]
        %v7593 = vld [vmem:[#allocation2 + $0x1a] sm:$0xff]
        %v7594 = vld [vmem:[#allocation2 + $0x22] sm:$0xff]
        %v7595 = vld [vmem:[#allocation2 + $0x2a] sm:$0xff]
        %v7596 = vld [vmem:[#allocation2 + $0x32] sm:$0xff]
        %v7597 = vld [vmem:[#allocation2 + $0x3a] sm:$0xff]
        %v7598 = vld [vmem:[#allocation2 + $0x42] sm:$0xff]
        %v7599 = vld [vmem:[#allocation2 + $0x4a] sm:$0xff]
        %v7600 = vld [vmem:[#allocation2 + $0x52] sm:$0xff]
        %v7601 = vld [vmem:[#allocation2 + $0x5a] sm:$0xff]
        %v7602 = vld [vmem:[#allocation2 + $0x62] sm:$0xff]
        %v7603 = vld [vmem:[#allocation2 + $0x6a] sm:$0xff]
        %v7604 = vld [vmem:[#allocation2 + $0x72] sm:$0xff]
        %v7605 = vld [vmem:[#allocation2 + $0x7a] sm:$0xff]
        %v7606 = vld [vmem:[#allocation2 + $0x82] sm:$0xff]
        %v7607 = vld [vmem:[#allocation2 + $0x8a] sm:$0xff]
        %v7608 = vld [vmem:[#allocation2 + $0x92] sm:$0xff]
        %v7609 = vld [vmem:[#allocation2 + $0x9a] sm:$0xff]
        %v7610 = vld [vmem:[#allocation2 + $0xa2] sm:$0xff]
        %v7611 = vld [vmem:[#allocation2 + $0xaa] sm:$0xff]
        %v7612 = vld [vmem:[#allocation2 + $0xb2] sm:$0xff]
        %v7613 = vld [vmem:[#allocation2 + $0xba] sm:$0xff]
        %v7614 = vld [vmem:[#allocation2 + $0xc2] sm:$0xff]
        %v7615 = vld [vmem:[#allocation2 + $0xca] sm:$0xff]
        %v7616 = vld [vmem:[#allocation2 + $0xd2] sm:$0xff]
        %v7617 = vld [vmem:[#allocation2 + $0xda] sm:$0xff]
        %s7618 = scalar_lea.vmem %s4, 16
        %v7619 = vld [vmem:[%s7618] sm:$0xff]
        %v7621 = vsel %vm6773, %v7590, 0
        %v7624 = vsel %vm6773, %v7591, 0
        %v7627 = vsel %vm6773, %v7592, 0
        %v7630 = vsel %vm6773, %v7593, 0
        %v7633 = vsel %vm6773, %v7594, 0
        %v7636 = vsel %vm6773, %v7595, 0
        %v7639 = vsel %vm6773, %v7596, 0
        %v7642 = vsel %vm6773, %v7597, 0
        %v7645 = vsel %vm6773, %v7598, 0
        %v7648 = vsel %vm6773, %v7599, 0
        %v7651 = vsel %vm6773, %v7600, 0
        %v7654 = vsel %vm6773, %v7601, 0
        %v7657 = vsel %vm6773, %v7602, 0
        %v7660 = vsel %vm6773, %v7603, 0
        %v7663 = vsel %vm6773, %v7604, 0
        %v7666 = vsel %vm6773, %v7605, 0
        %v7669 = vsel %vm6773, %v7606, 0
        %v7672 = vsel %vm6773, %v7607, 0
        %v7675 = vsel %vm6773, %v7608, 0
        %v7678 = vsel %vm6773, %v7609, 0
        %v7681 = vsel %vm6773, %v7610, 0
        %v7684 = vsel %vm6773, %v7611, 0
        %v7687 = vsel %vm6773, %v7612, 0
        %v7690 = vsel %vm6773, %v7613, 0
        %v7693 = vsel %vm6773, %v7614, 0
        %v7696 = vsel %vm6773, %v7615, 0
        %v7699 = vsel %vm6773, %v7616, 0
        %v7702 = vsel %vm6773, %v7617, 0
        %7704 = vmatprep.subr.mxu0 0.0
        %7705 = vmatpush1.msra.mxu0 0.0
        %7706 = vmatprep.subr.mxu0 0.0
        %7707 = vmatpush1.msra.mxu0 0.0
        %7708 = vmatprep.subr.mxu0 0.0
        %7709 = vmatpush1.msra.mxu0 0.0
        %7710 = vmatprep.subr.mxu0 0.0
        %7711 = vmatpush1.msra.mxu0 0.0
        %7712 = vmatprep.subr.mxu0 0.0
        %7713 = vmatpush1.msra.mxu0 0.0
        %7714 = vmatprep.subr.mxu0 0.0
        %7715 = vmatpush1.msra.mxu0 0.0
        %7716 = vmatprep.subr.mxu0 0.0
        %7717 = vmatpush1.msra.mxu0 0.0
        %7718 = vmatprep.subr.mxu0 0.0
        %7719 = vmatpush1.msra.mxu0 0.0
        %7720 = vmatprep.subr.mxu0 0.0
        %7721 = vmatpush1.msra.mxu0 0.0
        %7722 = vmatprep.subr.mxu0 0.0
        %7723 = vmatpush1.msra.mxu0 0.0
        %7724 = vmatprep.subr.mxu0 0.0
        %7725 = vmatpush1.msra.mxu0 0.0
        %7726 = vmatprep.subr.mxu0 0.0
        %7727 = vmatpush1.msra.mxu0 0.0
        %7728 = vmatprep.subr.mxu0 0.0
        %7729 = vmatpush1.msra.mxu0 0.0
        %7730 = vmatprep.subr.mxu0 0.0
        %7731 = vmatpush1.msra.mxu0 0.0
        %7732 = vmatprep.subr.mxu0 0.0
        %7733 = vmatpush1.msra.mxu0 0.0
        %7734 = vmatprep.subr.mxu0 0.0
        %7735 = vmatpush1.msra.mxu0 %v7619
        %7736 = vmatprep.subr.mxu0 0.0
        %7737 = vmatpush2.msra.mxu0 0.0
        %7738 = vmatprep.subr.mxu0 0.0
        %7739 = vmatpush2.msra.mxu0 0.0
        %7740 = vmatprep.subr.mxu0 0.0
        %7741 = vmatpush2.msra.mxu0 0.0
        %7742 = vmatprep.subr.mxu0 0.0
        %7743 = vmatpush2.msra.mxu0 0.0
        %7744 = vmatprep.subr.mxu0 0.0
        %7745 = vmatpush2.msra.mxu0 0.0
        %7746 = vmatprep.subr.mxu0 0.0
        %7747 = vmatpush2.msra.mxu0 0.0
        %7748 = vmatprep.subr.mxu0 0.0
        %7749 = vmatpush2.msra.mxu0 0.0
        %7750 = vmatprep.subr.mxu0 0.0
        %7751 = vmatpush2.msra.mxu0 0.0
        %7752 = vmatprep.subr.mxu0 0.0
        %7753 = vmatpush2.msra.mxu0 0.0
        %7754 = vmatprep.subr.mxu0 0.0
        %7755 = vmatpush2.msra.mxu0 0.0
        %7756 = vmatprep.subr.mxu0 0.0
        %7757 = vmatpush2.msra.mxu0 0.0
        %7758 = vmatprep.subr.mxu0 0.0
        %7759 = vmatpush2.msra.mxu0 0.0
        %7760 = vmatprep.subr.mxu0 0.0
        %7761 = vmatpush2.msra.mxu0 0.0
        %7762 = vmatprep.subr.mxu0 0.0
        %7763 = vmatpush2.msra.mxu0 0.0
        %7764 = vmatprep.subr.mxu0 0.0
        %7765 = vmatpush2.msra.mxu0 0.0
        %7766 = vmatprep.subr.mxu0 0.0
        %7767 = vmatpush2.msra.mxu0 0.0
        %7768 = vmatprep.mubr.f32.mxu0 0.0
        %7769 = vmatmul.mubr.f32.gmra.mxu0 %v7621
        %v7770 = vpop.f32.mrf.mxu0
        %v7771 = vadd.f32 0.0, %v7770
        %v7772 = vpop.f32.mrf.mxu0
        %7773 = vmatprep.mubr.f32.mxu0 0.0
        %7774 = vmatmul.mubr.f32.gmra.mxu0 %v7624
        %v7775 = vpop.f32.mrf.mxu0
        %v7776 = vadd.f32 0.0, %v7775
        %v7777 = vpop.f32.mrf.mxu0
        %7778 = vmatprep.mubr.f32.mxu0 0.0
        %7779 = vmatmul.mubr.f32.gmra.mxu0 %v7627
        %v7780 = vpop.f32.mrf.mxu0
        %v7781 = vadd.f32 0.0, %v7780
        %v7782 = vpop.f32.mrf.mxu0
        %7783 = vmatprep.mubr.f32.mxu0 0.0
        %7784 = vmatmul.mubr.f32.gmra.mxu0 %v7630
        %v7785 = vpop.f32.mrf.mxu0
        %v7786 = vadd.f32 0.0, %v7785
        %v7787 = vpop.f32.mrf.mxu0
        %7788 = vmatprep.mubr.f32.mxu0 0.0
        %7789 = vmatmul.mubr.f32.gmra.mxu0 %v7633
        %v7790 = vpop.f32.mrf.mxu0
        %v7791 = vadd.f32 0.0, %v7790
        %v7792 = vpop.f32.mrf.mxu0
        %7793 = vmatprep.mubr.f32.mxu0 0.0
        %7794 = vmatmul.mubr.f32.gmra.mxu0 %v7636
        %v7795 = vpop.f32.mrf.mxu0
        %v7796 = vadd.f32 0.0, %v7795
        %v7797 = vpop.f32.mrf.mxu0
        %7798 = vmatprep.mubr.f32.mxu0 0.0
        %7799 = vmatmul.mubr.f32.gmra.mxu0 %v7639
        %v7800 = vpop.f32.mrf.mxu0
        %v7801 = vadd.f32 0.0, %v7800
        %v7802 = vpop.f32.mrf.mxu0
        %7803 = vmatprep.mubr.f32.mxu0 0.0
        %7804 = vmatmul.mubr.f32.gmra.mxu0 %v7642
        %v7805 = vpop.f32.mrf.mxu0
        %v7806 = vadd.f32 0.0, %v7805
        %v7807 = vpop.f32.mrf.mxu0
        %7808 = vmatprep.mubr.f32.mxu0 0.0
        %7809 = vmatmul.mubr.f32.gmra.mxu0 %v7645
        %v7810 = vpop.f32.mrf.mxu0
        %v7811 = vadd.f32 0.0, %v7810
        %v7812 = vpop.f32.mrf.mxu0
        %7813 = vmatprep.mubr.f32.mxu0 0.0
        %7814 = vmatmul.mubr.f32.gmra.mxu0 %v7648
        %v7815 = vpop.f32.mrf.mxu0
        %v7816 = vadd.f32 0.0, %v7815
        %v7817 = vpop.f32.mrf.mxu0
        %7818 = vmatprep.mubr.f32.mxu0 0.0
        %7819 = vmatmul.mubr.f32.gmra.mxu0 %v7651
        %v7820 = vpop.f32.mrf.mxu0
        %v7821 = vadd.f32 0.0, %v7820
        %v7822 = vpop.f32.mrf.mxu0
        %7823 = vmatprep.mubr.f32.mxu0 0.0
        %7824 = vmatmul.mubr.f32.gmra.mxu0 %v7654
        %v7825 = vpop.f32.mrf.mxu0
        %v7826 = vadd.f32 0.0, %v7825
        %v7827 = vpop.f32.mrf.mxu0
        %7828 = vmatprep.mubr.f32.mxu0 0.0
        %7829 = vmatmul.mubr.f32.gmra.mxu0 %v7657
        %v7830 = vpop.f32.mrf.mxu0
        %v7831 = vadd.f32 0.0, %v7830
        %v7832 = vpop.f32.mrf.mxu0
        %7833 = vmatprep.mubr.f32.mxu0 0.0
        %7834 = vmatmul.mubr.f32.gmra.mxu0 %v7660
        %v7835 = vpop.f32.mrf.mxu0
        %v7836 = vadd.f32 0.0, %v7835
        %v7837 = vpop.f32.mrf.mxu0
        %7838 = vmatprep.mubr.f32.mxu0 0.0
        %7839 = vmatmul.mubr.f32.gmra.mxu0 %v7663
        %v7840 = vpop.f32.mrf.mxu0
        %v7841 = vadd.f32 0.0, %v7840
        %v7842 = vpop.f32.mrf.mxu0
        %7843 = vmatprep.mubr.f32.mxu0 0.0
        %7844 = vmatmul.mubr.f32.gmra.mxu0 %v7666
        %v7845 = vpop.f32.mrf.mxu0
        %v7846 = vadd.f32 0.0, %v7845
        %v7847 = vpop.f32.mrf.mxu0
        %7848 = vmatprep.mubr.f32.mxu0 0.0
        %7849 = vmatmul.mubr.f32.gmra.mxu0 %v7669
        %v7850 = vpop.f32.mrf.mxu0
        %v7851 = vadd.f32 0.0, %v7850
        %v7852 = vpop.f32.mrf.mxu0
        %7853 = vmatprep.mubr.f32.mxu0 0.0
        %7854 = vmatmul.mubr.f32.gmra.mxu0 %v7672
        %v7855 = vpop.f32.mrf.mxu0
        %v7856 = vadd.f32 0.0, %v7855
        %v7857 = vpop.f32.mrf.mxu0
        %7858 = vmatprep.mubr.f32.mxu0 0.0
        %7859 = vmatmul.mubr.f32.gmra.mxu0 %v7675
        %v7860 = vpop.f32.mrf.mxu0
        %v7861 = vadd.f32 0.0, %v7860
        %v7862 = vpop.f32.mrf.mxu0
        %7863 = vmatprep.mubr.f32.mxu0 0.0
        %7864 = vmatmul.mubr.f32.gmra.mxu0 %v7678
        %v7865 = vpop.f32.mrf.mxu0
        %v7866 = vadd.f32 0.0, %v7865
        %v7867 = vpop.f32.mrf.mxu0
        %7868 = vmatprep.mubr.f32.mxu0 0.0
        %7869 = vmatmul.mubr.f32.gmra.mxu0 %v7681
        %v7870 = vpop.f32.mrf.mxu0
        %v7871 = vadd.f32 0.0, %v7870
        %v7872 = vpop.f32.mrf.mxu0
        %7873 = vmatprep.mubr.f32.mxu0 0.0
        %7874 = vmatmul.mubr.f32.gmra.mxu0 %v7684
        %v7875 = vpop.f32.mrf.mxu0
        %v7876 = vadd.f32 0.0, %v7875
        %v7877 = vpop.f32.mrf.mxu0
        %7878 = vmatprep.mubr.f32.mxu0 0.0
        %7879 = vmatmul.mubr.f32.gmra.mxu0 %v7687
        %v7880 = vpop.f32.mrf.mxu0
        %v7881 = vadd.f32 0.0, %v7880
        %v7882 = vpop.f32.mrf.mxu0
        %7883 = vmatprep.mubr.f32.mxu0 0.0
        %7884 = vmatmul.mubr.f32.gmra.mxu0 %v7690
        %v7885 = vpop.f32.mrf.mxu0
        %v7886 = vadd.f32 0.0, %v7885
        %v7887 = vpop.f32.mrf.mxu0
        %7888 = vmatprep.mubr.f32.mxu0 0.0
        %7889 = vmatmul.mubr.f32.gmra.mxu0 %v7693
        %v7890 = vpop.f32.mrf.mxu0
        %v7891 = vadd.f32 0.0, %v7890
        %v7892 = vpop.f32.mrf.mxu0
        %7893 = vmatprep.mubr.f32.mxu0 0.0
        %7894 = vmatmul.mubr.f32.gmra.mxu0 %v7696
        %v7895 = vpop.f32.mrf.mxu0
        %v7896 = vadd.f32 0.0, %v7895
        %v7897 = vpop.f32.mrf.mxu0
        %7898 = vmatprep.mubr.f32.mxu0 0.0
        %7899 = vmatmul.mubr.f32.gmra.mxu0 %v7699
        %v7900 = vpop.f32.mrf.mxu0
        %v7901 = vadd.f32 0.0, %v7900
        %v7902 = vpop.f32.mrf.mxu0
        %7903 = vmatprep.mubr.f32.mxu0 0.0
        %7904 = vmatmul.mubr.f32.gmra.mxu0 %v7702
        %v7905 = vpop.f32.mrf.mxu0
        %v7906 = vadd.f32 0.0, %v7905
        %v7907 = vpop.f32.mrf.mxu0
        %7908 = vdwg.mxu0
        %v7909 = vadd.f32 %v7452, %v7771
        %v7910 = vadd.f32 %v7457, %v7776
        %v7911 = vadd.f32 %v7462, %v7781
        %v7912 = vadd.f32 %v7467, %v7786
        %v7913 = vadd.f32 %v7472, %v7791
        %v7914 = vadd.f32 %v7477, %v7796
        %v7915 = vadd.f32 %v7482, %v7801
        %v7916 = vadd.f32 %v7487, %v7806
        %v7917 = vadd.f32 %v7492, %v7811
        %v7918 = vadd.f32 %v7497, %v7816
        %v7919 = vadd.f32 %v7502, %v7821
        %v7920 = vadd.f32 %v7507, %v7826
        %v7921 = vadd.f32 %v7512, %v7831
        %v7922 = vadd.f32 %v7517, %v7836
        %v7923 = vadd.f32 %v7522, %v7841
        %v7924 = vadd.f32 %v7527, %v7846
        %v7925 = vadd.f32 %v7532, %v7851
        %v7926 = vadd.f32 %v7537, %v7856
        %v7927 = vadd.f32 %v7542, %v7861
        %v7928 = vadd.f32 %v7547, %v7866
        %v7929 = vadd.f32 %v7552, %v7871
        %v7930 = vadd.f32 %v7557, %v7876
        %v7931 = vadd.f32 %v7562, %v7881
        %v7932 = vadd.f32 %v7567, %v7886
        %v7933 = vadd.f32 %v7572, %v7891
        %v7934 = vadd.f32 %v7577, %v7896
        %v7935 = vadd.f32 %v7582, %v7901
        %v7936 = vadd.f32 %v7587, %v7906
        %v7937 = vld [vmem:[#allocation2 + $0x10] sm:$0xff]
        %v7938 = vld [vmem:[#allocation2 + $0x18] sm:$0xff]
        %v7939 = vld [vmem:[#allocation2 + $0x20] sm:$0xff]
        %v7940 = vld [vmem:[#allocation2 + $0x28] sm:$0xff]
        %v7941 = vld [vmem:[#allocation2 + $0x30] sm:$0xff]
        %v7942 = vld [vmem:[#allocation2 + $0x38] sm:$0xff]
        %v7943 = vld [vmem:[#allocation2 + $0x40] sm:$0xff]
        %v7944 = vld [vmem:[#allocation2 + $0x48] sm:$0xff]
        %v7945 = vld [vmem:[#allocation2 + $0x50] sm:$0xff]
        %v7946 = vld [vmem:[#allocation2 + $0x58] sm:$0xff]
        %v7947 = vld [vmem:[#allocation2 + $0x60] sm:$0xff]
        %v7948 = vld [vmem:[#allocation2 + $0x68] sm:$0xff]
        %v7949 = vld [vmem:[#allocation2 + $0x70] sm:$0xff]
        %v7950 = vld [vmem:[#allocation2 + $0x78] sm:$0xff]
        %v7951 = vld [vmem:[#allocation2 + $0x80] sm:$0xff]
        %v7952 = vld [vmem:[#allocation2 + $0x88] sm:$0xff]
        %v7953 = vld [vmem:[#allocation2 + $0x90] sm:$0xff]
        %v7954 = vld [vmem:[#allocation2 + $0x98] sm:$0xff]
        %v7955 = vld [vmem:[#allocation2 + $0xa0] sm:$0xff]
        %v7956 = vld [vmem:[#allocation2 + $0xa8] sm:$0xff]
        %v7957 = vld [vmem:[#allocation2 + $0xb0] sm:$0xff]
        %v7958 = vld [vmem:[#allocation2 + $0xb8] sm:$0xff]
        %v7959 = vld [vmem:[#allocation2 + $0xc0] sm:$0xff]
        %v7960 = vld [vmem:[#allocation2 + $0xc8] sm:$0xff]
        %v7961 = vld [vmem:[#allocation2 + $0xd0] sm:$0xff]
        %v7962 = vld [vmem:[#allocation2 + $0xd8] sm:$0xff]
        %v7963 = vld [vmem:[#allocation2 + $0xe0] sm:$0xff]
        %v7964 = vld [vmem:[#allocation2 + $0xe8] sm:$0xff]
        %s7965 = scalar_lea.vmem %s4, 24
        %v7966 = vld [vmem:[%s7965] sm:$0xff]
        %v7968 = vsel %vm6773, %v7937, 0
        %v7971 = vsel %vm6773, %v7938, 0
        %v7974 = vsel %vm6773, %v7939, 0
        %v7977 = vsel %vm6773, %v7940, 0
        %v7980 = vsel %vm6773, %v7941, 0
        %v7983 = vsel %vm6773, %v7942, 0
        %v7986 = vsel %vm6773, %v7943, 0
        %v7989 = vsel %vm6773, %v7944, 0
        %v7992 = vsel %vm6773, %v7945, 0
        %v7995 = vsel %vm6773, %v7946, 0
        %v7998 = vsel %vm6773, %v7947, 0
        %v8001 = vsel %vm6773, %v7948, 0
        %v8004 = vsel %vm6773, %v7949, 0
        %v8007 = vsel %vm6773, %v7950, 0
        %v8010 = vsel %vm6773, %v7951, 0
        %v8013 = vsel %vm6773, %v7952, 0
        %v8016 = vsel %vm6773, %v7953, 0
        %v8019 = vsel %vm6773, %v7954, 0
        %v8022 = vsel %vm6773, %v7955, 0
        %v8025 = vsel %vm6773, %v7956, 0
        %v8028 = vsel %vm6773, %v7957, 0
        %v8031 = vsel %vm6773, %v7958, 0
        %v8034 = vsel %vm6773, %v7959, 0
        %v8037 = vsel %vm6773, %v7960, 0
        %v8040 = vsel %vm6773, %v7961, 0
        %v8043 = vsel %vm6773, %v7962, 0
        %v8046 = vsel %vm6773, %v7963, 0
        %v8049 = vsel %vm6773, %v7964, 0
        %8051 = vmatprep.subr.mxu0 0.0
        %8052 = vmatpush1.msra.mxu0 0.0
        %8053 = vmatprep.subr.mxu0 0.0
        %8054 = vmatpush1.msra.mxu0 0.0
        %8055 = vmatprep.subr.mxu0 0.0
        %8056 = vmatpush1.msra.mxu0 0.0
        %8057 = vmatprep.subr.mxu0 0.0
        %8058 = vmatpush1.msra.mxu0 0.0
        %8059 = vmatprep.subr.mxu0 0.0
        %8060 = vmatpush1.msra.mxu0 0.0
        %8061 = vmatprep.subr.mxu0 0.0
        %8062 = vmatpush1.msra.mxu0 0.0
        %8063 = vmatprep.subr.mxu0 0.0
        %8064 = vmatpush1.msra.mxu0 0.0
        %8065 = vmatprep.subr.mxu0 0.0
        %8066 = vmatpush1.msra.mxu0 0.0
        %8067 = vmatprep.subr.mxu0 0.0
        %8068 = vmatpush1.msra.mxu0 0.0
        %8069 = vmatprep.subr.mxu0 0.0
        %8070 = vmatpush1.msra.mxu0 0.0
        %8071 = vmatprep.subr.mxu0 0.0
        %8072 = vmatpush1.msra.mxu0 0.0
        %8073 = vmatprep.subr.mxu0 0.0
        %8074 = vmatpush1.msra.mxu0 0.0
        %8075 = vmatprep.subr.mxu0 0.0
        %8076 = vmatpush1.msra.mxu0 0.0
        %8077 = vmatprep.subr.mxu0 0.0
        %8078 = vmatpush1.msra.mxu0 0.0
        %8079 = vmatprep.subr.mxu0 0.0
        %8080 = vmatpush1.msra.mxu0 0.0
        %8081 = vmatprep.subr.mxu0 0.0
        %8082 = vmatpush1.msra.mxu0 %v7966
        %8083 = vmatprep.subr.mxu0 0.0
        %8084 = vmatpush2.msra.mxu0 0.0
        %8085 = vmatprep.subr.mxu0 0.0
        %8086 = vmatpush2.msra.mxu0 0.0
        %8087 = vmatprep.subr.mxu0 0.0
        %8088 = vmatpush2.msra.mxu0 0.0
        %8089 = vmatprep.subr.mxu0 0.0
        %8090 = vmatpush2.msra.mxu0 0.0
        %8091 = vmatprep.subr.mxu0 0.0
        %8092 = vmatpush2.msra.mxu0 0.0
        %8093 = vmatprep.subr.mxu0 0.0
        %8094 = vmatpush2.msra.mxu0 0.0
        %8095 = vmatprep.subr.mxu0 0.0
        %8096 = vmatpush2.msra.mxu0 0.0
        %8097 = vmatprep.subr.mxu0 0.0
        %8098 = vmatpush2.msra.mxu0 0.0
        %8099 = vmatprep.subr.mxu0 0.0
        %8100 = vmatpush2.msra.mxu0 0.0
        %8101 = vmatprep.subr.mxu0 0.0
        %8102 = vmatpush2.msra.mxu0 0.0
        %8103 = vmatprep.subr.mxu0 0.0
        %8104 = vmatpush2.msra.mxu0 0.0
        %8105 = vmatprep.subr.mxu0 0.0
        %8106 = vmatpush2.msra.mxu0 0.0
        %8107 = vmatprep.subr.mxu0 0.0
        %8108 = vmatpush2.msra.mxu0 0.0
        %8109 = vmatprep.subr.mxu0 0.0
        %8110 = vmatpush2.msra.mxu0 0.0
        %8111 = vmatprep.subr.mxu0 0.0
        %8112 = vmatpush2.msra.mxu0 0.0
        %8113 = vmatprep.subr.mxu0 0.0
        %8114 = vmatpush2.msra.mxu0 0.0
        %8115 = vmatprep.mubr.f32.mxu0 0.0
        %8116 = vmatmul.mubr.f32.gmra.mxu0 %v7968
        %v8117 = vpop.f32.mrf.mxu0
        %v8118 = vadd.f32 0.0, %v8117
        %v8119 = vpop.f32.mrf.mxu0
        %8120 = vmatprep.mubr.f32.mxu0 0.0
        %8121 = vmatmul.mubr.f32.gmra.mxu0 %v7971
        %v8122 = vpop.f32.mrf.mxu0
        %v8123 = vadd.f32 0.0, %v8122
        %v8124 = vpop.f32.mrf.mxu0
        %8125 = vmatprep.mubr.f32.mxu0 0.0
        %8126 = vmatmul.mubr.f32.gmra.mxu0 %v7974
        %v8127 = vpop.f32.mrf.mxu0
        %v8128 = vadd.f32 0.0, %v8127
        %v8129 = vpop.f32.mrf.mxu0
        %8130 = vmatprep.mubr.f32.mxu0 0.0
        %8131 = vmatmul.mubr.f32.gmra.mxu0 %v7977
        %v8132 = vpop.f32.mrf.mxu0
        %v8133 = vadd.f32 0.0, %v8132
        %v8134 = vpop.f32.mrf.mxu0
        %8135 = vmatprep.mubr.f32.mxu0 0.0
        %8136 = vmatmul.mubr.f32.gmra.mxu0 %v7980
        %v8137 = vpop.f32.mrf.mxu0
        %v8138 = vadd.f32 0.0, %v8137
        %v8139 = vpop.f32.mrf.mxu0
        %8140 = vmatprep.mubr.f32.mxu0 0.0
        %8141 = vmatmul.mubr.f32.gmra.mxu0 %v7983
        %v8142 = vpop.f32.mrf.mxu0
        %v8143 = vadd.f32 0.0, %v8142
        %v8144 = vpop.f32.mrf.mxu0
        %8145 = vmatprep.mubr.f32.mxu0 0.0
        %8146 = vmatmul.mubr.f32.gmra.mxu0 %v7986
        %v8147 = vpop.f32.mrf.mxu0
        %v8148 = vadd.f32 0.0, %v8147
        %v8149 = vpop.f32.mrf.mxu0
        %8150 = vmatprep.mubr.f32.mxu0 0.0
        %8151 = vmatmul.mubr.f32.gmra.mxu0 %v7989
        %v8152 = vpop.f32.mrf.mxu0
        %v8153 = vadd.f32 0.0, %v8152
        %v8154 = vpop.f32.mrf.mxu0
        %8155 = vmatprep.mubr.f32.mxu0 0.0
        %8156 = vmatmul.mubr.f32.gmra.mxu0 %v7992
        %v8157 = vpop.f32.mrf.mxu0
        %v8158 = vadd.f32 0.0, %v8157
        %v8159 = vpop.f32.mrf.mxu0
        %8160 = vmatprep.mubr.f32.mxu0 0.0
        %8161 = vmatmul.mubr.f32.gmra.mxu0 %v7995
        %v8162 = vpop.f32.mrf.mxu0
        %v8163 = vadd.f32 0.0, %v8162
        %v8164 = vpop.f32.mrf.mxu0
        %8165 = vmatprep.mubr.f32.mxu0 0.0
        %8166 = vmatmul.mubr.f32.gmra.mxu0 %v7998
        %v8167 = vpop.f32.mrf.mxu0
        %v8168 = vadd.f32 0.0, %v8167
        %v8169 = vpop.f32.mrf.mxu0
        %8170 = vmatprep.mubr.f32.mxu0 0.0
        %8171 = vmatmul.mubr.f32.gmra.mxu0 %v8001
        %v8172 = vpop.f32.mrf.mxu0
        %v8173 = vadd.f32 0.0, %v8172
        %v8174 = vpop.f32.mrf.mxu0
        %8175 = vmatprep.mubr.f32.mxu0 0.0
        %8176 = vmatmul.mubr.f32.gmra.mxu0 %v8004
        %v8177 = vpop.f32.mrf.mxu0
        %v8178 = vadd.f32 0.0, %v8177
        %v8179 = vpop.f32.mrf.mxu0
        %8180 = vmatprep.mubr.f32.mxu0 0.0
        %8181 = vmatmul.mubr.f32.gmra.mxu0 %v8007
        %v8182 = vpop.f32.mrf.mxu0
        %v8183 = vadd.f32 0.0, %v8182
        %v8184 = vpop.f32.mrf.mxu0
        %8185 = vmatprep.mubr.f32.mxu0 0.0
        %8186 = vmatmul.mubr.f32.gmra.mxu0 %v8010
        %v8187 = vpop.f32.mrf.mxu0
        %v8188 = vadd.f32 0.0, %v8187
        %v8189 = vpop.f32.mrf.mxu0
        %8190 = vmatprep.mubr.f32.mxu0 0.0
        %8191 = vmatmul.mubr.f32.gmra.mxu0 %v8013
        %v8192 = vpop.f32.mrf.mxu0
        %v8193 = vadd.f32 0.0, %v8192
        %v8194 = vpop.f32.mrf.mxu0
        %8195 = vmatprep.mubr.f32.mxu0 0.0
        %8196 = vmatmul.mubr.f32.gmra.mxu0 %v8016
        %v8197 = vpop.f32.mrf.mxu0
        %v8198 = vadd.f32 0.0, %v8197
        %v8199 = vpop.f32.mrf.mxu0
        %8200 = vmatprep.mubr.f32.mxu0 0.0
        %8201 = vmatmul.mubr.f32.gmra.mxu0 %v8019
        %v8202 = vpop.f32.mrf.mxu0
        %v8203 = vadd.f32 0.0, %v8202
        %v8204 = vpop.f32.mrf.mxu0
        %8205 = vmatprep.mubr.f32.mxu0 0.0
        %8206 = vmatmul.mubr.f32.gmra.mxu0 %v8022
        %v8207 = vpop.f32.mrf.mxu0
        %v8208 = vadd.f32 0.0, %v8207
        %v8209 = vpop.f32.mrf.mxu0
        %8210 = vmatprep.mubr.f32.mxu0 0.0
        %8211 = vmatmul.mubr.f32.gmra.mxu0 %v8025
        %v8212 = vpop.f32.mrf.mxu0
        %v8213 = vadd.f32 0.0, %v8212
        %v8214 = vpop.f32.mrf.mxu0
        %8215 = vmatprep.mubr.f32.mxu0 0.0
        %8216 = vmatmul.mubr.f32.gmra.mxu0 %v8028
        %v8217 = vpop.f32.mrf.mxu0
        %v8218 = vadd.f32 0.0, %v8217
        %v8219 = vpop.f32.mrf.mxu0
        %8220 = vmatprep.mubr.f32.mxu0 0.0
        %8221 = vmatmul.mubr.f32.gmra.mxu0 %v8031
        %v8222 = vpop.f32.mrf.mxu0
        %v8223 = vadd.f32 0.0, %v8222
        %v8224 = vpop.f32.mrf.mxu0
        %8225 = vmatprep.mubr.f32.mxu0 0.0
        %8226 = vmatmul.mubr.f32.gmra.mxu0 %v8034
        %v8227 = vpop.f32.mrf.mxu0
        %v8228 = vadd.f32 0.0, %v8227
        %v8229 = vpop.f32.mrf.mxu0
        %8230 = vmatprep.mubr.f32.mxu0 0.0
        %8231 = vmatmul.mubr.f32.gmra.mxu0 %v8037
        %v8232 = vpop.f32.mrf.mxu0
        %v8233 = vadd.f32 0.0, %v8232
        %v8234 = vpop.f32.mrf.mxu0
        %8235 = vmatprep.mubr.f32.mxu0 0.0
        %8236 = vmatmul.mubr.f32.gmra.mxu0 %v8040
        %v8237 = vpop.f32.mrf.mxu0
        %v8238 = vadd.f32 0.0, %v8237
        %v8239 = vpop.f32.mrf.mxu0
        %8240 = vmatprep.mubr.f32.mxu0 0.0
        %8241 = vmatmul.mubr.f32.gmra.mxu0 %v8043
        %v8242 = vpop.f32.mrf.mxu0
        %v8243 = vadd.f32 0.0, %v8242
        %v8244 = vpop.f32.mrf.mxu0
        %8245 = vmatprep.mubr.f32.mxu0 0.0
        %8246 = vmatmul.mubr.f32.gmra.mxu0 %v8046
        %v8247 = vpop.f32.mrf.mxu0
        %v8248 = vadd.f32 0.0, %v8247
        %v8249 = vpop.f32.mrf.mxu0
        %8250 = vmatprep.mubr.f32.mxu0 0.0
        %8251 = vmatmul.mubr.f32.gmra.mxu0 %v8049
        %v8252 = vpop.f32.mrf.mxu0
        %v8253 = vadd.f32 0.0, %v8252
        %v8254 = vpop.f32.mrf.mxu0
        %8255 = vdwg.mxu0
        %v8256 = vadd.f32 %v7909, %v8118
        %v8257 = vadd.f32 %v7910, %v8123
        %v8258 = vadd.f32 %v7911, %v8128
        %v8259 = vadd.f32 %v7912, %v8133
        %v8260 = vadd.f32 %v7913, %v8138
        %v8261 = vadd.f32 %v7914, %v8143
        %v8262 = vadd.f32 %v7915, %v8148
        %v8263 = vadd.f32 %v7916, %v8153
        %v8264 = vadd.f32 %v7917, %v8158
        %v8265 = vadd.f32 %v7918, %v8163
        %v8266 = vadd.f32 %v7919, %v8168
        %v8267 = vadd.f32 %v7920, %v8173
        %v8268 = vadd.f32 %v7921, %v8178
        %v8269 = vadd.f32 %v7922, %v8183
        %v8270 = vadd.f32 %v7923, %v8188
        %v8271 = vadd.f32 %v7924, %v8193
        %v8272 = vadd.f32 %v7925, %v8198
        %v8273 = vadd.f32 %v7926, %v8203
        %v8274 = vadd.f32 %v7927, %v8208
        %v8275 = vadd.f32 %v7928, %v8213
        %v8276 = vadd.f32 %v7929, %v8218
        %v8277 = vadd.f32 %v7930, %v8223
        %v8278 = vadd.f32 %v7931, %v8228
        %v8279 = vadd.f32 %v7932, %v8233
        %v8280 = vadd.f32 %v7933, %v8238
        %v8281 = vadd.f32 %v7934, %v8243
        %v8282 = vadd.f32 %v7935, %v8248
        %v8283 = vadd.f32 %v7936, %v8253
        %v8284 = vld [vmem:[#allocation2 + $0x11] sm:$0xff]
        %v8285 = vld [vmem:[#allocation2 + $0x19] sm:$0xff]
        %v8286 = vld [vmem:[#allocation2 + $0x21] sm:$0xff]
        %v8287 = vld [vmem:[#allocation2 + $0x29] sm:$0xff]
        %v8288 = vld [vmem:[#allocation2 + $0x31] sm:$0xff]
        %v8289 = vld [vmem:[#allocation2 + $0x39] sm:$0xff]
        %v8290 = vld [vmem:[#allocation2 + $0x41] sm:$0xff]
        %v8291 = vld [vmem:[#allocation2 + $0x49] sm:$0xff]
        %v8292 = vld [vmem:[#allocation2 + $0x51] sm:$0xff]
        %v8293 = vld [vmem:[#allocation2 + $0x59] sm:$0xff]
        %v8294 = vld [vmem:[#allocation2 + $0x61] sm:$0xff]
        %v8295 = vld [vmem:[#allocation2 + $0x69] sm:$0xff]
        %v8296 = vld [vmem:[#allocation2 + $0x71] sm:$0xff]
        %v8297 = vld [vmem:[#allocation2 + $0x79] sm:$0xff]
        %v8298 = vld [vmem:[#allocation2 + $0x81] sm:$0xff]
        %v8299 = vld [vmem:[#allocation2 + $0x89] sm:$0xff]
        %v8300 = vld [vmem:[#allocation2 + $0x91] sm:$0xff]
        %v8301 = vld [vmem:[#allocation2 + $0x99] sm:$0xff]
        %v8302 = vld [vmem:[#allocation2 + $0xa1] sm:$0xff]
        %v8303 = vld [vmem:[#allocation2 + $0xa9] sm:$0xff]
        %v8304 = vld [vmem:[#allocation2 + $0xb1] sm:$0xff]
        %v8305 = vld [vmem:[#allocation2 + $0xb9] sm:$0xff]
        %v8306 = vld [vmem:[#allocation2 + $0xc1] sm:$0xff]
        %v8307 = vld [vmem:[#allocation2 + $0xc9] sm:$0xff]
        %v8308 = vld [vmem:[#allocation2 + $0xd1] sm:$0xff]
        %v8309 = vld [vmem:[#allocation2 + $0xd9] sm:$0xff]
        %v8310 = vld [vmem:[#allocation2 + $0xe1] sm:$0xff]
        %v8311 = vld [vmem:[#allocation2 + $0xe9] sm:$0xff]
        %s8312 = scalar_lea.vmem %s4, 32
        %v8313 = vld [vmem:[%s8312] sm:$0xff]
        %v8315 = vsel %vm6773, %v8284, 0
        %v8318 = vsel %vm6773, %v8285, 0
        %v8321 = vsel %vm6773, %v8286, 0
        %v8324 = vsel %vm6773, %v8287, 0
        %v8327 = vsel %vm6773, %v8288, 0
        %v8330 = vsel %vm6773, %v8289, 0
        %v8333 = vsel %vm6773, %v8290, 0
        %v8336 = vsel %vm6773, %v8291, 0
        %v8339 = vsel %vm6773, %v8292, 0
        %v8342 = vsel %vm6773, %v8293, 0
        %v8345 = vsel %vm6773, %v8294, 0
        %v8348 = vsel %vm6773, %v8295, 0
        %v8351 = vsel %vm6773, %v8296, 0
        %v8354 = vsel %vm6773, %v8297, 0
        %v8357 = vsel %vm6773, %v8298, 0
        %v8360 = vsel %vm6773, %v8299, 0
        %v8363 = vsel %vm6773, %v8300, 0
        %v8366 = vsel %vm6773, %v8301, 0
        %v8369 = vsel %vm6773, %v8302, 0
        %v8372 = vsel %vm6773, %v8303, 0
        %v8375 = vsel %vm6773, %v8304, 0
        %v8378 = vsel %vm6773, %v8305, 0
        %v8381 = vsel %vm6773, %v8306, 0
        %v8384 = vsel %vm6773, %v8307, 0
        %v8387 = vsel %vm6773, %v8308, 0
        %v8390 = vsel %vm6773, %v8309, 0
        %v8393 = vsel %vm6773, %v8310, 0
        %v8396 = vsel %vm6773, %v8311, 0
        %8398 = vmatprep.subr.mxu0 0.0
        %8399 = vmatpush1.msra.mxu0 0.0
        %8400 = vmatprep.subr.mxu0 0.0
        %8401 = vmatpush1.msra.mxu0 0.0
        %8402 = vmatprep.subr.mxu0 0.0
        %8403 = vmatpush1.msra.mxu0 0.0
        %8404 = vmatprep.subr.mxu0 0.0
        %8405 = vmatpush1.msra.mxu0 0.0
        %8406 = vmatprep.subr.mxu0 0.0
        %8407 = vmatpush1.msra.mxu0 0.0
        %8408 = vmatprep.subr.mxu0 0.0
        %8409 = vmatpush1.msra.mxu0 0.0
        %8410 = vmatprep.subr.mxu0 0.0
        %8411 = vmatpush1.msra.mxu0 0.0
        %8412 = vmatprep.subr.mxu0 0.0
        %8413 = vmatpush1.msra.mxu0 0.0
        %8414 = vmatprep.subr.mxu0 0.0
        %8415 = vmatpush1.msra.mxu0 0.0
        %8416 = vmatprep.subr.mxu0 0.0
        %8417 = vmatpush1.msra.mxu0 0.0
        %8418 = vmatprep.subr.mxu0 0.0
        %8419 = vmatpush1.msra.mxu0 0.0
        %8420 = vmatprep.subr.mxu0 0.0
        %8421 = vmatpush1.msra.mxu0 0.0
        %8422 = vmatprep.subr.mxu0 0.0
        %8423 = vmatpush1.msra.mxu0 0.0
        %8424 = vmatprep.subr.mxu0 0.0
        %8425 = vmatpush1.msra.mxu0 0.0
        %8426 = vmatprep.subr.mxu0 0.0
        %8427 = vmatpush1.msra.mxu0 0.0
        %8428 = vmatprep.subr.mxu0 0.0
        %8429 = vmatpush1.msra.mxu0 %v8313
        %8430 = vmatprep.subr.mxu0 0.0
        %8431 = vmatpush2.msra.mxu0 0.0
        %8432 = vmatprep.subr.mxu0 0.0
        %8433 = vmatpush2.msra.mxu0 0.0
        %8434 = vmatprep.subr.mxu0 0.0
        %8435 = vmatpush2.msra.mxu0 0.0
        %8436 = vmatprep.subr.mxu0 0.0
        %8437 = vmatpush2.msra.mxu0 0.0
        %8438 = vmatprep.subr.mxu0 0.0
        %8439 = vmatpush2.msra.mxu0 0.0
        %8440 = vmatprep.subr.mxu0 0.0
        %8441 = vmatpush2.msra.mxu0 0.0
        %8442 = vmatprep.subr.mxu0 0.0
        %8443 = vmatpush2.msra.mxu0 0.0
        %8444 = vmatprep.subr.mxu0 0.0
        %8445 = vmatpush2.msra.mxu0 0.0
        %8446 = vmatprep.subr.mxu0 0.0
        %8447 = vmatpush2.msra.mxu0 0.0
        %8448 = vmatprep.subr.mxu0 0.0
        %8449 = vmatpush2.msra.mxu0 0.0
        %8450 = vmatprep.subr.mxu0 0.0
        %8451 = vmatpush2.msra.mxu0 0.0
        %8452 = vmatprep.subr.mxu0 0.0
        %8453 = vmatpush2.msra.mxu0 0.0
        %8454 = vmatprep.subr.mxu0 0.0
        %8455 = vmatpush2.msra.mxu0 0.0
        %8456 = vmatprep.subr.mxu0 0.0
        %8457 = vmatpush2.msra.mxu0 0.0
        %8458 = vmatprep.subr.mxu0 0.0
        %8459 = vmatpush2.msra.mxu0 0.0
        %8460 = vmatprep.subr.mxu0 0.0
        %8461 = vmatpush2.msra.mxu0 0.0
        %8462 = vmatprep.mubr.f32.mxu0 0.0
        %8463 = vmatmul.mubr.f32.gmra.mxu0 %v8315
        %v8464 = vpop.f32.mrf.mxu0
        %v8465 = vadd.f32 0.0, %v8464
        %v8466 = vpop.f32.mrf.mxu0
        %8467 = vmatprep.mubr.f32.mxu0 0.0
        %8468 = vmatmul.mubr.f32.gmra.mxu0 %v8318
        %v8469 = vpop.f32.mrf.mxu0
        %v8470 = vadd.f32 0.0, %v8469
        %v8471 = vpop.f32.mrf.mxu0
        %8472 = vmatprep.mubr.f32.mxu0 0.0
        %8473 = vmatmul.mubr.f32.gmra.mxu0 %v8321
        %v8474 = vpop.f32.mrf.mxu0
        %v8475 = vadd.f32 0.0, %v8474
        %v8476 = vpop.f32.mrf.mxu0
        %8477 = vmatprep.mubr.f32.mxu0 0.0
        %8478 = vmatmul.mubr.f32.gmra.mxu0 %v8324
        %v8479 = vpop.f32.mrf.mxu0
        %v8480 = vadd.f32 0.0, %v8479
        %v8481 = vpop.f32.mrf.mxu0
        %8482 = vmatprep.mubr.f32.mxu0 0.0
        %8483 = vmatmul.mubr.f32.gmra.mxu0 %v8327
        %v8484 = vpop.f32.mrf.mxu0
        %v8485 = vadd.f32 0.0, %v8484
        %v8486 = vpop.f32.mrf.mxu0
        %8487 = vmatprep.mubr.f32.mxu0 0.0
        %8488 = vmatmul.mubr.f32.gmra.mxu0 %v8330
        %v8489 = vpop.f32.mrf.mxu0
        %v8490 = vadd.f32 0.0, %v8489
        %v8491 = vpop.f32.mrf.mxu0
        %8492 = vmatprep.mubr.f32.mxu0 0.0
        %8493 = vmatmul.mubr.f32.gmra.mxu0 %v8333
        %v8494 = vpop.f32.mrf.mxu0
        %v8495 = vadd.f32 0.0, %v8494
        %v8496 = vpop.f32.mrf.mxu0
        %8497 = vmatprep.mubr.f32.mxu0 0.0
        %8498 = vmatmul.mubr.f32.gmra.mxu0 %v8336
        %v8499 = vpop.f32.mrf.mxu0
        %v8500 = vadd.f32 0.0, %v8499
        %v8501 = vpop.f32.mrf.mxu0
        %8502 = vmatprep.mubr.f32.mxu0 0.0
        %8503 = vmatmul.mubr.f32.gmra.mxu0 %v8339
        %v8504 = vpop.f32.mrf.mxu0
        %v8505 = vadd.f32 0.0, %v8504
        %v8506 = vpop.f32.mrf.mxu0
        %8507 = vmatprep.mubr.f32.mxu0 0.0
        %8508 = vmatmul.mubr.f32.gmra.mxu0 %v8342
        %v8509 = vpop.f32.mrf.mxu0
        %v8510 = vadd.f32 0.0, %v8509
        %v8511 = vpop.f32.mrf.mxu0
        %8512 = vmatprep.mubr.f32.mxu0 0.0
        %8513 = vmatmul.mubr.f32.gmra.mxu0 %v8345
        %v8514 = vpop.f32.mrf.mxu0
        %v8515 = vadd.f32 0.0, %v8514
        %v8516 = vpop.f32.mrf.mxu0
        %8517 = vmatprep.mubr.f32.mxu0 0.0
        %8518 = vmatmul.mubr.f32.gmra.mxu0 %v8348
        %v8519 = vpop.f32.mrf.mxu0
        %v8520 = vadd.f32 0.0, %v8519
        %v8521 = vpop.f32.mrf.mxu0
        %8522 = vmatprep.mubr.f32.mxu0 0.0
        %8523 = vmatmul.mubr.f32.gmra.mxu0 %v8351
        %v8524 = vpop.f32.mrf.mxu0
        %v8525 = vadd.f32 0.0, %v8524
        %v8526 = vpop.f32.mrf.mxu0
        %8527 = vmatprep.mubr.f32.mxu0 0.0
        %8528 = vmatmul.mubr.f32.gmra.mxu0 %v8354
        %v8529 = vpop.f32.mrf.mxu0
        %v8530 = vadd.f32 0.0, %v8529
        %v8531 = vpop.f32.mrf.mxu0
        %8532 = vmatprep.mubr.f32.mxu0 0.0
        %8533 = vmatmul.mubr.f32.gmra.mxu0 %v8357
        %v8534 = vpop.f32.mrf.mxu0
        %v8535 = vadd.f32 0.0, %v8534
        %v8536 = vpop.f32.mrf.mxu0
        %8537 = vmatprep.mubr.f32.mxu0 0.0
        %8538 = vmatmul.mubr.f32.gmra.mxu0 %v8360
        %v8539 = vpop.f32.mrf.mxu0
        %v8540 = vadd.f32 0.0, %v8539
        %v8541 = vpop.f32.mrf.mxu0
        %8542 = vmatprep.mubr.f32.mxu0 0.0
        %8543 = vmatmul.mubr.f32.gmra.mxu0 %v8363
        %v8544 = vpop.f32.mrf.mxu0
        %v8545 = vadd.f32 0.0, %v8544
        %v8546 = vpop.f32.mrf.mxu0
        %8547 = vmatprep.mubr.f32.mxu0 0.0
        %8548 = vmatmul.mubr.f32.gmra.mxu0 %v8366
        %v8549 = vpop.f32.mrf.mxu0
        %v8550 = vadd.f32 0.0, %v8549
        %v8551 = vpop.f32.mrf.mxu0
        %8552 = vmatprep.mubr.f32.mxu0 0.0
        %8553 = vmatmul.mubr.f32.gmra.mxu0 %v8369
        %v8554 = vpop.f32.mrf.mxu0
        %v8555 = vadd.f32 0.0, %v8554
        %v8556 = vpop.f32.mrf.mxu0
        %8557 = vmatprep.mubr.f32.mxu0 0.0
        %8558 = vmatmul.mubr.f32.gmra.mxu0 %v8372
        %v8559 = vpop.f32.mrf.mxu0
        %v8560 = vadd.f32 0.0, %v8559
        %v8561 = vpop.f32.mrf.mxu0
        %8562 = vmatprep.mubr.f32.mxu0 0.0
        %8563 = vmatmul.mubr.f32.gmra.mxu0 %v8375
        %v8564 = vpop.f32.mrf.mxu0
        %v8565 = vadd.f32 0.0, %v8564
        %v8566 = vpop.f32.mrf.mxu0
        %8567 = vmatprep.mubr.f32.mxu0 0.0
        %8568 = vmatmul.mubr.f32.gmra.mxu0 %v8378
        %v8569 = vpop.f32.mrf.mxu0
        %v8570 = vadd.f32 0.0, %v8569
        %v8571 = vpop.f32.mrf.mxu0
        %8572 = vmatprep.mubr.f32.mxu0 0.0
        %8573 = vmatmul.mubr.f32.gmra.mxu0 %v8381
        %v8574 = vpop.f32.mrf.mxu0
        %v8575 = vadd.f32 0.0, %v8574
        %v8576 = vpop.f32.mrf.mxu0
        %8577 = vmatprep.mubr.f32.mxu0 0.0
        %8578 = vmatmul.mubr.f32.gmra.mxu0 %v8384
        %v8579 = vpop.f32.mrf.mxu0
        %v8580 = vadd.f32 0.0, %v8579
        %v8581 = vpop.f32.mrf.mxu0
        %8582 = vmatprep.mubr.f32.mxu0 0.0
        %8583 = vmatmul.mubr.f32.gmra.mxu0 %v8387
        %v8584 = vpop.f32.mrf.mxu0
        %v8585 = vadd.f32 0.0, %v8584
        %v8586 = vpop.f32.mrf.mxu0
        %8587 = vmatprep.mubr.f32.mxu0 0.0
        %8588 = vmatmul.mubr.f32.gmra.mxu0 %v8390
        %v8589 = vpop.f32.mrf.mxu0
        %v8590 = vadd.f32 0.0, %v8589
        %v8591 = vpop.f32.mrf.mxu0
        %8592 = vmatprep.mubr.f32.mxu0 0.0
        %8593 = vmatmul.mubr.f32.gmra.mxu0 %v8393
        %v8594 = vpop.f32.mrf.mxu0
        %v8595 = vadd.f32 0.0, %v8594
        %v8596 = vpop.f32.mrf.mxu0
        %8597 = vmatprep.mubr.f32.mxu0 0.0
        %8598 = vmatmul.mubr.f32.gmra.mxu0 %v8396
        %v8599 = vpop.f32.mrf.mxu0
        %v8600 = vadd.f32 0.0, %v8599
        %v8601 = vpop.f32.mrf.mxu0
        %8602 = vdwg.mxu0
        %v8603 = vadd.f32 %v8256, %v8465
        %v8604 = vadd.f32 %v8257, %v8470
        %v8605 = vadd.f32 %v8258, %v8475
        %v8606 = vadd.f32 %v8259, %v8480
        %v8607 = vadd.f32 %v8260, %v8485
        %v8608 = vadd.f32 %v8261, %v8490
        %v8609 = vadd.f32 %v8262, %v8495
        %v8610 = vadd.f32 %v8263, %v8500
        %v8611 = vadd.f32 %v8264, %v8505
        %v8612 = vadd.f32 %v8265, %v8510
        %v8613 = vadd.f32 %v8266, %v8515
        %v8614 = vadd.f32 %v8267, %v8520
        %v8615 = vadd.f32 %v8268, %v8525
        %v8616 = vadd.f32 %v8269, %v8530
        %v8617 = vadd.f32 %v8270, %v8535
        %v8618 = vadd.f32 %v8271, %v8540
        %v8619 = vadd.f32 %v8272, %v8545
        %v8620 = vadd.f32 %v8273, %v8550
        %v8621 = vadd.f32 %v8274, %v8555
        %v8622 = vadd.f32 %v8275, %v8560
        %v8623 = vadd.f32 %v8276, %v8565
        %v8624 = vadd.f32 %v8277, %v8570
        %v8625 = vadd.f32 %v8278, %v8575
        %v8626 = vadd.f32 %v8279, %v8580
        %v8627 = vadd.f32 %v8280, %v8585
        %v8628 = vadd.f32 %v8281, %v8590
        %v8629 = vadd.f32 %v8282, %v8595
        %v8630 = vadd.f32 %v8283, %v8600
        %v8631 = vld [vmem:[#allocation2 + $0x12] sm:$0xff]
        %v8632 = vld [vmem:[#allocation2 + $0x1a] sm:$0xff]
        %v8633 = vld [vmem:[#allocation2 + $0x22] sm:$0xff]
        %v8634 = vld [vmem:[#allocation2 + $0x2a] sm:$0xff]
        %v8635 = vld [vmem:[#allocation2 + $0x32] sm:$0xff]
        %v8636 = vld [vmem:[#allocation2 + $0x3a] sm:$0xff]
        %v8637 = vld [vmem:[#allocation2 + $0x42] sm:$0xff]
        %v8638 = vld [vmem:[#allocation2 + $0x4a] sm:$0xff]
        %v8639 = vld [vmem:[#allocation2 + $0x52] sm:$0xff]
        %v8640 = vld [vmem:[#allocation2 + $0x5a] sm:$0xff]
        %v8641 = vld [vmem:[#allocation2 + $0x62] sm:$0xff]
        %v8642 = vld [vmem:[#allocation2 + $0x6a] sm:$0xff]
        %v8643 = vld [vmem:[#allocation2 + $0x72] sm:$0xff]
        %v8644 = vld [vmem:[#allocation2 + $0x7a] sm:$0xff]
        %v8645 = vld [vmem:[#allocation2 + $0x82] sm:$0xff]
        %v8646 = vld [vmem:[#allocation2 + $0x8a] sm:$0xff]
        %v8647 = vld [vmem:[#allocation2 + $0x92] sm:$0xff]
        %v8648 = vld [vmem:[#allocation2 + $0x9a] sm:$0xff]
        %v8649 = vld [vmem:[#allocation2 + $0xa2] sm:$0xff]
        %v8650 = vld [vmem:[#allocation2 + $0xaa] sm:$0xff]
        %v8651 = vld [vmem:[#allocation2 + $0xb2] sm:$0xff]
        %v8652 = vld [vmem:[#allocation2 + $0xba] sm:$0xff]
        %v8653 = vld [vmem:[#allocation2 + $0xc2] sm:$0xff]
        %v8654 = vld [vmem:[#allocation2 + $0xca] sm:$0xff]
        %v8655 = vld [vmem:[#allocation2 + $0xd2] sm:$0xff]
        %v8656 = vld [vmem:[#allocation2 + $0xda] sm:$0xff]
        %v8657 = vld [vmem:[#allocation2 + $0xe2] sm:$0xff]
        %v8658 = vld [vmem:[#allocation2 + $0xea] sm:$0xff]
        %s8659 = scalar_lea.vmem %s4, 40
        %v8660 = vld [vmem:[%s8659] sm:$0xff]
        %v8662 = vsel %vm6773, %v8631, 0
        %v8665 = vsel %vm6773, %v8632, 0
        %v8668 = vsel %vm6773, %v8633, 0
        %v8671 = vsel %vm6773, %v8634, 0
        %v8674 = vsel %vm6773, %v8635, 0
        %v8677 = vsel %vm6773, %v8636, 0
        %v8680 = vsel %vm6773, %v8637, 0
        %v8683 = vsel %vm6773, %v8638, 0
        %v8686 = vsel %vm6773, %v8639, 0
        %v8689 = vsel %vm6773, %v8640, 0
        %v8692 = vsel %vm6773, %v8641, 0
        %v8695 = vsel %vm6773, %v8642, 0
        %v8698 = vsel %vm6773, %v8643, 0
        %v8701 = vsel %vm6773, %v8644, 0
        %v8704 = vsel %vm6773, %v8645, 0
        %v8707 = vsel %vm6773, %v8646, 0
        %v8710 = vsel %vm6773, %v8647, 0
        %v8713 = vsel %vm6773, %v8648, 0
        %v8716 = vsel %vm6773, %v8649, 0
        %v8719 = vsel %vm6773, %v8650, 0
        %v8722 = vsel %vm6773, %v8651, 0
        %v8725 = vsel %vm6773, %v8652, 0
        %v8728 = vsel %vm6773, %v8653, 0
        %v8731 = vsel %vm6773, %v8654, 0
        %v8734 = vsel %vm6773, %v8655, 0
        %v8737 = vsel %vm6773, %v8656, 0
        %v8740 = vsel %vm6773, %v8657, 0
        %v8743 = vsel %vm6773, %v8658, 0
        %8745 = vmatprep.subr.mxu0 0.0
        %8746 = vmatpush1.msra.mxu0 0.0
        %8747 = vmatprep.subr.mxu0 0.0
        %8748 = vmatpush1.msra.mxu0 0.0
        %8749 = vmatprep.subr.mxu0 0.0
        %8750 = vmatpush1.msra.mxu0 0.0
        %8751 = vmatprep.subr.mxu0 0.0
        %8752 = vmatpush1.msra.mxu0 0.0
        %8753 = vmatprep.subr.mxu0 0.0
        %8754 = vmatpush1.msra.mxu0 0.0
        %8755 = vmatprep.subr.mxu0 0.0
        %8756 = vmatpush1.msra.mxu0 0.0
        %8757 = vmatprep.subr.mxu0 0.0
        %8758 = vmatpush1.msra.mxu0 0.0
        %8759 = vmatprep.subr.mxu0 0.0
        %8760 = vmatpush1.msra.mxu0 0.0
        %8761 = vmatprep.subr.mxu0 0.0
        %8762 = vmatpush1.msra.mxu0 0.0
        %8763 = vmatprep.subr.mxu0 0.0
        %8764 = vmatpush1.msra.mxu0 0.0
        %8765 = vmatprep.subr.mxu0 0.0
        %8766 = vmatpush1.msra.mxu0 0.0
        %8767 = vmatprep.subr.mxu0 0.0
        %8768 = vmatpush1.msra.mxu0 0.0
        %8769 = vmatprep.subr.mxu0 0.0
        %8770 = vmatpush1.msra.mxu0 0.0
        %8771 = vmatprep.subr.mxu0 0.0
        %8772 = vmatpush1.msra.mxu0 0.0
        %8773 = vmatprep.subr.mxu0 0.0
        %8774 = vmatpush1.msra.mxu0 0.0
        %8775 = vmatprep.subr.mxu0 0.0
        %8776 = vmatpush1.msra.mxu0 %v8660
        %8777 = vmatprep.subr.mxu0 0.0
        %8778 = vmatpush2.msra.mxu0 0.0
        %8779 = vmatprep.subr.mxu0 0.0
        %8780 = vmatpush2.msra.mxu0 0.0
        %8781 = vmatprep.subr.mxu0 0.0
        %8782 = vmatpush2.msra.mxu0 0.0
        %8783 = vmatprep.subr.mxu0 0.0
        %8784 = vmatpush2.msra.mxu0 0.0
        %8785 = vmatprep.subr.mxu0 0.0
        %8786 = vmatpush2.msra.mxu0 0.0
        %8787 = vmatprep.subr.mxu0 0.0
        %8788 = vmatpush2.msra.mxu0 0.0
        %8789 = vmatprep.subr.mxu0 0.0
        %8790 = vmatpush2.msra.mxu0 0.0
        %8791 = vmatprep.subr.mxu0 0.0
        %8792 = vmatpush2.msra.mxu0 0.0
        %8793 = vmatprep.subr.mxu0 0.0
        %8794 = vmatpush2.msra.mxu0 0.0
        %8795 = vmatprep.subr.mxu0 0.0
        %8796 = vmatpush2.msra.mxu0 0.0
        %8797 = vmatprep.subr.mxu0 0.0
        %8798 = vmatpush2.msra.mxu0 0.0
        %8799 = vmatprep.subr.mxu0 0.0
        %8800 = vmatpush2.msra.mxu0 0.0
        %8801 = vmatprep.subr.mxu0 0.0
        %8802 = vmatpush2.msra.mxu0 0.0
        %8803 = vmatprep.subr.mxu0 0.0
        %8804 = vmatpush2.msra.mxu0 0.0
        %8805 = vmatprep.subr.mxu0 0.0
        %8806 = vmatpush2.msra.mxu0 0.0
        %8807 = vmatprep.subr.mxu0 0.0
        %8808 = vmatpush2.msra.mxu0 0.0
        %8809 = vmatprep.mubr.f32.mxu0 0.0
        %8810 = vmatmul.mubr.f32.gmra.mxu0 %v8662
        %v8811 = vpop.f32.mrf.mxu0
        %v8812 = vadd.f32 0.0, %v8811
        %v8813 = vpop.f32.mrf.mxu0
        %8814 = vmatprep.mubr.f32.mxu0 0.0
        %8815 = vmatmul.mubr.f32.gmra.mxu0 %v8665
        %v8816 = vpop.f32.mrf.mxu0
        %v8817 = vadd.f32 0.0, %v8816
        %v8818 = vpop.f32.mrf.mxu0
        %8819 = vmatprep.mubr.f32.mxu0 0.0
        %8820 = vmatmul.mubr.f32.gmra.mxu0 %v8668
        %v8821 = vpop.f32.mrf.mxu0
        %v8822 = vadd.f32 0.0, %v8821
        %v8823 = vpop.f32.mrf.mxu0
        %8824 = vmatprep.mubr.f32.mxu0 0.0
        %8825 = vmatmul.mubr.f32.gmra.mxu0 %v8671
        %v8826 = vpop.f32.mrf.mxu0
        %v8827 = vadd.f32 0.0, %v8826
        %v8828 = vpop.f32.mrf.mxu0
        %8829 = vmatprep.mubr.f32.mxu0 0.0
        %8830 = vmatmul.mubr.f32.gmra.mxu0 %v8674
        %v8831 = vpop.f32.mrf.mxu0
        %v8832 = vadd.f32 0.0, %v8831
        %v8833 = vpop.f32.mrf.mxu0
        %8834 = vmatprep.mubr.f32.mxu0 0.0
        %8835 = vmatmul.mubr.f32.gmra.mxu0 %v8677
        %v8836 = vpop.f32.mrf.mxu0
        %v8837 = vadd.f32 0.0, %v8836
        %v8838 = vpop.f32.mrf.mxu0
        %8839 = vmatprep.mubr.f32.mxu0 0.0
        %8840 = vmatmul.mubr.f32.gmra.mxu0 %v8680
        %v8841 = vpop.f32.mrf.mxu0
        %v8842 = vadd.f32 0.0, %v8841
        %v8843 = vpop.f32.mrf.mxu0
        %8844 = vmatprep.mubr.f32.mxu0 0.0
        %8845 = vmatmul.mubr.f32.gmra.mxu0 %v8683
        %v8846 = vpop.f32.mrf.mxu0
        %v8847 = vadd.f32 0.0, %v8846
        %v8848 = vpop.f32.mrf.mxu0
        %8849 = vmatprep.mubr.f32.mxu0 0.0
        %8850 = vmatmul.mubr.f32.gmra.mxu0 %v8686
        %v8851 = vpop.f32.mrf.mxu0
        %v8852 = vadd.f32 0.0, %v8851
        %v8853 = vpop.f32.mrf.mxu0
        %8854 = vmatprep.mubr.f32.mxu0 0.0
        %8855 = vmatmul.mubr.f32.gmra.mxu0 %v8689
        %v8856 = vpop.f32.mrf.mxu0
        %v8857 = vadd.f32 0.0, %v8856
        %v8858 = vpop.f32.mrf.mxu0
        %8859 = vmatprep.mubr.f32.mxu0 0.0
        %8860 = vmatmul.mubr.f32.gmra.mxu0 %v8692
        %v8861 = vpop.f32.mrf.mxu0
        %v8862 = vadd.f32 0.0, %v8861
        %v8863 = vpop.f32.mrf.mxu0
        %8864 = vmatprep.mubr.f32.mxu0 0.0
        %8865 = vmatmul.mubr.f32.gmra.mxu0 %v8695
        %v8866 = vpop.f32.mrf.mxu0
        %v8867 = vadd.f32 0.0, %v8866
        %v8868 = vpop.f32.mrf.mxu0
        %8869 = vmatprep.mubr.f32.mxu0 0.0
        %8870 = vmatmul.mubr.f32.gmra.mxu0 %v8698
        %v8871 = vpop.f32.mrf.mxu0
        %v8872 = vadd.f32 0.0, %v8871
        %v8873 = vpop.f32.mrf.mxu0
        %8874 = vmatprep.mubr.f32.mxu0 0.0
        %8875 = vmatmul.mubr.f32.gmra.mxu0 %v8701
        %v8876 = vpop.f32.mrf.mxu0
        %v8877 = vadd.f32 0.0, %v8876
        %v8878 = vpop.f32.mrf.mxu0
        %8879 = vmatprep.mubr.f32.mxu0 0.0
        %8880 = vmatmul.mubr.f32.gmra.mxu0 %v8704
        %v8881 = vpop.f32.mrf.mxu0
        %v8882 = vadd.f32 0.0, %v8881
        %v8883 = vpop.f32.mrf.mxu0
        %8884 = vmatprep.mubr.f32.mxu0 0.0
        %8885 = vmatmul.mubr.f32.gmra.mxu0 %v8707
        %v8886 = vpop.f32.mrf.mxu0
        %v8887 = vadd.f32 0.0, %v8886
        %v8888 = vpop.f32.mrf.mxu0
        %8889 = vmatprep.mubr.f32.mxu0 0.0
        %8890 = vmatmul.mubr.f32.gmra.mxu0 %v8710
        %v8891 = vpop.f32.mrf.mxu0
        %v8892 = vadd.f32 0.0, %v8891
        %v8893 = vpop.f32.mrf.mxu0
        %8894 = vmatprep.mubr.f32.mxu0 0.0
        %8895 = vmatmul.mubr.f32.gmra.mxu0 %v8713
        %v8896 = vpop.f32.mrf.mxu0
        %v8897 = vadd.f32 0.0, %v8896
        %v8898 = vpop.f32.mrf.mxu0
        %8899 = vmatprep.mubr.f32.mxu0 0.0
        %8900 = vmatmul.mubr.f32.gmra.mxu0 %v8716
        %v8901 = vpop.f32.mrf.mxu0
        %v8902 = vadd.f32 0.0, %v8901
        %v8903 = vpop.f32.mrf.mxu0
        %8904 = vmatprep.mubr.f32.mxu0 0.0
        %8905 = vmatmul.mubr.f32.gmra.mxu0 %v8719
        %v8906 = vpop.f32.mrf.mxu0
        %v8907 = vadd.f32 0.0, %v8906
        %v8908 = vpop.f32.mrf.mxu0
        %8909 = vmatprep.mubr.f32.mxu0 0.0
        %8910 = vmatmul.mubr.f32.gmra.mxu0 %v8722
        %v8911 = vpop.f32.mrf.mxu0
        %v8912 = vadd.f32 0.0, %v8911
        %v8913 = vpop.f32.mrf.mxu0
        %8914 = vmatprep.mubr.f32.mxu0 0.0
        %8915 = vmatmul.mubr.f32.gmra.mxu0 %v8725
        %v8916 = vpop.f32.mrf.mxu0
        %v8917 = vadd.f32 0.0, %v8916
        %v8918 = vpop.f32.mrf.mxu0
        %8919 = vmatprep.mubr.f32.mxu0 0.0
        %8920 = vmatmul.mubr.f32.gmra.mxu0 %v8728
        %v8921 = vpop.f32.mrf.mxu0
        %v8922 = vadd.f32 0.0, %v8921
        %v8923 = vpop.f32.mrf.mxu0
        %8924 = vmatprep.mubr.f32.mxu0 0.0
        %8925 = vmatmul.mubr.f32.gmra.mxu0 %v8731
        %v8926 = vpop.f32.mrf.mxu0
        %v8927 = vadd.f32 0.0, %v8926
        %v8928 = vpop.f32.mrf.mxu0
        %8929 = vmatprep.mubr.f32.mxu0 0.0
        %8930 = vmatmul.mubr.f32.gmra.mxu0 %v8734
        %v8931 = vpop.f32.mrf.mxu0
        %v8932 = vadd.f32 0.0, %v8931
        %v8933 = vpop.f32.mrf.mxu0
        %8934 = vmatprep.mubr.f32.mxu0 0.0
        %8935 = vmatmul.mubr.f32.gmra.mxu0 %v8737
        %v8936 = vpop.f32.mrf.mxu0
        %v8937 = vadd.f32 0.0, %v8936
        %v8938 = vpop.f32.mrf.mxu0
        %8939 = vmatprep.mubr.f32.mxu0 0.0
        %8940 = vmatmul.mubr.f32.gmra.mxu0 %v8740
        %v8941 = vpop.f32.mrf.mxu0
        %v8942 = vadd.f32 0.0, %v8941
        %v8943 = vpop.f32.mrf.mxu0
        %8944 = vmatprep.mubr.f32.mxu0 0.0
        %8945 = vmatmul.mubr.f32.gmra.mxu0 %v8743
        %v8946 = vpop.f32.mrf.mxu0
        %v8947 = vadd.f32 0.0, %v8946
        %v8948 = vpop.f32.mrf.mxu0
        %8949 = vdwg.mxu0
        %v8950 = vadd.f32 %v8603, %v8812
        %v8951 = vadd.f32 %v8604, %v8817
        %v8952 = vadd.f32 %v8605, %v8822
        %v8953 = vadd.f32 %v8606, %v8827
        %v8954 = vadd.f32 %v8607, %v8832
        %v8955 = vadd.f32 %v8608, %v8837
        %v8956 = vadd.f32 %v8609, %v8842
        %v8957 = vadd.f32 %v8610, %v8847
        %v8958 = vadd.f32 %v8611, %v8852
        %v8959 = vadd.f32 %v8612, %v8857
        %v8960 = vadd.f32 %v8613, %v8862
        %v8961 = vadd.f32 %v8614, %v8867
        %v8962 = vadd.f32 %v8615, %v8872
        %v8963 = vadd.f32 %v8616, %v8877
        %v8964 = vadd.f32 %v8617, %v8882
        %v8965 = vadd.f32 %v8618, %v8887
        %v8966 = vadd.f32 %v8619, %v8892
        %v8967 = vadd.f32 %v8620, %v8897
        %v8968 = vadd.f32 %v8621, %v8902
        %v8969 = vadd.f32 %v8622, %v8907
        %v8970 = vadd.f32 %v8623, %v8912
        %v8971 = vadd.f32 %v8624, %v8917
        %v8972 = vadd.f32 %v8625, %v8922
        %v8973 = vadd.f32 %v8626, %v8927
        %v8974 = vadd.f32 %v8627, %v8932
        %v8975 = vadd.f32 %v8628, %v8937
        %v8976 = vadd.f32 %v8629, %v8942
        %v8977 = vadd.f32 %v8630, %v8947
        %v8978 = vld [vmem:[#allocation2 + $0x20] sm:$0xff]
        %v8979 = vld [vmem:[#allocation2 + $0x28] sm:$0xff]
        %v8980 = vld [vmem:[#allocation2 + $0x30] sm:$0xff]
        %v8981 = vld [vmem:[#allocation2 + $0x38] sm:$0xff]
        %v8982 = vld [vmem:[#allocation2 + $0x40] sm:$0xff]
        %v8983 = vld [vmem:[#allocation2 + $0x48] sm:$0xff]
        %v8984 = vld [vmem:[#allocation2 + $0x50] sm:$0xff]
        %v8985 = vld [vmem:[#allocation2 + $0x58] sm:$0xff]
        %v8986 = vld [vmem:[#allocation2 + $0x60] sm:$0xff]
        %v8987 = vld [vmem:[#allocation2 + $0x68] sm:$0xff]
        %v8988 = vld [vmem:[#allocation2 + $0x70] sm:$0xff]
        %v8989 = vld [vmem:[#allocation2 + $0x78] sm:$0xff]
        %v8990 = vld [vmem:[#allocation2 + $0x80] sm:$0xff]
        %v8991 = vld [vmem:[#allocation2 + $0x88] sm:$0xff]
        %v8992 = vld [vmem:[#allocation2 + $0x90] sm:$0xff]
        %v8993 = vld [vmem:[#allocation2 + $0x98] sm:$0xff]
        %v8994 = vld [vmem:[#allocation2 + $0xa0] sm:$0xff]
        %v8995 = vld [vmem:[#allocation2 + $0xa8] sm:$0xff]
        %v8996 = vld [vmem:[#allocation2 + $0xb0] sm:$0xff]
        %v8997 = vld [vmem:[#allocation2 + $0xb8] sm:$0xff]
        %v8998 = vld [vmem:[#allocation2 + $0xc0] sm:$0xff]
        %v8999 = vld [vmem:[#allocation2 + $0xc8] sm:$0xff]
        %v9000 = vld [vmem:[#allocation2 + $0xd0] sm:$0xff]
        %v9001 = vld [vmem:[#allocation2 + $0xd8] sm:$0xff]
        %v9002 = vld [vmem:[#allocation2 + $0xe0] sm:$0xff]
        %v9003 = vld [vmem:[#allocation2 + $0xe8] sm:$0xff]
        %v9004 = vld [vmem:[#allocation2 + $0xf0] sm:$0xff]
        %v9005 = vld [vmem:[#allocation2 + $0xf8] sm:$0xff]
        %s9006 = scalar_lea.vmem %s4, 48
        %v9007 = vld [vmem:[%s9006] sm:$0xff]
        %v9009 = vsel %vm6773, %v8978, 0
        %v9012 = vsel %vm6773, %v8979, 0
        %v9015 = vsel %vm6773, %v8980, 0
        %v9018 = vsel %vm6773, %v8981, 0
        %v9021 = vsel %vm6773, %v8982, 0
        %v9024 = vsel %vm6773, %v8983, 0
        %v9027 = vsel %vm6773, %v8984, 0
        %v9030 = vsel %vm6773, %v8985, 0
        %v9033 = vsel %vm6773, %v8986, 0
        %v9036 = vsel %vm6773, %v8987, 0
        %v9039 = vsel %vm6773, %v8988, 0
        %v9042 = vsel %vm6773, %v8989, 0
        %v9045 = vsel %vm6773, %v8990, 0
        %v9048 = vsel %vm6773, %v8991, 0
        %v9051 = vsel %vm6773, %v8992, 0
        %v9054 = vsel %vm6773, %v8993, 0
        %v9057 = vsel %vm6773, %v8994, 0
        %v9060 = vsel %vm6773, %v8995, 0
        %v9063 = vsel %vm6773, %v8996, 0
        %v9066 = vsel %vm6773, %v8997, 0
        %v9069 = vsel %vm6773, %v8998, 0
        %v9072 = vsel %vm6773, %v8999, 0
        %v9075 = vsel %vm6773, %v9000, 0
        %v9078 = vsel %vm6773, %v9001, 0
        %v9081 = vsel %vm6773, %v9002, 0
        %v9084 = vsel %vm6773, %v9003, 0
        %v9087 = vsel %vm6773, %v9004, 0
        %v9090 = vsel %vm6773, %v9005, 0
        %9092 = vmatprep.subr.mxu0 0.0
        %9093 = vmatpush1.msra.mxu0 0.0
        %9094 = vmatprep.subr.mxu0 0.0
        %9095 = vmatpush1.msra.mxu0 0.0
        %9096 = vmatprep.subr.mxu0 0.0
        %9097 = vmatpush1.msra.mxu0 0.0
        %9098 = vmatprep.subr.mxu0 0.0
        %9099 = vmatpush1.msra.mxu0 0.0
        %9100 = vmatprep.subr.mxu0 0.0
        %9101 = vmatpush1.msra.mxu0 0.0
        %9102 = vmatprep.subr.mxu0 0.0
        %9103 = vmatpush1.msra.mxu0 0.0
        %9104 = vmatprep.subr.mxu0 0.0
        %9105 = vmatpush1.msra.mxu0 0.0
        %9106 = vmatprep.subr.mxu0 0.0
        %9107 = vmatpush1.msra.mxu0 0.0
        %9108 = vmatprep.subr.mxu0 0.0
        %9109 = vmatpush1.msra.mxu0 0.0
        %9110 = vmatprep.subr.mxu0 0.0
        %9111 = vmatpush1.msra.mxu0 0.0
        %9112 = vmatprep.subr.mxu0 0.0
        %9113 = vmatpush1.msra.mxu0 0.0
        %9114 = vmatprep.subr.mxu0 0.0
        %9115 = vmatpush1.msra.mxu0 0.0
        %9116 = vmatprep.subr.mxu0 0.0
        %9117 = vmatpush1.msra.mxu0 0.0
        %9118 = vmatprep.subr.mxu0 0.0
        %9119 = vmatpush1.msra.mxu0 0.0
        %9120 = vmatprep.subr.mxu0 0.0
        %9121 = vmatpush1.msra.mxu0 0.0
        %9122 = vmatprep.subr.mxu0 0.0
        %9123 = vmatpush1.msra.mxu0 %v9007
        %9124 = vmatprep.subr.mxu0 0.0
        %9125 = vmatpush2.msra.mxu0 0.0
        %9126 = vmatprep.subr.mxu0 0.0
        %9127 = vmatpush2.msra.mxu0 0.0
        %9128 = vmatprep.subr.mxu0 0.0
        %9129 = vmatpush2.msra.mxu0 0.0
        %9130 = vmatprep.subr.mxu0 0.0
        %9131 = vmatpush2.msra.mxu0 0.0
        %9132 = vmatprep.subr.mxu0 0.0
        %9133 = vmatpush2.msra.mxu0 0.0
        %9134 = vmatprep.subr.mxu0 0.0
        %9135 = vmatpush2.msra.mxu0 0.0
        %9136 = vmatprep.subr.mxu0 0.0
        %9137 = vmatpush2.msra.mxu0 0.0
        %9138 = vmatprep.subr.mxu0 0.0
        %9139 = vmatpush2.msra.mxu0 0.0
        %9140 = vmatprep.subr.mxu0 0.0
        %9141 = vmatpush2.msra.mxu0 0.0
        %9142 = vmatprep.subr.mxu0 0.0
        %9143 = vmatpush2.msra.mxu0 0.0
        %9144 = vmatprep.subr.mxu0 0.0
        %9145 = vmatpush2.msra.mxu0 0.0
        %9146 = vmatprep.subr.mxu0 0.0
        %9147 = vmatpush2.msra.mxu0 0.0
        %9148 = vmatprep.subr.mxu0 0.0
        %9149 = vmatpush2.msra.mxu0 0.0
        %9150 = vmatprep.subr.mxu0 0.0
        %9151 = vmatpush2.msra.mxu0 0.0
        %9152 = vmatprep.subr.mxu0 0.0
        %9153 = vmatpush2.msra.mxu0 0.0
        %9154 = vmatprep.subr.mxu0 0.0
        %9155 = vmatpush2.msra.mxu0 0.0
        %9156 = vmatprep.mubr.f32.mxu0 0.0
        %9157 = vmatmul.mubr.f32.gmra.mxu0 %v9009
        %v9158 = vpop.f32.mrf.mxu0
        %v9159 = vadd.f32 0.0, %v9158
        %v9160 = vpop.f32.mrf.mxu0
        %9161 = vmatprep.mubr.f32.mxu0 0.0
        %9162 = vmatmul.mubr.f32.gmra.mxu0 %v9012
        %v9163 = vpop.f32.mrf.mxu0
        %v9164 = vadd.f32 0.0, %v9163
        %v9165 = vpop.f32.mrf.mxu0
        %9166 = vmatprep.mubr.f32.mxu0 0.0
        %9167 = vmatmul.mubr.f32.gmra.mxu0 %v9015
        %v9168 = vpop.f32.mrf.mxu0
        %v9169 = vadd.f32 0.0, %v9168
        %v9170 = vpop.f32.mrf.mxu0
        %9171 = vmatprep.mubr.f32.mxu0 0.0
        %9172 = vmatmul.mubr.f32.gmra.mxu0 %v9018
        %v9173 = vpop.f32.mrf.mxu0
        %v9174 = vadd.f32 0.0, %v9173
        %v9175 = vpop.f32.mrf.mxu0
        %9176 = vmatprep.mubr.f32.mxu0 0.0
        %9177 = vmatmul.mubr.f32.gmra.mxu0 %v9021
        %v9178 = vpop.f32.mrf.mxu0
        %v9179 = vadd.f32 0.0, %v9178
        %v9180 = vpop.f32.mrf.mxu0
        %9181 = vmatprep.mubr.f32.mxu0 0.0
        %9182 = vmatmul.mubr.f32.gmra.mxu0 %v9024
        %v9183 = vpop.f32.mrf.mxu0
        %v9184 = vadd.f32 0.0, %v9183
        %v9185 = vpop.f32.mrf.mxu0
        %9186 = vmatprep.mubr.f32.mxu0 0.0
        %9187 = vmatmul.mubr.f32.gmra.mxu0 %v9027
        %v9188 = vpop.f32.mrf.mxu0
        %v9189 = vadd.f32 0.0, %v9188
        %v9190 = vpop.f32.mrf.mxu0
        %9191 = vmatprep.mubr.f32.mxu0 0.0
        %9192 = vmatmul.mubr.f32.gmra.mxu0 %v9030
        %v9193 = vpop.f32.mrf.mxu0
        %v9194 = vadd.f32 0.0, %v9193
        %v9195 = vpop.f32.mrf.mxu0
        %9196 = vmatprep.mubr.f32.mxu0 0.0
        %9197 = vmatmul.mubr.f32.gmra.mxu0 %v9033
        %v9198 = vpop.f32.mrf.mxu0
        %v9199 = vadd.f32 0.0, %v9198
        %v9200 = vpop.f32.mrf.mxu0
        %9201 = vmatprep.mubr.f32.mxu0 0.0
        %9202 = vmatmul.mubr.f32.gmra.mxu0 %v9036
        %v9203 = vpop.f32.mrf.mxu0
        %v9204 = vadd.f32 0.0, %v9203
        %v9205 = vpop.f32.mrf.mxu0
        %9206 = vmatprep.mubr.f32.mxu0 0.0
        %9207 = vmatmul.mubr.f32.gmra.mxu0 %v9039
        %v9208 = vpop.f32.mrf.mxu0
        %v9209 = vadd.f32 0.0, %v9208
        %v9210 = vpop.f32.mrf.mxu0
        %9211 = vmatprep.mubr.f32.mxu0 0.0
        %9212 = vmatmul.mubr.f32.gmra.mxu0 %v9042
        %v9213 = vpop.f32.mrf.mxu0
        %v9214 = vadd.f32 0.0, %v9213
        %v9215 = vpop.f32.mrf.mxu0
        %9216 = vmatprep.mubr.f32.mxu0 0.0
        %9217 = vmatmul.mubr.f32.gmra.mxu0 %v9045
        %v9218 = vpop.f32.mrf.mxu0
        %v9219 = vadd.f32 0.0, %v9218
        %v9220 = vpop.f32.mrf.mxu0
        %9221 = vmatprep.mubr.f32.mxu0 0.0
        %9222 = vmatmul.mubr.f32.gmra.mxu0 %v9048
        %v9223 = vpop.f32.mrf.mxu0
        %v9224 = vadd.f32 0.0, %v9223
        %v9225 = vpop.f32.mrf.mxu0
        %9226 = vmatprep.mubr.f32.mxu0 0.0
        %9227 = vmatmul.mubr.f32.gmra.mxu0 %v9051
        %v9228 = vpop.f32.mrf.mxu0
        %v9229 = vadd.f32 0.0, %v9228
        %v9230 = vpop.f32.mrf.mxu0
        %9231 = vmatprep.mubr.f32.mxu0 0.0
        %9232 = vmatmul.mubr.f32.gmra.mxu0 %v9054
        %v9233 = vpop.f32.mrf.mxu0
        %v9234 = vadd.f32 0.0, %v9233
        %v9235 = vpop.f32.mrf.mxu0
        %9236 = vmatprep.mubr.f32.mxu0 0.0
        %9237 = vmatmul.mubr.f32.gmra.mxu0 %v9057
        %v9238 = vpop.f32.mrf.mxu0
        %v9239 = vadd.f32 0.0, %v9238
        %v9240 = vpop.f32.mrf.mxu0
        %9241 = vmatprep.mubr.f32.mxu0 0.0
        %9242 = vmatmul.mubr.f32.gmra.mxu0 %v9060
        %v9243 = vpop.f32.mrf.mxu0
        %v9244 = vadd.f32 0.0, %v9243
        %v9245 = vpop.f32.mrf.mxu0
        %9246 = vmatprep.mubr.f32.mxu0 0.0
        %9247 = vmatmul.mubr.f32.gmra.mxu0 %v9063
        %v9248 = vpop.f32.mrf.mxu0
        %v9249 = vadd.f32 0.0, %v9248
        %v9250 = vpop.f32.mrf.mxu0
        %9251 = vmatprep.mubr.f32.mxu0 0.0
        %9252 = vmatmul.mubr.f32.gmra.mxu0 %v9066
        %v9253 = vpop.f32.mrf.mxu0
        %v9254 = vadd.f32 0.0, %v9253
        %v9255 = vpop.f32.mrf.mxu0
        %9256 = vmatprep.mubr.f32.mxu0 0.0
        %9257 = vmatmul.mubr.f32.gmra.mxu0 %v9069
        %v9258 = vpop.f32.mrf.mxu0
        %v9259 = vadd.f32 0.0, %v9258
        %v9260 = vpop.f32.mrf.mxu0
        %9261 = vmatprep.mubr.f32.mxu0 0.0
        %9262 = vmatmul.mubr.f32.gmra.mxu0 %v9072
        %v9263 = vpop.f32.mrf.mxu0
        %v9264 = vadd.f32 0.0, %v9263
        %v9265 = vpop.f32.mrf.mxu0
        %9266 = vmatprep.mubr.f32.mxu0 0.0
        %9267 = vmatmul.mubr.f32.gmra.mxu0 %v9075
        %v9268 = vpop.f32.mrf.mxu0
        %v9269 = vadd.f32 0.0, %v9268
        %v9270 = vpop.f32.mrf.mxu0
        %9271 = vmatprep.mubr.f32.mxu0 0.0
        %9272 = vmatmul.mubr.f32.gmra.mxu0 %v9078
        %v9273 = vpop.f32.mrf.mxu0
        %v9274 = vadd.f32 0.0, %v9273
        %v9275 = vpop.f32.mrf.mxu0
        %9276 = vmatprep.mubr.f32.mxu0 0.0
        %9277 = vmatmul.mubr.f32.gmra.mxu0 %v9081
        %v9278 = vpop.f32.mrf.mxu0
        %v9279 = vadd.f32 0.0, %v9278
        %v9280 = vpop.f32.mrf.mxu0
        %9281 = vmatprep.mubr.f32.mxu0 0.0
        %9282 = vmatmul.mubr.f32.gmra.mxu0 %v9084
        %v9283 = vpop.f32.mrf.mxu0
        %v9284 = vadd.f32 0.0, %v9283
        %v9285 = vpop.f32.mrf.mxu0
        %9286 = vmatprep.mubr.f32.mxu0 0.0
        %9287 = vmatmul.mubr.f32.gmra.mxu0 %v9087
        %v9288 = vpop.f32.mrf.mxu0
        %v9289 = vadd.f32 0.0, %v9288
        %v9290 = vpop.f32.mrf.mxu0
        %9291 = vmatprep.mubr.f32.mxu0 0.0
        %9292 = vmatmul.mubr.f32.gmra.mxu0 %v9090
        %v9293 = vpop.f32.mrf.mxu0
        %v9294 = vadd.f32 0.0, %v9293
        %v9295 = vpop.f32.mrf.mxu0
        %9296 = vdwg.mxu0
        %v9297 = vadd.f32 %v8950, %v9159
        %v9298 = vadd.f32 %v8951, %v9164
        %v9299 = vadd.f32 %v8952, %v9169
        %v9300 = vadd.f32 %v8953, %v9174
        %v9301 = vadd.f32 %v8954, %v9179
        %v9302 = vadd.f32 %v8955, %v9184
        %v9303 = vadd.f32 %v8956, %v9189
        %v9304 = vadd.f32 %v8957, %v9194
        %v9305 = vadd.f32 %v8958, %v9199
        %v9306 = vadd.f32 %v8959, %v9204
        %v9307 = vadd.f32 %v8960, %v9209
        %v9308 = vadd.f32 %v8961, %v9214
        %v9309 = vadd.f32 %v8962, %v9219
        %v9310 = vadd.f32 %v8963, %v9224
        %v9311 = vadd.f32 %v8964, %v9229
        %v9312 = vadd.f32 %v8965, %v9234
        %v9313 = vadd.f32 %v8966, %v9239
        %v9314 = vadd.f32 %v8967, %v9244
        %v9315 = vadd.f32 %v8968, %v9249
        %v9316 = vadd.f32 %v8969, %v9254
        %v9317 = vadd.f32 %v8970, %v9259
        %v9318 = vadd.f32 %v8971, %v9264
        %v9319 = vadd.f32 %v8972, %v9269
        %v9320 = vadd.f32 %v8973, %v9274
        %v9321 = vadd.f32 %v8974, %v9279
        %v9322 = vadd.f32 %v8975, %v9284
        %v9323 = vadd.f32 %v8976, %v9289
        %v9324 = vadd.f32 %v8977, %v9294
        %v9325 = vld [vmem:[#allocation2 + $0x21] sm:$0xff]
        %v9326 = vld [vmem:[#allocation2 + $0x29] sm:$0xff]
        %v9327 = vld [vmem:[#allocation2 + $0x31] sm:$0xff]
        %v9328 = vld [vmem:[#allocation2 + $0x39] sm:$0xff]
        %v9329 = vld [vmem:[#allocation2 + $0x41] sm:$0xff]
        %v9330 = vld [vmem:[#allocation2 + $0x49] sm:$0xff]
        %v9331 = vld [vmem:[#allocation2 + $0x51] sm:$0xff]
        %v9332 = vld [vmem:[#allocation2 + $0x59] sm:$0xff]
        %v9333 = vld [vmem:[#allocation2 + $0x61] sm:$0xff]
        %v9334 = vld [vmem:[#allocation2 + $0x69] sm:$0xff]
        %v9335 = vld [vmem:[#allocation2 + $0x71] sm:$0xff]
        %v9336 = vld [vmem:[#allocation2 + $0x79] sm:$0xff]
        %v9337 = vld [vmem:[#allocation2 + $0x81] sm:$0xff]
        %v9338 = vld [vmem:[#allocation2 + $0x89] sm:$0xff]
        %v9339 = vld [vmem:[#allocation2 + $0x91] sm:$0xff]
        %v9340 = vld [vmem:[#allocation2 + $0x99] sm:$0xff]
        %v9341 = vld [vmem:[#allocation2 + $0xa1] sm:$0xff]
        %v9342 = vld [vmem:[#allocation2 + $0xa9] sm:$0xff]
        %v9343 = vld [vmem:[#allocation2 + $0xb1] sm:$0xff]
        %v9344 = vld [vmem:[#allocation2 + $0xb9] sm:$0xff]
        %v9345 = vld [vmem:[#allocation2 + $0xc1] sm:$0xff]
        %v9346 = vld [vmem:[#allocation2 + $0xc9] sm:$0xff]
        %v9347 = vld [vmem:[#allocation2 + $0xd1] sm:$0xff]
        %v9348 = vld [vmem:[#allocation2 + $0xd9] sm:$0xff]
        %v9349 = vld [vmem:[#allocation2 + $0xe1] sm:$0xff]
        %v9350 = vld [vmem:[#allocation2 + $0xe9] sm:$0xff]
        %v9351 = vld [vmem:[#allocation2 + $0xf1] sm:$0xff]
        %v9352 = vld [vmem:[#allocation2 + $0xf9] sm:$0xff]
        %s9353 = scalar_lea.vmem %s4, 56
        %v9354 = vld [vmem:[%s9353] sm:$0xff]
        %v9356 = vsel %vm6773, %v9325, 0
        %v9359 = vsel %vm6773, %v9326, 0
        %v9362 = vsel %vm6773, %v9327, 0
        %v9365 = vsel %vm6773, %v9328, 0
        %v9368 = vsel %vm6773, %v9329, 0
        %v9371 = vsel %vm6773, %v9330, 0
        %v9374 = vsel %vm6773, %v9331, 0
        %v9377 = vsel %vm6773, %v9332, 0
        %v9380 = vsel %vm6773, %v9333, 0
        %v9383 = vsel %vm6773, %v9334, 0
        %v9386 = vsel %vm6773, %v9335, 0
        %v9389 = vsel %vm6773, %v9336, 0
        %v9392 = vsel %vm6773, %v9337, 0
        %v9395 = vsel %vm6773, %v9338, 0
        %v9398 = vsel %vm6773, %v9339, 0
        %v9401 = vsel %vm6773, %v9340, 0
        %v9404 = vsel %vm6773, %v9341, 0
        %v9407 = vsel %vm6773, %v9342, 0
        %v9410 = vsel %vm6773, %v9343, 0
        %v9413 = vsel %vm6773, %v9344, 0
        %v9416 = vsel %vm6773, %v9345, 0
        %v9419 = vsel %vm6773, %v9346, 0
        %v9422 = vsel %vm6773, %v9347, 0
        %v9425 = vsel %vm6773, %v9348, 0
        %v9428 = vsel %vm6773, %v9349, 0
        %v9431 = vsel %vm6773, %v9350, 0
        %v9434 = vsel %vm6773, %v9351, 0
        %v9437 = vsel %vm6773, %v9352, 0
        %9439 = vmatprep.subr.mxu0 0.0
        %9440 = vmatpush1.msra.mxu0 0.0
        %9441 = vmatprep.subr.mxu0 0.0
        %9442 = vmatpush1.msra.mxu0 0.0
        %9443 = vmatprep.subr.mxu0 0.0
        %9444 = vmatpush1.msra.mxu0 0.0
        %9445 = vmatprep.subr.mxu0 0.0
        %9446 = vmatpush1.msra.mxu0 0.0
        %9447 = vmatprep.subr.mxu0 0.0
        %9448 = vmatpush1.msra.mxu0 0.0
        %9449 = vmatprep.subr.mxu0 0.0
        %9450 = vmatpush1.msra.mxu0 0.0
        %9451 = vmatprep.subr.mxu0 0.0
        %9452 = vmatpush1.msra.mxu0 0.0
        %9453 = vmatprep.subr.mxu0 0.0
        %9454 = vmatpush1.msra.mxu0 0.0
        %9455 = vmatprep.subr.mxu0 0.0
        %9456 = vmatpush1.msra.mxu0 0.0
        %9457 = vmatprep.subr.mxu0 0.0
        %9458 = vmatpush1.msra.mxu0 0.0
        %9459 = vmatprep.subr.mxu0 0.0
        %9460 = vmatpush1.msra.mxu0 0.0
        %9461 = vmatprep.subr.mxu0 0.0
        %9462 = vmatpush1.msra.mxu0 0.0
        %9463 = vmatprep.subr.mxu0 0.0
        %9464 = vmatpush1.msra.mxu0 0.0
        %9465 = vmatprep.subr.mxu0 0.0
        %9466 = vmatpush1.msra.mxu0 0.0
        %9467 = vmatprep.subr.mxu0 0.0
        %9468 = vmatpush1.msra.mxu0 0.0
        %9469 = vmatprep.subr.mxu0 0.0
        %9470 = vmatpush1.msra.mxu0 %v9354
        %9471 = vmatprep.subr.mxu0 0.0
        %9472 = vmatpush2.msra.mxu0 0.0
        %9473 = vmatprep.subr.mxu0 0.0
        %9474 = vmatpush2.msra.mxu0 0.0
        %9475 = vmatprep.subr.mxu0 0.0
        %9476 = vmatpush2.msra.mxu0 0.0
        %9477 = vmatprep.subr.mxu0 0.0
        %9478 = vmatpush2.msra.mxu0 0.0
        %9479 = vmatprep.subr.mxu0 0.0
        %9480 = vmatpush2.msra.mxu0 0.0
        %9481 = vmatprep.subr.mxu0 0.0
        %9482 = vmatpush2.msra.mxu0 0.0
        %9483 = vmatprep.subr.mxu0 0.0
        %9484 = vmatpush2.msra.mxu0 0.0
        %9485 = vmatprep.subr.mxu0 0.0
        %9486 = vmatpush2.msra.mxu0 0.0
        %9487 = vmatprep.subr.mxu0 0.0
        %9488 = vmatpush2.msra.mxu0 0.0
        %9489 = vmatprep.subr.mxu0 0.0
        %9490 = vmatpush2.msra.mxu0 0.0
        %9491 = vmatprep.subr.mxu0 0.0
        %9492 = vmatpush2.msra.mxu0 0.0
        %9493 = vmatprep.subr.mxu0 0.0
        %9494 = vmatpush2.msra.mxu0 0.0
        %9495 = vmatprep.subr.mxu0 0.0
        %9496 = vmatpush2.msra.mxu0 0.0
        %9497 = vmatprep.subr.mxu0 0.0
        %9498 = vmatpush2.msra.mxu0 0.0
        %9499 = vmatprep.subr.mxu0 0.0
        %9500 = vmatpush2.msra.mxu0 0.0
        %9501 = vmatprep.subr.mxu0 0.0
        %9502 = vmatpush2.msra.mxu0 0.0
        %9503 = vmatprep.mubr.f32.mxu0 0.0
        %9504 = vmatmul.mubr.f32.gmra.mxu0 %v9356
        %v9505 = vpop.f32.mrf.mxu0
        %v9506 = vadd.f32 0.0, %v9505
        %v9507 = vpop.f32.mrf.mxu0
        %9508 = vmatprep.mubr.f32.mxu0 0.0
        %9509 = vmatmul.mubr.f32.gmra.mxu0 %v9359
        %v9510 = vpop.f32.mrf.mxu0
        %v9511 = vadd.f32 0.0, %v9510
        %v9512 = vpop.f32.mrf.mxu0
        %9513 = vmatprep.mubr.f32.mxu0 0.0
        %9514 = vmatmul.mubr.f32.gmra.mxu0 %v9362
        %v9515 = vpop.f32.mrf.mxu0
        %v9516 = vadd.f32 0.0, %v9515
        %v9517 = vpop.f32.mrf.mxu0
        %9518 = vmatprep.mubr.f32.mxu0 0.0
        %9519 = vmatmul.mubr.f32.gmra.mxu0 %v9365
        %v9520 = vpop.f32.mrf.mxu0
        %v9521 = vadd.f32 0.0, %v9520
        %v9522 = vpop.f32.mrf.mxu0
        %9523 = vmatprep.mubr.f32.mxu0 0.0
        %9524 = vmatmul.mubr.f32.gmra.mxu0 %v9368
        %v9525 = vpop.f32.mrf.mxu0
        %v9526 = vadd.f32 0.0, %v9525
        %v9527 = vpop.f32.mrf.mxu0
        %9528 = vmatprep.mubr.f32.mxu0 0.0
        %9529 = vmatmul.mubr.f32.gmra.mxu0 %v9371
        %v9530 = vpop.f32.mrf.mxu0
        %v9531 = vadd.f32 0.0, %v9530
        %v9532 = vpop.f32.mrf.mxu0
        %9533 = vmatprep.mubr.f32.mxu0 0.0
        %9534 = vmatmul.mubr.f32.gmra.mxu0 %v9374
        %v9535 = vpop.f32.mrf.mxu0
        %v9536 = vadd.f32 0.0, %v9535
        %v9537 = vpop.f32.mrf.mxu0
        %9538 = vmatprep.mubr.f32.mxu0 0.0
        %9539 = vmatmul.mubr.f32.gmra.mxu0 %v9377
        %v9540 = vpop.f32.mrf.mxu0
        %v9541 = vadd.f32 0.0, %v9540
        %v9542 = vpop.f32.mrf.mxu0
        %9543 = vmatprep.mubr.f32.mxu0 0.0
        %9544 = vmatmul.mubr.f32.gmra.mxu0 %v9380
        %v9545 = vpop.f32.mrf.mxu0
        %v9546 = vadd.f32 0.0, %v9545
        %v9547 = vpop.f32.mrf.mxu0
        %9548 = vmatprep.mubr.f32.mxu0 0.0
        %9549 = vmatmul.mubr.f32.gmra.mxu0 %v9383
        %v9550 = vpop.f32.mrf.mxu0
        %v9551 = vadd.f32 0.0, %v9550
        %v9552 = vpop.f32.mrf.mxu0
        %9553 = vmatprep.mubr.f32.mxu0 0.0
        %9554 = vmatmul.mubr.f32.gmra.mxu0 %v9386
        %v9555 = vpop.f32.mrf.mxu0
        %v9556 = vadd.f32 0.0, %v9555
        %v9557 = vpop.f32.mrf.mxu0
        %9558 = vmatprep.mubr.f32.mxu0 0.0
        %9559 = vmatmul.mubr.f32.gmra.mxu0 %v9389
        %v9560 = vpop.f32.mrf.mxu0
        %v9561 = vadd.f32 0.0, %v9560
        %v9562 = vpop.f32.mrf.mxu0
        %9563 = vmatprep.mubr.f32.mxu0 0.0
        %9564 = vmatmul.mubr.f32.gmra.mxu0 %v9392
        %v9565 = vpop.f32.mrf.mxu0
        %v9566 = vadd.f32 0.0, %v9565
        %v9567 = vpop.f32.mrf.mxu0
        %9568 = vmatprep.mubr.f32.mxu0 0.0
        %9569 = vmatmul.mubr.f32.gmra.mxu0 %v9395
        %v9570 = vpop.f32.mrf.mxu0
        %v9571 = vadd.f32 0.0, %v9570
        %v9572 = vpop.f32.mrf.mxu0
        %9573 = vmatprep.mubr.f32.mxu0 0.0
        %9574 = vmatmul.mubr.f32.gmra.mxu0 %v9398
        %v9575 = vpop.f32.mrf.mxu0
        %v9576 = vadd.f32 0.0, %v9575
        %v9577 = vpop.f32.mrf.mxu0
        %9578 = vmatprep.mubr.f32.mxu0 0.0
        %9579 = vmatmul.mubr.f32.gmra.mxu0 %v9401
        %v9580 = vpop.f32.mrf.mxu0
        %v9581 = vadd.f32 0.0, %v9580
        %v9582 = vpop.f32.mrf.mxu0
        %9583 = vmatprep.mubr.f32.mxu0 0.0
        %9584 = vmatmul.mubr.f32.gmra.mxu0 %v9404
        %v9585 = vpop.f32.mrf.mxu0
        %v9586 = vadd.f32 0.0, %v9585
        %v9587 = vpop.f32.mrf.mxu0
        %9588 = vmatprep.mubr.f32.mxu0 0.0
        %9589 = vmatmul.mubr.f32.gmra.mxu0 %v9407
        %v9590 = vpop.f32.mrf.mxu0
        %v9591 = vadd.f32 0.0, %v9590
        %v9592 = vpop.f32.mrf.mxu0
        %9593 = vmatprep.mubr.f32.mxu0 0.0
        %9594 = vmatmul.mubr.f32.gmra.mxu0 %v9410
        %v9595 = vpop.f32.mrf.mxu0
        %v9596 = vadd.f32 0.0, %v9595
        %v9597 = vpop.f32.mrf.mxu0
        %9598 = vmatprep.mubr.f32.mxu0 0.0
        %9599 = vmatmul.mubr.f32.gmra.mxu0 %v9413
        %v9600 = vpop.f32.mrf.mxu0
        %v9601 = vadd.f32 0.0, %v9600
        %v9602 = vpop.f32.mrf.mxu0
        %9603 = vmatprep.mubr.f32.mxu0 0.0
        %9604 = vmatmul.mubr.f32.gmra.mxu0 %v9416
        %v9605 = vpop.f32.mrf.mxu0
        %v9606 = vadd.f32 0.0, %v9605
        %v9607 = vpop.f32.mrf.mxu0
        %9608 = vmatprep.mubr.f32.mxu0 0.0
        %9609 = vmatmul.mubr.f32.gmra.mxu0 %v9419
        %v9610 = vpop.f32.mrf.mxu0
        %v9611 = vadd.f32 0.0, %v9610
        %v9612 = vpop.f32.mrf.mxu0
        %9613 = vmatprep.mubr.f32.mxu0 0.0
        %9614 = vmatmul.mubr.f32.gmra.mxu0 %v9422
        %v9615 = vpop.f32.mrf.mxu0
        %v9616 = vadd.f32 0.0, %v9615
        %v9617 = vpop.f32.mrf.mxu0
        %9618 = vmatprep.mubr.f32.mxu0 0.0
        %9619 = vmatmul.mubr.f32.gmra.mxu0 %v9425
        %v9620 = vpop.f32.mrf.mxu0
        %v9621 = vadd.f32 0.0, %v9620
        %v9622 = vpop.f32.mrf.mxu0
        %9623 = vmatprep.mubr.f32.mxu0 0.0
        %9624 = vmatmul.mubr.f32.gmra.mxu0 %v9428
        %v9625 = vpop.f32.mrf.mxu0
        %v9626 = vadd.f32 0.0, %v9625
        %v9627 = vpop.f32.mrf.mxu0
        %9628 = vmatprep.mubr.f32.mxu0 0.0
        %9629 = vmatmul.mubr.f32.gmra.mxu0 %v9431
        %v9630 = vpop.f32.mrf.mxu0
        %v9631 = vadd.f32 0.0, %v9630
        %v9632 = vpop.f32.mrf.mxu0
        %9633 = vmatprep.mubr.f32.mxu0 0.0
        %9634 = vmatmul.mubr.f32.gmra.mxu0 %v9434
        %v9635 = vpop.f32.mrf.mxu0
        %v9636 = vadd.f32 0.0, %v9635
        %v9637 = vpop.f32.mrf.mxu0
        %9638 = vmatprep.mubr.f32.mxu0 0.0
        %9639 = vmatmul.mubr.f32.gmra.mxu0 %v9437
        %v9640 = vpop.f32.mrf.mxu0
        %v9641 = vadd.f32 0.0, %v9640
        %v9642 = vpop.f32.mrf.mxu0
        %9643 = vdwg.mxu0
        %v9644 = vadd.f32 %v9297, %v9506
        %v9645 = vadd.f32 %v9298, %v9511
        %v9646 = vadd.f32 %v9299, %v9516
        %v9647 = vadd.f32 %v9300, %v9521
        %v9648 = vadd.f32 %v9301, %v9526
        %v9649 = vadd.f32 %v9302, %v9531
        %v9650 = vadd.f32 %v9303, %v9536
        %v9651 = vadd.f32 %v9304, %v9541
        %v9652 = vadd.f32 %v9305, %v9546
        %v9653 = vadd.f32 %v9306, %v9551
        %v9654 = vadd.f32 %v9307, %v9556
        %v9655 = vadd.f32 %v9308, %v9561
        %v9656 = vadd.f32 %v9309, %v9566
        %v9657 = vadd.f32 %v9310, %v9571
        %v9658 = vadd.f32 %v9311, %v9576
        %v9659 = vadd.f32 %v9312, %v9581
        %v9660 = vadd.f32 %v9313, %v9586
        %v9661 = vadd.f32 %v9314, %v9591
        %v9662 = vadd.f32 %v9315, %v9596
        %v9663 = vadd.f32 %v9316, %v9601
        %v9664 = vadd.f32 %v9317, %v9606
        %v9665 = vadd.f32 %v9318, %v9611
        %v9666 = vadd.f32 %v9319, %v9616
        %v9667 = vadd.f32 %v9320, %v9621
        %v9668 = vadd.f32 %v9321, %v9626
        %v9669 = vadd.f32 %v9322, %v9631
        %v9670 = vadd.f32 %v9323, %v9636
        %v9671 = vadd.f32 %v9324, %v9641
        %v9672 = vld [vmem:[#allocation2 + $0x22] sm:$0xff]
        %v9673 = vld [vmem:[#allocation2 + $0x2a] sm:$0xff]
        %v9674 = vld [vmem:[#allocation2 + $0x32] sm:$0xff]
        %v9675 = vld [vmem:[#allocation2 + $0x3a] sm:$0xff]
        %v9676 = vld [vmem:[#allocation2 + $0x42] sm:$0xff]
        %v9677 = vld [vmem:[#allocation2 + $0x4a] sm:$0xff]
        %v9678 = vld [vmem:[#allocation2 + $0x52] sm:$0xff]
        %v9679 = vld [vmem:[#allocation2 + $0x5a] sm:$0xff]
        %v9680 = vld [vmem:[#allocation2 + $0x62] sm:$0xff]
        %v9681 = vld [vmem:[#allocation2 + $0x6a] sm:$0xff]
        %v9682 = vld [vmem:[#allocation2 + $0x72] sm:$0xff]
        %v9683 = vld [vmem:[#allocation2 + $0x7a] sm:$0xff]
        %v9684 = vld [vmem:[#allocation2 + $0x82] sm:$0xff]
        %v9685 = vld [vmem:[#allocation2 + $0x8a] sm:$0xff]
        %v9686 = vld [vmem:[#allocation2 + $0x92] sm:$0xff]
        %v9687 = vld [vmem:[#allocation2 + $0x9a] sm:$0xff]
        %v9688 = vld [vmem:[#allocation2 + $0xa2] sm:$0xff]
        %v9689 = vld [vmem:[#allocation2 + $0xaa] sm:$0xff]
        %v9690 = vld [vmem:[#allocation2 + $0xb2] sm:$0xff]
        %v9691 = vld [vmem:[#allocation2 + $0xba] sm:$0xff]
        %v9692 = vld [vmem:[#allocation2 + $0xc2] sm:$0xff]
        %v9693 = vld [vmem:[#allocation2 + $0xca] sm:$0xff]
        %v9694 = vld [vmem:[#allocation2 + $0xd2] sm:$0xff]
        %v9695 = vld [vmem:[#allocation2 + $0xda] sm:$0xff]
        %v9696 = vld [vmem:[#allocation2 + $0xe2] sm:$0xff]
        %v9697 = vld [vmem:[#allocation2 + $0xea] sm:$0xff]
        %v9698 = vld [vmem:[#allocation2 + $0xf2] sm:$0xff]
        %v9699 = vld [vmem:[#allocation2 + $0xfa] sm:$0xff]
        %s9700 = scalar_lea.vmem %s4, 64
        %v9701 = vld [vmem:[%s9700] sm:$0xff]
        %v9703 = vsel %vm6773, %v9672, 0
        %v9706 = vsel %vm6773, %v9673, 0
        %v9709 = vsel %vm6773, %v9674, 0
        %v9712 = vsel %vm6773, %v9675, 0
        %v9715 = vsel %vm6773, %v9676, 0
        %v9718 = vsel %vm6773, %v9677, 0
        %v9721 = vsel %vm6773, %v9678, 0
        %v9724 = vsel %vm6773, %v9679, 0
        %v9727 = vsel %vm6773, %v9680, 0
        %v9730 = vsel %vm6773, %v9681, 0
        %v9733 = vsel %vm6773, %v9682, 0
        %v9736 = vsel %vm6773, %v9683, 0
        %v9739 = vsel %vm6773, %v9684, 0
        %v9742 = vsel %vm6773, %v9685, 0
        %v9745 = vsel %vm6773, %v9686, 0
        %v9748 = vsel %vm6773, %v9687, 0
        %v9751 = vsel %vm6773, %v9688, 0
        %v9754 = vsel %vm6773, %v9689, 0
        %v9757 = vsel %vm6773, %v9690, 0
        %v9760 = vsel %vm6773, %v9691, 0
        %v9763 = vsel %vm6773, %v9692, 0
        %v9766 = vsel %vm6773, %v9693, 0
        %v9769 = vsel %vm6773, %v9694, 0
        %v9772 = vsel %vm6773, %v9695, 0
        %v9775 = vsel %vm6773, %v9696, 0
        %v9778 = vsel %vm6773, %v9697, 0
        %v9781 = vsel %vm6773, %v9698, 0
        %v9784 = vsel %vm6773, %v9699, 0
        %9786 = vmatprep.subr.mxu0 0.0
        %9787 = vmatpush1.msra.mxu0 0.0
        %9788 = vmatprep.subr.mxu0 0.0
        %9789 = vmatpush1.msra.mxu0 0.0
        %9790 = vmatprep.subr.mxu0 0.0
        %9791 = vmatpush1.msra.mxu0 0.0
        %9792 = vmatprep.subr.mxu0 0.0
        %9793 = vmatpush1.msra.mxu0 0.0
        %9794 = vmatprep.subr.mxu0 0.0
        %9795 = vmatpush1.msra.mxu0 0.0
        %9796 = vmatprep.subr.mxu0 0.0
        %9797 = vmatpush1.msra.mxu0 0.0
        %9798 = vmatprep.subr.mxu0 0.0
        %9799 = vmatpush1.msra.mxu0 0.0
        %9800 = vmatprep.subr.mxu0 0.0
        %9801 = vmatpush1.msra.mxu0 0.0
        %9802 = vmatprep.subr.mxu0 0.0
        %9803 = vmatpush1.msra.mxu0 0.0
        %9804 = vmatprep.subr.mxu0 0.0
        %9805 = vmatpush1.msra.mxu0 0.0
        %9806 = vmatprep.subr.mxu0 0.0
        %9807 = vmatpush1.msra.mxu0 0.0
        %9808 = vmatprep.subr.mxu0 0.0
        %9809 = vmatpush1.msra.mxu0 0.0
        %9810 = vmatprep.subr.mxu0 0.0
        %9811 = vmatpush1.msra.mxu0 0.0
        %9812 = vmatprep.subr.mxu0 0.0
        %9813 = vmatpush1.msra.mxu0 0.0
        %9814 = vmatprep.subr.mxu0 0.0
        %9815 = vmatpush1.msra.mxu0 0.0
        %9816 = vmatprep.subr.mxu0 0.0
        %9817 = vmatpush1.msra.mxu0 %v9701
        %9818 = vmatprep.subr.mxu0 0.0
        %9819 = vmatpush2.msra.mxu0 0.0
        %9820 = vmatprep.subr.mxu0 0.0
        %9821 = vmatpush2.msra.mxu0 0.0
        %9822 = vmatprep.subr.mxu0 0.0
        %9823 = vmatpush2.msra.mxu0 0.0
        %9824 = vmatprep.subr.mxu0 0.0
        %9825 = vmatpush2.msra.mxu0 0.0
        %9826 = vmatprep.subr.mxu0 0.0
        %9827 = vmatpush2.msra.mxu0 0.0
        %9828 = vmatprep.subr.mxu0 0.0
        %9829 = vmatpush2.msra.mxu0 0.0
        %9830 = vmatprep.subr.mxu0 0.0
        %9831 = vmatpush2.msra.mxu0 0.0
        %9832 = vmatprep.subr.mxu0 0.0
        %9833 = vmatpush2.msra.mxu0 0.0
        %9834 = vmatprep.subr.mxu0 0.0
        %9835 = vmatpush2.msra.mxu0 0.0
        %9836 = vmatprep.subr.mxu0 0.0
        %9837 = vmatpush2.msra.mxu0 0.0
        %9838 = vmatprep.subr.mxu0 0.0
        %9839 = vmatpush2.msra.mxu0 0.0
        %9840 = vmatprep.subr.mxu0 0.0
        %9841 = vmatpush2.msra.mxu0 0.0
        %9842 = vmatprep.subr.mxu0 0.0
        %9843 = vmatpush2.msra.mxu0 0.0
        %9844 = vmatprep.subr.mxu0 0.0
        %9845 = vmatpush2.msra.mxu0 0.0
        %9846 = vmatprep.subr.mxu0 0.0
        %9847 = vmatpush2.msra.mxu0 0.0
        %9848 = vmatprep.subr.mxu0 0.0
        %9849 = vmatpush2.msra.mxu0 0.0
        %9850 = vmatprep.mubr.f32.mxu0 0.0
        %9851 = vmatmul.mubr.f32.gmra.mxu0 %v9703
        %v9852 = vpop.f32.mrf.mxu0
        %v9853 = vadd.f32 0.0, %v9852
        %v9854 = vpop.f32.mrf.mxu0
        %9855 = vmatprep.mubr.f32.mxu0 0.0
        %9856 = vmatmul.mubr.f32.gmra.mxu0 %v9706
        %v9857 = vpop.f32.mrf.mxu0
        %v9858 = vadd.f32 0.0, %v9857
        %v9859 = vpop.f32.mrf.mxu0
        %9860 = vmatprep.mubr.f32.mxu0 0.0
        %9861 = vmatmul.mubr.f32.gmra.mxu0 %v9709
        %v9862 = vpop.f32.mrf.mxu0
        %v9863 = vadd.f32 0.0, %v9862
        %v9864 = vpop.f32.mrf.mxu0
        %9865 = vmatprep.mubr.f32.mxu0 0.0
        %9866 = vmatmul.mubr.f32.gmra.mxu0 %v9712
        %v9867 = vpop.f32.mrf.mxu0
        %v9868 = vadd.f32 0.0, %v9867
        %v9869 = vpop.f32.mrf.mxu0
        %9870 = vmatprep.mubr.f32.mxu0 0.0
        %9871 = vmatmul.mubr.f32.gmra.mxu0 %v9715
        %v9872 = vpop.f32.mrf.mxu0
        %v9873 = vadd.f32 0.0, %v9872
        %v9874 = vpop.f32.mrf.mxu0
        %9875 = vmatprep.mubr.f32.mxu0 0.0
        %9876 = vmatmul.mubr.f32.gmra.mxu0 %v9718
        %v9877 = vpop.f32.mrf.mxu0
        %v9878 = vadd.f32 0.0, %v9877
        %v9879 = vpop.f32.mrf.mxu0
        %9880 = vmatprep.mubr.f32.mxu0 0.0
        %9881 = vmatmul.mubr.f32.gmra.mxu0 %v9721
        %v9882 = vpop.f32.mrf.mxu0
        %v9883 = vadd.f32 0.0, %v9882
        %v9884 = vpop.f32.mrf.mxu0
        %9885 = vmatprep.mubr.f32.mxu0 0.0
        %9886 = vmatmul.mubr.f32.gmra.mxu0 %v9724
        %v9887 = vpop.f32.mrf.mxu0
        %v9888 = vadd.f32 0.0, %v9887
        %v9889 = vpop.f32.mrf.mxu0
        %9890 = vmatprep.mubr.f32.mxu0 0.0
        %9891 = vmatmul.mubr.f32.gmra.mxu0 %v9727
        %v9892 = vpop.f32.mrf.mxu0
        %v9893 = vadd.f32 0.0, %v9892
        %v9894 = vpop.f32.mrf.mxu0
        %9895 = vmatprep.mubr.f32.mxu0 0.0
        %9896 = vmatmul.mubr.f32.gmra.mxu0 %v9730
        %v9897 = vpop.f32.mrf.mxu0
        %v9898 = vadd.f32 0.0, %v9897
        %v9899 = vpop.f32.mrf.mxu0
        %9900 = vmatprep.mubr.f32.mxu0 0.0
        %9901 = vmatmul.mubr.f32.gmra.mxu0 %v9733
        %v9902 = vpop.f32.mrf.mxu0
        %v9903 = vadd.f32 0.0, %v9902
        %v9904 = vpop.f32.mrf.mxu0
        %9905 = vmatprep.mubr.f32.mxu0 0.0
        %9906 = vmatmul.mubr.f32.gmra.mxu0 %v9736
        %v9907 = vpop.f32.mrf.mxu0
        %v9908 = vadd.f32 0.0, %v9907
        %v9909 = vpop.f32.mrf.mxu0
        %9910 = vmatprep.mubr.f32.mxu0 0.0
        %9911 = vmatmul.mubr.f32.gmra.mxu0 %v9739
        %v9912 = vpop.f32.mrf.mxu0
        %v9913 = vadd.f32 0.0, %v9912
        %v9914 = vpop.f32.mrf.mxu0
        %9915 = vmatprep.mubr.f32.mxu0 0.0
        %9916 = vmatmul.mubr.f32.gmra.mxu0 %v9742
        %v9917 = vpop.f32.mrf.mxu0
        %v9918 = vadd.f32 0.0, %v9917
        %v9919 = vpop.f32.mrf.mxu0
        %9920 = vmatprep.mubr.f32.mxu0 0.0
        %9921 = vmatmul.mubr.f32.gmra.mxu0 %v9745
        %v9922 = vpop.f32.mrf.mxu0
        %v9923 = vadd.f32 0.0, %v9922
        %v9924 = vpop.f32.mrf.mxu0
        %9925 = vmatprep.mubr.f32.mxu0 0.0
        %9926 = vmatmul.mubr.f32.gmra.mxu0 %v9748
        %v9927 = vpop.f32.mrf.mxu0
        %v9928 = vadd.f32 0.0, %v9927
        %v9929 = vpop.f32.mrf.mxu0
        %9930 = vmatprep.mubr.f32.mxu0 0.0
        %9931 = vmatmul.mubr.f32.gmra.mxu0 %v9751
        %v9932 = vpop.f32.mrf.mxu0
        %v9933 = vadd.f32 0.0, %v9932
        %v9934 = vpop.f32.mrf.mxu0
        %9935 = vmatprep.mubr.f32.mxu0 0.0
        %9936 = vmatmul.mubr.f32.gmra.mxu0 %v9754
        %v9937 = vpop.f32.mrf.mxu0
        %v9938 = vadd.f32 0.0, %v9937
        %v9939 = vpop.f32.mrf.mxu0
        %9940 = vmatprep.mubr.f32.mxu0 0.0
        %9941 = vmatmul.mubr.f32.gmra.mxu0 %v9757
        %v9942 = vpop.f32.mrf.mxu0
        %v9943 = vadd.f32 0.0, %v9942
        %v9944 = vpop.f32.mrf.mxu0
        %9945 = vmatprep.mubr.f32.mxu0 0.0
        %9946 = vmatmul.mubr.f32.gmra.mxu0 %v9760
        %v9947 = vpop.f32.mrf.mxu0
        %v9948 = vadd.f32 0.0, %v9947
        %v9949 = vpop.f32.mrf.mxu0
        %9950 = vmatprep.mubr.f32.mxu0 0.0
        %9951 = vmatmul.mubr.f32.gmra.mxu0 %v9763
        %v9952 = vpop.f32.mrf.mxu0
        %v9953 = vadd.f32 0.0, %v9952
        %v9954 = vpop.f32.mrf.mxu0
        %9955 = vmatprep.mubr.f32.mxu0 0.0
        %9956 = vmatmul.mubr.f32.gmra.mxu0 %v9766
        %v9957 = vpop.f32.mrf.mxu0
        %v9958 = vadd.f32 0.0, %v9957
        %v9959 = vpop.f32.mrf.mxu0
        %9960 = vmatprep.mubr.f32.mxu0 0.0
        %9961 = vmatmul.mubr.f32.gmra.mxu0 %v9769
        %v9962 = vpop.f32.mrf.mxu0
        %v9963 = vadd.f32 0.0, %v9962
        %v9964 = vpop.f32.mrf.mxu0
        %9965 = vmatprep.mubr.f32.mxu0 0.0
        %9966 = vmatmul.mubr.f32.gmra.mxu0 %v9772
        %v9967 = vpop.f32.mrf.mxu0
        %v9968 = vadd.f32 0.0, %v9967
        %v9969 = vpop.f32.mrf.mxu0
        %9970 = vmatprep.mubr.f32.mxu0 0.0
        %9971 = vmatmul.mubr.f32.gmra.mxu0 %v9775
        %v9972 = vpop.f32.mrf.mxu0
        %v9973 = vadd.f32 0.0, %v9972
        %v9974 = vpop.f32.mrf.mxu0
        %9975 = vmatprep.mubr.f32.mxu0 0.0
        %9976 = vmatmul.mubr.f32.gmra.mxu0 %v9778
        %v9977 = vpop.f32.mrf.mxu0
        %v9978 = vadd.f32 0.0, %v9977
        %v9979 = vpop.f32.mrf.mxu0
        %9980 = vmatprep.mubr.f32.mxu0 0.0
        %9981 = vmatmul.mubr.f32.gmra.mxu0 %v9781
        %v9982 = vpop.f32.mrf.mxu0
        %v9983 = vadd.f32 0.0, %v9982
        %v9984 = vpop.f32.mrf.mxu0
        %9985 = vmatprep.mubr.f32.mxu0 0.0
        %9986 = vmatmul.mubr.f32.gmra.mxu0 %v9784
        %v9987 = vpop.f32.mrf.mxu0
        %v9988 = vadd.f32 0.0, %v9987
        %v9989 = vpop.f32.mrf.mxu0
        %9990 = vdwg.mxu0
        %v9991 = vadd.f32 %v9644, %v9853
        %v9992 = vadd.f32 %v9645, %v9858
        %v9993 = vadd.f32 %v9646, %v9863
        %v9994 = vadd.f32 %v9647, %v9868
        %v9995 = vadd.f32 %v9648, %v9873
        %v9996 = vadd.f32 %v9649, %v9878
        %v9997 = vadd.f32 %v9650, %v9883
        %v9998 = vadd.f32 %v9651, %v9888
        %v9999 = vadd.f32 %v9652, %v9893
        %v10000 = vadd.f32 %v9653, %v9898
        %v10001 = vadd.f32 %v9654, %v9903
        %v10002 = vadd.f32 %v9655, %v9908
        %v10003 = vadd.f32 %v9656, %v9913
        %v10004 = vadd.f32 %v9657, %v9918
        %v10005 = vadd.f32 %v9658, %v9923
        %v10006 = vadd.f32 %v9659, %v9928
        %v10007 = vadd.f32 %v9660, %v9933
        %v10008 = vadd.f32 %v9661, %v9938
        %v10009 = vadd.f32 %v9662, %v9943
        %v10010 = vadd.f32 %v9663, %v9948
        %v10011 = vadd.f32 %v9664, %v9953
        %v10012 = vadd.f32 %v9665, %v9958
        %v10013 = vadd.f32 %v9666, %v9963
        %v10014 = vadd.f32 %v9667, %v9968
        %v10015 = vadd.f32 %v9668, %v9973
        %v10016 = vadd.f32 %v9669, %v9978
        %v10017 = vadd.f32 %v9670, %v9983
        %v10018 = vadd.f32 %v9671, %v9988
        %v10019 = vld [vmem:[%s5] sm:$0x1]
        %v10021 = vlaneseq
        %v10022 = vshrl.u32 %v10021, 7
        %v10023 = vsub.s32 0, %v10022
        %v10024 = vrot.slane %v10019, %v10023
        %v10026 = vadd.f32 %v9991, %v10024
        %v10027 = vadd.f32 %v9992, %v10024
        %v10028 = vadd.f32 %v9993, %v10024
        %v10029 = vadd.f32 %v9994, %v10024
        %v10030 = vadd.f32 %v9995, %v10024
        %v10031 = vadd.f32 %v9996, %v10024
        %v10032 = vadd.f32 %v9997, %v10024
        %v10033 = vadd.f32 %v9998, %v10024
        %v10034 = vadd.f32 %v9999, %v10024
        %v10035 = vadd.f32 %v10000, %v10024
        %v10036 = vadd.f32 %v10001, %v10024
        %v10037 = vadd.f32 %v10002, %v10024
        %v10038 = vadd.f32 %v10003, %v10024
        %v10039 = vadd.f32 %v10004, %v10024
        %v10040 = vadd.f32 %v10005, %v10024
        %v10041 = vadd.f32 %v10006, %v10024
        %v10042 = vadd.f32 %v10007, %v10024
        %v10043 = vadd.f32 %v10008, %v10024
        %v10044 = vadd.f32 %v10009, %v10024
        %v10045 = vadd.f32 %v10010, %v10024
        %v10046 = vadd.f32 %v10011, %v10024
        %v10047 = vadd.f32 %v10012, %v10024
        %v10048 = vadd.f32 %v10013, %v10024
        %v10049 = vadd.f32 %v10014, %v10024
        %v10050 = vadd.f32 %v10015, %v10024
        %v10051 = vadd.f32 %v10016, %v10024
        %v10052 = vadd.f32 %v10017, %v10024
        %v10053 = vadd.f32 %v10018, %v10024
        %v10054 = vmax.f32 %v10026, 0.0
        %v10055 = vmax.f32 %v10027, 0.0
        %v10056 = vmax.f32 %v10028, 0.0
        %v10057 = vmax.f32 %v10029, 0.0
        %v10058 = vmax.f32 %v10030, 0.0
        %v10059 = vmax.f32 %v10031, 0.0
        %v10060 = vmax.f32 %v10032, 0.0
        %v10061 = vmax.f32 %v10033, 0.0
        %v10062 = vmax.f32 %v10034, 0.0
        %v10063 = vmax.f32 %v10035, 0.0
        %v10064 = vmax.f32 %v10036, 0.0
        %v10065 = vmax.f32 %v10037, 0.0
        %v10066 = vmax.f32 %v10038, 0.0
        %v10067 = vmax.f32 %v10039, 0.0
        %v10068 = vmax.f32 %v10040, 0.0
        %v10069 = vmax.f32 %v10041, 0.0
        %v10070 = vmax.f32 %v10042, 0.0
        %v10071 = vmax.f32 %v10043, 0.0
        %v10072 = vmax.f32 %v10044, 0.0
        %v10073 = vmax.f32 %v10045, 0.0
        %v10074 = vmax.f32 %v10046, 0.0
        %v10075 = vmax.f32 %v10047, 0.0
        %v10076 = vmax.f32 %v10048, 0.0
        %v10077 = vmax.f32 %v10049, 0.0
        %v10078 = vmax.f32 %v10050, 0.0
        %v10079 = vmax.f32 %v10051, 0.0
        %v10080 = vmax.f32 %v10052, 0.0
        %v10081 = vmax.f32 %v10053, 0.0
        %vm10082 = vcmask 130048
        %10083 = vst.msk [vmem:[#allocation3 + $0xe0] sm:$0xff] %vm10082, 0.0
        %10084 = vst.msk [vmem:[#allocation3] sm:$0xff] %vm10082, %v10054
        %10085 = vst.msk [vmem:[#allocation3 + $0x8] sm:$0xff] %vm10082, %v10055
        %10086 = vst.msk [vmem:[#allocation3 + $0x10] sm:$0xff] %vm10082, %v10056
        %10087 = vst.msk [vmem:[#allocation3 + $0x18] sm:$0xff] %vm10082, %v10057
        %10088 = vst.msk [vmem:[#allocation3 + $0x20] sm:$0xff] %vm10082, %v10058
        %10089 = vst.msk [vmem:[#allocation3 + $0x28] sm:$0xff] %vm10082, %v10059
        %10090 = vst.msk [vmem:[#allocation3 + $0x30] sm:$0xff] %vm10082, %v10060
        %10091 = vst.msk [vmem:[#allocation3 + $0x38] sm:$0xff] %vm10082, %v10061
        %10092 = vst.msk [vmem:[#allocation3 + $0x40] sm:$0xff] %vm10082, %v10062
        %10093 = vst.msk [vmem:[#allocation3 + $0x48] sm:$0xff] %vm10082, %v10063
        %10094 = vst.msk [vmem:[#allocation3 + $0x50] sm:$0xff] %vm10082, %v10064
        %10095 = vst.msk [vmem:[#allocation3 + $0x58] sm:$0xff] %vm10082, %v10065
        %10096 = vst.msk [vmem:[#allocation3 + $0x60] sm:$0xff] %vm10082, %v10066
        %10097 = vst.msk [vmem:[#allocation3 + $0x68] sm:$0xff] %vm10082, %v10067
        %10098 = vst.msk [vmem:[#allocation3 + $0x70] sm:$0xff] %vm10082, %v10068
        %10099 = vst.msk [vmem:[#allocation3 + $0x78] sm:$0xff] %vm10082, %v10069
        %10100 = vst.msk [vmem:[#allocation3 + $0x80] sm:$0xff] %vm10082, %v10070
        %10101 = vst.msk [vmem:[#allocation3 + $0x88] sm:$0xff] %vm10082, %v10071
        %10102 = vst.msk [vmem:[#allocation3 + $0x90] sm:$0xff] %vm10082, %v10072
        %10103 = vst.msk [vmem:[#allocation3 + $0x98] sm:$0xff] %vm10082, %v10073
        %10104 = vst.msk [vmem:[#allocation3 + $0xa0] sm:$0xff] %vm10082, %v10074
        %10105 = vst.msk [vmem:[#allocation3 + $0xa8] sm:$0xff] %vm10082, %v10075
        %10106 = vst.msk [vmem:[#allocation3 + $0xb0] sm:$0xff] %vm10082, %v10076
        %10107 = vst.msk [vmem:[#allocation3 + $0xb8] sm:$0xff] %vm10082, %v10077
        %10108 = vst.msk [vmem:[#allocation3 + $0xc0] sm:$0xff] %vm10082, %v10078
        %10109 = vst.msk [vmem:[#allocation3 + $0xc8] sm:$0xff] %vm10082, %v10079
        %10110 = vst.msk [vmem:[#allocation3 + $0xd0] sm:$0xff] %vm10082, %v10080
        %10111 = vst.msk [vmem:[#allocation3 + $0xd8] sm:$0xff] %vm10082, %v10081
        %v10112 = vld [vmem:[#allocation3] sm:$0xff]
        %v10113 = vld [vmem:[#allocation3 + $0x8] sm:$0xff]
        %v10114 = vld [vmem:[#allocation3 + $0x10] sm:$0xff]
        %v10115 = vld [vmem:[#allocation3 + $0x18] sm:$0xff]
        %v10116 = vld [vmem:[#allocation3 + $0x20] sm:$0xff]
        %v10117 = vld [vmem:[#allocation3 + $0x28] sm:$0xff]
        %v10118 = vld [vmem:[#allocation3 + $0x30] sm:$0xff]
        %v10119 = vld [vmem:[#allocation3 + $0x38] sm:$0xff]
        %v10120 = vld [vmem:[#allocation3 + $0x40] sm:$0xff]
        %v10121 = vld [vmem:[#allocation3 + $0x48] sm:$0xff]
        %v10122 = vld [vmem:[#allocation3 + $0x50] sm:$0xff]
        %v10123 = vld [vmem:[#allocation3 + $0x58] sm:$0xff]
        %v10124 = vld [vmem:[#allocation3 + $0x60] sm:$0xff]
        %v10125 = vld [vmem:[#allocation3 + $0x68] sm:$0xff]
        %v10126 = vld [vmem:[#allocation3 + $0x70] sm:$0xff]
        %v10127 = vld [vmem:[#allocation3 + $0x78] sm:$0xff]
        %v10128 = vld [vmem:[#allocation3 + $0x80] sm:$0xff]
        %v10129 = vld [vmem:[#allocation3 + $0x88] sm:$0xff]
        %v10130 = vld [vmem:[#allocation3 + $0x90] sm:$0xff]
        %v10131 = vld [vmem:[#allocation3 + $0x98] sm:$0xff]
        %v10132 = vld [vmem:[#allocation3 + $0xa0] sm:$0xff]
        %v10133 = vld [vmem:[#allocation3 + $0xa8] sm:$0xff]
        %v10134 = vld [vmem:[#allocation3 + $0xb0] sm:$0xff]
        %v10135 = vld [vmem:[#allocation3 + $0xb8] sm:$0xff]
        %v10136 = vld [vmem:[#allocation3 + $0xc0] sm:$0xff]
        %v10137 = vld [vmem:[#allocation3 + $0xc8] sm:$0xff]
        %v10138 = vld [vmem:[#allocation3 + $0xd0] sm:$0xff]
        %v10139 = vld [vmem:[#allocation3 + $0xd8] sm:$0xff]
        %v10140 = vld [vmem:[#allocation3 + $0x1] sm:$0xff]
        %v10141 = vld [vmem:[#allocation3 + $0x9] sm:$0xff]
        %v10142 = vld [vmem:[#allocation3 + $0x11] sm:$0xff]
        %v10143 = vld [vmem:[#allocation3 + $0x19] sm:$0xff]
        %v10144 = vld [vmem:[#allocation3 + $0x21] sm:$0xff]
        %v10145 = vld [vmem:[#allocation3 + $0x29] sm:$0xff]
        %v10146 = vld [vmem:[#allocation3 + $0x31] sm:$0xff]
        %v10147 = vld [vmem:[#allocation3 + $0x39] sm:$0xff]
        %v10148 = vld [vmem:[#allocation3 + $0x41] sm:$0xff]
        %v10149 = vld [vmem:[#allocation3 + $0x49] sm:$0xff]
        %v10150 = vld [vmem:[#allocation3 + $0x51] sm:$0xff]
        %v10151 = vld [vmem:[#allocation3 + $0x59] sm:$0xff]
        %v10152 = vld [vmem:[#allocation3 + $0x61] sm:$0xff]
        %v10153 = vld [vmem:[#allocation3 + $0x69] sm:$0xff]
        %v10154 = vld [vmem:[#allocation3 + $0x71] sm:$0xff]
        %v10155 = vld [vmem:[#allocation3 + $0x79] sm:$0xff]
        %v10156 = vld [vmem:[#allocation3 + $0x81] sm:$0xff]
        %v10157 = vld [vmem:[#allocation3 + $0x89] sm:$0xff]
        %v10158 = vld [vmem:[#allocation3 + $0x91] sm:$0xff]
        %v10159 = vld [vmem:[#allocation3 + $0x99] sm:$0xff]
        %v10160 = vld [vmem:[#allocation3 + $0xa1] sm:$0xff]
        %v10161 = vld [vmem:[#allocation3 + $0xa9] sm:$0xff]
        %v10162 = vld [vmem:[#allocation3 + $0xb1] sm:$0xff]
        %v10163 = vld [vmem:[#allocation3 + $0xb9] sm:$0xff]
        %v10164 = vld [vmem:[#allocation3 + $0xc1] sm:$0xff]
        %v10165 = vld [vmem:[#allocation3 + $0xc9] sm:$0xff]
        %v10166 = vld [vmem:[#allocation3 + $0xd1] sm:$0xff]
        %v10167 = vld [vmem:[#allocation3 + $0xd9] sm:$0xff]
        %v10168 = vmax.f32 %v10112, %v10140
        %v10169 = vmax.f32 %v10113, %v10141
        %v10170 = vmax.f32 %v10114, %v10142
        %v10171 = vmax.f32 %v10115, %v10143
        %v10172 = vmax.f32 %v10116, %v10144
        %v10173 = vmax.f32 %v10117, %v10145
        %v10174 = vmax.f32 %v10118, %v10146
        %v10175 = vmax.f32 %v10119, %v10147
        %v10176 = vmax.f32 %v10120, %v10148
        %v10177 = vmax.f32 %v10121, %v10149
        %v10178 = vmax.f32 %v10122, %v10150
        %v10179 = vmax.f32 %v10123, %v10151
        %v10180 = vmax.f32 %v10124, %v10152
        %v10181 = vmax.f32 %v10125, %v10153
        %v10182 = vmax.f32 %v10126, %v10154
        %v10183 = vmax.f32 %v10127, %v10155
        %v10184 = vmax.f32 %v10128, %v10156
        %v10185 = vmax.f32 %v10129, %v10157
        %v10186 = vmax.f32 %v10130, %v10158
        %v10187 = vmax.f32 %v10131, %v10159
        %v10188 = vmax.f32 %v10132, %v10160
        %v10189 = vmax.f32 %v10133, %v10161
        %v10190 = vmax.f32 %v10134, %v10162
        %v10191 = vmax.f32 %v10135, %v10163
        %v10192 = vmax.f32 %v10136, %v10164
        %v10193 = vmax.f32 %v10137, %v10165
        %v10194 = vmax.f32 %v10138, %v10166
        %v10195 = vmax.f32 %v10139, %v10167
        %v10196 = vsel %vm10082, %v10168, -inf
        %v10197 = vsel %vm10082, %v10170, -inf
        %v10198 = vmax.f32 %v10196, %v10197
        %v10199 = vsel %vm10082, %v10169, -inf
        %v10200 = vsel %vm10082, %v10171, -inf
        %v10201 = vmax.f32 %v10199, %v10200
        %v10202 = vsel %vm10082, %v10172, -inf
        %v10203 = vsel %vm10082, %v10174, -inf
        %v10204 = vmax.f32 %v10202, %v10203
        %v10205 = vsel %vm10082, %v10173, -inf
        %v10206 = vsel %vm10082, %v10175, -inf
        %v10207 = vmax.f32 %v10205, %v10206
        %v10208 = vsel %vm10082, %v10176, -inf
        %v10209 = vsel %vm10082, %v10178, -inf
        %v10210 = vmax.f32 %v10208, %v10209
        %v10211 = vsel %vm10082, %v10177, -inf
        %v10212 = vsel %vm10082, %v10179, -inf
        %v10213 = vmax.f32 %v10211, %v10212
        %v10214 = vsel %vm10082, %v10180, -inf
        %v10215 = vsel %vm10082, %v10182, -inf
        %v10216 = vmax.f32 %v10214, %v10215
        %v10217 = vsel %vm10082, %v10181, -inf
        %v10218 = vsel %vm10082, %v10183, -inf
        %v10219 = vmax.f32 %v10217, %v10218
        %v10220 = vsel %vm10082, %v10184, -inf
        %v10221 = vsel %vm10082, %v10186, -inf
        %v10222 = vmax.f32 %v10220, %v10221
        %v10223 = vsel %vm10082, %v10185, -inf
        %v10224 = vsel %vm10082, %v10187, -inf
        %v10225 = vmax.f32 %v10223, %v10224
        %v10226 = vsel %vm10082, %v10188, -inf
        %v10227 = vsel %vm10082, %v10190, -inf
        %v10228 = vmax.f32 %v10226, %v10227
        %v10229 = vsel %vm10082, %v10189, -inf
        %v10230 = vsel %vm10082, %v10191, -inf
        %v10231 = vmax.f32 %v10229, %v10230
        %v10232 = vsel %vm10082, %v10192, -inf
        %v10233 = vsel %vm10082, %v10194, -inf
        %v10234 = vmax.f32 %v10232, %v10233
        %v10235 = vsel %vm10082, %v10193, -inf
        %v10236 = vsel %vm10082, %v10195, -inf
        %v10237 = vmax.f32 %v10235, %v10236
        %v10238 = vld [vmem:[%s6] sm:$0xff]
        %v10239 = vld [vmem:[%s6 + $0x8] sm:$0xff]
        %v10240 = vld [vmem:[%s6 + $0x10] sm:$0xff]
        %v10241 = vld [vmem:[%s6 + $0x18] sm:$0xff]
        %v10242 = vld [vmem:[%s6 + $0x20] sm:$0xff]
        %v10243 = vld [vmem:[%s6 + $0x28] sm:$0xff]
        %v10244 = vld [vmem:[%s6 + $0x30] sm:$0xff]
        %v10245 = vld [vmem:[%s6 + $0x38] sm:$0xff]
        %v10246 = vld [vmem:[%s6 + $0x40] sm:$0xff]
        %v10247 = vld [vmem:[%s6 + $0x48] sm:$0xff]
        %v10248 = vld [vmem:[%s6 + $0x50] sm:$0xff]
        %v10249 = vld [vmem:[%s6 + $0x58] sm:$0xff]
        %v10250 = vld [vmem:[%s6 + $0x60] sm:$0xff]
        %v10251 = vld [vmem:[%s6 + $0x68] sm:$0xff]
        %v10252 = vmul.f32 %v10198, %v10238
        %v10253 = vmul.f32 %v10201, %v10239
        %v10254 = vmul.f32 %v10204, %v10240
        %v10255 = vmul.f32 %v10207, %v10241
        %v10256 = vmul.f32 %v10210, %v10242
        %v10257 = vmul.f32 %v10213, %v10243
        %v10258 = vmul.f32 %v10216, %v10244
        %v10259 = vmul.f32 %v10219, %v10245
        %v10260 = vmul.f32 %v10222, %v10246
        %v10261 = vmul.f32 %v10225, %v10247
        %v10262 = vmul.f32 %v10228, %v10248
        %v10263 = vmul.f32 %v10231, %v10249
        %v10264 = vmul.f32 %v10234, %v10250
        %v10265 = vmul.f32 %v10237, %v10251
        %v10266 = vsel %vm10082, %v10252, 0.0
        %v10267 = vsel %vm10082, %v10254, 0.0
        %v10268 = vadd.f32 %v10266, %v10267
        %v10269 = vsel %vm10082, %v10256, 0.0
        %v10270 = vadd.f32 %v10268, %v10269
        %v10271 = vsel %vm10082, %v10258, 0.0
        %v10272 = vadd.f32 %v10270, %v10271
        %v10273 = vsel %vm10082, %v10260, 0.0
        %v10274 = vadd.f32 %v10272, %v10273
        %v10275 = vsel %vm10082, %v10262, 0.0
        %v10276 = vadd.f32 %v10274, %v10275
        %v10277 = vsel %vm10082, %v10264, 0.0
        %v10278 = vadd.f32 %v10276, %v10277
        %v10279 = vsel %vm10082, %v10253, 0.0
        %v10280 = vsel %vm10082, %v10255, 0.0
        %v10281 = vadd.f32 %v10279, %v10280
        %v10282 = vsel %vm10082, %v10257, 0.0
        %v10283 = vadd.f32 %v10281, %v10282
        %v10284 = vsel %vm10082, %v10259, 0.0
        %v10285 = vadd.f32 %v10283, %v10284
        %v10286 = vsel %vm10082, %v10261, 0.0
        %v10287 = vadd.f32 %v10285, %v10286
        %v10288 = vsel %vm10082, %v10263, 0.0
        %v10289 = vadd.f32 %v10287, %v10288
        %v10290 = vsel %vm10082, %v10265, 0.0
        %v10291 = vadd.f32 %v10289, %v10290
        %v10292 = vsel %vm10082, %v10278, 0.0
        %v10293 = vsel %vm10082, %v10291, 0.0
        %v10294 = vadd.f32 %v10292, %v10293
        %10295 = vadd.xlane.f32.xlu0 %v10294
        %v10296 = vpop.xlane.xlu0 %10295
        %v10297 = vrot.slane %v10296, 4
        %v10298 = vadd.f32 %v10296, %v10297
        %v10299 = vrot.slane %v10298, 2
        %v10300 = vadd.f32 %v10298, %v10299
        %v10301 = vrot.slane %v10300, 1
        %v10302 = vadd.f32 %v10300, %v10301
        %s10303 = vtos %v10302
        %s10304 = sld [smem:[#allocation4]]
        %s10305 = sadd.f32 %s10303, %s10304
        %s10306 = smax.f32 %s10305, 0.0
        %s10307 = scalar_lea.vmem %s6, 112
        %v10308 = vld [vmem:[%s10307] sm:$0xff]
        %v10309 = vld [vmem:[%s10307 + $0x8] sm:$0xff]
        %v10310 = vld [vmem:[%s10307 + $0x10] sm:$0xff]
        %v10311 = vld [vmem:[%s10307 + $0x18] sm:$0xff]
        %v10312 = vld [vmem:[%s10307 + $0x20] sm:$0xff]
        %v10313 = vld [vmem:[%s10307 + $0x28] sm:$0xff]
        %v10314 = vld [vmem:[%s10307 + $0x30] sm:$0xff]
        %v10315 = vld [vmem:[%s10307 + $0x38] sm:$0xff]
        %v10316 = vld [vmem:[%s10307 + $0x40] sm:$0xff]
        %v10317 = vld [vmem:[%s10307 + $0x48] sm:$0xff]
        %v10318 = vld [vmem:[%s10307 + $0x50] sm:$0xff]
        %v10319 = vld [vmem:[%s10307 + $0x58] sm:$0xff]
        %v10320 = vld [vmem:[%s10307 + $0x60] sm:$0xff]
        %v10321 = vld [vmem:[%s10307 + $0x68] sm:$0xff]
        %v10322 = vmul.f32 %v10198, %v10308
        %v10323 = vmul.f32 %v10201, %v10309
        %v10324 = vmul.f32 %v10204, %v10310
        %v10325 = vmul.f32 %v10207, %v10311
        %v10326 = vmul.f32 %v10210, %v10312
        %v10327 = vmul.f32 %v10213, %v10313
        %v10328 = vmul.f32 %v10216, %v10314
        %v10329 = vmul.f32 %v10219, %v10315
        %v10330 = vmul.f32 %v10222, %v10316
        %v10331 = vmul.f32 %v10225, %v10317
        %v10332 = vmul.f32 %v10228, %v10318
        %v10333 = vmul.f32 %v10231, %v10319
        %v10334 = vmul.f32 %v10234, %v10320
        %v10335 = vmul.f32 %v10237, %v10321
        %v10336 = vsel %vm10082, %v10322, 0.0
        %v10337 = vsel %vm10082, %v10324, 0.0
        %v10338 = vadd.f32 %v10336, %v10337
        %v10339 = vsel %vm10082, %v10326, 0.0
        %v10340 = vadd.f32 %v10338, %v10339
        %v10341 = vsel %vm10082, %v10328, 0.0
        %v10342 = vadd.f32 %v10340, %v10341
        %v10343 = vsel %vm10082, %v10330, 0.0
        %v10344 = vadd.f32 %v10342, %v10343
        %v10345 = vsel %vm10082, %v10332, 0.0
        %v10346 = vadd.f32 %v10344, %v10345
        %v10347 = vsel %vm10082, %v10334, 0.0
        %v10348 = vadd.f32 %v10346, %v10347
        %v10349 = vsel %vm10082, %v10323, 0.0
        %v10350 = vsel %vm10082, %v10325, 0.0
        %v10351 = vadd.f32 %v10349, %v10350
        %v10352 = vsel %vm10082, %v10327, 0.0
        %v10353 = vadd.f32 %v10351, %v10352
        %v10354 = vsel %vm10082, %v10329, 0.0
        %v10355 = vadd.f32 %v10353, %v10354
        %v10356 = vsel %vm10082, %v10331, 0.0
        %v10357 = vadd.f32 %v10355, %v10356
        %v10358 = vsel %vm10082, %v10333, 0.0
        %v10359 = vadd.f32 %v10357, %v10358
        %v10360 = vsel %vm10082, %v10335, 0.0
        %v10361 = vadd.f32 %v10359, %v10360
        %v10362 = vsel %vm10082, %v10348, 0.0
        %v10363 = vsel %vm10082, %v10361, 0.0
        %v10364 = vadd.f32 %v10362, %v10363
        %10365 = vadd.xlane.f32.xlu0 %v10364
        %v10366 = vpop.xlane.xlu0 %10365
        %v10367 = vrot.slane %v10366, 4
        %v10368 = vadd.f32 %v10366, %v10367
        %v10369 = vrot.slane %v10368, 2
        %v10370 = vadd.f32 %v10368, %v10369
        %v10371 = vrot.slane %v10370, 1
        %v10372 = vadd.f32 %v10370, %v10371
        %s10373 = vtos %v10372
        %s10374 = sld [smem:[#allocation4 + $0x1]]
        %s10375 = sadd.f32 %s10373, %s10374
        %s10376 = smax.f32 %s10375, 0.0
        %s10377 = scalar_lea.vmem %s6, 224
        %v10378 = vld [vmem:[%s10377] sm:$0xff]
        %v10379 = vld [vmem:[%s10377 + $0x8] sm:$0xff]
        %v10380 = vld [vmem:[%s10377 + $0x10] sm:$0xff]
        %v10381 = vld [vmem:[%s10377 + $0x18] sm:$0xff]
        %v10382 = vld [vmem:[%s10377 + $0x20] sm:$0xff]
        %v10383 = vld [vmem:[%s10377 + $0x28] sm:$0xff]
        %v10384 = vld [vmem:[%s10377 + $0x30] sm:$0xff]
        %v10385 = vld [vmem:[%s10377 + $0x38] sm:$0xff]
        %v10386 = vld [vmem:[%s10377 + $0x40] sm:$0xff]
        %v10387 = vld [vmem:[%s10377 + $0x48] sm:$0xff]
        %v10388 = vld [vmem:[%s10377 + $0x50] sm:$0xff]
        %v10389 = vld [vmem:[%s10377 + $0x58] sm:$0xff]
        %v10390 = vld [vmem:[%s10377 + $0x60] sm:$0xff]
        %v10391 = vld [vmem:[%s10377 + $0x68] sm:$0xff]
        %v10392 = vmul.f32 %v10198, %v10378
        %v10393 = vmul.f32 %v10201, %v10379
        %v10394 = vmul.f32 %v10204, %v10380
        %v10395 = vmul.f32 %v10207, %v10381
        %v10396 = vmul.f32 %v10210, %v10382
        %v10397 = vmul.f32 %v10213, %v10383
        %v10398 = vmul.f32 %v10216, %v10384
        %v10399 = vmul.f32 %v10219, %v10385
        %v10400 = vmul.f32 %v10222, %v10386
        %v10401 = vmul.f32 %v10225, %v10387
        %v10402 = vmul.f32 %v10228, %v10388
        %v10403 = vmul.f32 %v10231, %v10389
        %v10404 = vmul.f32 %v10234, %v10390
        %v10405 = vmul.f32 %v10237, %v10391
        %v10406 = vsel %vm10082, %v10392, 0.0
        %v10407 = vsel %vm10082, %v10394, 0.0
        %v10408 = vadd.f32 %v10406, %v10407
        %v10409 = vsel %vm10082, %v10396, 0.0
        %v10410 = vadd.f32 %v10408, %v10409
        %v10411 = vsel %vm10082, %v10398, 0.0
        %v10412 = vadd.f32 %v10410, %v10411
        %v10413 = vsel %vm10082, %v10400, 0.0
        %v10414 = vadd.f32 %v10412, %v10413
        %v10415 = vsel %vm10082, %v10402, 0.0
        %v10416 = vadd.f32 %v10414, %v10415
        %v10417 = vsel %vm10082, %v10404, 0.0
        %v10418 = vadd.f32 %v10416, %v10417
        %v10419 = vsel %vm10082, %v10393, 0.0
        %v10420 = vsel %vm10082, %v10395, 0.0
        %v10421 = vadd.f32 %v10419, %v10420
        %v10422 = vsel %vm10082, %v10397, 0.0
        %v10423 = vadd.f32 %v10421, %v10422
        %v10424 = vsel %vm10082, %v10399, 0.0
        %v10425 = vadd.f32 %v10423, %v10424
        %v10426 = vsel %vm10082, %v10401, 0.0
        %v10427 = vadd.f32 %v10425, %v10426
        %v10428 = vsel %vm10082, %v10403, 0.0
        %v10429 = vadd.f32 %v10427, %v10428
        %v10430 = vsel %vm10082, %v10405, 0.0
        %v10431 = vadd.f32 %v10429, %v10430
        %v10432 = vsel %vm10082, %v10418, 0.0
        %v10433 = vsel %vm10082, %v10431, 0.0
        %v10434 = vadd.f32 %v10432, %v10433
        %10435 = vadd.xlane.f32.xlu0 %v10434
        %v10436 = vpop.xlane.xlu0 %10435
        %v10437 = vrot.slane %v10436, 4
        %v10438 = vadd.f32 %v10436, %v10437
        %v10439 = vrot.slane %v10438, 2
        %v10440 = vadd.f32 %v10438, %v10439
        %v10441 = vrot.slane %v10440, 1
        %v10442 = vadd.f32 %v10440, %v10441
        %s10443 = vtos %v10442
        %s10444 = sld [smem:[#allocation4 + $0x2]]
        %s10445 = sadd.f32 %s10443, %s10444
        %s10446 = smax.f32 %s10445, 0.0
        %s10447 = scalar_lea.vmem %s6, 336
        %v10448 = vld [vmem:[%s10447] sm:$0xff]
        %v10449 = vld [vmem:[%s10447 + $0x8] sm:$0xff]
        %v10450 = vld [vmem:[%s10447 + $0x10] sm:$0xff]
        %v10451 = vld [vmem:[%s10447 + $0x18] sm:$0xff]
        %v10452 = vld [vmem:[%s10447 + $0x20] sm:$0xff]
        %v10453 = vld [vmem:[%s10447 + $0x28] sm:$0xff]
        %v10454 = vld [vmem:[%s10447 + $0x30] sm:$0xff]
        %v10455 = vld [vmem:[%s10447 + $0x38] sm:$0xff]
        %v10456 = vld [vmem:[%s10447 + $0x40] sm:$0xff]
        %v10457 = vld [vmem:[%s10447 + $0x48] sm:$0xff]
        %v10458 = vld [vmem:[%s10447 + $0x50] sm:$0xff]
        %v10459 = vld [vmem:[%s10447 + $0x58] sm:$0xff]
        %v10460 = vld [vmem:[%s10447 + $0x60] sm:$0xff]
        %v10461 = vld [vmem:[%s10447 + $0x68] sm:$0xff]
        %v10462 = vmul.f32 %v10198, %v10448
        %v10463 = vmul.f32 %v10201, %v10449
        %v10464 = vmul.f32 %v10204, %v10450
        %v10465 = vmul.f32 %v10207, %v10451
        %v10466 = vmul.f32 %v10210, %v10452
        %v10467 = vmul.f32 %v10213, %v10453
        %v10468 = vmul.f32 %v10216, %v10454
        %v10469 = vmul.f32 %v10219, %v10455
        %v10470 = vmul.f32 %v10222, %v10456
        %v10471 = vmul.f32 %v10225, %v10457
        %v10472 = vmul.f32 %v10228, %v10458
        %v10473 = vmul.f32 %v10231, %v10459
        %v10474 = vmul.f32 %v10234, %v10460
        %v10475 = vmul.f32 %v10237, %v10461
        %v10476 = vsel %vm10082, %v10462, 0.0
        %v10477 = vsel %vm10082, %v10464, 0.0
        %v10478 = vadd.f32 %v10476, %v10477
        %v10479 = vsel %vm10082, %v10466, 0.0
        %v10480 = vadd.f32 %v10478, %v10479
        %v10481 = vsel %vm10082, %v10468, 0.0
        %v10482 = vadd.f32 %v10480, %v10481
        %v10483 = vsel %vm10082, %v10470, 0.0
        %v10484 = vadd.f32 %v10482, %v10483
        %v10485 = vsel %vm10082, %v10472, 0.0
        %v10486 = vadd.f32 %v10484, %v10485
        %v10487 = vsel %vm10082, %v10474, 0.0
        %v10488 = vadd.f32 %v10486, %v10487
        %v10489 = vsel %vm10082, %v10463, 0.0
        %v10490 = vsel %vm10082, %v10465, 0.0
        %v10491 = vadd.f32 %v10489, %v10490
        %v10492 = vsel %vm10082, %v10467, 0.0
        %v10493 = vadd.f32 %v10491, %v10492
        %v10494 = vsel %vm10082, %v10469, 0.0
        %v10495 = vadd.f32 %v10493, %v10494
        %v10496 = vsel %vm10082, %v10471, 0.0
        %v10497 = vadd.f32 %v10495, %v10496
        %v10498 = vsel %vm10082, %v10473, 0.0
        %v10499 = vadd.f32 %v10497, %v10498
        %v10500 = vsel %vm10082, %v10475, 0.0
        %v10501 = vadd.f32 %v10499, %v10500
        %v10502 = vsel %vm10082, %v10488, 0.0
        %v10503 = vsel %vm10082, %v10501, 0.0
        %v10504 = vadd.f32 %v10502, %v10503
        %10505 = vadd.xlane.f32.xlu0 %v10504
        %v10506 = vpop.xlane.xlu0 %10505
        %v10507 = vrot.slane %v10506, 4
        %v10508 = vadd.f32 %v10506, %v10507
        %v10509 = vrot.slane %v10508, 2
        %v10510 = vadd.f32 %v10508, %v10509
        %v10511 = vrot.slane %v10510, 1
        %v10512 = vadd.f32 %v10510, %v10511
        %s10513 = vtos %v10512
        %s10514 = sld [smem:[#allocation4 + $0x3]]
        %s10515 = sadd.f32 %s10513, %s10514
        %s10516 = smax.f32 %s10515, 0.0
        %s10517 = scalar_lea.vmem %s6, 448
        %v10518 = vld [vmem:[%s10517] sm:$0xff]
        %v10519 = vld [vmem:[%s10517 + $0x8] sm:$0xff]
        %v10520 = vld [vmem:[%s10517 + $0x10] sm:$0xff]
        %v10521 = vld [vmem:[%s10517 + $0x18] sm:$0xff]
        %v10522 = vld [vmem:[%s10517 + $0x20] sm:$0xff]
        %v10523 = vld [vmem:[%s10517 + $0x28] sm:$0xff]
        %v10524 = vld [vmem:[%s10517 + $0x30] sm:$0xff]
        %v10525 = vld [vmem:[%s10517 + $0x38] sm:$0xff]
        %v10526 = vld [vmem:[%s10517 + $0x40] sm:$0xff]
        %v10527 = vld [vmem:[%s10517 + $0x48] sm:$0xff]
        %v10528 = vld [vmem:[%s10517 + $0x50] sm:$0xff]
        %v10529 = vld [vmem:[%s10517 + $0x58] sm:$0xff]
        %v10530 = vld [vmem:[%s10517 + $0x60] sm:$0xff]
        %v10531 = vld [vmem:[%s10517 + $0x68] sm:$0xff]
        %v10532 = vmul.f32 %v10198, %v10518
        %v10533 = vmul.f32 %v10201, %v10519
        %v10534 = vmul.f32 %v10204, %v10520
        %v10535 = vmul.f32 %v10207, %v10521
        %v10536 = vmul.f32 %v10210, %v10522
        %v10537 = vmul.f32 %v10213, %v10523
        %v10538 = vmul.f32 %v10216, %v10524
        %v10539 = vmul.f32 %v10219, %v10525
        %v10540 = vmul.f32 %v10222, %v10526
        %v10541 = vmul.f32 %v10225, %v10527
        %v10542 = vmul.f32 %v10228, %v10528
        %v10543 = vmul.f32 %v10231, %v10529
        %v10544 = vmul.f32 %v10234, %v10530
        %v10545 = vmul.f32 %v10237, %v10531
        %v10546 = vsel %vm10082, %v10532, 0.0
        %v10547 = vsel %vm10082, %v10534, 0.0
        %v10548 = vadd.f32 %v10546, %v10547
        %v10549 = vsel %vm10082, %v10536, 0.0
        %v10550 = vadd.f32 %v10548, %v10549
        %v10551 = vsel %vm10082, %v10538, 0.0
        %v10552 = vadd.f32 %v10550, %v10551
        %v10553 = vsel %vm10082, %v10540, 0.0
        %v10554 = vadd.f32 %v10552, %v10553
        %v10555 = vsel %vm10082, %v10542, 0.0
        %v10556 = vadd.f32 %v10554, %v10555
        %v10557 = vsel %vm10082, %v10544, 0.0
        %v10558 = vadd.f32 %v10556, %v10557
        %v10559 = vsel %vm10082, %v10533, 0.0
        %v10560 = vsel %vm10082, %v10535, 0.0
        %v10561 = vadd.f32 %v10559, %v10560
        %v10562 = vsel %vm10082, %v10537, 0.0
        %v10563 = vadd.f32 %v10561, %v10562
        %v10564 = vsel %vm10082, %v10539, 0.0
        %v10565 = vadd.f32 %v10563, %v10564
        %v10566 = vsel %vm10082, %v10541, 0.0
        %v10567 = vadd.f32 %v10565, %v10566
        %v10568 = vsel %vm10082, %v10543, 0.0
        %v10569 = vadd.f32 %v10567, %v10568
        %v10570 = vsel %vm10082, %v10545, 0.0
        %v10571 = vadd.f32 %v10569, %v10570
        %v10572 = vsel %vm10082, %v10558, 0.0
        %v10573 = vsel %vm10082, %v10571, 0.0
        %v10574 = vadd.f32 %v10572, %v10573
        %10575 = vadd.xlane.f32.xlu0 %v10574
        %v10576 = vpop.xlane.xlu0 %10575
        %v10577 = vrot.slane %v10576, 4
        %v10578 = vadd.f32 %v10576, %v10577
        %v10579 = vrot.slane %v10578, 2
        %v10580 = vadd.f32 %v10578, %v10579
        %v10581 = vrot.slane %v10580, 1
        %v10582 = vadd.f32 %v10580, %v10581
        %s10583 = vtos %v10582
        %s10584 = sld [smem:[#allocation4 + $0x4]]
        %s10585 = sadd.f32 %s10583, %s10584
        %s10586 = smax.f32 %s10585, 0.0
        %s10587 = scalar_lea.vmem %s6, 560
        %v10588 = vld [vmem:[%s10587] sm:$0xff]
        %v10589 = vld [vmem:[%s10587 + $0x8] sm:$0xff]
        %v10590 = vld [vmem:[%s10587 + $0x10] sm:$0xff]
        %v10591 = vld [vmem:[%s10587 + $0x18] sm:$0xff]
        %v10592 = vld [vmem:[%s10587 + $0x20] sm:$0xff]
        %v10593 = vld [vmem:[%s10587 + $0x28] sm:$0xff]
        %v10594 = vld [vmem:[%s10587 + $0x30] sm:$0xff]
        %v10595 = vld [vmem:[%s10587 + $0x38] sm:$0xff]
        %v10596 = vld [vmem:[%s10587 + $0x40] sm:$0xff]
        %v10597 = vld [vmem:[%s10587 + $0x48] sm:$0xff]
        %v10598 = vld [vmem:[%s10587 + $0x50] sm:$0xff]
        %v10599 = vld [vmem:[%s10587 + $0x58] sm:$0xff]
        %v10600 = vld [vmem:[%s10587 + $0x60] sm:$0xff]
        %v10601 = vld [vmem:[%s10587 + $0x68] sm:$0xff]
        %v10602 = vmul.f32 %v10198, %v10588
        %v10603 = vmul.f32 %v10201, %v10589
        %v10604 = vmul.f32 %v10204, %v10590
        %v10605 = vmul.f32 %v10207, %v10591
        %v10606 = vmul.f32 %v10210, %v10592
        %v10607 = vmul.f32 %v10213, %v10593
        %v10608 = vmul.f32 %v10216, %v10594
        %v10609 = vmul.f32 %v10219, %v10595
        %v10610 = vmul.f32 %v10222, %v10596
        %v10611 = vmul.f32 %v10225, %v10597
        %v10612 = vmul.f32 %v10228, %v10598
        %v10613 = vmul.f32 %v10231, %v10599
        %v10614 = vmul.f32 %v10234, %v10600
        %v10615 = vmul.f32 %v10237, %v10601
        %v10616 = vsel %vm10082, %v10602, 0.0
        %v10617 = vsel %vm10082, %v10604, 0.0
        %v10618 = vadd.f32 %v10616, %v10617
        %v10619 = vsel %vm10082, %v10606, 0.0
        %v10620 = vadd.f32 %v10618, %v10619
        %v10621 = vsel %vm10082, %v10608, 0.0
        %v10622 = vadd.f32 %v10620, %v10621
        %v10623 = vsel %vm10082, %v10610, 0.0
        %v10624 = vadd.f32 %v10622, %v10623
        %v10625 = vsel %vm10082, %v10612, 0.0
        %v10626 = vadd.f32 %v10624, %v10625
        %v10627 = vsel %vm10082, %v10614, 0.0
        %v10628 = vadd.f32 %v10626, %v10627
        %v10629 = vsel %vm10082, %v10603, 0.0
        %v10630 = vsel %vm10082, %v10605, 0.0
        %v10631 = vadd.f32 %v10629, %v10630
        %v10632 = vsel %vm10082, %v10607, 0.0
        %v10633 = vadd.f32 %v10631, %v10632
        %v10634 = vsel %vm10082, %v10609, 0.0
        %v10635 = vadd.f32 %v10633, %v10634
        %v10636 = vsel %vm10082, %v10611, 0.0
        %v10637 = vadd.f32 %v10635, %v10636
        %v10638 = vsel %vm10082, %v10613, 0.0
        %v10639 = vadd.f32 %v10637, %v10638
        %v10640 = vsel %vm10082, %v10615, 0.0
        %v10641 = vadd.f32 %v10639, %v10640
        %v10642 = vsel %vm10082, %v10628, 0.0
        %v10643 = vsel %vm10082, %v10641, 0.0
        %v10644 = vadd.f32 %v10642, %v10643
        %10645 = vadd.xlane.f32.xlu0 %v10644
        %v10646 = vpop.xlane.xlu0 %10645
        %v10647 = vrot.slane %v10646, 4
        %v10648 = vadd.f32 %v10646, %v10647
        %v10649 = vrot.slane %v10648, 2
        %v10650 = vadd.f32 %v10648, %v10649
        %v10651 = vrot.slane %v10650, 1
        %v10652 = vadd.f32 %v10650, %v10651
        %s10653 = vtos %v10652
        %s10654 = sld [smem:[#allocation4 + $0x5]]
        %s10655 = sadd.f32 %s10653, %s10654
        %s10656 = smax.f32 %s10655, 0.0
        %s10657 = scalar_lea.vmem %s6, 672
        %v10658 = vld [vmem:[%s10657] sm:$0xff]
        %v10659 = vld [vmem:[%s10657 + $0x8] sm:$0xff]
        %v10660 = vld [vmem:[%s10657 + $0x10] sm:$0xff]
        %v10661 = vld [vmem:[%s10657 + $0x18] sm:$0xff]
        %v10662 = vld [vmem:[%s10657 + $0x20] sm:$0xff]
        %v10663 = vld [vmem:[%s10657 + $0x28] sm:$0xff]
        %v10664 = vld [vmem:[%s10657 + $0x30] sm:$0xff]
        %v10665 = vld [vmem:[%s10657 + $0x38] sm:$0xff]
        %v10666 = vld [vmem:[%s10657 + $0x40] sm:$0xff]
        %v10667 = vld [vmem:[%s10657 + $0x48] sm:$0xff]
        %v10668 = vld [vmem:[%s10657 + $0x50] sm:$0xff]
        %v10669 = vld [vmem:[%s10657 + $0x58] sm:$0xff]
        %v10670 = vld [vmem:[%s10657 + $0x60] sm:$0xff]
        %v10671 = vld [vmem:[%s10657 + $0x68] sm:$0xff]
        %v10672 = vmul.f32 %v10198, %v10658
        %v10673 = vmul.f32 %v10201, %v10659
        %v10674 = vmul.f32 %v10204, %v10660
        %v10675 = vmul.f32 %v10207, %v10661
        %v10676 = vmul.f32 %v10210, %v10662
        %v10677 = vmul.f32 %v10213, %v10663
        %v10678 = vmul.f32 %v10216, %v10664
        %v10679 = vmul.f32 %v10219, %v10665
        %v10680 = vmul.f32 %v10222, %v10666
        %v10681 = vmul.f32 %v10225, %v10667
        %v10682 = vmul.f32 %v10228, %v10668
        %v10683 = vmul.f32 %v10231, %v10669
        %v10684 = vmul.f32 %v10234, %v10670
        %v10685 = vmul.f32 %v10237, %v10671
        %v10686 = vsel %vm10082, %v10672, 0.0
        %v10687 = vsel %vm10082, %v10674, 0.0
        %v10688 = vadd.f32 %v10686, %v10687
        %v10689 = vsel %vm10082, %v10676, 0.0
        %v10690 = vadd.f32 %v10688, %v10689
        %v10691 = vsel %vm10082, %v10678, 0.0
        %v10692 = vadd.f32 %v10690, %v10691
        %v10693 = vsel %vm10082, %v10680, 0.0
        %v10694 = vadd.f32 %v10692, %v10693
        %v10695 = vsel %vm10082, %v10682, 0.0
        %v10696 = vadd.f32 %v10694, %v10695
        %v10697 = vsel %vm10082, %v10684, 0.0
        %v10698 = vadd.f32 %v10696, %v10697
        %v10699 = vsel %vm10082, %v10673, 0.0
        %v10700 = vsel %vm10082, %v10675, 0.0
        %v10701 = vadd.f32 %v10699, %v10700
        %v10702 = vsel %vm10082, %v10677, 0.0
        %v10703 = vadd.f32 %v10701, %v10702
        %v10704 = vsel %vm10082, %v10679, 0.0
        %v10705 = vadd.f32 %v10703, %v10704
        %v10706 = vsel %vm10082, %v10681, 0.0
        %v10707 = vadd.f32 %v10705, %v10706
        %v10708 = vsel %vm10082, %v10683, 0.0
        %v10709 = vadd.f32 %v10707, %v10708
        %v10710 = vsel %vm10082, %v10685, 0.0
        %v10711 = vadd.f32 %v10709, %v10710
        %v10712 = vsel %vm10082, %v10698, 0.0
        %v10713 = vsel %vm10082, %v10711, 0.0
        %v10714 = vadd.f32 %v10712, %v10713
        %10715 = vadd.xlane.f32.xlu0 %v10714
        %v10716 = vpop.xlane.xlu0 %10715
        %v10717 = vrot.slane %v10716, 4
        %v10718 = vadd.f32 %v10716, %v10717
        %v10719 = vrot.slane %v10718, 2
        %v10720 = vadd.f32 %v10718, %v10719
        %v10721 = vrot.slane %v10720, 1
        %v10722 = vadd.f32 %v10720, %v10721
        %s10723 = vtos %v10722
        %s10724 = sld [smem:[#allocation4 + $0x6]]
        %s10725 = sadd.f32 %s10723, %s10724
        %s10726 = smax.f32 %s10725, 0.0
        %s10727 = scalar_lea.vmem %s6, 784
        %v10728 = vld [vmem:[%s10727] sm:$0xff]
        %v10729 = vld [vmem:[%s10727 + $0x8] sm:$0xff]
        %v10730 = vld [vmem:[%s10727 + $0x10] sm:$0xff]
        %v10731 = vld [vmem:[%s10727 + $0x18] sm:$0xff]
        %v10732 = vld [vmem:[%s10727 + $0x20] sm:$0xff]
        %v10733 = vld [vmem:[%s10727 + $0x28] sm:$0xff]
        %v10734 = vld [vmem:[%s10727 + $0x30] sm:$0xff]
        %v10735 = vld [vmem:[%s10727 + $0x38] sm:$0xff]
        %v10736 = vld [vmem:[%s10727 + $0x40] sm:$0xff]
        %v10737 = vld [vmem:[%s10727 + $0x48] sm:$0xff]
        %v10738 = vld [vmem:[%s10727 + $0x50] sm:$0xff]
        %v10739 = vld [vmem:[%s10727 + $0x58] sm:$0xff]
        %v10740 = vld [vmem:[%s10727 + $0x60] sm:$0xff]
        %v10741 = vld [vmem:[%s10727 + $0x68] sm:$0xff]
        %v10742 = vmul.f32 %v10198, %v10728
        %v10743 = vmul.f32 %v10201, %v10729
        %v10744 = vmul.f32 %v10204, %v10730
        %v10745 = vmul.f32 %v10207, %v10731
        %v10746 = vmul.f32 %v10210, %v10732
        %v10747 = vmul.f32 %v10213, %v10733
        %v10748 = vmul.f32 %v10216, %v10734
        %v10749 = vmul.f32 %v10219, %v10735
        %v10750 = vmul.f32 %v10222, %v10736
        %v10751 = vmul.f32 %v10225, %v10737
        %v10752 = vmul.f32 %v10228, %v10738
        %v10753 = vmul.f32 %v10231, %v10739
        %v10754 = vmul.f32 %v10234, %v10740
        %v10755 = vmul.f32 %v10237, %v10741
        %v10756 = vsel %vm10082, %v10742, 0.0
        %v10757 = vsel %vm10082, %v10744, 0.0
        %v10758 = vadd.f32 %v10756, %v10757
        %v10759 = vsel %vm10082, %v10746, 0.0
        %v10760 = vadd.f32 %v10758, %v10759
        %v10761 = vsel %vm10082, %v10748, 0.0
        %v10762 = vadd.f32 %v10760, %v10761
        %v10763 = vsel %vm10082, %v10750, 0.0
        %v10764 = vadd.f32 %v10762, %v10763
        %v10765 = vsel %vm10082, %v10752, 0.0
        %v10766 = vadd.f32 %v10764, %v10765
        %v10767 = vsel %vm10082, %v10754, 0.0
        %v10768 = vadd.f32 %v10766, %v10767
        %v10769 = vsel %vm10082, %v10743, 0.0
        %v10770 = vsel %vm10082, %v10745, 0.0
        %v10771 = vadd.f32 %v10769, %v10770
        %v10772 = vsel %vm10082, %v10747, 0.0
        %v10773 = vadd.f32 %v10771, %v10772
        %v10774 = vsel %vm10082, %v10749, 0.0
        %v10775 = vadd.f32 %v10773, %v10774
        %v10776 = vsel %vm10082, %v10751, 0.0
        %v10777 = vadd.f32 %v10775, %v10776
        %v10778 = vsel %vm10082, %v10753, 0.0
        %v10779 = vadd.f32 %v10777, %v10778
        %v10780 = vsel %vm10082, %v10755, 0.0
        %v10781 = vadd.f32 %v10779, %v10780
        %v10782 = vsel %vm10082, %v10768, 0.0
        %v10783 = vsel %vm10082, %v10781, 0.0
        %v10784 = vadd.f32 %v10782, %v10783
        %10785 = vadd.xlane.f32.xlu0 %v10784
        %v10786 = vpop.xlane.xlu0 %10785
        %v10787 = vrot.slane %v10786, 4
        %v10788 = vadd.f32 %v10786, %v10787
        %v10789 = vrot.slane %v10788, 2
        %v10790 = vadd.f32 %v10788, %v10789
        %v10791 = vrot.slane %v10790, 1
        %v10792 = vadd.f32 %v10790, %v10791
        %s10793 = vtos %v10792
        %s10794 = sld [smem:[#allocation4 + $0x7]]
        %s10795 = sadd.f32 %s10793, %s10794
        %s10796 = smax.f32 %s10795, 0.0
        %s10797 = scalar_lea.vmem %s6, 896
        %v10798 = vld [vmem:[%s10797] sm:$0xff]
        %v10799 = vld [vmem:[%s10797 + $0x8] sm:$0xff]
        %v10800 = vld [vmem:[%s10797 + $0x10] sm:$0xff]
        %v10801 = vld [vmem:[%s10797 + $0x18] sm:$0xff]
        %v10802 = vld [vmem:[%s10797 + $0x20] sm:$0xff]
        %v10803 = vld [vmem:[%s10797 + $0x28] sm:$0xff]
        %v10804 = vld [vmem:[%s10797 + $0x30] sm:$0xff]
        %v10805 = vld [vmem:[%s10797 + $0x38] sm:$0xff]
        %v10806 = vld [vmem:[%s10797 + $0x40] sm:$0xff]
        %v10807 = vld [vmem:[%s10797 + $0x48] sm:$0xff]
        %v10808 = vld [vmem:[%s10797 + $0x50] sm:$0xff]
        %v10809 = vld [vmem:[%s10797 + $0x58] sm:$0xff]
        %v10810 = vld [vmem:[%s10797 + $0x60] sm:$0xff]
        %v10811 = vld [vmem:[%s10797 + $0x68] sm:$0xff]
        %v10812 = vmul.f32 %v10198, %v10798
        %v10813 = vmul.f32 %v10201, %v10799
        %v10814 = vmul.f32 %v10204, %v10800
        %v10815 = vmul.f32 %v10207, %v10801
        %v10816 = vmul.f32 %v10210, %v10802
        %v10817 = vmul.f32 %v10213, %v10803
        %v10818 = vmul.f32 %v10216, %v10804
        %v10819 = vmul.f32 %v10219, %v10805
        %v10820 = vmul.f32 %v10222, %v10806
        %v10821 = vmul.f32 %v10225, %v10807
        %v10822 = vmul.f32 %v10228, %v10808
        %v10823 = vmul.f32 %v10231, %v10809
        %v10824 = vmul.f32 %v10234, %v10810
        %v10825 = vmul.f32 %v10237, %v10811
        %v10826 = vsel %vm10082, %v10812, 0.0
        %v10827 = vsel %vm10082, %v10814, 0.0
        %v10828 = vadd.f32 %v10826, %v10827
        %v10829 = vsel %vm10082, %v10816, 0.0
        %v10830 = vadd.f32 %v10828, %v10829
        %v10831 = vsel %vm10082, %v10818, 0.0
        %v10832 = vadd.f32 %v10830, %v10831
        %v10833 = vsel %vm10082, %v10820, 0.0
        %v10834 = vadd.f32 %v10832, %v10833
        %v10835 = vsel %vm10082, %v10822, 0.0
        %v10836 = vadd.f32 %v10834, %v10835
        %v10837 = vsel %vm10082, %v10824, 0.0
        %v10838 = vadd.f32 %v10836, %v10837
        %v10839 = vsel %vm10082, %v10813, 0.0
        %v10840 = vsel %vm10082, %v10815, 0.0
        %v10841 = vadd.f32 %v10839, %v10840
        %v10842 = vsel %vm10082, %v10817, 0.0
        %v10843 = vadd.f32 %v10841, %v10842
        %v10844 = vsel %vm10082, %v10819, 0.0
        %v10845 = vadd.f32 %v10843, %v10844
        %v10846 = vsel %vm10082, %v10821, 0.0
        %v10847 = vadd.f32 %v10845, %v10846
        %v10848 = vsel %vm10082, %v10823, 0.0
        %v10849 = vadd.f32 %v10847, %v10848
        %v10850 = vsel %vm10082, %v10825, 0.0
        %v10851 = vadd.f32 %v10849, %v10850
        %v10852 = vsel %vm10082, %v10838, 0.0
        %v10853 = vsel %vm10082, %v10851, 0.0
        %v10854 = vadd.f32 %v10852, %v10853
        %10855 = vadd.xlane.f32.xlu0 %v10854
        %v10856 = vpop.xlane.xlu0 %10855
        %v10857 = vrot.slane %v10856, 4
        %v10858 = vadd.f32 %v10856, %v10857
        %v10859 = vrot.slane %v10858, 2
        %v10860 = vadd.f32 %v10858, %v10859
        %v10861 = vrot.slane %v10860, 1
        %v10862 = vadd.f32 %v10860, %v10861
        %s10863 = vtos %v10862
        %s10864 = sld [smem:[#allocation4 + $0x8]]
        %s10865 = sadd.f32 %s10863, %s10864
        %s10866 = smax.f32 %s10865, 0.0
        %s10867 = scalar_lea.vmem %s6, 1008
        %v10868 = vld [vmem:[%s10867] sm:$0xff]
        %v10869 = vld [vmem:[%s10867 + $0x8] sm:$0xff]
        %v10870 = vld [vmem:[%s10867 + $0x10] sm:$0xff]
        %v10871 = vld [vmem:[%s10867 + $0x18] sm:$0xff]
        %v10872 = vld [vmem:[%s10867 + $0x20] sm:$0xff]
        %v10873 = vld [vmem:[%s10867 + $0x28] sm:$0xff]
        %v10874 = vld [vmem:[%s10867 + $0x30] sm:$0xff]
        %v10875 = vld [vmem:[%s10867 + $0x38] sm:$0xff]
        %v10876 = vld [vmem:[%s10867 + $0x40] sm:$0xff]
        %v10877 = vld [vmem:[%s10867 + $0x48] sm:$0xff]
        %v10878 = vld [vmem:[%s10867 + $0x50] sm:$0xff]
        %v10879 = vld [vmem:[%s10867 + $0x58] sm:$0xff]
        %v10880 = vld [vmem:[%s10867 + $0x60] sm:$0xff]
        %v10881 = vld [vmem:[%s10867 + $0x68] sm:$0xff]
        %v10882 = vmul.f32 %v10198, %v10868
        %v10883 = vmul.f32 %v10201, %v10869
        %v10884 = vmul.f32 %v10204, %v10870
        %v10885 = vmul.f32 %v10207, %v10871
        %v10886 = vmul.f32 %v10210, %v10872
        %v10887 = vmul.f32 %v10213, %v10873
        %v10888 = vmul.f32 %v10216, %v10874
        %v10889 = vmul.f32 %v10219, %v10875
        %v10890 = vmul.f32 %v10222, %v10876
        %v10891 = vmul.f32 %v10225, %v10877
        %v10892 = vmul.f32 %v10228, %v10878
        %v10893 = vmul.f32 %v10231, %v10879
        %v10894 = vmul.f32 %v10234, %v10880
        %v10895 = vmul.f32 %v10237, %v10881
        %v10896 = vsel %vm10082, %v10882, 0.0
        %v10897 = vsel %vm10082, %v10884, 0.0
        %v10898 = vadd.f32 %v10896, %v10897
        %v10899 = vsel %vm10082, %v10886, 0.0
        %v10900 = vadd.f32 %v10898, %v10899
        %v10901 = vsel %vm10082, %v10888, 0.0
        %v10902 = vadd.f32 %v10900, %v10901
        %v10903 = vsel %vm10082, %v10890, 0.0
        %v10904 = vadd.f32 %v10902, %v10903
        %v10905 = vsel %vm10082, %v10892, 0.0
        %v10906 = vadd.f32 %v10904, %v10905
        %v10907 = vsel %vm10082, %v10894, 0.0
        %v10908 = vadd.f32 %v10906, %v10907
        %v10909 = vsel %vm10082, %v10883, 0.0
        %v10910 = vsel %vm10082, %v10885, 0.0
        %v10911 = vadd.f32 %v10909, %v10910
        %v10912 = vsel %vm10082, %v10887, 0.0
        %v10913 = vadd.f32 %v10911, %v10912
        %v10914 = vsel %vm10082, %v10889, 0.0
        %v10915 = vadd.f32 %v10913, %v10914
        %v10916 = vsel %vm10082, %v10891, 0.0
        %v10917 = vadd.f32 %v10915, %v10916
        %v10918 = vsel %vm10082, %v10893, 0.0
        %v10919 = vadd.f32 %v10917, %v10918
        %v10920 = vsel %vm10082, %v10895, 0.0
        %v10921 = vadd.f32 %v10919, %v10920
        %v10922 = vsel %vm10082, %v10908, 0.0
        %v10923 = vsel %vm10082, %v10921, 0.0
        %v10924 = vadd.f32 %v10922, %v10923
        %10925 = vadd.xlane.f32.xlu0 %v10924
        %v10926 = vpop.xlane.xlu0 %10925
        %v10927 = vrot.slane %v10926, 4
        %v10928 = vadd.f32 %v10926, %v10927
        %v10929 = vrot.slane %v10928, 2
        %v10930 = vadd.f32 %v10928, %v10929
        %v10931 = vrot.slane %v10930, 1
        %v10932 = vadd.f32 %v10930, %v10931
        %s10933 = vtos %v10932
        %s10934 = sld [smem:[#allocation4 + $0x9]]
        %s10935 = sadd.f32 %s10933, %s10934
        %s10936 = smax.f32 %s10935, 0.0
        %s10937 = scalar_lea.vmem %s6, 1120
        %v10938 = vld [vmem:[%s10937] sm:$0xff]
        %v10939 = vld [vmem:[%s10937 + $0x8] sm:$0xff]
        %v10940 = vld [vmem:[%s10937 + $0x10] sm:$0xff]
        %v10941 = vld [vmem:[%s10937 + $0x18] sm:$0xff]
        %v10942 = vld [vmem:[%s10937 + $0x20] sm:$0xff]
        %v10943 = vld [vmem:[%s10937 + $0x28] sm:$0xff]
        %v10944 = vld [vmem:[%s10937 + $0x30] sm:$0xff]
        %v10945 = vld [vmem:[%s10937 + $0x38] sm:$0xff]
        %v10946 = vld [vmem:[%s10937 + $0x40] sm:$0xff]
        %v10947 = vld [vmem:[%s10937 + $0x48] sm:$0xff]
        %v10948 = vld [vmem:[%s10937 + $0x50] sm:$0xff]
        %v10949 = vld [vmem:[%s10937 + $0x58] sm:$0xff]
        %v10950 = vld [vmem:[%s10937 + $0x60] sm:$0xff]
        %v10951 = vld [vmem:[%s10937 + $0x68] sm:$0xff]
        %v10952 = vmul.f32 %v10198, %v10938
        %v10953 = vmul.f32 %v10201, %v10939
        %v10954 = vmul.f32 %v10204, %v10940
        %v10955 = vmul.f32 %v10207, %v10941
        %v10956 = vmul.f32 %v10210, %v10942
        %v10957 = vmul.f32 %v10213, %v10943
        %v10958 = vmul.f32 %v10216, %v10944
        %v10959 = vmul.f32 %v10219, %v10945
        %v10960 = vmul.f32 %v10222, %v10946
        %v10961 = vmul.f32 %v10225, %v10947
        %v10962 = vmul.f32 %v10228, %v10948
        %v10963 = vmul.f32 %v10231, %v10949
        %v10964 = vmul.f32 %v10234, %v10950
        %v10965 = vmul.f32 %v10237, %v10951
        %v10966 = vsel %vm10082, %v10952, 0.0
        %v10967 = vsel %vm10082, %v10954, 0.0
        %v10968 = vadd.f32 %v10966, %v10967
        %v10969 = vsel %vm10082, %v10956, 0.0
        %v10970 = vadd.f32 %v10968, %v10969
        %v10971 = vsel %vm10082, %v10958, 0.0
        %v10972 = vadd.f32 %v10970, %v10971
        %v10973 = vsel %vm10082, %v10960, 0.0
        %v10974 = vadd.f32 %v10972, %v10973
        %v10975 = vsel %vm10082, %v10962, 0.0
        %v10976 = vadd.f32 %v10974, %v10975
        %v10977 = vsel %vm10082, %v10964, 0.0
        %v10978 = vadd.f32 %v10976, %v10977
        %v10979 = vsel %vm10082, %v10953, 0.0
        %v10980 = vsel %vm10082, %v10955, 0.0
        %v10981 = vadd.f32 %v10979, %v10980
        %v10982 = vsel %vm10082, %v10957, 0.0
        %v10983 = vadd.f32 %v10981, %v10982
        %v10984 = vsel %vm10082, %v10959, 0.0
        %v10985 = vadd.f32 %v10983, %v10984
        %v10986 = vsel %vm10082, %v10961, 0.0
        %v10987 = vadd.f32 %v10985, %v10986
        %v10988 = vsel %vm10082, %v10963, 0.0
        %v10989 = vadd.f32 %v10987, %v10988
        %v10990 = vsel %vm10082, %v10965, 0.0
        %v10991 = vadd.f32 %v10989, %v10990
        %v10992 = vsel %vm10082, %v10978, 0.0
        %v10993 = vsel %vm10082, %v10991, 0.0
        %v10994 = vadd.f32 %v10992, %v10993
        %10995 = vadd.xlane.f32.xlu0 %v10994
        %v10996 = vpop.xlane.xlu0 %10995
        %v10997 = vrot.slane %v10996, 4
        %v10998 = vadd.f32 %v10996, %v10997
        %v10999 = vrot.slane %v10998, 2
        %v11000 = vadd.f32 %v10998, %v10999
        %v11001 = vrot.slane %v11000, 1
        %v11002 = vadd.f32 %v11000, %v11001
        %s11003 = vtos %v11002
        %s11004 = sld [smem:[#allocation4 + $0xa]]
        %s11005 = sadd.f32 %s11003, %s11004
        %s11006 = smax.f32 %s11005, 0.0
        %s11007 = scalar_lea.vmem %s6, 1232
        %v11008 = vld [vmem:[%s11007] sm:$0xff]
        %v11009 = vld [vmem:[%s11007 + $0x8] sm:$0xff]
        %v11010 = vld [vmem:[%s11007 + $0x10] sm:$0xff]
        %v11011 = vld [vmem:[%s11007 + $0x18] sm:$0xff]
        %v11012 = vld [vmem:[%s11007 + $0x20] sm:$0xff]
        %v11013 = vld [vmem:[%s11007 + $0x28] sm:$0xff]
        %v11014 = vld [vmem:[%s11007 + $0x30] sm:$0xff]
        %v11015 = vld [vmem:[%s11007 + $0x38] sm:$0xff]
        %v11016 = vld [vmem:[%s11007 + $0x40] sm:$0xff]
        %v11017 = vld [vmem:[%s11007 + $0x48] sm:$0xff]
        %v11018 = vld [vmem:[%s11007 + $0x50] sm:$0xff]
        %v11019 = vld [vmem:[%s11007 + $0x58] sm:$0xff]
        %v11020 = vld [vmem:[%s11007 + $0x60] sm:$0xff]
        %v11021 = vld [vmem:[%s11007 + $0x68] sm:$0xff]
        %v11022 = vmul.f32 %v10198, %v11008
        %v11023 = vmul.f32 %v10201, %v11009
        %v11024 = vmul.f32 %v10204, %v11010
        %v11025 = vmul.f32 %v10207, %v11011
        %v11026 = vmul.f32 %v10210, %v11012
        %v11027 = vmul.f32 %v10213, %v11013
        %v11028 = vmul.f32 %v10216, %v11014
        %v11029 = vmul.f32 %v10219, %v11015
        %v11030 = vmul.f32 %v10222, %v11016
        %v11031 = vmul.f32 %v10225, %v11017
        %v11032 = vmul.f32 %v10228, %v11018
        %v11033 = vmul.f32 %v10231, %v11019
        %v11034 = vmul.f32 %v10234, %v11020
        %v11035 = vmul.f32 %v10237, %v11021
        %v11036 = vsel %vm10082, %v11022, 0.0
        %v11037 = vsel %vm10082, %v11024, 0.0
        %v11038 = vadd.f32 %v11036, %v11037
        %v11039 = vsel %vm10082, %v11026, 0.0
        %v11040 = vadd.f32 %v11038, %v11039
        %v11041 = vsel %vm10082, %v11028, 0.0
        %v11042 = vadd.f32 %v11040, %v11041
        %v11043 = vsel %vm10082, %v11030, 0.0
        %v11044 = vadd.f32 %v11042, %v11043
        %v11045 = vsel %vm10082, %v11032, 0.0
        %v11046 = vadd.f32 %v11044, %v11045
        %v11047 = vsel %vm10082, %v11034, 0.0
        %v11048 = vadd.f32 %v11046, %v11047
        %v11049 = vsel %vm10082, %v11023, 0.0
        %v11050 = vsel %vm10082, %v11025, 0.0
        %v11051 = vadd.f32 %v11049, %v11050
        %v11052 = vsel %vm10082, %v11027, 0.0
        %v11053 = vadd.f32 %v11051, %v11052
        %v11054 = vsel %vm10082, %v11029, 0.0
        %v11055 = vadd.f32 %v11053, %v11054
        %v11056 = vsel %vm10082, %v11031, 0.0
        %v11057 = vadd.f32 %v11055, %v11056
        %v11058 = vsel %vm10082, %v11033, 0.0
        %v11059 = vadd.f32 %v11057, %v11058
        %v11060 = vsel %vm10082, %v11035, 0.0
        %v11061 = vadd.f32 %v11059, %v11060
        %v11062 = vsel %vm10082, %v11048, 0.0
        %v11063 = vsel %vm10082, %v11061, 0.0
        %v11064 = vadd.f32 %v11062, %v11063
        %11065 = vadd.xlane.f32.xlu0 %v11064
        %v11066 = vpop.xlane.xlu0 %11065
        %v11067 = vrot.slane %v11066, 4
        %v11068 = vadd.f32 %v11066, %v11067
        %v11069 = vrot.slane %v11068, 2
        %v11070 = vadd.f32 %v11068, %v11069
        %v11071 = vrot.slane %v11070, 1
        %v11072 = vadd.f32 %v11070, %v11071
        %s11073 = vtos %v11072
        %s11074 = sld [smem:[#allocation4 + $0xb]]
        %s11075 = sadd.f32 %s11073, %s11074
        %s11076 = smax.f32 %s11075, 0.0
        %s11077 = scalar_lea.vmem %s6, 1344
        %v11078 = vld [vmem:[%s11077] sm:$0xff]
        %v11079 = vld [vmem:[%s11077 + $0x8] sm:$0xff]
        %v11080 = vld [vmem:[%s11077 + $0x10] sm:$0xff]
        %v11081 = vld [vmem:[%s11077 + $0x18] sm:$0xff]
        %v11082 = vld [vmem:[%s11077 + $0x20] sm:$0xff]
        %v11083 = vld [vmem:[%s11077 + $0x28] sm:$0xff]
        %v11084 = vld [vmem:[%s11077 + $0x30] sm:$0xff]
        %v11085 = vld [vmem:[%s11077 + $0x38] sm:$0xff]
        %v11086 = vld [vmem:[%s11077 + $0x40] sm:$0xff]
        %v11087 = vld [vmem:[%s11077 + $0x48] sm:$0xff]
        %v11088 = vld [vmem:[%s11077 + $0x50] sm:$0xff]
        %v11089 = vld [vmem:[%s11077 + $0x58] sm:$0xff]
        %v11090 = vld [vmem:[%s11077 + $0x60] sm:$0xff]
        %v11091 = vld [vmem:[%s11077 + $0x68] sm:$0xff]
        %v11092 = vmul.f32 %v10198, %v11078
        %v11093 = vmul.f32 %v10201, %v11079
        %v11094 = vmul.f32 %v10204, %v11080
        %v11095 = vmul.f32 %v10207, %v11081
        %v11096 = vmul.f32 %v10210, %v11082
        %v11097 = vmul.f32 %v10213, %v11083
        %v11098 = vmul.f32 %v10216, %v11084
        %v11099 = vmul.f32 %v10219, %v11085
        %v11100 = vmul.f32 %v10222, %v11086
        %v11101 = vmul.f32 %v10225, %v11087
        %v11102 = vmul.f32 %v10228, %v11088
        %v11103 = vmul.f32 %v10231, %v11089
        %v11104 = vmul.f32 %v10234, %v11090
        %v11105 = vmul.f32 %v10237, %v11091
        %v11106 = vsel %vm10082, %v11092, 0.0
        %v11107 = vsel %vm10082, %v11094, 0.0
        %v11108 = vadd.f32 %v11106, %v11107
        %v11109 = vsel %vm10082, %v11096, 0.0
        %v11110 = vadd.f32 %v11108, %v11109
        %v11111 = vsel %vm10082, %v11098, 0.0
        %v11112 = vadd.f32 %v11110, %v11111
        %v11113 = vsel %vm10082, %v11100, 0.0
        %v11114 = vadd.f32 %v11112, %v11113
        %v11115 = vsel %vm10082, %v11102, 0.0
        %v11116 = vadd.f32 %v11114, %v11115
        %v11117 = vsel %vm10082, %v11104, 0.0
        %v11118 = vadd.f32 %v11116, %v11117
        %v11119 = vsel %vm10082, %v11093, 0.0
        %v11120 = vsel %vm10082, %v11095, 0.0
        %v11121 = vadd.f32 %v11119, %v11120
        %v11122 = vsel %vm10082, %v11097, 0.0
        %v11123 = vadd.f32 %v11121, %v11122
        %v11124 = vsel %vm10082, %v11099, 0.0
        %v11125 = vadd.f32 %v11123, %v11124
        %v11126 = vsel %vm10082, %v11101, 0.0
        %v11127 = vadd.f32 %v11125, %v11126
        %v11128 = vsel %vm10082, %v11103, 0.0
        %v11129 = vadd.f32 %v11127, %v11128
        %v11130 = vsel %vm10082, %v11105, 0.0
        %v11131 = vadd.f32 %v11129, %v11130
        %v11132 = vsel %vm10082, %v11118, 0.0
        %v11133 = vsel %vm10082, %v11131, 0.0
        %v11134 = vadd.f32 %v11132, %v11133
        %11135 = vadd.xlane.f32.xlu0 %v11134
        %v11136 = vpop.xlane.xlu0 %11135
        %v11137 = vrot.slane %v11136, 4
        %v11138 = vadd.f32 %v11136, %v11137
        %v11139 = vrot.slane %v11138, 2
        %v11140 = vadd.f32 %v11138, %v11139
        %v11141 = vrot.slane %v11140, 1
        %v11142 = vadd.f32 %v11140, %v11141
        %s11143 = vtos %v11142
        %s11144 = sld [smem:[#allocation4 + $0xc]]
        %s11145 = sadd.f32 %s11143, %s11144
        %s11146 = smax.f32 %s11145, 0.0
        %s11147 = scalar_lea.vmem %s6, 1456
        %v11148 = vld [vmem:[%s11147] sm:$0xff]
        %v11149 = vld [vmem:[%s11147 + $0x8] sm:$0xff]
        %v11150 = vld [vmem:[%s11147 + $0x10] sm:$0xff]
        %v11151 = vld [vmem:[%s11147 + $0x18] sm:$0xff]
        %v11152 = vld [vmem:[%s11147 + $0x20] sm:$0xff]
        %v11153 = vld [vmem:[%s11147 + $0x28] sm:$0xff]
        %v11154 = vld [vmem:[%s11147 + $0x30] sm:$0xff]
        %v11155 = vld [vmem:[%s11147 + $0x38] sm:$0xff]
        %v11156 = vld [vmem:[%s11147 + $0x40] sm:$0xff]
        %v11157 = vld [vmem:[%s11147 + $0x48] sm:$0xff]
        %v11158 = vld [vmem:[%s11147 + $0x50] sm:$0xff]
        %v11159 = vld [vmem:[%s11147 + $0x58] sm:$0xff]
        %v11160 = vld [vmem:[%s11147 + $0x60] sm:$0xff]
        %v11161 = vld [vmem:[%s11147 + $0x68] sm:$0xff]
        %v11162 = vmul.f32 %v10198, %v11148
        %v11163 = vmul.f32 %v10201, %v11149
        %v11164 = vmul.f32 %v10204, %v11150
        %v11165 = vmul.f32 %v10207, %v11151
        %v11166 = vmul.f32 %v10210, %v11152
        %v11167 = vmul.f32 %v10213, %v11153
        %v11168 = vmul.f32 %v10216, %v11154
        %v11169 = vmul.f32 %v10219, %v11155
        %v11170 = vmul.f32 %v10222, %v11156
        %v11171 = vmul.f32 %v10225, %v11157
        %v11172 = vmul.f32 %v10228, %v11158
        %v11173 = vmul.f32 %v10231, %v11159
        %v11174 = vmul.f32 %v10234, %v11160
        %v11175 = vmul.f32 %v10237, %v11161
        %v11176 = vsel %vm10082, %v11162, 0.0
        %v11177 = vsel %vm10082, %v11164, 0.0
        %v11178 = vadd.f32 %v11176, %v11177
        %v11179 = vsel %vm10082, %v11166, 0.0
        %v11180 = vadd.f32 %v11178, %v11179
        %v11181 = vsel %vm10082, %v11168, 0.0
        %v11182 = vadd.f32 %v11180, %v11181
        %v11183 = vsel %vm10082, %v11170, 0.0
        %v11184 = vadd.f32 %v11182, %v11183
        %v11185 = vsel %vm10082, %v11172, 0.0
        %v11186 = vadd.f32 %v11184, %v11185
        %v11187 = vsel %vm10082, %v11174, 0.0
        %v11188 = vadd.f32 %v11186, %v11187
        %v11189 = vsel %vm10082, %v11163, 0.0
        %v11190 = vsel %vm10082, %v11165, 0.0
        %v11191 = vadd.f32 %v11189, %v11190
        %v11192 = vsel %vm10082, %v11167, 0.0
        %v11193 = vadd.f32 %v11191, %v11192
        %v11194 = vsel %vm10082, %v11169, 0.0
        %v11195 = vadd.f32 %v11193, %v11194
        %v11196 = vsel %vm10082, %v11171, 0.0
        %v11197 = vadd.f32 %v11195, %v11196
        %v11198 = vsel %vm10082, %v11173, 0.0
        %v11199 = vadd.f32 %v11197, %v11198
        %v11200 = vsel %vm10082, %v11175, 0.0
        %v11201 = vadd.f32 %v11199, %v11200
        %v11202 = vsel %vm10082, %v11188, 0.0
        %v11203 = vsel %vm10082, %v11201, 0.0
        %v11204 = vadd.f32 %v11202, %v11203
        %11205 = vadd.xlane.f32.xlu0 %v11204
        %v11206 = vpop.xlane.xlu0 %11205
        %v11207 = vrot.slane %v11206, 4
        %v11208 = vadd.f32 %v11206, %v11207
        %v11209 = vrot.slane %v11208, 2
        %v11210 = vadd.f32 %v11208, %v11209
        %v11211 = vrot.slane %v11210, 1
        %v11212 = vadd.f32 %v11210, %v11211
        %s11213 = vtos %v11212
        %s11214 = sld [smem:[#allocation4 + $0xd]]
        %s11215 = sadd.f32 %s11213, %s11214
        %s11216 = smax.f32 %s11215, 0.0
        %s11217 = scalar_lea.vmem %s6, 1568
        %v11218 = vld [vmem:[%s11217] sm:$0xff]
        %v11219 = vld [vmem:[%s11217 + $0x8] sm:$0xff]
        %v11220 = vld [vmem:[%s11217 + $0x10] sm:$0xff]
        %v11221 = vld [vmem:[%s11217 + $0x18] sm:$0xff]
        %v11222 = vld [vmem:[%s11217 + $0x20] sm:$0xff]
        %v11223 = vld [vmem:[%s11217 + $0x28] sm:$0xff]
        %v11224 = vld [vmem:[%s11217 + $0x30] sm:$0xff]
        %v11225 = vld [vmem:[%s11217 + $0x38] sm:$0xff]
        %v11226 = vld [vmem:[%s11217 + $0x40] sm:$0xff]
        %v11227 = vld [vmem:[%s11217 + $0x48] sm:$0xff]
        %v11228 = vld [vmem:[%s11217 + $0x50] sm:$0xff]
        %v11229 = vld [vmem:[%s11217 + $0x58] sm:$0xff]
        %v11230 = vld [vmem:[%s11217 + $0x60] sm:$0xff]
        %v11231 = vld [vmem:[%s11217 + $0x68] sm:$0xff]
        %v11232 = vmul.f32 %v10198, %v11218
        %v11233 = vmul.f32 %v10201, %v11219
        %v11234 = vmul.f32 %v10204, %v11220
        %v11235 = vmul.f32 %v10207, %v11221
        %v11236 = vmul.f32 %v10210, %v11222
        %v11237 = vmul.f32 %v10213, %v11223
        %v11238 = vmul.f32 %v10216, %v11224
        %v11239 = vmul.f32 %v10219, %v11225
        %v11240 = vmul.f32 %v10222, %v11226
        %v11241 = vmul.f32 %v10225, %v11227
        %v11242 = vmul.f32 %v10228, %v11228
        %v11243 = vmul.f32 %v10231, %v11229
        %v11244 = vmul.f32 %v10234, %v11230
        %v11245 = vmul.f32 %v10237, %v11231
        %v11246 = vsel %vm10082, %v11232, 0.0
        %v11247 = vsel %vm10082, %v11234, 0.0
        %v11248 = vadd.f32 %v11246, %v11247
        %v11249 = vsel %vm10082, %v11236, 0.0
        %v11250 = vadd.f32 %v11248, %v11249
        %v11251 = vsel %vm10082, %v11238, 0.0
        %v11252 = vadd.f32 %v11250, %v11251
        %v11253 = vsel %vm10082, %v11240, 0.0
        %v11254 = vadd.f32 %v11252, %v11253
        %v11255 = vsel %vm10082, %v11242, 0.0
        %v11256 = vadd.f32 %v11254, %v11255
        %v11257 = vsel %vm10082, %v11244, 0.0
        %v11258 = vadd.f32 %v11256, %v11257
        %v11259 = vsel %vm10082, %v11233, 0.0
        %v11260 = vsel %vm10082, %v11235, 0.0
        %v11261 = vadd.f32 %v11259, %v11260
        %v11262 = vsel %vm10082, %v11237, 0.0
        %v11263 = vadd.f32 %v11261, %v11262
        %v11264 = vsel %vm10082, %v11239, 0.0
        %v11265 = vadd.f32 %v11263, %v11264
        %v11266 = vsel %vm10082, %v11241, 0.0
        %v11267 = vadd.f32 %v11265, %v11266
        %v11268 = vsel %vm10082, %v11243, 0.0
        %v11269 = vadd.f32 %v11267, %v11268
        %v11270 = vsel %vm10082, %v11245, 0.0
        %v11271 = vadd.f32 %v11269, %v11270
        %v11272 = vsel %vm10082, %v11258, 0.0
        %v11273 = vsel %vm10082, %v11271, 0.0
        %v11274 = vadd.f32 %v11272, %v11273
        %11275 = vadd.xlane.f32.xlu0 %v11274
        %v11276 = vpop.xlane.xlu0 %11275
        %v11277 = vrot.slane %v11276, 4
        %v11278 = vadd.f32 %v11276, %v11277
        %v11279 = vrot.slane %v11278, 2
        %v11280 = vadd.f32 %v11278, %v11279
        %v11281 = vrot.slane %v11280, 1
        %v11282 = vadd.f32 %v11280, %v11281
        %s11283 = vtos %v11282
        %s11284 = sld [smem:[#allocation4 + $0xe]]
        %s11285 = sadd.f32 %s11283, %s11284
        %s11286 = smax.f32 %s11285, 0.0
        %s11287 = scalar_lea.vmem %s6, 1680
        %v11288 = vld [vmem:[%s11287] sm:$0xff]
        %v11289 = vld [vmem:[%s11287 + $0x8] sm:$0xff]
        %v11290 = vld [vmem:[%s11287 + $0x10] sm:$0xff]
        %v11291 = vld [vmem:[%s11287 + $0x18] sm:$0xff]
        %v11292 = vld [vmem:[%s11287 + $0x20] sm:$0xff]
        %v11293 = vld [vmem:[%s11287 + $0x28] sm:$0xff]
        %v11294 = vld [vmem:[%s11287 + $0x30] sm:$0xff]
        %v11295 = vld [vmem:[%s11287 + $0x38] sm:$0xff]
        %v11296 = vld [vmem:[%s11287 + $0x40] sm:$0xff]
        %v11297 = vld [vmem:[%s11287 + $0x48] sm:$0xff]
        %v11298 = vld [vmem:[%s11287 + $0x50] sm:$0xff]
        %v11299 = vld [vmem:[%s11287 + $0x58] sm:$0xff]
        %v11300 = vld [vmem:[%s11287 + $0x60] sm:$0xff]
        %v11301 = vld [vmem:[%s11287 + $0x68] sm:$0xff]
        %v11302 = vmul.f32 %v10198, %v11288
        %v11303 = vmul.f32 %v10201, %v11289
        %v11304 = vmul.f32 %v10204, %v11290
        %v11305 = vmul.f32 %v10207, %v11291
        %v11306 = vmul.f32 %v10210, %v11292
        %v11307 = vmul.f32 %v10213, %v11293
        %v11308 = vmul.f32 %v10216, %v11294
        %v11309 = vmul.f32 %v10219, %v11295
        %v11310 = vmul.f32 %v10222, %v11296
        %v11311 = vmul.f32 %v10225, %v11297
        %v11312 = vmul.f32 %v10228, %v11298
        %v11313 = vmul.f32 %v10231, %v11299
        %v11314 = vmul.f32 %v10234, %v11300
        %v11315 = vmul.f32 %v10237, %v11301
        %v11316 = vsel %vm10082, %v11302, 0.0
        %v11317 = vsel %vm10082, %v11304, 0.0
        %v11318 = vadd.f32 %v11316, %v11317
        %v11319 = vsel %vm10082, %v11306, 0.0
        %v11320 = vadd.f32 %v11318, %v11319
        %v11321 = vsel %vm10082, %v11308, 0.0
        %v11322 = vadd.f32 %v11320, %v11321
        %v11323 = vsel %vm10082, %v11310, 0.0
        %v11324 = vadd.f32 %v11322, %v11323
        %v11325 = vsel %vm10082, %v11312, 0.0
        %v11326 = vadd.f32 %v11324, %v11325
        %v11327 = vsel %vm10082, %v11314, 0.0
        %v11328 = vadd.f32 %v11326, %v11327
        %v11329 = vsel %vm10082, %v11303, 0.0
        %v11330 = vsel %vm10082, %v11305, 0.0
        %v11331 = vadd.f32 %v11329, %v11330
        %v11332 = vsel %vm10082, %v11307, 0.0
        %v11333 = vadd.f32 %v11331, %v11332
        %v11334 = vsel %vm10082, %v11309, 0.0
        %v11335 = vadd.f32 %v11333, %v11334
        %v11336 = vsel %vm10082, %v11311, 0.0
        %v11337 = vadd.f32 %v11335, %v11336
        %v11338 = vsel %vm10082, %v11313, 0.0
        %v11339 = vadd.f32 %v11337, %v11338
        %v11340 = vsel %vm10082, %v11315, 0.0
        %v11341 = vadd.f32 %v11339, %v11340
        %v11342 = vsel %vm10082, %v11328, 0.0
        %v11343 = vsel %vm10082, %v11341, 0.0
        %v11344 = vadd.f32 %v11342, %v11343
        %11345 = vadd.xlane.f32.xlu0 %v11344
        %v11346 = vpop.xlane.xlu0 %11345
        %v11347 = vrot.slane %v11346, 4
        %v11348 = vadd.f32 %v11346, %v11347
        %v11349 = vrot.slane %v11348, 2
        %v11350 = vadd.f32 %v11348, %v11349
        %v11351 = vrot.slane %v11350, 1
        %v11352 = vadd.f32 %v11350, %v11351
        %s11353 = vtos %v11352
        %s11354 = sld [smem:[#allocation4 + $0xf]]
        %s11355 = sadd.f32 %s11353, %s11354
        %s11356 = smax.f32 %s11355, 0.0
        %v11357 = vld [vmem:[%s9] sm:$0x1]
        %v11358 = vld [vmem:[%s8] sm:$0x1]
        %v11359 = vstv %s10306
        %v11360 = vmul.f32 %v11359, %v11358
        %v11361 = vadd.f32 %v11357, %v11360
        %v11362 = vld [vmem:[%s8 + $0x1] sm:$0x1]
        %v11363 = vstv %s10376
        %v11364 = vmul.f32 %v11363, %v11362
        %v11365 = vadd.f32 %v11361, %v11364
        %v11366 = vld [vmem:[%s8 + $0x2] sm:$0x1]
        %v11367 = vstv %s10446
        %v11368 = vmul.f32 %v11367, %v11366
        %v11369 = vadd.f32 %v11365, %v11368
        %v11370 = vld [vmem:[%s8 + $0x3] sm:$0x1]
        %v11371 = vstv %s10516
        %v11372 = vmul.f32 %v11371, %v11370
        %v11373 = vadd.f32 %v11369, %v11372
        %v11374 = vld [vmem:[%s8 + $0x4] sm:$0x1]
        %v11375 = vstv %s10586
        %v11376 = vmul.f32 %v11375, %v11374
        %v11377 = vadd.f32 %v11373, %v11376
        %v11378 = vld [vmem:[%s8 + $0x5] sm:$0x1]
        %v11379 = vstv %s10656
        %v11380 = vmul.f32 %v11379, %v11378
        %v11381 = vadd.f32 %v11377, %v11380
        %v11382 = vld [vmem:[%s8 + $0x6] sm:$0x1]
        %v11383 = vstv %s10726
        %v11384 = vmul.f32 %v11383, %v11382
        %v11385 = vadd.f32 %v11381, %v11384
        %v11386 = vld [vmem:[%s8 + $0x7] sm:$0x1]
        %v11387 = vstv %s10796
        %v11388 = vmul.f32 %v11387, %v11386
        %v11389 = vadd.f32 %v11385, %v11388
        %v11390 = vld [vmem:[%s8 + $0x8] sm:$0x1]
        %v11391 = vstv %s10866
        %v11392 = vmul.f32 %v11391, %v11390
        %v11393 = vadd.f32 %v11389, %v11392
        %v11394 = vld [vmem:[%s8 + $0x9] sm:$0x1]
        %v11395 = vstv %s10936
        %v11396 = vmul.f32 %v11395, %v11394
        %v11397 = vadd.f32 %v11393, %v11396
        %v11398 = vld [vmem:[%s8 + $0xa] sm:$0x1]
        %v11399 = vstv %s11006
        %v11400 = vmul.f32 %v11399, %v11398
        %v11401 = vadd.f32 %v11397, %v11400
        %v11402 = vld [vmem:[%s8 + $0xb] sm:$0x1]
        %v11403 = vstv %s11076
        %v11404 = vmul.f32 %v11403, %v11402
        %v11405 = vadd.f32 %v11401, %v11404
        %v11406 = vld [vmem:[%s8 + $0xc] sm:$0x1]
        %v11407 = vstv %s11146
        %v11408 = vmul.f32 %v11407, %v11406
        %v11409 = vadd.f32 %v11405, %v11408
        %v11410 = vld [vmem:[%s8 + $0xd] sm:$0x1]
        %v11411 = vstv %s11216
        %v11412 = vmul.f32 %v11411, %v11410
        %v11413 = vadd.f32 %v11409, %v11412
        %v11414 = vld [vmem:[%s8 + $0xe] sm:$0x1]
        %v11415 = vstv %s11286
        %v11416 = vmul.f32 %v11415, %v11414
        %v11417 = vadd.f32 %v11413, %v11416
        %v11418 = vld [vmem:[%s8 + $0xf] sm:$0x1]
        %v11419 = vstv %s11356
        %v11420 = vmul.f32 %v11419, %v11418
        %v11421 = vadd.f32 %v11417, %v11420
        %vm11422 = vcmask 73728
        %11423 = vst.msk [vmem:[%s380] sm:$0x1] %vm11422, %v11421
        %s11424 = sand.u32 %s253, 1
        %s11425 = scalar_lea.sflag [#allocation5], %s11424
        %s11426 = sand.u32 %s253, 1
        %s11427 = scalar_lea.vmem [#allocation7], %s11426
        // Predicated region
        $region65: #{mnist_net_forward.1} parent=59 // pred_check
          %p11428 = pneg %p263
        $region66: #{mnist_net_forward.1} parent=59 // pred_check_branch
          %11430 = sbr.rel (%p11428) target = $region68
        $region67: #{mnist_net_forward.1} parent=59 // pred_region
          %s11432 = ssub.s32 16, 16
          %11433 = vsyncadd %s11425, %s11432
          %s11434 = smul.addr %s25, 16
          %s11435 = scalar_lea.hbm %s10, %s11434
          %s11437 = sshll.u32 %s11427, 4
          %s11438 = int_to_ptr.vmem [resolvable:$true] %s11437
          %11440 = dma.vmem_to_hbm [thread:$0]  %s11438, 16, %s11435, %s11425
        $region68: #{mnist_net_forward.1} parent=59 // pred_fallthru
          _
      $region60: #{mnist_net_forward.1} parent=5 // pred_fallthru
        _
      %p11441 = scmp.le.s32.totalorder 2, %s20
      // Predicated region
      $region69: #{mnist_net_forward.1} parent=5 // pred_check
        %p11442 = pneg %p11441
      $region70: #{mnist_net_forward.1} parent=5 // pred_check_branch
        %11444 = sbr.rel (%p11442) target = $region72
      $region71: #{mnist_net_forward.1} parent=5 // pred_region
        %s11445 = ssub.s32 %s20, 2
        // Predicated region
        $region73: #{mnist_net_forward.1} parent=71 // pred_check
          %p11446 = pneg %p269
        $region74: #{mnist_net_forward.1} parent=71 // pred_check_branch
          %11448 = sbr.rel (%p11446) target = $region76
        $region75: #{mnist_net_forward.1} parent=71 // pred_region
          %s11449 = sand.u32 %s254, 1
          %s11450 = scalar_lea.sflag [#allocation5], %s11449
          %s11451 = sand.u32 %s254, 1
          %s11452 = scalar_lea.vmem [#allocation7], %s11451
          %11453 = dma.done %s11450, 16
        $region76: #{mnist_net_forward.1} parent=71 // pred_fallthru
          _
      $region72: #{mnist_net_forward.1} parent=5 // pred_fallthru
        _
    $region6: #{mnist_net_forward.1} parent=1 // loop_footer
      %s24 = sadd.s32 1, %s20
    $region7: #{mnist_net_forward.1} parent=1 // loop_footer_branch
      %19 = sbr.rel target = $region3
    $region8: #{mnist_net_forward.1} parent=1 // loop_exit
      _
    %11454 = vsyncpa [#allocation5], 1
    %s11455 = scalar_lea.sflag [#allocation5], 1
    %11456 = vsyncpa %s11455, 1
    %11457 = vsyncpa [#allocation6], 1
    %s11458 = scalar_lea.sflag [#allocation6], 1
    %11459 = vsyncpa %s11458, 1

</llo_original>
